<compile_context>
chip_gen: v6e
topology: v6e:2x2x1
jax: 0.10.0
libtpu: 0.0.40
codegen_flags: <defaults>
</compile_context>

<pallas_src>
import functools

import jax
import jax.numpy as jnp
from jax import lax
from jax.experimental import pallas as pl
from jax.experimental.pallas import tpu as pltpu

BN_EPS = 1e-5


# ------------------------------------------------------------------ fused 3-stage kernel
def _network_kernel(
    x_ref,
    # EnhanceNetwork weights (banded conv matrices + per-lane bias/gamma/beta)
    e_in_B, e_in_b,
    e_cv_B, e_cv_b, e_cv_g, e_cv_be,
    e_out_B, e_out_b,
    # CalibrateNetwork weights
    c_in_B, c_in_b, c_in_g, c_in_be,
    c1_B, c1_b, c1_g, c1_be,
    c2_B, c2_b, c2_g, c2_be,
    c_out_B, c_out_b,
    # 0/1 channel gather matrices for BN statistics (lane -> channel and back)
    G3, G3t, G16, G16t,
    # outputs: per-stage i_en and att (stage-indexed blocks)
    i_ref, att_ref,
    # scratch: persistent input_op carried across the stage grid axis
    inp_vmem,
    *, N, H, W,
):
    R = N * H

    # Stage 0: initialize the carried input_op with the network input.
    @pl.when(pl.program_id(0) == 0)
    def _():
        inp_vmem[...] = x_ref[...]

    x = x_ref[...].reshape(R, W * 3)          # original network input (lane-dense)
    inp = inp_vmem[...].reshape(R, W * 3)     # current input_op

    # Image-boundary masks for the H-direction conv taps (computed once, shared by all convs).
    rows = lax.broadcasted_iota(jnp.int32, (R, 1), 0)
    row_in_img = rows % H
    first_row = row_in_img == 0               # tap y[h-1] is out of the image here
    last_row = row_in_img == (H - 1)          # tap y[h+1] is out of the image here

    def conv(y, B_ref, bias_ref):
        """3x3 conv as 3 row-shifted banded bf16 MXU matmuls; fp32 accumulation."""
        up = jnp.where(first_row, 0.0, pltpu.roll(y, 1, axis=0)).astype(jnp.bfloat16)
        mid = y.astype(jnp.bfloat16)
        dn = jnp.where(last_row, 0.0, pltpu.roll(y, R - 1, axis=0)).astype(jnp.bfloat16)
        acc = jnp.dot(up, B_ref[0], preferred_element_type=jnp.float32)
        acc = acc + jnp.dot(mid, B_ref[1], preferred_element_type=jnp.float32)
        acc = acc + jnp.dot(dn, B_ref[2], preferred_element_type=jnp.float32)
        return acc + bias_ref[...]

    def bn(z, g_ref, be_ref, G_ref, Gt_ref):
        """Training-mode BatchNorm over (N,H,W) per channel; one pass, lane-dense layout."""
        inv_cnt = 1.0 / float(R * W)
        s1 = jnp.sum(z, axis=0, keepdims=True)
        s2 = jnp.sum(z * z, axis=0, keepdims=True)
        s = jnp.concatenate([s1, s2], axis=0)                               # (2, W*C)
        stats = jnp.dot(s, G_ref[...], preferred_element_type=jnp.float32) * inv_cnt  # (2, C)
        mean_c = stats[0:1]
        var_c = jnp.maximum(stats[1:2] - mean_c * mean_c, 0.0)              # clamp before rsqrt
        inv_c = lax.rsqrt(var_c + BN_EPS)
        mi = jnp.concatenate([mean_c, inv_c], axis=0)                       # (2, C)
        mi_l = jnp.dot(mi, Gt_ref[...], preferred_element_type=jnp.float32)  # (2, W*C)
        return (z - mi_l[0:1]) * (mi_l[1:2] * g_ref[...]) + be_ref[...]

    relu = lambda v: jnp.maximum(v, 0.0)

    # -------------------- EnhanceNetwork(input_op) --------------------
    fea = relu(conv(inp, e_in_B, e_in_b))                                   # in_conv + ReLU
    fea = fea + relu(bn(conv(fea, e_cv_B, e_cv_b), e_cv_g, e_cv_be, G3, G3t))  # 1 residual block
    fea = jax.nn.sigmoid(conv(fea, e_out_B, e_out_b))                       # out_conv + Sigmoid
    illu = jnp.clip(fea + inp, 0.0001, 1.0)                                 # i_en

    r = jnp.clip(x / illu, 0.0, 1.0)

    # -------------------- CalibrateNetwork(r) --------------------
    cf = relu(bn(conv(r, c_in_B, c_in_b), c_in_g, c_in_be, G16, G16t))

    def cal_block(_, fcf):                    # 3 residual blocks, SHARED conv1/conv2 weights
        t = relu(bn(conv(fcf, c1_B, c1_b), c1_g, c1_be, G16, G16t))
        t = relu(bn(conv(t, c2_B, c2_b), c2_g, c2_be, G16, G16t))
        return fcf + t

    cf = lax.fori_loop(0, 3, cal_block, cf, unroll=True)
    out = jax.nn.sigmoid(conv(cf, c_out_B, c_out_b))                        # out_conv + Sigmoid
    att = r - out                                                           # delta

    # -------------------- stage epilogue --------------------
    i_ref[...] = illu.reshape(1, N, H, W * 3)
    att_ref[...] = att.reshape(1, N, H, W * 3)
    inp_vmem[...] = (x + att).reshape(N, H, W * 3)                          # input_op for next stage


# ------------------------------------------------------------------ wrapper-side weight prep
def _prep_conv(layer, Wdim, with_bn):
    """(3,3,Cin,Cout) conv weight -> 3 banded bf16 (W*Cin, W*Cout) matrices (one per dy).

    B[dy, w'*Cin + ci, w*Cout + co] = weight[dy, dx, ci, co] with w' = w + dx - 1 (in range);
    out-of-range W taps are omitted (== zero padding in W). Bias / BN affine params are tiled
    to per-lane f32 vectors of length W*Cout.
    """
    w = layer["w"]
    Cin, Cout = w.shape[2], w.shape[3]
    E = jnp.stack([jnp.eye(Wdim, Wdim, k=1 - dx, dtype=jnp.float32) for dx in range(3)])
    B = jnp.einsum("xab,yxij->yaibj", E, w).reshape(3, Wdim * Cin, Wdim * Cout)
    B = B.astype(jnp.bfloat16)
    b_l = jnp.tile(layer["b"], Wdim).reshape(1, Wdim * Cout)
    if not with_bn:
        return (B, b_l)
    g_l = jnp.tile(layer["gamma"], Wdim).reshape(1, Wdim * Cout)
    be_l = jnp.tile(layer["beta"], Wdim).reshape(1, Wdim * Cout)
    return (B, b_l, g_l, be_l)


def _chan_gather(C, Wdim):
    """0/1 matrix mapping lane index (w*C + c) -> channel c, and its transpose."""
    lane_c = jnp.arange(Wdim * C) % C
    G = (lane_c[:, None] == jnp.arange(C)[None, :]).astype(jnp.float32)   # (W*C, C)
    return G, G.T


def prepare_weights(params, W):
    """Run ONCE at init time (hoisted out of the jitted forward)."""
    e, c = params["enhance"], params["calibrate"]
    G3, G3t = _chan_gather(3, W)
    G16, G16t = _chan_gather(16, W)
    return (
        *_prep_conv(e["in_conv"], W, False),
        *_prep_conv(e["conv"], W, True),
        *_prep_conv(e["out_conv"], W, False),
        *_prep_conv(c["in_conv"], W, True),
        *_prep_conv(c["conv1"], W, True),
        *_prep_conv(c["conv2"], W, True),
        *_prep_conv(c["out_conv"], W, False),
        G3, G3t, G16, G16t,
    )


# ------------------------------------------------------------------ parameters
def _init_layer(key, cin, cout):
    kw, kb, kg = jax.random.split(key, 3)
    return dict(
        w=0.02 * jax.random.normal(kw, (3, 3, cin, cout), jnp.float32),
        b=0.01 * jax.random.normal(kb, (cout,), jnp.float32),
        gamma=1.0 + 0.02 * jax.random.normal(kg, (cout,), jnp.float32),
        beta=jnp.zeros((cout,), jnp.float32),
    )


def init_params(key):
    ks = jax.random.split(key, 6)
    enhance = {                       # EnhanceNetwork(layers=1, channels=3)
        "in_conv": _init_layer(ks[0], 3, 3),
        "conv": _init_layer(ks[1], 3, 3),
        "out_conv": _init_layer(ks[2], 3, 3),
    }
    calibrate = {                     # CalibrateNetwork(layers=3, channels=16)
        "in_conv": _init_layer(ks[3], 3, 16),
        "conv1": _init_layer(ks[4], 16, 16),   # shared across all 3 blocks
        "conv2": _init_layer(ks[5], 16, 16),   # shared across all 3 blocks
        "out_conv": _init_layer(jax.random.fold_in(ks[5], 7), 16, 3),
    }
    return {"enhance": enhance, "calibrate": calibrate}


# ------------------------------------------------------------------ forward
def network_forward(prepped, x_nchw, stage=3):
    """Network.forward: returns (ilist, rlist, inlist, attlist), lists of NCHW arrays."""
    N, C, H, W = x_nchw.shape
    assert C == 3
    x_l = jnp.transpose(x_nchw.astype(jnp.float32), (0, 2, 3, 1)).reshape(N, H, W * 3)

    def resident_spec(a):
        nd = a.ndim
        return pl.BlockSpec(a.shape, lambda s, _nd=nd: (0,) * _nd)   # constant -> DMA'd once

    in_specs = [pl.BlockSpec((N, H, W * 3), lambda s: (0, 0, 0))]
    in_specs += [resident_spec(a) for a in prepped]

    out_sd = jax.ShapeDtypeStruct((stage, N, H, W * 3), jnp.float32)
    out_specs = [pl.BlockSpec((1, N, H, W * 3), lambda s: (s, 0, 0, 0)),
                 pl.BlockSpec((1, N, H, W * 3), lambda s: (s, 0, 0, 0))]

    # Cost estimate + VMEM budget sized from the actual buffers.
    R = N * H
    conv_dims = [(3, 3)] * 3 + [(3, 16)] + [(16, 16)] * 6 + [(16, 3)]
    flops = stage * sum(2 * R * 3 * (W * ci) * (W * co) for ci, co in conv_dims)
    transcendentals = stage * (2 * R * W * 3 + 8 * (W * 16 + 16))
    w_bytes = sum(int(a.size) * jnp.dtype(a.dtype).itemsize for a in prepped)
    io_bytes = (1 + 2 * stage) * N * H * W * 3 * 4
    act_bytes = 24 * R * W * 16 * 4
    vmem_limit = int(min(64 << 20, max(16 << 20, 2 * (w_bytes + act_bytes) + io_bytes)))

    fused = pl.pallas_call(
        functools.partial(_network_kernel, N=N, H=H, W=W),
        out_shape=(out_sd, out_sd),
        grid_spec=pltpu.PrefetchScalarGridSpec(
            num_scalar_prefetch=0,
            grid=(stage,),
            in_specs=in_specs,
            out_specs=out_specs,
            scratch_shapes=[pltpu.VMEM((N, H, W * 3), jnp.float32)],
        ),
        compiler_params=pltpu.CompilerParams(
            dimension_semantics=("arbitrary",),      # stage axis carries scratch state
            vmem_limit_bytes=vmem_limit,
        ),
        cost_estimate=pl.CostEstimate(
            flops=flops, transcendentals=transcendentals,
            bytes_accessed=w_bytes + io_bytes),
    )

    i_all, att_all = fused(x_l, *prepped)

    # Recompute r / |att| / next input_op wrapper-side with the exact same fp ops as the kernel
    # (fewer narrow store streams out of the kernel; results are identical).
    ilist, rlist, inlist, attlist = [], [], [], []
    inp = x_l
    for s in range(stage):
        illu = i_all[s]
        att = att_all[s]
        inlist.append(inp)
        ilist.append(illu)
        rlist.append(jnp.clip(x_l / illu, 0.0, 1.0))
        attlist.append(jnp.abs(att))
        inp = x_l + att

    def to_nchw(lst):
        return [a.reshape(N, H, W, 3).transpose(0, 3, 1, 2) for a in lst]

    return to_nchw(ilist), to_nchw(rlist), to_nchw(inlist), to_nchw(attlist)


# ------------------------------------------------------------------ main
if __name__ == "__main__":
    key = jax.random.PRNGKey(0)
    kp, kx = jax.random.split(key)
    params = init_params(kp)
    # Small NCHW input, values in (0, 1] like a low-light image.
    x = jax.random.uniform(kx, (2, 3, 16, 16), jnp.float32, minval=0.05, maxval=1.0)

    prepped = prepare_weights(params, x.shape[3])       # once, outside the jitted forward
    fwd = jax.jit(network_forward, static_argnames="stage")
    ilist, rlist, inlist, attlist = fwd(prepped, x, stage=3)
    jax.block_until_ready((ilist, rlist, inlist, attlist))

    # sanity: shapes / ranges match PyTorch semantics (stage lists of N,C,H,W tensors)
    assert len(ilist) == 3 and ilist[0].shape == (2, 3, 16, 16)
    assert rlist[0].shape == (2, 3, 16, 16) and attlist[0].shape == (2, 3, 16, 16)
    assert inlist[0].shape == (2, 3, 16, 16)
    assert bool(jnp.all(jnp.isfinite(ilist[-1]))) and bool(jnp.all(jnp.isfinite(attlist[-1])))
    assert bool(jnp.all(ilist[0] >= 0.0001)) and bool(jnp.all(ilist[0] <= 1.0))
    assert bool(jnp.all(rlist[0] >= 0.0)) and bool(jnp.all(rlist[0] <= 1.0))
    assert bool(jnp.all(attlist[0] >= 0.0))
    print("KERNEL_OK")
</pallas_src>

<mosaic_0001>
module attributes {stable_mosaic.version = 11 : i64} {
  func.func @_network_kernel(%arg0: i32, %arg1: memref<2x16x48xf32, #tpu.memory_space<vmem>>, %arg2: memref<3x48x48xbf16, #tpu.memory_space<vmem>>, %arg3: memref<1x48xf32, #tpu.memory_space<vmem>>, %arg4: memref<3x48x48xbf16, #tpu.memory_space<vmem>>, %arg5: memref<1x48xf32, #tpu.memory_space<vmem>>, %arg6: memref<1x48xf32, #tpu.memory_space<vmem>>, %arg7: memref<1x48xf32, #tpu.memory_space<vmem>>, %arg8: memref<3x48x48xbf16, #tpu.memory_space<vmem>>, %arg9: memref<1x48xf32, #tpu.memory_space<vmem>>, %arg10: memref<3x48x256xbf16, #tpu.memory_space<vmem>>, %arg11: memref<1x256xf32, #tpu.memory_space<vmem>>, %arg12: memref<1x256xf32, #tpu.memory_space<vmem>>, %arg13: memref<1x256xf32, #tpu.memory_space<vmem>>, %arg14: memref<3x256x256xbf16, #tpu.memory_space<vmem>>, %arg15: memref<1x256xf32, #tpu.memory_space<vmem>>, %arg16: memref<1x256xf32, #tpu.memory_space<vmem>>, %arg17: memref<1x256xf32, #tpu.memory_space<vmem>>, %arg18: memref<3x256x256xbf16, #tpu.memory_space<vmem>>, %arg19: memref<1x256xf32, #tpu.memory_space<vmem>>, %arg20: memref<1x256xf32, #tpu.memory_space<vmem>>, %arg21: memref<1x256xf32, #tpu.memory_space<vmem>>, %arg22: memref<3x256x48xbf16, #tpu.memory_space<vmem>>, %arg23: memref<1x48xf32, #tpu.memory_space<vmem>>, %arg24: memref<48x3xf32, #tpu.memory_space<vmem>>, %arg25: memref<3x48xf32, #tpu.memory_space<vmem>>, %arg26: memref<256x16xf32, #tpu.memory_space<vmem>>, %arg27: memref<16x256xf32, #tpu.memory_space<vmem>>, %arg28: memref<1x2x16x48xf32, #tpu.memory_space<vmem>>, %arg29: memref<1x2x16x48xf32, #tpu.memory_space<vmem>>, %arg30: memref<2x16x48xf32, #tpu.memory_space<vmem>>) attributes {dimension_semantics = [#tpu.dimension_semantics<arbitrary>], iteration_bounds = array<i64: 3>, scalar_prefetch = 0 : i64, scratch_operands = 1 : i64, tpu.core_type = #tpu.core_type<tc>, window_params = [{pipeline_mode = #tpu.pipeline_mode<synchronous>, transform_indices = @transform_0, window_bounds = array<i64: 2, 16, 48>}, {pipeline_mode = #tpu.pipeline_mode<synchronous>, transform_indices = @transform_1, window_bounds = array<i64: 3, 48, 48>}, {pipeline_mode = #tpu.pipeline_mode<synchronous>, transform_indices = @transform_2, window_bounds = array<i64: 1, 48>}, {pipeline_mode = #tpu.pipeline_mode<synchronous>, transform_indices = @transform_3, window_bounds = array<i64: 3, 48, 48>}, {pipeline_mode = #tpu.pipeline_mode<synchronous>, transform_indices = @transform_4, window_bounds = array<i64: 1, 48>}, {pipeline_mode = #tpu.pipeline_mode<synchronous>, transform_indices = @transform_5, window_bounds = array<i64: 1, 48>}, {pipeline_mode = #tpu.pipeline_mode<synchronous>, transform_indices = @transform_6, window_bounds = array<i64: 1, 48>}, {pipeline_mode = #tpu.pipeline_mode<synchronous>, transform_indices = @transform_7, window_bounds = array<i64: 3, 48, 48>}, {pipeline_mode = #tpu.pipeline_mode<synchronous>, transform_indices = @transform_8, window_bounds = array<i64: 1, 48>}, {pipeline_mode = #tpu.pipeline_mode<synchronous>, transform_indices = @transform_9, window_bounds = array<i64: 3, 48, 256>}, {pipeline_mode = #tpu.pipeline_mode<synchronous>, transform_indices = @transform_10, window_bounds = array<i64: 1, 256>}, {pipeline_mode = #tpu.pipeline_mode<synchronous>, transform_indices = @transform_11, window_bounds = array<i64: 1, 256>}, {pipeline_mode = #tpu.pipeline_mode<synchronous>, transform_indices = @transform_12, window_bounds = array<i64: 1, 256>}, {pipeline_mode = #tpu.pipeline_mode<synchronous>, transform_indices = @transform_13, window_bounds = array<i64: 3, 256, 256>}, {pipeline_mode = #tpu.pipeline_mode<synchronous>, transform_indices = @transform_14, window_bounds = array<i64: 1, 256>}, {pipeline_mode = #tpu.pipeline_mode<synchronous>, transform_indices = @transform_15, window_bounds = array<i64: 1, 256>}, {pipeline_mode = #tpu.pipeline_mode<synchronous>, transform_indices = @transform_16, window_bounds = array<i64: 1, 256>}, {pipeline_mode = #tpu.pipeline_mode<synchronous>, transform_indices = @transform_17, window_bounds = array<i64: 3, 256, 256>}, {pipeline_mode = #tpu.pipeline_mode<synchronous>, transform_indices = @transform_18, window_bounds = array<i64: 1, 256>}, {pipeline_mode = #tpu.pipeline_mode<synchronous>, transform_indices = @transform_19, window_bounds = array<i64: 1, 256>}, {pipeline_mode = #tpu.pipeline_mode<synchronous>, transform_indices = @transform_20, window_bounds = array<i64: 1, 256>}, {pipeline_mode = #tpu.pipeline_mode<synchronous>, transform_indices = @transform_21, window_bounds = array<i64: 3, 256, 48>}, {pipeline_mode = #tpu.pipeline_mode<synchronous>, transform_indices = @transform_22, window_bounds = array<i64: 1, 48>}, {pipeline_mode = #tpu.pipeline_mode<synchronous>, transform_indices = @transform_23, window_bounds = array<i64: 48, 3>}, {pipeline_mode = #tpu.pipeline_mode<synchronous>, transform_indices = @transform_24, window_bounds = array<i64: 3, 48>}, {pipeline_mode = #tpu.pipeline_mode<synchronous>, transform_indices = @transform_25, window_bounds = array<i64: 256, 16>}, {pipeline_mode = #tpu.pipeline_mode<synchronous>, transform_indices = @transform_26, window_bounds = array<i64: 16, 256>}, {transform_indices = @transform_27, window_bounds = array<i64: 1, 2, 16, 48>}, {transform_indices = @transform_28, window_bounds = array<i64: 1, 2, 16, 48>}]} {
    %c0_i32 = arith.constant 0 : i32
    %0 = arith.cmpi eq, %arg0, %c0_i32 : i32
    %1 = arith.extui %0 : i1 to i32
    %c0_i32_0 = arith.constant 0 : i32
    %2 = arith.cmpi ne, %1, %c0_i32_0 : i32
    scf.if %2 {
      %c0_353 = arith.constant 0 : index
      %c0_354 = arith.constant 0 : index
      %c0_355 = arith.constant 0 : index
      %639 = vector.load %arg1[%c0_353, %c0_354, %c0_355] : memref<2x16x48xf32, #tpu.memory_space<vmem>>, vector<2x16x48xf32>
      %c0_356 = arith.constant 0 : index
      %c0_357 = arith.constant 0 : index
      %c0_358 = arith.constant 0 : index
      %640 = vector.load %arg30[%c0_356, %c0_357, %c0_358] : memref<2x16x48xf32, #tpu.memory_space<vmem>>, vector<2x16x48xf32>
      tpu.vector_store %arg30[%c0_356, %c0_357, %c0_358], %639 {strides = array<i32>} : memref<2x16x48xf32, #tpu.memory_space<vmem>>, vector<2x16x48xf32>,
    } else {
    }
    %c0 = arith.constant 0 : index
    %c0_1 = arith.constant 0 : index
    %c0_2 = arith.constant 0 : index
    %3 = vector.load %arg1[%c0, %c0_1, %c0_2] : memref<2x16x48xf32, #tpu.memory_space<vmem>>, vector<2x16x48xf32>
    %4 = vector.shape_cast %3 : vector<2x16x48xf32> to vector<32x48xf32>
    %c0_3 = arith.constant 0 : index
    %c0_4 = arith.constant 0 : index
    %c0_5 = arith.constant 0 : index
    %5 = vector.load %arg30[%c0_3, %c0_4, %c0_5] : memref<2x16x48xf32, #tpu.memory_space<vmem>>, vector<2x16x48xf32>
    %6 = vector.shape_cast %5 : vector<2x16x48xf32> to vector<32x48xf32>
    %7 = tpu.iota {dimensions = array<i32: 0>} : vector<32x1xi32>
    %c16_i32 = arith.constant 16 : i32
    %c0_i32_6 = arith.constant 0 : i32
    %8 = arith.cmpi eq, %c16_i32, %c0_i32_6 : i32
    %c1_i32 = arith.constant 1 : i32
    %9 = arith.select %8, %c1_i32, %c16_i32 : i32
    %10 = vector.broadcast %9 : i32 to vector<32x1xi32>
    %11 = arith.remsi %7, %10 : vector<32x1xi32>
    %c0_i32_7 = arith.constant 0 : i32
    %12 = vector.broadcast %c0_i32_7 : i32 to vector<32x1xi32>
    %13 = arith.cmpi ne, %11, %12 : vector<32x1xi32>
    %c0_i32_8 = arith.constant 0 : i32
    %14 = vector.broadcast %c0_i32_8 : i32 to vector<32x1xi32>
    %15 = arith.cmpi slt, %11, %14 : vector<32x1xi32>
    %c0_i32_9 = arith.constant 0 : i32
    %16 = arith.cmpi slt, %9, %c0_i32_9 : i32
    %17 = vector.broadcast %16 : i1 to vector<32x1xi1>
    %18 = vector.broadcast %17 : vector<32x1xi1> to vector<32x1xi1>
    %19 = arith.xori %15, %18 : vector<32x1xi1>
    %20 = arith.andi %19, %13 : vector<32x1xi1>
    %21 = vector.broadcast %9 : i32 to vector<32x1xi32>
    %22 = arith.addi %11, %21 : vector<32x1xi32>
    %23 = arith.select %20, %22, %11 : vector<32x1xi1>, vector<32x1xi32>
    %c0_i32_10 = arith.constant 0 : i32
    %24 = vector.broadcast %c0_i32_10 : i32 to vector<32x1xi32>
    %25 = arith.cmpi eq, %23, %24 : vector<32x1xi32>
    %c15_i32 = arith.constant 15 : i32
    %26 = vector.broadcast %c15_i32 : i32 to vector<32x1xi32>
    %27 = arith.cmpi eq, %23, %26 : vector<32x1xi32>
    %c1_i32_11 = arith.constant 1 : i32
    %28 = tpu.dynamic_rotate %6 by %c1_i32_11 dim 0 : vector<32x48xf32>, i32 -> vector<32x48xf32>
    %cst = arith.constant 0.000000e+00 : f32
    %29 = vector.shape_cast %25 : vector<32x1xi1> to vector<32x1xi1>
    %30 = vector.broadcast %29 : vector<32x1xi1> to vector<32x48xi1>
    %31 = vector.broadcast %cst : f32 to vector<32x48xf32>
    %32 = arith.select %30, %31, %28 : vector<32x48xi1>, vector<32x48xf32>
    %33 = arith.truncf %32 : vector<32x48xf32> to vector<32x48xbf16>
    %34 = arith.truncf %6 : vector<32x48xf32> to vector<32x48xbf16>
    %c31_i32 = arith.constant 31 : i32
    %35 = tpu.dynamic_rotate %6 by %c31_i32 dim 0 : vector<32x48xf32>, i32 -> vector<32x48xf32>
    %cst_12 = arith.constant 0.000000e+00 : f32
    %36 = vector.shape_cast %27 : vector<32x1xi1> to vector<32x1xi1>
    %37 = vector.broadcast %36 : vector<32x1xi1> to vector<32x48xi1>
    %38 = vector.broadcast %cst_12 : f32 to vector<32x48xf32>
    %39 = arith.select %37, %38, %35 : vector<32x48xi1>, vector<32x48xf32>
    %40 = arith.truncf %39 : vector<32x48xf32> to vector<32x48xbf16>
    %c0_13 = arith.constant 0 : index
    %c0_14 = arith.constant 0 : index
    %c0_15 = arith.constant 0 : index
    %41 = vector.load %arg2[%c0_13, %c0_14, %c0_15] : memref<3x48x48xbf16, #tpu.memory_space<vmem>>, vector<1x48x48xbf16>
    %42 = vector.shape_cast %41 : vector<1x48x48xbf16> to vector<48x48xbf16>
    %cst_16 = arith.constant dense<0.000000e+00> : vector<32x48xf32>
    %43 = tpu.matmul %33, %42, %cst_16 {dimension_numbers = #tpu.dot_dimension_numbers<[1], [0], [0], [1], [0, 0, 1, 1], [], []>} : vector<32x48xbf16>, vector<48x48xbf16>, vector<32x48xf32> -> vector<32x48xf32>
    %c1 = arith.constant 1 : index
    %c0_17 = arith.constant 0 : index
    %c0_18 = arith.constant 0 : index
    %44 = vector.load %arg2[%c1, %c0_17, %c0_18] : memref<3x48x48xbf16, #tpu.memory_space<vmem>>, vector<1x48x48xbf16>
    %45 = vector.shape_cast %44 : vector<1x48x48xbf16> to vector<48x48xbf16>
    %cst_19 = arith.constant dense<0.000000e+00> : vector<32x48xf32>
    %46 = tpu.matmul %34, %45, %cst_19 {dimension_numbers = #tpu.dot_dimension_numbers<[1], [0], [0], [1], [0, 0, 1, 1], [], []>} : vector<32x48xbf16>, vector<48x48xbf16>, vector<32x48xf32> -> vector<32x48xf32>
    %47 = arith.addf %43, %46 : vector<32x48xf32>
    %c2 = arith.constant 2 : index
    %c0_20 = arith.constant 0 : index
    %c0_21 = arith.constant 0 : index
    %48 = vector.load %arg2[%c2, %c0_20, %c0_21] : memref<3x48x48xbf16, #tpu.memory_space<vmem>>, vector<1x48x48xbf16>
    %49 = vector.shape_cast %48 : vector<1x48x48xbf16> to vector<48x48xbf16>
    %cst_22 = arith.constant dense<0.000000e+00> : vector<32x48xf32>
    %50 = tpu.matmul %40, %49, %cst_22 {dimension_numbers = #tpu.dot_dimension_numbers<[1], [0], [0], [1], [0, 0, 1, 1], [], []>} : vector<32x48xbf16>, vector<48x48xbf16>, vector<32x48xf32> -> vector<32x48xf32>
    %51 = arith.addf %47, %50 : vector<32x48xf32>
    %c0_23 = arith.constant 0 : index
    %c0_24 = arith.constant 0 : index
    %52 = vector.load %arg3[%c0_23, %c0_24] : memref<1x48xf32, #tpu.memory_space<vmem>>, vector<1x48xf32>
    %53 = vector.broadcast %52 : vector<1x48xf32> to vector<32x48xf32>
    %54 = arith.addf %51, %53 : vector<32x48xf32>
    %cst_25 = arith.constant 0.000000e+00 : f32
    %55 = vector.broadcast %cst_25 : f32 to vector<32x48xf32>
    %56 = arith.maximumf %54, %55 : vector<32x48xf32>
    %c1_i32_26 = arith.constant 1 : i32
    %57 = tpu.dynamic_rotate %56 by %c1_i32_26 dim 0 : vector<32x48xf32>, i32 -> vector<32x48xf32>
    %cst_27 = arith.constant 0.000000e+00 : f32
    %58 = vector.shape_cast %25 : vector<32x1xi1> to vector<32x1xi1>
    %59 = vector.broadcast %58 : vector<32x1xi1> to vector<32x48xi1>
    %60 = vector.broadcast %cst_27 : f32 to vector<32x48xf32>
    %61 = arith.select %59, %60, %57 : vector<32x48xi1>, vector<32x48xf32>
    %62 = arith.truncf %61 : vector<32x48xf32> to vector<32x48xbf16>
    %63 = arith.truncf %56 : vector<32x48xf32> to vector<32x48xbf16>
    %c31_i32_28 = arith.constant 31 : i32
    %64 = tpu.dynamic_rotate %56 by %c31_i32_28 dim 0 : vector<32x48xf32>, i32 -> vector<32x48xf32>
    %cst_29 = arith.constant 0.000000e+00 : f32
    %65 = vector.shape_cast %27 : vector<32x1xi1> to vector<32x1xi1>
    %66 = vector.broadcast %65 : vector<32x1xi1> to vector<32x48xi1>
    %67 = vector.broadcast %cst_29 : f32 to vector<32x48xf32>
    %68 = arith.select %66, %67, %64 : vector<32x48xi1>, vector<32x48xf32>
    %69 = arith.truncf %68 : vector<32x48xf32> to vector<32x48xbf16>
    %c0_30 = arith.constant 0 : index
    %c0_31 = arith.constant 0 : index
    %c0_32 = arith.constant 0 : index
    %70 = vector.load %arg4[%c0_30, %c0_31, %c0_32] : memref<3x48x48xbf16, #tpu.memory_space<vmem>>, vector<1x48x48xbf16>
    %71 = vector.shape_cast %70 : vector<1x48x48xbf16> to vector<48x48xbf16>
    %cst_33 = arith.constant dense<0.000000e+00> : vector<32x48xf32>
    %72 = tpu.matmul %62, %71, %cst_33 {dimension_numbers = #tpu.dot_dimension_numbers<[1], [0], [0], [1], [0, 0, 1, 1], [], []>} : vector<32x48xbf16>, vector<48x48xbf16>, vector<32x48xf32> -> vector<32x48xf32>
    %c1_34 = arith.constant 1 : index
    %c0_35 = arith.constant 0 : index
    %c0_36 = arith.constant 0 : index
    %73 = vector.load %arg4[%c1_34, %c0_35, %c0_36] : memref<3x48x48xbf16, #tpu.memory_space<vmem>>, vector<1x48x48xbf16>
    %74 = vector.shape_cast %73 : vector<1x48x48xbf16> to vector<48x48xbf16>
    %cst_37 = arith.constant dense<0.000000e+00> : vector<32x48xf32>
    %75 = tpu.matmul %63, %74, %cst_37 {dimension_numbers = #tpu.dot_dimension_numbers<[1], [0], [0], [1], [0, 0, 1, 1], [], []>} : vector<32x48xbf16>, vector<48x48xbf16>, vector<32x48xf32> -> vector<32x48xf32>
    %76 = arith.addf %72, %75 : vector<32x48xf32>
    %c2_38 = arith.constant 2 : index
    %c0_39 = arith.constant 0 : index
    %c0_40 = arith.constant 0 : index
    %77 = vector.load %arg4[%c2_38, %c0_39, %c0_40] : memref<3x48x48xbf16, #tpu.memory_space<vmem>>, vector<1x48x48xbf16>
    %78 = vector.shape_cast %77 : vector<1x48x48xbf16> to vector<48x48xbf16>
    %cst_41 = arith.constant dense<0.000000e+00> : vector<32x48xf32>
    %79 = tpu.matmul %69, %78, %cst_41 {dimension_numbers = #tpu.dot_dimension_numbers<[1], [0], [0], [1], [0, 0, 1, 1], [], []>} : vector<32x48xbf16>, vector<48x48xbf16>, vector<32x48xf32> -> vector<32x48xf32>
    %80 = arith.addf %76, %79 : vector<32x48xf32>
    %c0_42 = arith.constant 0 : index
    %c0_43 = arith.constant 0 : index
    %81 = vector.load %arg5[%c0_42, %c0_43] : memref<1x48xf32, #tpu.memory_space<vmem>>, vector<1x48xf32>
    %82 = vector.broadcast %81 : vector<1x48xf32> to vector<32x48xf32>
    %83 = arith.addf %80, %82 : vector<32x48xf32>
    %cst_44 = arith.constant dense<0.000000e+00> : vector<48xf32>
    %84 = vector.multi_reduction <add>, %83, %cst_44 [0] : vector<32x48xf32> to vector<48xf32>
    %85 = vector.shape_cast %84 : vector<48xf32> to vector<1x48xf32>
    %86 = arith.mulf %83, %83 : vector<32x48xf32>
    %cst_45 = arith.constant dense<0.000000e+00> : vector<48xf32>
    %87 = vector.multi_reduction <add>, %86, %cst_45 [0] : vector<32x48xf32> to vector<48xf32>
    %88 = vector.shape_cast %87 : vector<48xf32> to vector<1x48xf32>
    %89 = tpu.concatenate %85, %88 in 0 : vector<1x48xf32>, vector<1x48xf32> -> vector<2x48xf32>
    %c0_46 = arith.constant 0 : index
    %c0_47 = arith.constant 0 : index
    %90 = vector.load %arg24[%c0_46, %c0_47] : memref<48x3xf32, #tpu.memory_space<vmem>>, vector<48x3xf32>
    %cst_48 = arith.constant dense<0.000000e+00> : vector<2x3xf32>
    %91 = tpu.matmul %89, %90, %cst_48 {dimension_numbers = #tpu.dot_dimension_numbers<[1], [0], [0], [1], [0, 0, 1, 1], [], []>} : vector<2x48xf32>, vector<48x3xf32>, vector<2x3xf32> -> vector<2x3xf32>
    %cst_49 = arith.constant 0.001953125 : f32
    %92 = vector.broadcast %cst_49 : f32 to vector<2x3xf32>
    %93 = arith.mulf %91, %92 : vector<2x3xf32>
    %94 = vector.extract_strided_slice %93 {offsets = [0, 0], sizes = [1, 3], strides = [1, 1]} : vector<2x3xf32> to vector<1x3xf32>
    %95 = vector.extract_strided_slice %93 {offsets = [1, 0], sizes = [1, 3], strides = [1, 1]} : vector<2x3xf32> to vector<1x3xf32>
    %96 = arith.mulf %94, %94 : vector<1x3xf32>
    %97 = arith.subf %95, %96 : vector<1x3xf32>
    %cst_50 = arith.constant 0.000000e+00 : f32
    %98 = vector.broadcast %cst_50 : f32 to vector<1x3xf32>
    %99 = arith.maximumf %97, %98 : vector<1x3xf32>
    %cst_51 = arith.constant 9.99999974E-6 : f32
    %100 = vector.broadcast %cst_51 : f32 to vector<1x3xf32>
    %101 = arith.addf %99, %100 : vector<1x3xf32>
    %102 = math.rsqrt %101 : vector<1x3xf32>
    %103 = tpu.concatenate %94, %102 in 0 : vector<1x3xf32>, vector<1x3xf32> -> vector<2x3xf32>
    %c0_52 = arith.constant 0 : index
    %c0_53 = arith.constant 0 : index
    %104 = vector.load %arg25[%c0_52, %c0_53] : memref<3x48xf32, #tpu.memory_space<vmem>>, vector<3x48xf32>
    %cst_54 = arith.constant dense<0.000000e+00> : vector<2x48xf32>
    %105 = tpu.matmul %103, %104, %cst_54 {dimension_numbers = #tpu.dot_dimension_numbers<[1], [0], [0], [1], [0, 0, 1, 1], [], []>} : vector<2x3xf32>, vector<3x48xf32>, vector<2x48xf32> -> vector<2x48xf32>
    %106 = vector.extract_strided_slice %105 {offsets = [0, 0], sizes = [1, 48], strides = [1, 1]} : vector<2x48xf32> to vector<1x48xf32>
    %107 = vector.broadcast %106 : vector<1x48xf32> to vector<32x48xf32>
    %108 = arith.subf %83, %107 : vector<32x48xf32>
    %109 = vector.extract_strided_slice %105 {offsets = [1, 0], sizes = [1, 48], strides = [1, 1]} : vector<2x48xf32> to vector<1x48xf32>
    %c0_55 = arith.constant 0 : index
    %c0_56 = arith.constant 0 : index
    %110 = vector.load %arg6[%c0_55, %c0_56] : memref<1x48xf32, #tpu.memory_space<vmem>>, vector<1x48xf32>
    %111 = arith.mulf %109, %110 : vector<1x48xf32>
    %112 = vector.broadcast %111 : vector<1x48xf32> to vector<32x48xf32>
    %113 = arith.mulf %108, %112 : vector<32x48xf32>
    %c0_57 = arith.constant 0 : index
    %c0_58 = arith.constant 0 : index
    %114 = vector.load %arg7[%c0_57, %c0_58] : memref<1x48xf32, #tpu.memory_space<vmem>>, vector<1x48xf32>
    %115 = vector.broadcast %114 : vector<1x48xf32> to vector<32x48xf32>
    %116 = arith.addf %113, %115 : vector<32x48xf32>
    %cst_59 = arith.constant 0.000000e+00 : f32
    %117 = vector.broadcast %cst_59 : f32 to vector<32x48xf32>
    %118 = arith.maximumf %116, %117 : vector<32x48xf32>
    %119 = arith.addf %56, %118 : vector<32x48xf32>
    %c1_i32_60 = arith.constant 1 : i32
    %120 = tpu.dynamic_rotate %119 by %c1_i32_60 dim 0 : vector<32x48xf32>, i32 -> vector<32x48xf32>
    %cst_61 = arith.constant 0.000000e+00 : f32
    %121 = vector.shape_cast %25 : vector<32x1xi1> to vector<32x1xi1>
    %122 = vector.broadcast %121 : vector<32x1xi1> to vector<32x48xi1>
    %123 = vector.broadcast %cst_61 : f32 to vector<32x48xf32>
    %124 = arith.select %122, %123, %120 : vector<32x48xi1>, vector<32x48xf32>
    %125 = arith.truncf %124 : vector<32x48xf32> to vector<32x48xbf16>
    %126 = arith.truncf %119 : vector<32x48xf32> to vector<32x48xbf16>
    %c31_i32_62 = arith.constant 31 : i32
    %127 = tpu.dynamic_rotate %119 by %c31_i32_62 dim 0 : vector<32x48xf32>, i32 -> vector<32x48xf32>
    %cst_63 = arith.constant 0.000000e+00 : f32
    %128 = vector.shape_cast %27 : vector<32x1xi1> to vector<32x1xi1>
    %129 = vector.broadcast %128 : vector<32x1xi1> to vector<32x48xi1>
    %130 = vector.broadcast %cst_63 : f32 to vector<32x48xf32>
    %131 = arith.select %129, %130, %127 : vector<32x48xi1>, vector<32x48xf32>
    %132 = arith.truncf %131 : vector<32x48xf32> to vector<32x48xbf16>
    %c0_64 = arith.constant 0 : index
    %c0_65 = arith.constant 0 : index
    %c0_66 = arith.constant 0 : index
    %133 = vector.load %arg8[%c0_64, %c0_65, %c0_66] : memref<3x48x48xbf16, #tpu.memory_space<vmem>>, vector<1x48x48xbf16>
    %134 = vector.shape_cast %133 : vector<1x48x48xbf16> to vector<48x48xbf16>
    %cst_67 = arith.constant dense<0.000000e+00> : vector<32x48xf32>
    %135 = tpu.matmul %125, %134, %cst_67 {dimension_numbers = #tpu.dot_dimension_numbers<[1], [0], [0], [1], [0, 0, 1, 1], [], []>} : vector<32x48xbf16>, vector<48x48xbf16>, vector<32x48xf32> -> vector<32x48xf32>
    %c1_68 = arith.constant 1 : index
    %c0_69 = arith.constant 0 : index
    %c0_70 = arith.constant 0 : index
    %136 = vector.load %arg8[%c1_68, %c0_69, %c0_70] : memref<3x48x48xbf16, #tpu.memory_space<vmem>>, vector<1x48x48xbf16>
    %137 = vector.shape_cast %136 : vector<1x48x48xbf16> to vector<48x48xbf16>
    %cst_71 = arith.constant dense<0.000000e+00> : vector<32x48xf32>
    %138 = tpu.matmul %126, %137, %cst_71 {dimension_numbers = #tpu.dot_dimension_numbers<[1], [0], [0], [1], [0, 0, 1, 1], [], []>} : vector<32x48xbf16>, vector<48x48xbf16>, vector<32x48xf32> -> vector<32x48xf32>
    %139 = arith.addf %135, %138 : vector<32x48xf32>
    %c2_72 = arith.constant 2 : index
    %c0_73 = arith.constant 0 : index
    %c0_74 = arith.constant 0 : index
    %140 = vector.load %arg8[%c2_72, %c0_73, %c0_74] : memref<3x48x48xbf16, #tpu.memory_space<vmem>>, vector<1x48x48xbf16>
    %141 = vector.shape_cast %140 : vector<1x48x48xbf16> to vector<48x48xbf16>
    %cst_75 = arith.constant dense<0.000000e+00> : vector<32x48xf32>
    %142 = tpu.matmul %132, %141, %cst_75 {dimension_numbers = #tpu.dot_dimension_numbers<[1], [0], [0], [1], [0, 0, 1, 1], [], []>} : vector<32x48xbf16>, vector<48x48xbf16>, vector<32x48xf32> -> vector<32x48xf32>
    %143 = arith.addf %139, %142 : vector<32x48xf32>
    %c0_76 = arith.constant 0 : index
    %c0_77 = arith.constant 0 : index
    %144 = vector.load %arg9[%c0_76, %c0_77] : memref<1x48xf32, #tpu.memory_space<vmem>>, vector<1x48xf32>
    %145 = vector.broadcast %144 : vector<1x48xf32> to vector<32x48xf32>
    %146 = arith.addf %143, %145 : vector<32x48xf32>
    %147 = arith.negf %146 : vector<32x48xf32>
    %148 = math.exp %147 : vector<32x48xf32>
    %cst_78 = arith.constant 1.000000e+00 : f32
    %149 = vector.broadcast %cst_78 : f32 to vector<32x48xf32>
    %150 = arith.addf %149, %148 : vector<32x48xf32>
    %151 = arith.divf %149, %150 : vector<32x48xf32>
    %152 = arith.addf %151, %6 : vector<32x48xf32>
    %cst_79 = arith.constant 9.99999974E-5 : f32
    %cst_80 = arith.constant 1.000000e+00 : f32
    %153 = vector.broadcast %cst_79 : f32 to vector<32x48xf32>
    %154 = arith.maximumf %153, %152 : vector<32x48xf32>
    %155 = vector.broadcast %cst_80 : f32 to vector<32x48xf32>
    %156 = arith.minimumf %155, %154 : vector<32x48xf32>
    %157 = arith.divf %4, %156 : vector<32x48xf32>
    %cst_81 = arith.constant 0.000000e+00 : f32
    %cst_82 = arith.constant 1.000000e+00 : f32
    %158 = vector.broadcast %cst_81 : f32 to vector<32x48xf32>
    %159 = arith.maximumf %158, %157 : vector<32x48xf32>
    %160 = vector.broadcast %cst_82 : f32 to vector<32x48xf32>
    %161 = arith.minimumf %160, %159 : vector<32x48xf32>
    %c1_i32_83 = arith.constant 1 : i32
    %162 = tpu.dynamic_rotate %161 by %c1_i32_83 dim 0 : vector<32x48xf32>, i32 -> vector<32x48xf32>
    %cst_84 = arith.constant 0.000000e+00 : f32
    %163 = vector.shape_cast %25 : vector<32x1xi1> to vector<32x1xi1>
    %164 = vector.broadcast %163 : vector<32x1xi1> to vector<32x48xi1>
    %165 = vector.broadcast %cst_84 : f32 to vector<32x48xf32>
    %166 = arith.select %164, %165, %162 : vector<32x48xi1>, vector<32x48xf32>
    %167 = arith.truncf %166 : vector<32x48xf32> to vector<32x48xbf16>
    %168 = arith.truncf %161 : vector<32x48xf32> to vector<32x48xbf16>
    %c31_i32_85 = arith.constant 31 : i32
    %169 = tpu.dynamic_rotate %161 by %c31_i32_85 dim 0 : vector<32x48xf32>, i32 -> vector<32x48xf32>
    %cst_86 = arith.constant 0.000000e+00 : f32
    %170 = vector.shape_cast %27 : vector<32x1xi1> to vector<32x1xi1>
    %171 = vector.broadcast %170 : vector<32x1xi1> to vector<32x48xi1>
    %172 = vector.broadcast %cst_86 : f32 to vector<32x48xf32>
    %173 = arith.select %171, %172, %169 : vector<32x48xi1>, vector<32x48xf32>
    %174 = arith.truncf %173 : vector<32x48xf32> to vector<32x48xbf16>
    %c0_87 = arith.constant 0 : index
    %c0_88 = arith.constant 0 : index
    %c0_89 = arith.constant 0 : index
    %175 = vector.load %arg10[%c0_87, %c0_88, %c0_89] : memref<3x48x256xbf16, #tpu.memory_space<vmem>>, vector<1x48x256xbf16>
    %176 = vector.shape_cast %175 : vector<1x48x256xbf16> to vector<48x256xbf16>
    %cst_90 = arith.constant dense<0.000000e+00> : vector<32x256xf32>
    %177 = tpu.matmul %167, %176, %cst_90 {dimension_numbers = #tpu.dot_dimension_numbers<[1], [0], [0], [1], [0, 0, 1, 1], [], []>} : vector<32x48xbf16>, vector<48x256xbf16>, vector<32x256xf32> -> vector<32x256xf32>
    %c1_91 = arith.constant 1 : index
    %c0_92 = arith.constant 0 : index
    %c0_93 = arith.constant 0 : index
    %178 = vector.load %arg10[%c1_91, %c0_92, %c0_93] : memref<3x48x256xbf16, #tpu.memory_space<vmem>>, vector<1x48x256xbf16>
    %179 = vector.shape_cast %178 : vector<1x48x256xbf16> to vector<48x256xbf16>
    %cst_94 = arith.constant dense<0.000000e+00> : vector<32x256xf32>
    %180 = tpu.matmul %168, %179, %cst_94 {dimension_numbers = #tpu.dot_dimension_numbers<[1], [0], [0], [1], [0, 0, 1, 1], [], []>} : vector<32x48xbf16>, vector<48x256xbf16>, vector<32x256xf32> -> vector<32x256xf32>
    %181 = arith.addf %177, %180 : vector<32x256xf32>
    %c2_95 = arith.constant 2 : index
    %c0_96 = arith.constant 0 : index
    %c0_97 = arith.constant 0 : index
    %182 = vector.load %arg10[%c2_95, %c0_96, %c0_97] : memref<3x48x256xbf16, #tpu.memory_space<vmem>>, vector<1x48x256xbf16>
    %183 = vector.shape_cast %182 : vector<1x48x256xbf16> to vector<48x256xbf16>
    %cst_98 = arith.constant dense<0.000000e+00> : vector<32x256xf32>
    %184 = tpu.matmul %174, %183, %cst_98 {dimension_numbers = #tpu.dot_dimension_numbers<[1], [0], [0], [1], [0, 0, 1, 1], [], []>} : vector<32x48xbf16>, vector<48x256xbf16>, vector<32x256xf32> -> vector<32x256xf32>
    %185 = arith.addf %181, %184 : vector<32x256xf32>
    %c0_99 = arith.constant 0 : index
    %c0_100 = arith.constant 0 : index
    %186 = vector.load %arg11[%c0_99, %c0_100] : memref<1x256xf32, #tpu.memory_space<vmem>>, vector<1x256xf32>
    %187 = vector.broadcast %186 : vector<1x256xf32> to vector<32x256xf32>
    %188 = arith.addf %185, %187 : vector<32x256xf32>
    %cst_101 = arith.constant dense<0.000000e+00> : vector<256xf32>
    %189 = vector.multi_reduction <add>, %188, %cst_101 [0] : vector<32x256xf32> to vector<256xf32>
    %190 = vector.shape_cast %189 : vector<256xf32> to vector<1x256xf32>
    %191 = arith.mulf %188, %188 : vector<32x256xf32>
    %cst_102 = arith.constant dense<0.000000e+00> : vector<256xf32>
    %192 = vector.multi_reduction <add>, %191, %cst_102 [0] : vector<32x256xf32> to vector<256xf32>
    %193 = vector.shape_cast %192 : vector<256xf32> to vector<1x256xf32>
    %194 = tpu.concatenate %190, %193 in 0 : vector<1x256xf32>, vector<1x256xf32> -> vector<2x256xf32>
    %c0_103 = arith.constant 0 : index
    %c0_104 = arith.constant 0 : index
    %195 = vector.load %arg26[%c0_103, %c0_104] : memref<256x16xf32, #tpu.memory_space<vmem>>, vector<256x16xf32>
    %cst_105 = arith.constant dense<0.000000e+00> : vector<2x16xf32>
    %196 = tpu.matmul %194, %195, %cst_105 {dimension_numbers = #tpu.dot_dimension_numbers<[1], [0], [0], [1], [0, 0, 1, 1], [], []>} : vector<2x256xf32>, vector<256x16xf32>, vector<2x16xf32> -> vector<2x16xf32>
    %cst_106 = arith.constant 0.001953125 : f32
    %197 = vector.broadcast %cst_106 : f32 to vector<2x16xf32>
    %198 = arith.mulf %196, %197 : vector<2x16xf32>
    %199 = vector.extract_strided_slice %198 {offsets = [0, 0], sizes = [1, 16], strides = [1, 1]} : vector<2x16xf32> to vector<1x16xf32>
    %200 = vector.extract_strided_slice %198 {offsets = [1, 0], sizes = [1, 16], strides = [1, 1]} : vector<2x16xf32> to vector<1x16xf32>
    %201 = arith.mulf %199, %199 : vector<1x16xf32>
    %202 = arith.subf %200, %201 : vector<1x16xf32>
    %cst_107 = arith.constant 0.000000e+00 : f32
    %203 = vector.broadcast %cst_107 : f32 to vector<1x16xf32>
    %204 = arith.maximumf %202, %203 : vector<1x16xf32>
    %cst_108 = arith.constant 9.99999974E-6 : f32
    %205 = vector.broadcast %cst_108 : f32 to vector<1x16xf32>
    %206 = arith.addf %204, %205 : vector<1x16xf32>
    %207 = math.rsqrt %206 : vector<1x16xf32>
    %208 = tpu.concatenate %199, %207 in 0 : vector<1x16xf32>, vector<1x16xf32> -> vector<2x16xf32>
    %c0_109 = arith.constant 0 : index
    %c0_110 = arith.constant 0 : index
    %209 = vector.load %arg27[%c0_109, %c0_110] : memref<16x256xf32, #tpu.memory_space<vmem>>, vector<16x256xf32>
    %cst_111 = arith.constant dense<0.000000e+00> : vector<2x256xf32>
    %210 = tpu.matmul %208, %209, %cst_111 {dimension_numbers = #tpu.dot_dimension_numbers<[1], [0], [0], [1], [0, 0, 1, 1], [], []>} : vector<2x16xf32>, vector<16x256xf32>, vector<2x256xf32> -> vector<2x256xf32>
    %211 = vector.extract_strided_slice %210 {offsets = [0, 0], sizes = [1, 256], strides = [1, 1]} : vector<2x256xf32> to vector<1x256xf32>
    %212 = vector.broadcast %211 : vector<1x256xf32> to vector<32x256xf32>
    %213 = arith.subf %188, %212 : vector<32x256xf32>
    %214 = vector.extract_strided_slice %210 {offsets = [1, 0], sizes = [1, 256], strides = [1, 1]} : vector<2x256xf32> to vector<1x256xf32>
    %c0_112 = arith.constant 0 : index
    %c0_113 = arith.constant 0 : index
    %215 = vector.load %arg12[%c0_112, %c0_113] : memref<1x256xf32, #tpu.memory_space<vmem>>, vector<1x256xf32>
    %216 = arith.mulf %214, %215 : vector<1x256xf32>
    %217 = vector.broadcast %216 : vector<1x256xf32> to vector<32x256xf32>
    %218 = arith.mulf %213, %217 : vector<32x256xf32>
    %c0_114 = arith.constant 0 : index
    %c0_115 = arith.constant 0 : index
    %219 = vector.load %arg13[%c0_114, %c0_115] : memref<1x256xf32, #tpu.memory_space<vmem>>, vector<1x256xf32>
    %220 = vector.broadcast %219 : vector<1x256xf32> to vector<32x256xf32>
    %221 = arith.addf %218, %220 : vector<32x256xf32>
    %cst_116 = arith.constant 0.000000e+00 : f32
    %222 = vector.broadcast %cst_116 : f32 to vector<32x256xf32>
    %223 = arith.maximumf %221, %222 : vector<32x256xf32>
    %c0_i32_117 = arith.constant 0 : i32
    %c1_i32_118 = arith.constant 1 : i32
    %224 = tpu.dynamic_rotate %223 by %c1_i32_118 dim 0 : vector<32x256xf32>, i32 -> vector<32x256xf32>
    %cst_119 = arith.constant 0.000000e+00 : f32
    %225 = vector.shape_cast %25 : vector<32x1xi1> to vector<32x1xi1>
    %226 = vector.broadcast %225 : vector<32x1xi1> to vector<32x256xi1>
    %227 = vector.broadcast %cst_119 : f32 to vector<32x256xf32>
    %228 = arith.select %226, %227, %224 : vector<32x256xi1>, vector<32x256xf32>
    %229 = arith.truncf %228 : vector<32x256xf32> to vector<32x256xbf16>
    %230 = arith.truncf %223 : vector<32x256xf32> to vector<32x256xbf16>
    %c31_i32_120 = arith.constant 31 : i32
    %231 = tpu.dynamic_rotate %223 by %c31_i32_120 dim 0 : vector<32x256xf32>, i32 -> vector<32x256xf32>
    %cst_121 = arith.constant 0.000000e+00 : f32
    %232 = vector.shape_cast %27 : vector<32x1xi1> to vector<32x1xi1>
    %233 = vector.broadcast %232 : vector<32x1xi1> to vector<32x256xi1>
    %234 = vector.broadcast %cst_121 : f32 to vector<32x256xf32>
    %235 = arith.select %233, %234, %231 : vector<32x256xi1>, vector<32x256xf32>
    %236 = arith.truncf %235 : vector<32x256xf32> to vector<32x256xbf16>
    %c0_122 = arith.constant 0 : index
    %c0_123 = arith.constant 0 : index
    %c0_124 = arith.constant 0 : index
    %237 = vector.load %arg14[%c0_122, %c0_123, %c0_124] : memref<3x256x256xbf16, #tpu.memory_space<vmem>>, vector<1x256x256xbf16>
    %238 = vector.shape_cast %237 : vector<1x256x256xbf16> to vector<256x256xbf16>
    %cst_125 = arith.constant dense<0.000000e+00> : vector<32x256xf32>
    %239 = tpu.matmul %229, %238, %cst_125 {dimension_numbers = #tpu.dot_dimension_numbers<[1], [0], [0], [1], [0, 0, 1, 1], [], []>} : vector<32x256xbf16>, vector<256x256xbf16>, vector<32x256xf32> -> vector<32x256xf32>
    %c1_126 = arith.constant 1 : index
    %c0_127 = arith.constant 0 : index
    %c0_128 = arith.constant 0 : index
    %240 = vector.load %arg14[%c1_126, %c0_127, %c0_128] : memref<3x256x256xbf16, #tpu.memory_space<vmem>>, vector<1x256x256xbf16>
    %241 = vector.shape_cast %240 : vector<1x256x256xbf16> to vector<256x256xbf16>
    %cst_129 = arith.constant dense<0.000000e+00> : vector<32x256xf32>
    %242 = tpu.matmul %230, %241, %cst_129 {dimension_numbers = #tpu.dot_dimension_numbers<[1], [0], [0], [1], [0, 0, 1, 1], [], []>} : vector<32x256xbf16>, vector<256x256xbf16>, vector<32x256xf32> -> vector<32x256xf32>
    %243 = arith.addf %239, %242 : vector<32x256xf32>
    %c2_130 = arith.constant 2 : index
    %c0_131 = arith.constant 0 : index
    %c0_132 = arith.constant 0 : index
    %244 = vector.load %arg14[%c2_130, %c0_131, %c0_132] : memref<3x256x256xbf16, #tpu.memory_space<vmem>>, vector<1x256x256xbf16>
    %245 = vector.shape_cast %244 : vector<1x256x256xbf16> to vector<256x256xbf16>
    %cst_133 = arith.constant dense<0.000000e+00> : vector<32x256xf32>
    %246 = tpu.matmul %236, %245, %cst_133 {dimension_numbers = #tpu.dot_dimension_numbers<[1], [0], [0], [1], [0, 0, 1, 1], [], []>} : vector<32x256xbf16>, vector<256x256xbf16>, vector<32x256xf32> -> vector<32x256xf32>
    %247 = arith.addf %243, %246 : vector<32x256xf32>
    %c0_134 = arith.constant 0 : index
    %c0_135 = arith.constant 0 : index
    %248 = vector.load %arg15[%c0_134, %c0_135] : memref<1x256xf32, #tpu.memory_space<vmem>>, vector<1x256xf32>
    %249 = vector.broadcast %248 : vector<1x256xf32> to vector<32x256xf32>
    %250 = arith.addf %247, %249 : vector<32x256xf32>
    %cst_136 = arith.constant dense<0.000000e+00> : vector<256xf32>
    %251 = vector.multi_reduction <add>, %250, %cst_136 [0] : vector<32x256xf32> to vector<256xf32>
    %252 = vector.shape_cast %251 : vector<256xf32> to vector<1x256xf32>
    %253 = arith.mulf %250, %250 : vector<32x256xf32>
    %cst_137 = arith.constant dense<0.000000e+00> : vector<256xf32>
    %254 = vector.multi_reduction <add>, %253, %cst_137 [0] : vector<32x256xf32> to vector<256xf32>
    %255 = vector.shape_cast %254 : vector<256xf32> to vector<1x256xf32>
    %256 = tpu.concatenate %252, %255 in 0 : vector<1x256xf32>, vector<1x256xf32> -> vector<2x256xf32>
    %c0_138 = arith.constant 0 : index
    %c0_139 = arith.constant 0 : index
    %257 = vector.load %arg26[%c0_138, %c0_139] : memref<256x16xf32, #tpu.memory_space<vmem>>, vector<256x16xf32>
    %cst_140 = arith.constant dense<0.000000e+00> : vector<2x16xf32>
    %258 = tpu.matmul %256, %257, %cst_140 {dimension_numbers = #tpu.dot_dimension_numbers<[1], [0], [0], [1], [0, 0, 1, 1], [], []>} : vector<2x256xf32>, vector<256x16xf32>, vector<2x16xf32> -> vector<2x16xf32>
    %cst_141 = arith.constant 0.001953125 : f32
    %259 = vector.broadcast %cst_141 : f32 to vector<2x16xf32>
    %260 = arith.mulf %258, %259 : vector<2x16xf32>
    %261 = vector.extract_strided_slice %260 {offsets = [0, 0], sizes = [1, 16], strides = [1, 1]} : vector<2x16xf32> to vector<1x16xf32>
    %262 = vector.extract_strided_slice %260 {offsets = [1, 0], sizes = [1, 16], strides = [1, 1]} : vector<2x16xf32> to vector<1x16xf32>
    %263 = arith.mulf %261, %261 : vector<1x16xf32>
    %264 = arith.subf %262, %263 : vector<1x16xf32>
    %cst_142 = arith.constant 0.000000e+00 : f32
    %265 = vector.broadcast %cst_142 : f32 to vector<1x16xf32>
    %266 = arith.maximumf %264, %265 : vector<1x16xf32>
    %cst_143 = arith.constant 9.99999974E-6 : f32
    %267 = vector.broadcast %cst_143 : f32 to vector<1x16xf32>
    %268 = arith.addf %266, %267 : vector<1x16xf32>
    %269 = math.rsqrt %268 : vector<1x16xf32>
    %270 = tpu.concatenate %261, %269 in 0 : vector<1x16xf32>, vector<1x16xf32> -> vector<2x16xf32>
    %c0_144 = arith.constant 0 : index
    %c0_145 = arith.constant 0 : index
    %271 = vector.load %arg27[%c0_144, %c0_145] : memref<16x256xf32, #tpu.memory_space<vmem>>, vector<16x256xf32>
    %cst_146 = arith.constant dense<0.000000e+00> : vector<2x256xf32>
    %272 = tpu.matmul %270, %271, %cst_146 {dimension_numbers = #tpu.dot_dimension_numbers<[1], [0], [0], [1], [0, 0, 1, 1], [], []>} : vector<2x16xf32>, vector<16x256xf32>, vector<2x256xf32> -> vector<2x256xf32>
    %273 = vector.extract_strided_slice %272 {offsets = [0, 0], sizes = [1, 256], strides = [1, 1]} : vector<2x256xf32> to vector<1x256xf32>
    %274 = vector.broadcast %273 : vector<1x256xf32> to vector<32x256xf32>
    %275 = arith.subf %250, %274 : vector<32x256xf32>
    %276 = vector.extract_strided_slice %272 {offsets = [1, 0], sizes = [1, 256], strides = [1, 1]} : vector<2x256xf32> to vector<1x256xf32>
    %c0_147 = arith.constant 0 : index
    %c0_148 = arith.constant 0 : index
    %277 = vector.load %arg16[%c0_147, %c0_148] : memref<1x256xf32, #tpu.memory_space<vmem>>, vector<1x256xf32>
    %278 = arith.mulf %276, %277 : vector<1x256xf32>
    %279 = vector.broadcast %278 : vector<1x256xf32> to vector<32x256xf32>
    %280 = arith.mulf %275, %279 : vector<32x256xf32>
    %c0_149 = arith.constant 0 : index
    %c0_150 = arith.constant 0 : index
    %281 = vector.load %arg17[%c0_149, %c0_150] : memref<1x256xf32, #tpu.memory_space<vmem>>, vector<1x256xf32>
    %282 = vector.broadcast %281 : vector<1x256xf32> to vector<32x256xf32>
    %283 = arith.addf %280, %282 : vector<32x256xf32>
    %cst_151 = arith.constant 0.000000e+00 : f32
    %284 = vector.broadcast %cst_151 : f32 to vector<32x256xf32>
    %285 = arith.maximumf %283, %284 : vector<32x256xf32>
    %c1_i32_152 = arith.constant 1 : i32
    %286 = tpu.dynamic_rotate %285 by %c1_i32_152 dim 0 : vector<32x256xf32>, i32 -> vector<32x256xf32>
    %cst_153 = arith.constant 0.000000e+00 : f32
    %287 = vector.shape_cast %25 : vector<32x1xi1> to vector<32x1xi1>
    %288 = vector.broadcast %287 : vector<32x1xi1> to vector<32x256xi1>
    %289 = vector.broadcast %cst_153 : f32 to vector<32x256xf32>
    %290 = arith.select %288, %289, %286 : vector<32x256xi1>, vector<32x256xf32>
    %291 = arith.truncf %290 : vector<32x256xf32> to vector<32x256xbf16>
    %292 = arith.truncf %285 : vector<32x256xf32> to vector<32x256xbf16>
    %c31_i32_154 = arith.constant 31 : i32
    %293 = tpu.dynamic_rotate %285 by %c31_i32_154 dim 0 : vector<32x256xf32>, i32 -> vector<32x256xf32>
    %cst_155 = arith.constant 0.000000e+00 : f32
    %294 = vector.shape_cast %27 : vector<32x1xi1> to vector<32x1xi1>
    %295 = vector.broadcast %294 : vector<32x1xi1> to vector<32x256xi1>
    %296 = vector.broadcast %cst_155 : f32 to vector<32x256xf32>
    %297 = arith.select %295, %296, %293 : vector<32x256xi1>, vector<32x256xf32>
    %298 = arith.truncf %297 : vector<32x256xf32> to vector<32x256xbf16>
    %c0_156 = arith.constant 0 : index
    %c0_157 = arith.constant 0 : index
    %c0_158 = arith.constant 0 : index
    %299 = vector.load %arg18[%c0_156, %c0_157, %c0_158] : memref<3x256x256xbf16, #tpu.memory_space<vmem>>, vector<1x256x256xbf16>
    %300 = vector.shape_cast %299 : vector<1x256x256xbf16> to vector<256x256xbf16>
    %cst_159 = arith.constant dense<0.000000e+00> : vector<32x256xf32>
    %301 = tpu.matmul %291, %300, %cst_159 {dimension_numbers = #tpu.dot_dimension_numbers<[1], [0], [0], [1], [0, 0, 1, 1], [], []>} : vector<32x256xbf16>, vector<256x256xbf16>, vector<32x256xf32> -> vector<32x256xf32>
    %c1_160 = arith.constant 1 : index
    %c0_161 = arith.constant 0 : index
    %c0_162 = arith.constant 0 : index
    %302 = vector.load %arg18[%c1_160, %c0_161, %c0_162] : memref<3x256x256xbf16, #tpu.memory_space<vmem>>, vector<1x256x256xbf16>
    %303 = vector.shape_cast %302 : vector<1x256x256xbf16> to vector<256x256xbf16>
    %cst_163 = arith.constant dense<0.000000e+00> : vector<32x256xf32>
    %304 = tpu.matmul %292, %303, %cst_163 {dimension_numbers = #tpu.dot_dimension_numbers<[1], [0], [0], [1], [0, 0, 1, 1], [], []>} : vector<32x256xbf16>, vector<256x256xbf16>, vector<32x256xf32> -> vector<32x256xf32>
    %305 = arith.addf %301, %304 : vector<32x256xf32>
    %c2_164 = arith.constant 2 : index
    %c0_165 = arith.constant 0 : index
    %c0_166 = arith.constant 0 : index
    %306 = vector.load %arg18[%c2_164, %c0_165, %c0_166] : memref<3x256x256xbf16, #tpu.memory_space<vmem>>, vector<1x256x256xbf16>
    %307 = vector.shape_cast %306 : vector<1x256x256xbf16> to vector<256x256xbf16>
    %cst_167 = arith.constant dense<0.000000e+00> : vector<32x256xf32>
    %308 = tpu.matmul %298, %307, %cst_167 {dimension_numbers = #tpu.dot_dimension_numbers<[1], [0], [0], [1], [0, 0, 1, 1], [], []>} : vector<32x256xbf16>, vector<256x256xbf16>, vector<32x256xf32> -> vector<32x256xf32>
    %309 = arith.addf %305, %308 : vector<32x256xf32>
    %c0_168 = arith.constant 0 : index
    %c0_169 = arith.constant 0 : index
    %310 = vector.load %arg19[%c0_168, %c0_169] : memref<1x256xf32, #tpu.memory_space<vmem>>, vector<1x256xf32>
    %311 = vector.broadcast %310 : vector<1x256xf32> to vector<32x256xf32>
    %312 = arith.addf %309, %311 : vector<32x256xf32>
    %cst_170 = arith.constant dense<0.000000e+00> : vector<256xf32>
    %313 = vector.multi_reduction <add>, %312, %cst_170 [0] : vector<32x256xf32> to vector<256xf32>
    %314 = vector.shape_cast %313 : vector<256xf32> to vector<1x256xf32>
    %315 = arith.mulf %312, %312 : vector<32x256xf32>
    %cst_171 = arith.constant dense<0.000000e+00> : vector<256xf32>
    %316 = vector.multi_reduction <add>, %315, %cst_171 [0] : vector<32x256xf32> to vector<256xf32>
    %317 = vector.shape_cast %316 : vector<256xf32> to vector<1x256xf32>
    %318 = tpu.concatenate %314, %317 in 0 : vector<1x256xf32>, vector<1x256xf32> -> vector<2x256xf32>
    %c0_172 = arith.constant 0 : index
    %c0_173 = arith.constant 0 : index
    %319 = vector.load %arg26[%c0_172, %c0_173] : memref<256x16xf32, #tpu.memory_space<vmem>>, vector<256x16xf32>
    %cst_174 = arith.constant dense<0.000000e+00> : vector<2x16xf32>
    %320 = tpu.matmul %318, %319, %cst_174 {dimension_numbers = #tpu.dot_dimension_numbers<[1], [0], [0], [1], [0, 0, 1, 1], [], []>} : vector<2x256xf32>, vector<256x16xf32>, vector<2x16xf32> -> vector<2x16xf32>
    %cst_175 = arith.constant 0.001953125 : f32
    %321 = vector.broadcast %cst_175 : f32 to vector<2x16xf32>
    %322 = arith.mulf %320, %321 : vector<2x16xf32>
    %323 = vector.extract_strided_slice %322 {offsets = [0, 0], sizes = [1, 16], strides = [1, 1]} : vector<2x16xf32> to vector<1x16xf32>
    %324 = vector.extract_strided_slice %322 {offsets = [1, 0], sizes = [1, 16], strides = [1, 1]} : vector<2x16xf32> to vector<1x16xf32>
    %325 = arith.mulf %323, %323 : vector<1x16xf32>
    %326 = arith.subf %324, %325 : vector<1x16xf32>
    %cst_176 = arith.constant 0.000000e+00 : f32
    %327 = vector.broadcast %cst_176 : f32 to vector<1x16xf32>
    %328 = arith.maximumf %326, %327 : vector<1x16xf32>
    %cst_177 = arith.constant 9.99999974E-6 : f32
    %329 = vector.broadcast %cst_177 : f32 to vector<1x16xf32>
    %330 = arith.addf %328, %329 : vector<1x16xf32>
    %331 = math.rsqrt %330 : vector<1x16xf32>
    %332 = tpu.concatenate %323, %331 in 0 : vector<1x16xf32>, vector<1x16xf32> -> vector<2x16xf32>
    %c0_178 = arith.constant 0 : index
    %c0_179 = arith.constant 0 : index
    %333 = vector.load %arg27[%c0_178, %c0_179] : memref<16x256xf32, #tpu.memory_space<vmem>>, vector<16x256xf32>
    %cst_180 = arith.constant dense<0.000000e+00> : vector<2x256xf32>
    %334 = tpu.matmul %332, %333, %cst_180 {dimension_numbers = #tpu.dot_dimension_numbers<[1], [0], [0], [1], [0, 0, 1, 1], [], []>} : vector<2x16xf32>, vector<16x256xf32>, vector<2x256xf32> -> vector<2x256xf32>
    %335 = vector.extract_strided_slice %334 {offsets = [0, 0], sizes = [1, 256], strides = [1, 1]} : vector<2x256xf32> to vector<1x256xf32>
    %336 = vector.broadcast %335 : vector<1x256xf32> to vector<32x256xf32>
    %337 = arith.subf %312, %336 : vector<32x256xf32>
    %338 = vector.extract_strided_slice %334 {offsets = [1, 0], sizes = [1, 256], strides = [1, 1]} : vector<2x256xf32> to vector<1x256xf32>
    %c0_181 = arith.constant 0 : index
    %c0_182 = arith.constant 0 : index
    %339 = vector.load %arg20[%c0_181, %c0_182] : memref<1x256xf32, #tpu.memory_space<vmem>>, vector<1x256xf32>
    %340 = arith.mulf %338, %339 : vector<1x256xf32>
    %341 = vector.broadcast %340 : vector<1x256xf32> to vector<32x256xf32>
    %342 = arith.mulf %337, %341 : vector<32x256xf32>
    %c0_183 = arith.constant 0 : index
    %c0_184 = arith.constant 0 : index
    %343 = vector.load %arg21[%c0_183, %c0_184] : memref<1x256xf32, #tpu.memory_space<vmem>>, vector<1x256xf32>
    %344 = vector.broadcast %343 : vector<1x256xf32> to vector<32x256xf32>
    %345 = arith.addf %342, %344 : vector<32x256xf32>
    %cst_185 = arith.constant 0.000000e+00 : f32
    %346 = vector.broadcast %cst_185 : f32 to vector<32x256xf32>
    %347 = arith.maximumf %345, %346 : vector<32x256xf32>
    %348 = arith.addf %223, %347 : vector<32x256xf32>
    %c1_i32_186 = arith.constant 1 : i32
    %c1_i32_187 = arith.constant 1 : i32
    %349 = tpu.dynamic_rotate %348 by %c1_i32_187 dim 0 : vector<32x256xf32>, i32 -> vector<32x256xf32>
    %cst_188 = arith.constant 0.000000e+00 : f32
    %350 = vector.shape_cast %25 : vector<32x1xi1> to vector<32x1xi1>
    %351 = vector.broadcast %350 : vector<32x1xi1> to vector<32x256xi1>
    %352 = vector.broadcast %cst_188 : f32 to vector<32x256xf32>
    %353 = arith.select %351, %352, %349 : vector<32x256xi1>, vector<32x256xf32>
    %354 = arith.truncf %353 : vector<32x256xf32> to vector<32x256xbf16>
    %355 = arith.truncf %348 : vector<32x256xf32> to vector<32x256xbf16>
    %c31_i32_189 = arith.constant 31 : i32
    %356 = tpu.dynamic_rotate %348 by %c31_i32_189 dim 0 : vector<32x256xf32>, i32 -> vector<32x256xf32>
    %cst_190 = arith.constant 0.000000e+00 : f32
    %357 = vector.shape_cast %27 : vector<32x1xi1> to vector<32x1xi1>
    %358 = vector.broadcast %357 : vector<32x1xi1> to vector<32x256xi1>
    %359 = vector.broadcast %cst_190 : f32 to vector<32x256xf32>
    %360 = arith.select %358, %359, %356 : vector<32x256xi1>, vector<32x256xf32>
    %361 = arith.truncf %360 : vector<32x256xf32> to vector<32x256xbf16>
    %c0_191 = arith.constant 0 : index
    %c0_192 = arith.constant 0 : index
    %c0_193 = arith.constant 0 : index
    %362 = vector.load %arg14[%c0_191, %c0_192, %c0_193] : memref<3x256x256xbf16, #tpu.memory_space<vmem>>, vector<1x256x256xbf16>
    %363 = vector.shape_cast %362 : vector<1x256x256xbf16> to vector<256x256xbf16>
    %cst_194 = arith.constant dense<0.000000e+00> : vector<32x256xf32>
    %364 = tpu.matmul %354, %363, %cst_194 {dimension_numbers = #tpu.dot_dimension_numbers<[1], [0], [0], [1], [0, 0, 1, 1], [], []>} : vector<32x256xbf16>, vector<256x256xbf16>, vector<32x256xf32> -> vector<32x256xf32>
    %c1_195 = arith.constant 1 : index
    %c0_196 = arith.constant 0 : index
    %c0_197 = arith.constant 0 : index
    %365 = vector.load %arg14[%c1_195, %c0_196, %c0_197] : memref<3x256x256xbf16, #tpu.memory_space<vmem>>, vector<1x256x256xbf16>
    %366 = vector.shape_cast %365 : vector<1x256x256xbf16> to vector<256x256xbf16>
    %cst_198 = arith.constant dense<0.000000e+00> : vector<32x256xf32>
    %367 = tpu.matmul %355, %366, %cst_198 {dimension_numbers = #tpu.dot_dimension_numbers<[1], [0], [0], [1], [0, 0, 1, 1], [], []>} : vector<32x256xbf16>, vector<256x256xbf16>, vector<32x256xf32> -> vector<32x256xf32>
    %368 = arith.addf %364, %367 : vector<32x256xf32>
    %c2_199 = arith.constant 2 : index
    %c0_200 = arith.constant 0 : index
    %c0_201 = arith.constant 0 : index
    %369 = vector.load %arg14[%c2_199, %c0_200, %c0_201] : memref<3x256x256xbf16, #tpu.memory_space<vmem>>, vector<1x256x256xbf16>
    %370 = vector.shape_cast %369 : vector<1x256x256xbf16> to vector<256x256xbf16>
    %cst_202 = arith.constant dense<0.000000e+00> : vector<32x256xf32>
    %371 = tpu.matmul %361, %370, %cst_202 {dimension_numbers = #tpu.dot_dimension_numbers<[1], [0], [0], [1], [0, 0, 1, 1], [], []>} : vector<32x256xbf16>, vector<256x256xbf16>, vector<32x256xf32> -> vector<32x256xf32>
    %372 = arith.addf %368, %371 : vector<32x256xf32>
    %c0_203 = arith.constant 0 : index
    %c0_204 = arith.constant 0 : index
    %373 = vector.load %arg15[%c0_203, %c0_204] : memref<1x256xf32, #tpu.memory_space<vmem>>, vector<1x256xf32>
    %374 = vector.broadcast %373 : vector<1x256xf32> to vector<32x256xf32>
    %375 = arith.addf %372, %374 : vector<32x256xf32>
    %cst_205 = arith.constant dense<0.000000e+00> : vector<256xf32>
    %376 = vector.multi_reduction <add>, %375, %cst_205 [0] : vector<32x256xf32> to vector<256xf32>
    %377 = vector.shape_cast %376 : vector<256xf32> to vector<1x256xf32>
    %378 = arith.mulf %375, %375 : vector<32x256xf32>
    %cst_206 = arith.constant dense<0.000000e+00> : vector<256xf32>
    %379 = vector.multi_reduction <add>, %378, %cst_206 [0] : vector<32x256xf32> to vector<256xf32>
    %380 = vector.shape_cast %379 : vector<256xf32> to vector<1x256xf32>
    %381 = tpu.concatenate %377, %380 in 0 : vector<1x256xf32>, vector<1x256xf32> -> vector<2x256xf32>
    %c0_207 = arith.constant 0 : index
    %c0_208 = arith.constant 0 : index
    %382 = vector.load %arg26[%c0_207, %c0_208] : memref<256x16xf32, #tpu.memory_space<vmem>>, vector<256x16xf32>
    %cst_209 = arith.constant dense<0.000000e+00> : vector<2x16xf32>
    %383 = tpu.matmul %381, %382, %cst_209 {dimension_numbers = #tpu.dot_dimension_numbers<[1], [0], [0], [1], [0, 0, 1, 1], [], []>} : vector<2x256xf32>, vector<256x16xf32>, vector<2x16xf32> -> vector<2x16xf32>
    %cst_210 = arith.constant 0.001953125 : f32
    %384 = vector.broadcast %cst_210 : f32 to vector<2x16xf32>
    %385 = arith.mulf %383, %384 : vector<2x16xf32>
    %386 = vector.extract_strided_slice %385 {offsets = [0, 0], sizes = [1, 16], strides = [1, 1]} : vector<2x16xf32> to vector<1x16xf32>
    %387 = vector.extract_strided_slice %385 {offsets = [1, 0], sizes = [1, 16], strides = [1, 1]} : vector<2x16xf32> to vector<1x16xf32>
    %388 = arith.mulf %386, %386 : vector<1x16xf32>
    %389 = arith.subf %387, %388 : vector<1x16xf32>
    %cst_211 = arith.constant 0.000000e+00 : f32
    %390 = vector.broadcast %cst_211 : f32 to vector<1x16xf32>
    %391 = arith.maximumf %389, %390 : vector<1x16xf32>
    %cst_212 = arith.constant 9.99999974E-6 : f32
    %392 = vector.broadcast %cst_212 : f32 to vector<1x16xf32>
    %393 = arith.addf %391, %392 : vector<1x16xf32>
    %394 = math.rsqrt %393 : vector<1x16xf32>
    %395 = tpu.concatenate %386, %394 in 0 : vector<1x16xf32>, vector<1x16xf32> -> vector<2x16xf32>
    %c0_213 = arith.constant 0 : index
    %c0_214 = arith.constant 0 : index
    %396 = vector.load %arg27[%c0_213, %c0_214] : memref<16x256xf32, #tpu.memory_space<vmem>>, vector<16x256xf32>
    %cst_215 = arith.constant dense<0.000000e+00> : vector<2x256xf32>
    %397 = tpu.matmul %395, %396, %cst_215 {dimension_numbers = #tpu.dot_dimension_numbers<[1], [0], [0], [1], [0, 0, 1, 1], [], []>} : vector<2x16xf32>, vector<16x256xf32>, vector<2x256xf32> -> vector<2x256xf32>
    %398 = vector.extract_strided_slice %397 {offsets = [0, 0], sizes = [1, 256], strides = [1, 1]} : vector<2x256xf32> to vector<1x256xf32>
    %399 = vector.broadcast %398 : vector<1x256xf32> to vector<32x256xf32>
    %400 = arith.subf %375, %399 : vector<32x256xf32>
    %401 = vector.extract_strided_slice %397 {offsets = [1, 0], sizes = [1, 256], strides = [1, 1]} : vector<2x256xf32> to vector<1x256xf32>
    %c0_216 = arith.constant 0 : index
    %c0_217 = arith.constant 0 : index
    %402 = vector.load %arg16[%c0_216, %c0_217] : memref<1x256xf32, #tpu.memory_space<vmem>>, vector<1x256xf32>
    %403 = arith.mulf %401, %402 : vector<1x256xf32>
    %404 = vector.broadcast %403 : vector<1x256xf32> to vector<32x256xf32>
    %405 = arith.mulf %400, %404 : vector<32x256xf32>
    %c0_218 = arith.constant 0 : index
    %c0_219 = arith.constant 0 : index
    %406 = vector.load %arg17[%c0_218, %c0_219] : memref<1x256xf32, #tpu.memory_space<vmem>>, vector<1x256xf32>
    %407 = vector.broadcast %406 : vector<1x256xf32> to vector<32x256xf32>
    %408 = arith.addf %405, %407 : vector<32x256xf32>
    %cst_220 = arith.constant 0.000000e+00 : f32
    %409 = vector.broadcast %cst_220 : f32 to vector<32x256xf32>
    %410 = arith.maximumf %408, %409 : vector<32x256xf32>
    %c1_i32_221 = arith.constant 1 : i32
    %411 = tpu.dynamic_rotate %410 by %c1_i32_221 dim 0 : vector<32x256xf32>, i32 -> vector<32x256xf32>
    %cst_222 = arith.constant 0.000000e+00 : f32
    %412 = vector.shape_cast %25 : vector<32x1xi1> to vector<32x1xi1>
    %413 = vector.broadcast %412 : vector<32x1xi1> to vector<32x256xi1>
    %414 = vector.broadcast %cst_222 : f32 to vector<32x256xf32>
    %415 = arith.select %413, %414, %411 : vector<32x256xi1>, vector<32x256xf32>
    %416 = arith.truncf %415 : vector<32x256xf32> to vector<32x256xbf16>
    %417 = arith.truncf %410 : vector<32x256xf32> to vector<32x256xbf16>
    %c31_i32_223 = arith.constant 31 : i32
    %418 = tpu.dynamic_rotate %410 by %c31_i32_223 dim 0 : vector<32x256xf32>, i32 -> vector<32x256xf32>
    %cst_224 = arith.constant 0.000000e+00 : f32
    %419 = vector.shape_cast %27 : vector<32x1xi1> to vector<32x1xi1>
    %420 = vector.broadcast %419 : vector<32x1xi1> to vector<32x256xi1>
    %421 = vector.broadcast %cst_224 : f32 to vector<32x256xf32>
    %422 = arith.select %420, %421, %418 : vector<32x256xi1>, vector<32x256xf32>
    %423 = arith.truncf %422 : vector<32x256xf32> to vector<32x256xbf16>
    %c0_225 = arith.constant 0 : index
    %c0_226 = arith.constant 0 : index
    %c0_227 = arith.constant 0 : index
    %424 = vector.load %arg18[%c0_225, %c0_226, %c0_227] : memref<3x256x256xbf16, #tpu.memory_space<vmem>>, vector<1x256x256xbf16>
    %425 = vector.shape_cast %424 : vector<1x256x256xbf16> to vector<256x256xbf16>
    %cst_228 = arith.constant dense<0.000000e+00> : vector<32x256xf32>
    %426 = tpu.matmul %416, %425, %cst_228 {dimension_numbers = #tpu.dot_dimension_numbers<[1], [0], [0], [1], [0, 0, 1, 1], [], []>} : vector<32x256xbf16>, vector<256x256xbf16>, vector<32x256xf32> -> vector<32x256xf32>
    %c1_229 = arith.constant 1 : index
    %c0_230 = arith.constant 0 : index
    %c0_231 = arith.constant 0 : index
    %427 = vector.load %arg18[%c1_229, %c0_230, %c0_231] : memref<3x256x256xbf16, #tpu.memory_space<vmem>>, vector<1x256x256xbf16>
    %428 = vector.shape_cast %427 : vector<1x256x256xbf16> to vector<256x256xbf16>
    %cst_232 = arith.constant dense<0.000000e+00> : vector<32x256xf32>
    %429 = tpu.matmul %417, %428, %cst_232 {dimension_numbers = #tpu.dot_dimension_numbers<[1], [0], [0], [1], [0, 0, 1, 1], [], []>} : vector<32x256xbf16>, vector<256x256xbf16>, vector<32x256xf32> -> vector<32x256xf32>
    %430 = arith.addf %426, %429 : vector<32x256xf32>
    %c2_233 = arith.constant 2 : index
    %c0_234 = arith.constant 0 : index
    %c0_235 = arith.constant 0 : index
    %431 = vector.load %arg18[%c2_233, %c0_234, %c0_235] : memref<3x256x256xbf16, #tpu.memory_space<vmem>>, vector<1x256x256xbf16>
    %432 = vector.shape_cast %431 : vector<1x256x256xbf16> to vector<256x256xbf16>
    %cst_236 = arith.constant dense<0.000000e+00> : vector<32x256xf32>
    %433 = tpu.matmul %423, %432, %cst_236 {dimension_numbers = #tpu.dot_dimension_numbers<[1], [0], [0], [1], [0, 0, 1, 1], [], []>} : vector<32x256xbf16>, vector<256x256xbf16>, vector<32x256xf32> -> vector<32x256xf32>
    %434 = arith.addf %430, %433 : vector<32x256xf32>
    %c0_237 = arith.constant 0 : index
    %c0_238 = arith.constant 0 : index
    %435 = vector.load %arg19[%c0_237, %c0_238] : memref<1x256xf32, #tpu.memory_space<vmem>>, vector<1x256xf32>
    %436 = vector.broadcast %435 : vector<1x256xf32> to vector<32x256xf32>
    %437 = arith.addf %434, %436 : vector<32x256xf32>
    %cst_239 = arith.constant dense<0.000000e+00> : vector<256xf32>
    %438 = vector.multi_reduction <add>, %437, %cst_239 [0] : vector<32x256xf32> to vector<256xf32>
    %439 = vector.shape_cast %438 : vector<256xf32> to vector<1x256xf32>
    %440 = arith.mulf %437, %437 : vector<32x256xf32>
    %cst_240 = arith.constant dense<0.000000e+00> : vector<256xf32>
    %441 = vector.multi_reduction <add>, %440, %cst_240 [0] : vector<32x256xf32> to vector<256xf32>
    %442 = vector.shape_cast %441 : vector<256xf32> to vector<1x256xf32>
    %443 = tpu.concatenate %439, %442 in 0 : vector<1x256xf32>, vector<1x256xf32> -> vector<2x256xf32>
    %c0_241 = arith.constant 0 : index
    %c0_242 = arith.constant 0 : index
    %444 = vector.load %arg26[%c0_241, %c0_242] : memref<256x16xf32, #tpu.memory_space<vmem>>, vector<256x16xf32>
    %cst_243 = arith.constant dense<0.000000e+00> : vector<2x16xf32>
    %445 = tpu.matmul %443, %444, %cst_243 {dimension_numbers = #tpu.dot_dimension_numbers<[1], [0], [0], [1], [0, 0, 1, 1], [], []>} : vector<2x256xf32>, vector<256x16xf32>, vector<2x16xf32> -> vector<2x16xf32>
    %cst_244 = arith.constant 0.001953125 : f32
    %446 = vector.broadcast %cst_244 : f32 to vector<2x16xf32>
    %447 = arith.mulf %445, %446 : vector<2x16xf32>
    %448 = vector.extract_strided_slice %447 {offsets = [0, 0], sizes = [1, 16], strides = [1, 1]} : vector<2x16xf32> to vector<1x16xf32>
    %449 = vector.extract_strided_slice %447 {offsets = [1, 0], sizes = [1, 16], strides = [1, 1]} : vector<2x16xf32> to vector<1x16xf32>
    %450 = arith.mulf %448, %448 : vector<1x16xf32>
    %451 = arith.subf %449, %450 : vector<1x16xf32>
    %cst_245 = arith.constant 0.000000e+00 : f32
    %452 = vector.broadcast %cst_245 : f32 to vector<1x16xf32>
    %453 = arith.maximumf %451, %452 : vector<1x16xf32>
    %cst_246 = arith.constant 9.99999974E-6 : f32
    %454 = vector.broadcast %cst_246 : f32 to vector<1x16xf32>
    %455 = arith.addf %453, %454 : vector<1x16xf32>
    %456 = math.rsqrt %455 : vector<1x16xf32>
    %457 = tpu.concatenate %448, %456 in 0 : vector<1x16xf32>, vector<1x16xf32> -> vector<2x16xf32>
    %c0_247 = arith.constant 0 : index
    %c0_248 = arith.constant 0 : index
    %458 = vector.load %arg27[%c0_247, %c0_248] : memref<16x256xf32, #tpu.memory_space<vmem>>, vector<16x256xf32>
    %cst_249 = arith.constant dense<0.000000e+00> : vector<2x256xf32>
    %459 = tpu.matmul %457, %458, %cst_249 {dimension_numbers = #tpu.dot_dimension_numbers<[1], [0], [0], [1], [0, 0, 1, 1], [], []>} : vector<2x16xf32>, vector<16x256xf32>, vector<2x256xf32> -> vector<2x256xf32>
    %460 = vector.extract_strided_slice %459 {offsets = [0, 0], sizes = [1, 256], strides = [1, 1]} : vector<2x256xf32> to vector<1x256xf32>
    %461 = vector.broadcast %460 : vector<1x256xf32> to vector<32x256xf32>
    %462 = arith.subf %437, %461 : vector<32x256xf32>
    %463 = vector.extract_strided_slice %459 {offsets = [1, 0], sizes = [1, 256], strides = [1, 1]} : vector<2x256xf32> to vector<1x256xf32>
    %c0_250 = arith.constant 0 : index
    %c0_251 = arith.constant 0 : index
    %464 = vector.load %arg20[%c0_250, %c0_251] : memref<1x256xf32, #tpu.memory_space<vmem>>, vector<1x256xf32>
    %465 = arith.mulf %463, %464 : vector<1x256xf32>
    %466 = vector.broadcast %465 : vector<1x256xf32> to vector<32x256xf32>
    %467 = arith.mulf %462, %466 : vector<32x256xf32>
    %c0_252 = arith.constant 0 : index
    %c0_253 = arith.constant 0 : index
    %468 = vector.load %arg21[%c0_252, %c0_253] : memref<1x256xf32, #tpu.memory_space<vmem>>, vector<1x256xf32>
    %469 = vector.broadcast %468 : vector<1x256xf32> to vector<32x256xf32>
    %470 = arith.addf %467, %469 : vector<32x256xf32>
    %cst_254 = arith.constant 0.000000e+00 : f32
    %471 = vector.broadcast %cst_254 : f32 to vector<32x256xf32>
    %472 = arith.maximumf %470, %471 : vector<32x256xf32>
    %473 = arith.addf %348, %472 : vector<32x256xf32>
    %c2_i32 = arith.constant 2 : i32
    %c1_i32_255 = arith.constant 1 : i32
    %474 = tpu.dynamic_rotate %473 by %c1_i32_255 dim 0 : vector<32x256xf32>, i32 -> vector<32x256xf32>
    %cst_256 = arith.constant 0.000000e+00 : f32
    %475 = vector.shape_cast %25 : vector<32x1xi1> to vector<32x1xi1>
    %476 = vector.broadcast %475 : vector<32x1xi1> to vector<32x256xi1>
    %477 = vector.broadcast %cst_256 : f32 to vector<32x256xf32>
    %478 = arith.select %476, %477, %474 : vector<32x256xi1>, vector<32x256xf32>
    %479 = arith.truncf %478 : vector<32x256xf32> to vector<32x256xbf16>
    %480 = arith.truncf %473 : vector<32x256xf32> to vector<32x256xbf16>
    %c31_i32_257 = arith.constant 31 : i32
    %481 = tpu.dynamic_rotate %473 by %c31_i32_257 dim 0 : vector<32x256xf32>, i32 -> vector<32x256xf32>
    %cst_258 = arith.constant 0.000000e+00 : f32
    %482 = vector.shape_cast %27 : vector<32x1xi1> to vector<32x1xi1>
    %483 = vector.broadcast %482 : vector<32x1xi1> to vector<32x256xi1>
    %484 = vector.broadcast %cst_258 : f32 to vector<32x256xf32>
    %485 = arith.select %483, %484, %481 : vector<32x256xi1>, vector<32x256xf32>
    %486 = arith.truncf %485 : vector<32x256xf32> to vector<32x256xbf16>
    %c0_259 = arith.constant 0 : index
    %c0_260 = arith.constant 0 : index
    %c0_261 = arith.constant 0 : index
    %487 = vector.load %arg14[%c0_259, %c0_260, %c0_261] : memref<3x256x256xbf16, #tpu.memory_space<vmem>>, vector<1x256x256xbf16>
    %488 = vector.shape_cast %487 : vector<1x256x256xbf16> to vector<256x256xbf16>
    %cst_262 = arith.constant dense<0.000000e+00> : vector<32x256xf32>
    %489 = tpu.matmul %479, %488, %cst_262 {dimension_numbers = #tpu.dot_dimension_numbers<[1], [0], [0], [1], [0, 0, 1, 1], [], []>} : vector<32x256xbf16>, vector<256x256xbf16>, vector<32x256xf32> -> vector<32x256xf32>
    %c1_263 = arith.constant 1 : index
    %c0_264 = arith.constant 0 : index
    %c0_265 = arith.constant 0 : index
    %490 = vector.load %arg14[%c1_263, %c0_264, %c0_265] : memref<3x256x256xbf16, #tpu.memory_space<vmem>>, vector<1x256x256xbf16>
    %491 = vector.shape_cast %490 : vector<1x256x256xbf16> to vector<256x256xbf16>
    %cst_266 = arith.constant dense<0.000000e+00> : vector<32x256xf32>
    %492 = tpu.matmul %480, %491, %cst_266 {dimension_numbers = #tpu.dot_dimension_numbers<[1], [0], [0], [1], [0, 0, 1, 1], [], []>} : vector<32x256xbf16>, vector<256x256xbf16>, vector<32x256xf32> -> vector<32x256xf32>
    %493 = arith.addf %489, %492 : vector<32x256xf32>
    %c2_267 = arith.constant 2 : index
    %c0_268 = arith.constant 0 : index
    %c0_269 = arith.constant 0 : index
    %494 = vector.load %arg14[%c2_267, %c0_268, %c0_269] : memref<3x256x256xbf16, #tpu.memory_space<vmem>>, vector<1x256x256xbf16>
    %495 = vector.shape_cast %494 : vector<1x256x256xbf16> to vector<256x256xbf16>
    %cst_270 = arith.constant dense<0.000000e+00> : vector<32x256xf32>
    %496 = tpu.matmul %486, %495, %cst_270 {dimension_numbers = #tpu.dot_dimension_numbers<[1], [0], [0], [1], [0, 0, 1, 1], [], []>} : vector<32x256xbf16>, vector<256x256xbf16>, vector<32x256xf32> -> vector<32x256xf32>
    %497 = arith.addf %493, %496 : vector<32x256xf32>
    %c0_271 = arith.constant 0 : index
    %c0_272 = arith.constant 0 : index
    %498 = vector.load %arg15[%c0_271, %c0_272] : memref<1x256xf32, #tpu.memory_space<vmem>>, vector<1x256xf32>
    %499 = vector.broadcast %498 : vector<1x256xf32> to vector<32x256xf32>
    %500 = arith.addf %497, %499 : vector<32x256xf32>
    %cst_273 = arith.constant dense<0.000000e+00> : vector<256xf32>
    %501 = vector.multi_reduction <add>, %500, %cst_273 [0] : vector<32x256xf32> to vector<256xf32>
    %502 = vector.shape_cast %501 : vector<256xf32> to vector<1x256xf32>
    %503 = arith.mulf %500, %500 : vector<32x256xf32>
    %cst_274 = arith.constant dense<0.000000e+00> : vector<256xf32>
    %504 = vector.multi_reduction <add>, %503, %cst_274 [0] : vector<32x256xf32> to vector<256xf32>
    %505 = vector.shape_cast %504 : vector<256xf32> to vector<1x256xf32>
    %506 = tpu.concatenate %502, %505 in 0 : vector<1x256xf32>, vector<1x256xf32> -> vector<2x256xf32>
    %c0_275 = arith.constant 0 : index
    %c0_276 = arith.constant 0 : index
    %507 = vector.load %arg26[%c0_275, %c0_276] : memref<256x16xf32, #tpu.memory_space<vmem>>, vector<256x16xf32>
    %cst_277 = arith.constant dense<0.000000e+00> : vector<2x16xf32>
    %508 = tpu.matmul %506, %507, %cst_277 {dimension_numbers = #tpu.dot_dimension_numbers<[1], [0], [0], [1], [0, 0, 1, 1], [], []>} : vector<2x256xf32>, vector<256x16xf32>, vector<2x16xf32> -> vector<2x16xf32>
    %cst_278 = arith.constant 0.001953125 : f32
    %509 = vector.broadcast %cst_278 : f32 to vector<2x16xf32>
    %510 = arith.mulf %508, %509 : vector<2x16xf32>
    %511 = vector.extract_strided_slice %510 {offsets = [0, 0], sizes = [1, 16], strides = [1, 1]} : vector<2x16xf32> to vector<1x16xf32>
    %512 = vector.extract_strided_slice %510 {offsets = [1, 0], sizes = [1, 16], strides = [1, 1]} : vector<2x16xf32> to vector<1x16xf32>
    %513 = arith.mulf %511, %511 : vector<1x16xf32>
    %514 = arith.subf %512, %513 : vector<1x16xf32>
    %cst_279 = arith.constant 0.000000e+00 : f32
    %515 = vector.broadcast %cst_279 : f32 to vector<1x16xf32>
    %516 = arith.maximumf %514, %515 : vector<1x16xf32>
    %cst_280 = arith.constant 9.99999974E-6 : f32
    %517 = vector.broadcast %cst_280 : f32 to vector<1x16xf32>
    %518 = arith.addf %516, %517 : vector<1x16xf32>
    %519 = math.rsqrt %518 : vector<1x16xf32>
    %520 = tpu.concatenate %511, %519 in 0 : vector<1x16xf32>, vector<1x16xf32> -> vector<2x16xf32>
    %c0_281 = arith.constant 0 : index
    %c0_282 = arith.constant 0 : index
    %521 = vector.load %arg27[%c0_281, %c0_282] : memref<16x256xf32, #tpu.memory_space<vmem>>, vector<16x256xf32>
    %cst_283 = arith.constant dense<0.000000e+00> : vector<2x256xf32>
    %522 = tpu.matmul %520, %521, %cst_283 {dimension_numbers = #tpu.dot_dimension_numbers<[1], [0], [0], [1], [0, 0, 1, 1], [], []>} : vector<2x16xf32>, vector<16x256xf32>, vector<2x256xf32> -> vector<2x256xf32>
    %523 = vector.extract_strided_slice %522 {offsets = [0, 0], sizes = [1, 256], strides = [1, 1]} : vector<2x256xf32> to vector<1x256xf32>
    %524 = vector.broadcast %523 : vector<1x256xf32> to vector<32x256xf32>
    %525 = arith.subf %500, %524 : vector<32x256xf32>
    %526 = vector.extract_strided_slice %522 {offsets = [1, 0], sizes = [1, 256], strides = [1, 1]} : vector<2x256xf32> to vector<1x256xf32>
    %c0_284 = arith.constant 0 : index
    %c0_285 = arith.constant 0 : index
    %527 = vector.load %arg16[%c0_284, %c0_285] : memref<1x256xf32, #tpu.memory_space<vmem>>, vector<1x256xf32>
    %528 = arith.mulf %526, %527 : vector<1x256xf32>
    %529 = vector.broadcast %528 : vector<1x256xf32> to vector<32x256xf32>
    %530 = arith.mulf %525, %529 : vector<32x256xf32>
    %c0_286 = arith.constant 0 : index
    %c0_287 = arith.constant 0 : index
    %531 = vector.load %arg17[%c0_286, %c0_287] : memref<1x256xf32, #tpu.memory_space<vmem>>, vector<1x256xf32>
    %532 = vector.broadcast %531 : vector<1x256xf32> to vector<32x256xf32>
    %533 = arith.addf %530, %532 : vector<32x256xf32>
    %cst_288 = arith.constant 0.000000e+00 : f32
    %534 = vector.broadcast %cst_288 : f32 to vector<32x256xf32>
    %535 = arith.maximumf %533, %534 : vector<32x256xf32>
    %c1_i32_289 = arith.constant 1 : i32
    %536 = tpu.dynamic_rotate %535 by %c1_i32_289 dim 0 : vector<32x256xf32>, i32 -> vector<32x256xf32>
    %cst_290 = arith.constant 0.000000e+00 : f32
    %537 = vector.shape_cast %25 : vector<32x1xi1> to vector<32x1xi1>
    %538 = vector.broadcast %537 : vector<32x1xi1> to vector<32x256xi1>
    %539 = vector.broadcast %cst_290 : f32 to vector<32x256xf32>
    %540 = arith.select %538, %539, %536 : vector<32x256xi1>, vector<32x256xf32>
    %541 = arith.truncf %540 : vector<32x256xf32> to vector<32x256xbf16>
    %542 = arith.truncf %535 : vector<32x256xf32> to vector<32x256xbf16>
    %c31_i32_291 = arith.constant 31 : i32
    %543 = tpu.dynamic_rotate %535 by %c31_i32_291 dim 0 : vector<32x256xf32>, i32 -> vector<32x256xf32>
    %cst_292 = arith.constant 0.000000e+00 : f32
    %544 = vector.shape_cast %27 : vector<32x1xi1> to vector<32x1xi1>
    %545 = vector.broadcast %544 : vector<32x1xi1> to vector<32x256xi1>
    %546 = vector.broadcast %cst_292 : f32 to vector<32x256xf32>
    %547 = arith.select %545, %546, %543 : vector<32x256xi1>, vector<32x256xf32>
    %548 = arith.truncf %547 : vector<32x256xf32> to vector<32x256xbf16>
    %c0_293 = arith.constant 0 : index
    %c0_294 = arith.constant 0 : index
    %c0_295 = arith.constant 0 : index
    %549 = vector.load %arg18[%c0_293, %c0_294, %c0_295] : memref<3x256x256xbf16, #tpu.memory_space<vmem>>, vector<1x256x256xbf16>
    %550 = vector.shape_cast %549 : vector<1x256x256xbf16> to vector<256x256xbf16>
    %cst_296 = arith.constant dense<0.000000e+00> : vector<32x256xf32>
    %551 = tpu.matmul %541, %550, %cst_296 {dimension_numbers = #tpu.dot_dimension_numbers<[1], [0], [0], [1], [0, 0, 1, 1], [], []>} : vector<32x256xbf16>, vector<256x256xbf16>, vector<32x256xf32> -> vector<32x256xf32>
    %c1_297 = arith.constant 1 : index
    %c0_298 = arith.constant 0 : index
    %c0_299 = arith.constant 0 : index
    %552 = vector.load %arg18[%c1_297, %c0_298, %c0_299] : memref<3x256x256xbf16, #tpu.memory_space<vmem>>, vector<1x256x256xbf16>
    %553 = vector.shape_cast %552 : vector<1x256x256xbf16> to vector<256x256xbf16>
    %cst_300 = arith.constant dense<0.000000e+00> : vector<32x256xf32>
    %554 = tpu.matmul %542, %553, %cst_300 {dimension_numbers = #tpu.dot_dimension_numbers<[1], [0], [0], [1], [0, 0, 1, 1], [], []>} : vector<32x256xbf16>, vector<256x256xbf16>, vector<32x256xf32> -> vector<32x256xf32>
    %555 = arith.addf %551, %554 : vector<32x256xf32>
    %c2_301 = arith.constant 2 : index
    %c0_302 = arith.constant 0 : index
    %c0_303 = arith.constant 0 : index
    %556 = vector.load %arg18[%c2_301, %c0_302, %c0_303] : memref<3x256x256xbf16, #tpu.memory_space<vmem>>, vector<1x256x256xbf16>
    %557 = vector.shape_cast %556 : vector<1x256x256xbf16> to vector<256x256xbf16>
    %cst_304 = arith.constant dense<0.000000e+00> : vector<32x256xf32>
    %558 = tpu.matmul %548, %557, %cst_304 {dimension_numbers = #tpu.dot_dimension_numbers<[1], [0], [0], [1], [0, 0, 1, 1], [], []>} : vector<32x256xbf16>, vector<256x256xbf16>, vector<32x256xf32> -> vector<32x256xf32>
    %559 = arith.addf %555, %558 : vector<32x256xf32>
    %c0_305 = arith.constant 0 : index
    %c0_306 = arith.constant 0 : index
    %560 = vector.load %arg19[%c0_305, %c0_306] : memref<1x256xf32, #tpu.memory_space<vmem>>, vector<1x256xf32>
    %561 = vector.broadcast %560 : vector<1x256xf32> to vector<32x256xf32>
    %562 = arith.addf %559, %561 : vector<32x256xf32>
    %cst_307 = arith.constant dense<0.000000e+00> : vector<256xf32>
    %563 = vector.multi_reduction <add>, %562, %cst_307 [0] : vector<32x256xf32> to vector<256xf32>
    %564 = vector.shape_cast %563 : vector<256xf32> to vector<1x256xf32>
    %565 = arith.mulf %562, %562 : vector<32x256xf32>
    %cst_308 = arith.constant dense<0.000000e+00> : vector<256xf32>
    %566 = vector.multi_reduction <add>, %565, %cst_308 [0] : vector<32x256xf32> to vector<256xf32>
    %567 = vector.shape_cast %566 : vector<256xf32> to vector<1x256xf32>
    %568 = tpu.concatenate %564, %567 in 0 : vector<1x256xf32>, vector<1x256xf32> -> vector<2x256xf32>
    %c0_309 = arith.constant 0 : index
    %c0_310 = arith.constant 0 : index
    %569 = vector.load %arg26[%c0_309, %c0_310] : memref<256x16xf32, #tpu.memory_space<vmem>>, vector<256x16xf32>
    %cst_311 = arith.constant dense<0.000000e+00> : vector<2x16xf32>
    %570 = tpu.matmul %568, %569, %cst_311 {dimension_numbers = #tpu.dot_dimension_numbers<[1], [0], [0], [1], [0, 0, 1, 1], [], []>} : vector<2x256xf32>, vector<256x16xf32>, vector<2x16xf32> -> vector<2x16xf32>
    %cst_312 = arith.constant 0.001953125 : f32
    %571 = vector.broadcast %cst_312 : f32 to vector<2x16xf32>
    %572 = arith.mulf %570, %571 : vector<2x16xf32>
    %573 = vector.extract_strided_slice %572 {offsets = [0, 0], sizes = [1, 16], strides = [1, 1]} : vector<2x16xf32> to vector<1x16xf32>
    %574 = vector.extract_strided_slice %572 {offsets = [1, 0], sizes = [1, 16], strides = [1, 1]} : vector<2x16xf32> to vector<1x16xf32>
    %575 = arith.mulf %573, %573 : vector<1x16xf32>
    %576 = arith.subf %574, %575 : vector<1x16xf32>
    %cst_313 = arith.constant 0.000000e+00 : f32
    %577 = vector.broadcast %cst_313 : f32 to vector<1x16xf32>
    %578 = arith.maximumf %576, %577 : vector<1x16xf32>
    %cst_314 = arith.constant 9.99999974E-6 : f32
    %579 = vector.broadcast %cst_314 : f32 to vector<1x16xf32>
    %580 = arith.addf %578, %579 : vector<1x16xf32>
    %581 = math.rsqrt %580 : vector<1x16xf32>
    %582 = tpu.concatenate %573, %581 in 0 : vector<1x16xf32>, vector<1x16xf32> -> vector<2x16xf32>
    %c0_315 = arith.constant 0 : index
    %c0_316 = arith.constant 0 : index
    %583 = vector.load %arg27[%c0_315, %c0_316] : memref<16x256xf32, #tpu.memory_space<vmem>>, vector<16x256xf32>
    %cst_317 = arith.constant dense<0.000000e+00> : vector<2x256xf32>
    %584 = tpu.matmul %582, %583, %cst_317 {dimension_numbers = #tpu.dot_dimension_numbers<[1], [0], [0], [1], [0, 0, 1, 1], [], []>} : vector<2x16xf32>, vector<16x256xf32>, vector<2x256xf32> -> vector<2x256xf32>
    %585 = vector.extract_strided_slice %584 {offsets = [0, 0], sizes = [1, 256], strides = [1, 1]} : vector<2x256xf32> to vector<1x256xf32>
    %586 = vector.broadcast %585 : vector<1x256xf32> to vector<32x256xf32>
    %587 = arith.subf %562, %586 : vector<32x256xf32>
    %588 = vector.extract_strided_slice %584 {offsets = [1, 0], sizes = [1, 256], strides = [1, 1]} : vector<2x256xf32> to vector<1x256xf32>
    %c0_318 = arith.constant 0 : index
    %c0_319 = arith.constant 0 : index
    %589 = vector.load %arg20[%c0_318, %c0_319] : memref<1x256xf32, #tpu.memory_space<vmem>>, vector<1x256xf32>
    %590 = arith.mulf %588, %589 : vector<1x256xf32>
    %591 = vector.broadcast %590 : vector<1x256xf32> to vector<32x256xf32>
    %592 = arith.mulf %587, %591 : vector<32x256xf32>
    %c0_320 = arith.constant 0 : index
    %c0_321 = arith.constant 0 : index
    %593 = vector.load %arg21[%c0_320, %c0_321] : memref<1x256xf32, #tpu.memory_space<vmem>>, vector<1x256xf32>
    %594 = vector.broadcast %593 : vector<1x256xf32> to vector<32x256xf32>
    %595 = arith.addf %592, %594 : vector<32x256xf32>
    %cst_322 = arith.constant 0.000000e+00 : f32
    %596 = vector.broadcast %cst_322 : f32 to vector<32x256xf32>
    %597 = arith.maximumf %595, %596 : vector<32x256xf32>
    %598 = arith.addf %473, %597 : vector<32x256xf32>
    %c1_i32_323 = arith.constant 1 : i32
    %599 = tpu.dynamic_rotate %598 by %c1_i32_323 dim 0 : vector<32x256xf32>, i32 -> vector<32x256xf32>
    %cst_324 = arith.constant 0.000000e+00 : f32
    %600 = vector.shape_cast %25 : vector<32x1xi1> to vector<32x1xi1>
    %601 = vector.broadcast %600 : vector<32x1xi1> to vector<32x256xi1>
    %602 = vector.broadcast %cst_324 : f32 to vector<32x256xf32>
    %603 = arith.select %601, %602, %599 : vector<32x256xi1>, vector<32x256xf32>
    %604 = arith.truncf %603 : vector<32x256xf32> to vector<32x256xbf16>
    %605 = arith.truncf %598 : vector<32x256xf32> to vector<32x256xbf16>
    %c31_i32_325 = arith.constant 31 : i32
    %606 = tpu.dynamic_rotate %598 by %c31_i32_325 dim 0 : vector<32x256xf32>, i32 -> vector<32x256xf32>
    %cst_326 = arith.constant 0.000000e+00 : f32
    %607 = vector.shape_cast %27 : vector<32x1xi1> to vector<32x1xi1>
    %608 = vector.broadcast %607 : vector<32x1xi1> to vector<32x256xi1>
    %609 = vector.broadcast %cst_326 : f32 to vector<32x256xf32>
    %610 = arith.select %608, %609, %606 : vector<32x256xi1>, vector<32x256xf32>
    %611 = arith.truncf %610 : vector<32x256xf32> to vector<32x256xbf16>
    %c0_327 = arith.constant 0 : index
    %c0_328 = arith.constant 0 : index
    %c0_329 = arith.constant 0 : index
    %612 = vector.load %arg22[%c0_327, %c0_328, %c0_329] : memref<3x256x48xbf16, #tpu.memory_space<vmem>>, vector<1x256x48xbf16>
    %613 = vector.shape_cast %612 : vector<1x256x48xbf16> to vector<256x48xbf16>
    %cst_330 = arith.constant dense<0.000000e+00> : vector<32x48xf32>
    %614 = tpu.matmul %604, %613, %cst_330 {dimension_numbers = #tpu.dot_dimension_numbers<[1], [0], [0], [1], [0, 0, 1, 1], [], []>} : vector<32x256xbf16>, vector<256x48xbf16>, vector<32x48xf32> -> vector<32x48xf32>
    %c1_331 = arith.constant 1 : index
    %c0_332 = arith.constant 0 : index
    %c0_333 = arith.constant 0 : index
    %615 = vector.load %arg22[%c1_331, %c0_332, %c0_333] : memref<3x256x48xbf16, #tpu.memory_space<vmem>>, vector<1x256x48xbf16>
    %616 = vector.shape_cast %615 : vector<1x256x48xbf16> to vector<256x48xbf16>
    %cst_334 = arith.constant dense<0.000000e+00> : vector<32x48xf32>
    %617 = tpu.matmul %605, %616, %cst_334 {dimension_numbers = #tpu.dot_dimension_numbers<[1], [0], [0], [1], [0, 0, 1, 1], [], []>} : vector<32x256xbf16>, vector<256x48xbf16>, vector<32x48xf32> -> vector<32x48xf32>
    %618 = arith.addf %614, %617 : vector<32x48xf32>
    %c2_335 = arith.constant 2 : index
    %c0_336 = arith.constant 0 : index
    %c0_337 = arith.constant 0 : index
    %619 = vector.load %arg22[%c2_335, %c0_336, %c0_337] : memref<3x256x48xbf16, #tpu.memory_space<vmem>>, vector<1x256x48xbf16>
    %620 = vector.shape_cast %619 : vector<1x256x48xbf16> to vector<256x48xbf16>
    %cst_338 = arith.constant dense<0.000000e+00> : vector<32x48xf32>
    %621 = tpu.matmul %611, %620, %cst_338 {dimension_numbers = #tpu.dot_dimension_numbers<[1], [0], [0], [1], [0, 0, 1, 1], [], []>} : vector<32x256xbf16>, vector<256x48xbf16>, vector<32x48xf32> -> vector<32x48xf32>
    %622 = arith.addf %618, %621 : vector<32x48xf32>
    %c0_339 = arith.constant 0 : index
    %c0_340 = arith.constant 0 : index
    %623 = vector.load %arg23[%c0_339, %c0_340] : memref<1x48xf32, #tpu.memory_space<vmem>>, vector<1x48xf32>
    %624 = vector.broadcast %623 : vector<1x48xf32> to vector<32x48xf32>
    %625 = arith.addf %622, %624 : vector<32x48xf32>
    %626 = arith.negf %625 : vector<32x48xf32>
    %627 = math.exp %626 : vector<32x48xf32>
    %cst_341 = arith.constant 1.000000e+00 : f32
    %628 = vector.broadcast %cst_341 : f32 to vector<32x48xf32>
    %629 = arith.addf %628, %627 : vector<32x48xf32>
    %630 = arith.divf %628, %629 : vector<32x48xf32>
    %631 = arith.subf %161, %630 : vector<32x48xf32>
    %632 = vector.shape_cast %156 : vector<32x48xf32> to vector<1x2x16x48xf32>
    %c0_342 = arith.constant 0 : index
    %c0_343 = arith.constant 0 : index
    %c0_344 = arith.constant 0 : index
    %c0_345 = arith.constant 0 : index
    %633 = vector.load %arg28[%c0_342, %c0_343, %c0_344, %c0_345] : memref<1x2x16x48xf32, #tpu.memory_space<vmem>>, vector<1x2x16x48xf32>
    tpu.vector_store %arg28[%c0_342, %c0_343, %c0_344, %c0_345], %632 {strides = array<i32>} : memref<1x2x16x48xf32, #tpu.memory_space<vmem>>, vector<1x2x16x48xf32>,
    %634 = vector.shape_cast %631 : vector<32x48xf32> to vector<1x2x16x48xf32>
    %c0_346 = arith.constant 0 : index
    %c0_347 = arith.constant 0 : index
    %c0_348 = arith.constant 0 : index
    %c0_349 = arith.constant 0 : index
    %635 = vector.load %arg29[%c0_346, %c0_347, %c0_348, %c0_349] : memref<1x2x16x48xf32, #tpu.memory_space<vmem>>, vector<1x2x16x48xf32>
    tpu.vector_store %arg29[%c0_346, %c0_347, %c0_348, %c0_349], %634 {strides = array<i32>} : memref<1x2x16x48xf32, #tpu.memory_space<vmem>>, vector<1x2x16x48xf32>,
    %636 = arith.addf %4, %631 : vector<32x48xf32>
    %637 = vector.shape_cast %636 : vector<32x48xf32> to vector<2x16x48xf32>
    %c0_350 = arith.constant 0 : index
    %c0_351 = arith.constant 0 : index
    %c0_352 = arith.constant 0 : index
    %638 = vector.load %arg30[%c0_350, %c0_351, %c0_352] : memref<2x16x48xf32, #tpu.memory_space<vmem>>, vector<2x16x48xf32>
    tpu.vector_store %arg30[%c0_350, %c0_351, %c0_352], %637 {strides = array<i32>} : memref<2x16x48xf32, #tpu.memory_space<vmem>>, vector<2x16x48xf32>,
    return
  }
  func.func @transform_0(%arg0: i32) -> (i32, i32, i32) {
    %c0_i32 = arith.constant 0 : i32
    %c0_i32_0 = arith.constant 0 : i32
    %c0_i32_1 = arith.constant 0 : i32
    %c0_i32_2 = arith.constant 0 : i32
    return %c0_i32, %c0_i32_0, %c0_i32_1 : i32, i32, i32
  }
  func.func @transform_1(%arg0: i32) -> (i32, i32, i32) {
    %c0_i32 = arith.constant 0 : i32
    %c0_i32_0 = arith.constant 0 : i32
    %c0_i32_1 = arith.constant 0 : i32
    %c0_i32_2 = arith.constant 0 : i32
    return %c0_i32, %c0_i32_0, %c0_i32_1 : i32, i32, i32
  }
  func.func @transform_2(%arg0: i32) -> (i32, i32) {
    %c0_i32 = arith.constant 0 : i32
    %c0_i32_0 = arith.constant 0 : i32
    %c0_i32_1 = arith.constant 0 : i32
    return %c0_i32, %c0_i32_0 : i32, i32
  }
  func.func @transform_3(%arg0: i32) -> (i32, i32, i32) {
    %c0_i32 = arith.constant 0 : i32
    %c0_i32_0 = arith.constant 0 : i32
    %c0_i32_1 = arith.constant 0 : i32
    %c0_i32_2 = arith.constant 0 : i32
    return %c0_i32, %c0_i32_0, %c0_i32_1 : i32, i32, i32
  }
  func.func @transform_4(%arg0: i32) -> (i32, i32) {
    %c0_i32 = arith.constant 0 : i32
    %c0_i32_0 = arith.constant 0 : i32
    %c0_i32_1 = arith.constant 0 : i32
    return %c0_i32, %c0_i32_0 : i32, i32
  }
  func.func @transform_5(%arg0: i32) -> (i32, i32) {
    %c0_i32 = arith.constant 0 : i32
    %c0_i32_0 = arith.constant 0 : i32
    %c0_i32_1 = arith.constant 0 : i32
    return %c0_i32, %c0_i32_0 : i32, i32
  }
  func.func @transform_6(%arg0: i32) -> (i32, i32) {
    %c0_i32 = arith.constant 0 : i32
    %c0_i32_0 = arith.constant 0 : i32
    %c0_i32_1 = arith.constant 0 : i32
    return %c0_i32, %c0_i32_0 : i32, i32
  }
  func.func @transform_7(%arg0: i32) -> (i32, i32, i32) {
    %c0_i32 = arith.constant 0 : i32
    %c0_i32_0 = arith.constant 0 : i32
    %c0_i32_1 = arith.constant 0 : i32
    %c0_i32_2 = arith.constant 0 : i32
    return %c0_i32, %c0_i32_0, %c0_i32_1 : i32, i32, i32
  }
  func.func @transform_8(%arg0: i32) -> (i32, i32) {
    %c0_i32 = arith.constant 0 : i32
    %c0_i32_0 = arith.constant 0 : i32
    %c0_i32_1 = arith.constant 0 : i32
    return %c0_i32, %c0_i32_0 : i32, i32
  }
  func.func @transform_9(%arg0: i32) -> (i32, i32, i32) {
    %c0_i32 = arith.constant 0 : i32
    %c0_i32_0 = arith.constant 0 : i32
    %c0_i32_1 = arith.constant 0 : i32
    %c0_i32_2 = arith.constant 0 : i32
    return %c0_i32, %c0_i32_0, %c0_i32_1 : i32, i32, i32
  }
  func.func @transform_10(%arg0: i32) -> (i32, i32) {
    %c0_i32 = arith.constant 0 : i32
    %c0_i32_0 = arith.constant 0 : i32
    %c0_i32_1 = arith.constant 0 : i32
    return %c0_i32, %c0_i32_0 : i32, i32
  }
  func.func @transform_11(%arg0: i32) -> (i32, i32) {
    %c0_i32 = arith.constant 0 : i32
    %c0_i32_0 = arith.constant 0 : i32
    %c0_i32_1 = arith.constant 0 : i32
    return %c0_i32, %c0_i32_0 : i32, i32
  }
  func.func @transform_12(%arg0: i32) -> (i32, i32) {
    %c0_i32 = arith.constant 0 : i32
    %c0_i32_0 = arith.constant 0 : i32
    %c0_i32_1 = arith.constant 0 : i32
    return %c0_i32, %c0_i32_0 : i32, i32
  }
  func.func @transform_13(%arg0: i32) -> (i32, i32, i32) {
    %c0_i32 = arith.constant 0 : i32
    %c0_i32_0 = arith.constant 0 : i32
    %c0_i32_1 = arith.constant 0 : i32
    %c0_i32_2 = arith.constant 0 : i32
    return %c0_i32, %c0_i32_0, %c0_i32_1 : i32, i32, i32
  }
  func.func @transform_14(%arg0: i32) -> (i32, i32) {
    %c0_i32 = arith.constant 0 : i32
    %c0_i32_0 = arith.constant 0 : i32
    %c0_i32_1 = arith.constant 0 : i32
    return %c0_i32, %c0_i32_0 : i32, i32
  }
  func.func @transform_15(%arg0: i32) -> (i32, i32) {
    %c0_i32 = arith.constant 0 : i32
    %c0_i32_0 = arith.constant 0 : i32
    %c0_i32_1 = arith.constant 0 : i32
    return %c0_i32, %c0_i32_0 : i32, i32
  }
  func.func @transform_16(%arg0: i32) -> (i32, i32) {
    %c0_i32 = arith.constant 0 : i32
    %c0_i32_0 = arith.constant 0 : i32
    %c0_i32_1 = arith.constant 0 : i32
    return %c0_i32, %c0_i32_0 : i32, i32
  }
  func.func @transform_17(%arg0: i32) -> (i32, i32, i32) {
    %c0_i32 = arith.constant 0 : i32
    %c0_i32_0 = arith.constant 0 : i32
    %c0_i32_1 = arith.constant 0 : i32
    %c0_i32_2 = arith.constant 0 : i32
    return %c0_i32, %c0_i32_0, %c0_i32_1 : i32, i32, i32
  }
  func.func @transform_18(%arg0: i32) -> (i32, i32) {
    %c0_i32 = arith.constant 0 : i32
    %c0_i32_0 = arith.constant 0 : i32
    %c0_i32_1 = arith.constant 0 : i32
    return %c0_i32, %c0_i32_0 : i32, i32
  }
  func.func @transform_19(%arg0: i32) -> (i32, i32) {
    %c0_i32 = arith.constant 0 : i32
    %c0_i32_0 = arith.constant 0 : i32
    %c0_i32_1 = arith.constant 0 : i32
    return %c0_i32, %c0_i32_0 : i32, i32
  }
  func.func @transform_20(%arg0: i32) -> (i32, i32) {
    %c0_i32 = arith.constant 0 : i32
    %c0_i32_0 = arith.constant 0 : i32
    %c0_i32_1 = arith.constant 0 : i32
    return %c0_i32, %c0_i32_0 : i32, i32
  }
  func.func @transform_21(%arg0: i32) -> (i32, i32, i32) {
    %c0_i32 = arith.constant 0 : i32
    %c0_i32_0 = arith.constant 0 : i32
    %c0_i32_1 = arith.constant 0 : i32
    %c0_i32_2 = arith.constant 0 : i32
    return %c0_i32, %c0_i32_0, %c0_i32_1 : i32, i32, i32
  }
  func.func @transform_22(%arg0: i32) -> (i32, i32) {
    %c0_i32 = arith.constant 0 : i32
    %c0_i32_0 = arith.constant 0 : i32
    %c0_i32_1 = arith.constant 0 : i32
    return %c0_i32, %c0_i32_0 : i32, i32
  }
  func.func @transform_23(%arg0: i32) -> (i32, i32) {
    %c0_i32 = arith.constant 0 : i32
    %c0_i32_0 = arith.constant 0 : i32
    %c0_i32_1 = arith.constant 0 : i32
    return %c0_i32, %c0_i32_0 : i32, i32
  }
  func.func @transform_24(%arg0: i32) -> (i32, i32) {
    %c0_i32 = arith.constant 0 : i32
    %c0_i32_0 = arith.constant 0 : i32
    %c0_i32_1 = arith.constant 0 : i32
    return %c0_i32, %c0_i32_0 : i32, i32
  }
  func.func @transform_25(%arg0: i32) -> (i32, i32) {
    %c0_i32 = arith.constant 0 : i32
    %c0_i32_0 = arith.constant 0 : i32
    %c0_i32_1 = arith.constant 0 : i32
    return %c0_i32, %c0_i32_0 : i32, i32
  }
  func.func @transform_26(%arg0: i32) -> (i32, i32) {
    %c0_i32 = arith.constant 0 : i32
    %c0_i32_0 = arith.constant 0 : i32
    %c0_i32_1 = arith.constant 0 : i32
    return %c0_i32, %c0_i32_0 : i32, i32
  }
  func.func @transform_27(%arg0: i32) -> (i32, i32, i32, i32) {
    %c0_i32 = arith.constant 0 : i32
    %c0_i32_0 = arith.constant 0 : i32
    %c0_i32_1 = arith.constant 0 : i32
    %c0_i32_2 = arith.constant 0 : i32
    return %arg0, %c0_i32, %c0_i32_0, %c0_i32_1 : i32, i32, i32, i32
  }
  func.func @transform_28(%arg0: i32) -> (i32, i32, i32, i32) {
    %c0_i32 = arith.constant 0 : i32
    %c0_i32_0 = arith.constant 0 : i32
    %c0_i32_1 = arith.constant 0 : i32
    %c0_i32_2 = arith.constant 0 : i32
    return %arg0, %c0_i32, %c0_i32_0, %c0_i32_1 : i32, i32, i32, i32
  }
}

</mosaic_0001>

<llo_original>
// kernel: network_forward.1
$region0: #{network_forward.1}
  #allocation0 [shape = 'u32[]', space=smem, size = 0x4, offset = 0x4, fixed_abs, tag = 'smem constant byte address 0x4 - core index']
  #allocation1 [shape = 'u32[144,128]{1,0:T(1,128)}', space=vmem, size = 0x12000, scoped, tag = 'internal scratch']
  #allocation2 [shape = 'f32[2,16,48]{2,1,0:T(8,128)}', space=vmem, size = 0x4000, scoped, tag = 'scratch operand']
  %s0 = inlined_call_operand.vmem [shape: f32[2,16,48], index: 0, kind: input, shape index: {}]
  %s1 = inlined_call_operand.vmem [shape: bf16[3,48,48], index: 1, kind: input, shape index: {}]
  %s2 = inlined_call_operand.hbm [shape: f32[1,48], index: 2, kind: input, shape index: {}]
  %s3 = inlined_call_operand.vmem [shape: bf16[3,48,48], index: 3, kind: input, shape index: {}]
  %s4 = inlined_call_operand.hbm [shape: f32[1,48], index: 4, kind: input, shape index: {}]
  %s5 = inlined_call_operand.hbm [shape: f32[1,48], index: 5, kind: input, shape index: {}]
  %s6 = inlined_call_operand.hbm [shape: f32[1,48], index: 6, kind: input, shape index: {}]
  %s7 = inlined_call_operand.hbm [shape: bf16[3,48,48], index: 7, kind: input, shape index: {}]
  %s8 = inlined_call_operand.hbm [shape: f32[1,48], index: 8, kind: input, shape index: {}]
  %s9 = inlined_call_operand.vmem [shape: bf16[3,48,256], index: 9, kind: input, shape index: {}]
  %s10 = inlined_call_operand.vmem [shape: f32[1,256], index: 10, kind: input, shape index: {}]
  %s11 = inlined_call_operand.vmem [shape: f32[1,256], index: 11, kind: input, shape index: {}]
  %s12 = inlined_call_operand.vmem [shape: f32[1,256], index: 12, kind: input, shape index: {}]
  %s13 = inlined_call_operand.vmem [shape: bf16[3,256,256], index: 13, kind: input, shape index: {}]
  %s14 = inlined_call_operand.vmem [shape: f32[1,256], index: 14, kind: input, shape index: {}]
  %s15 = inlined_call_operand.vmem [shape: f32[1,256], index: 15, kind: input, shape index: {}]
  %s16 = inlined_call_operand.vmem [shape: f32[1,256], index: 16, kind: input, shape index: {}]
  %s17 = inlined_call_operand.hbm [shape: bf16[3,256,256], index: 17, kind: input, shape index: {}]
  %s18 = inlined_call_operand.vmem [shape: f32[1,256], index: 18, kind: input, shape index: {}]
  %s19 = inlined_call_operand.vmem [shape: f32[1,256], index: 19, kind: input, shape index: {}]
  %s20 = inlined_call_operand.vmem [shape: f32[1,256], index: 20, kind: input, shape index: {}]
  %s21 = inlined_call_operand.vmem [shape: bf16[3,256,48], index: 21, kind: input, shape index: {}]
  %s22 = inlined_call_operand.hbm [shape: f32[1,48], index: 22, kind: input, shape index: {}]
  %s23 = inlined_call_operand.vmem [shape: f32[48,3], index: 23, kind: input, shape index: {}]
  %s24 = inlined_call_operand.vmem [shape: f32[3,48], index: 24, kind: input, shape index: {}]
  %s25 = inlined_call_operand.vmem [shape: f32[256,16], index: 25, kind: input, shape index: {}]
  %s26 = inlined_call_operand.hbm [shape: f32[16,256], index: 26, kind: input, shape index: {}]
  %s27 = inlined_call_operand.vmem [shape: f32[3,2,16,48], index: 27, kind: output, shape index: {0}]
  %s28 = inlined_call_operand.vmem [shape: f32[3,2,16,48], index: 28, kind: output, shape index: {1}]
  %29 = xla_tuple %s27, %s28
  %s30 = sld [smem:[#allocation0]]
  $region189: #{network_forward.1} parent=0
    _
  %s32 = ssub.s32 1, %s30
  %s33 = scalar_select 0, %s32, %s30
  $region1: #{network_forward.1} parent=0
    #allocation3 [shape = 'u8[512]{0}', space=vmem, size = 0x400, scoped, tag = 'input window, operand 2, single buffered']
    #allocation4 [shape = 's32[2]{0}', space=sflag, size = 0x8, scoped, tag = 'scoped memory for network_forward.1']
    #allocation5 [shape = 'u8[512]{0}', space=vmem, size = 0x400, scoped, tag = 'input window, operand 4, single buffered']
    #allocation6 [shape = 's32[1]{0}', space=sflag, size = 0x4, scoped, tag = 'scoped memory for network_forward.1']
    #allocation7 [shape = 'u8[512]{0}', space=vmem, size = 0x400, scoped, tag = 'input window, operand 5, single buffered']
    #allocation8 [shape = 'u8[512]{0}', space=vmem, size = 0x400, scoped, tag = 'input window, operand 6, single buffered']
    #allocation9 [shape = 's32[1]{0}', space=sflag, size = 0x4, scoped, tag = 'scoped memory for network_forward.1']
    #allocation10 [shape = 'u8[36864]{0}', space=vmem, size = 0x9000, scoped, tag = 'input window, operand 7, single buffered']
    #allocation11 [shape = 'u8[512]{0}', space=vmem, size = 0x400, scoped, tag = 'input window, operand 8, single buffered']
    #allocation12 [shape = 's32[1]{0}', space=sflag, size = 0x4, scoped, tag = 'scoped memory for network_forward.1']
    #allocation13 [shape = 'u8[393216]{0}', space=vmem, size = 0x60000, scoped, tag = 'input window, operand 17, single buffered']
    #allocation14 [shape = 'u8[512]{0}', space=vmem, size = 0x400, scoped, tag = 'input window, operand 22, single buffered']
    #allocation15 [shape = 's32[1]{0}', space=sflag, size = 0x4, scoped, tag = 'scoped memory for network_forward.1']
    #allocation16 [shape = 'u8[16384]{0}', space=vmem, size = 0x4000, scoped, tag = 'input window, operand 26, single buffered']
    %34 = vsyncpa [#allocation4], 0
    %35 = vsyncpa [#allocation6], 0
    %36 = vsyncpa [#allocation9], 0
    %37 = vsyncpa [#allocation12], 0
    %38 = vsyncpa [#allocation15], 0
    loop: start=0, step=1, limit=5
    $region2: #{network_forward.1} parent=1 // loop_pre_header
      _
    $region3: #{network_forward.1} parent=1 // loop_header
      %s40 = sphi 0, %s44
      %p41 = scmp.ge.s32.totalorder %s40, 5
      %s48 = sphi 0, %s48
      %s50 = sphi 0, %s48
      %s51 = sphi 0, %s50
      %s65 = sphi 0, %s51
      %s69 = sphi 0, %s69
      %s71 = sphi 0, %s69
      %s72 = sphi 0, %s71
      %s86 = sphi 0, %s72
      %s90 = sphi 0, %s90
      %s92 = sphi 0, %s90
      %s93 = sphi 0, %s92
      %s107 = sphi 0, %s93
      %s111 = sphi 0, %s111
      %s113 = sphi 0, %s111
      %s114 = sphi 0, %s113
      %s128 = sphi 0, %s114
      %s132 = sphi 0, %s132
      %s134 = sphi 0, %s132
      %s135 = sphi 0, %s134
      %s149 = sphi 0, %s135
      %s153 = sphi 0, %s153
      %s155 = sphi 0, %s153
      %s156 = sphi 0, %s155
      %s170 = sphi 0, %s156
      %s174 = sphi 0, %s174
      %s176 = sphi 0, %s174
      %s177 = sphi 0, %s176
      %s191 = sphi 0, %s177
      %s195 = sphi 0, %s195
      %s197 = sphi 0, %s195
      %s198 = sphi 0, %s197
      %s212 = sphi 0, %s198
      %s216 = sphi 0, %s216
      %s218 = sphi 0, %s216
      %s219 = sphi 0, %s218
      %s233 = sphi 0, %s219
      %s237 = sphi 0, %s237
      %s239 = sphi 0, %s237
      %s240 = sphi 0, %s239
      %s254 = sphi 0, %s240
      %s258 = sphi 0, %s258
      %s260 = sphi 0, %s258
      %s261 = sphi 0, %s260
      %s275 = sphi 0, %s261
      %s279 = sphi 0, %s279
      %s281 = sphi 0, %s279
      %s282 = sphi 0, %s281
      %s296 = sphi 0, %s282
      %s300 = sphi 0, %s300
      %s302 = sphi 0, %s300
      %s303 = sphi 0, %s302
      %s317 = sphi 0, %s303
      %s321 = sphi 0, %s321
      %s323 = sphi 0, %s321
      %s324 = sphi 0, %s323
      %s338 = sphi 0, %s324
      %s342 = sphi 0, %s342
      %s344 = sphi 0, %s342
      %s345 = sphi 0, %s344
      %s359 = sphi 0, %s345
      %s363 = sphi 0, %s363
      %s365 = sphi 0, %s363
      %s366 = sphi 0, %s365
      %s380 = sphi 0, %s366
      %s384 = sphi 0, %s384
      %s386 = sphi 0, %s384
      %s387 = sphi 0, %s386
      %s401 = sphi 0, %s387
      %s405 = sphi 0, %s405
      %s407 = sphi 0, %s405
      %s408 = sphi 0, %s407
      %s422 = sphi 0, %s408
      %s426 = sphi 0, %s426
      %s428 = sphi 0, %s426
      %s429 = sphi 0, %s428
      %s443 = sphi 0, %s429
      %s447 = sphi 0, %s447
      %s449 = sphi 0, %s447
      %s450 = sphi 0, %s449
      %s464 = sphi 0, %s450
      %s468 = sphi 0, %s468
      %s470 = sphi 0, %s468
      %s471 = sphi 0, %s470
      %s485 = sphi 0, %s471
      %s489 = sphi 0, %s489
      %s491 = sphi 0, %s489
      %s492 = sphi 0, %s491
      %s506 = sphi 0, %s492
      %s510 = sphi 0, %s510
      %s512 = sphi 0, %s510
      %s513 = sphi 0, %s512
      %s527 = sphi 0, %s513
      %s531 = sphi 0, %s531
      %s533 = sphi 0, %s531
      %s534 = sphi 0, %s533
      %s548 = sphi 0, %s534
      %s552 = sphi 0, %s552
      %s554 = sphi 0, %s552
      %s555 = sphi 0, %s554
      %s569 = sphi 0, %s555
      %s573 = sphi 0, %s573
      %s575 = sphi 0, %s573
      %s576 = sphi 0, %s575
      %s590 = sphi 0, %s576
      %s594 = sphi 0, %s594
      %s596 = sphi 0, %s594
      %s597 = sphi 0, %s596
      %s611 = sphi 0, %s597
      %s617 = sphi 0, %s619
      %s620 = sphi 0, %s617
      %s621 = sphi 0, %s620
      %s637 = sphi 0, %s621
      %s643 = sphi 0, %s645
      %s646 = sphi 0, %s643
      %s647 = sphi 0, %s646
      %s663 = sphi 0, %s647
    $region4: #{network_forward.1} parent=1 // loop_header_branch
      %43 = sbr.rel (%p41) target = $region8
    $region5: #{network_forward.1} parent=1 // loop_body
      %s45 = ssub.s32 %s40, 1
      %s46 = ssub.s32 %s40, 2
      %s47 = sadd.s32 %s40, 1
      %s49 = sadd.s32 %s48, 1
      %p52 = scmp.eq.s32.totalorder %s40, 2
      %p53 = scmp.ne.s32.totalorder %s48, %s50
      %p54 = scmp.eq.s32.totalorder %s40, 0
      %p55 = por %p53, %p54
      %p56 = scmp.ne.s32.totalorder %s48, %s50
      %p57 = scmp.eq.s32.totalorder %s45, 2
      %p58 = por %p56, %p57
      %p59 = scmp.ne.s32.totalorder %s50, %s51
      %p60 = scmp.eq.s32.totalorder %s45, 0
      %p61 = por %p59, %p60
      %p62 = scmp.ne.s32.totalorder %s50, %s51
      %p63 = scmp.eq.s32.totalorder %s46, 2
      %p64 = por %p62, %p63
      %p66 = scmp.ne.s32.totalorder %s51, %s65
      %p67 = scmp.eq.s32.totalorder %s46, 0
      %p68 = por %p66, %p67
      %s70 = sadd.s32 %s69, 1
      %p73 = scmp.eq.s32.totalorder %s40, 2
      %p74 = scmp.ne.s32.totalorder %s69, %s71
      %p75 = scmp.eq.s32.totalorder %s40, 0
      %p76 = por %p74, %p75
      %p77 = scmp.ne.s32.totalorder %s69, %s71
      %p78 = scmp.eq.s32.totalorder %s45, 2
      %p79 = por %p77, %p78
      %p80 = scmp.ne.s32.totalorder %s71, %s72
      %p81 = scmp.eq.s32.totalorder %s45, 0
      %p82 = por %p80, %p81
      %p83 = scmp.ne.s32.totalorder %s71, %s72
      %p84 = scmp.eq.s32.totalorder %s46, 2
      %p85 = por %p83, %p84
      %p87 = scmp.ne.s32.totalorder %s72, %s86
      %p88 = scmp.eq.s32.totalorder %s46, 0
      %p89 = por %p87, %p88
      %s91 = sadd.s32 %s90, 1
      %p94 = scmp.eq.s32.totalorder %s40, 2
      %p95 = scmp.ne.s32.totalorder %s90, %s92
      %p96 = scmp.eq.s32.totalorder %s40, 0
      %p97 = por %p95, %p96
      %p98 = scmp.ne.s32.totalorder %s90, %s92
      %p99 = scmp.eq.s32.totalorder %s45, 2
      %p100 = por %p98, %p99
      %p101 = scmp.ne.s32.totalorder %s92, %s93
      %p102 = scmp.eq.s32.totalorder %s45, 0
      %p103 = por %p101, %p102
      %p104 = scmp.ne.s32.totalorder %s92, %s93
      %p105 = scmp.eq.s32.totalorder %s46, 2
      %p106 = por %p104, %p105
      %p108 = scmp.ne.s32.totalorder %s93, %s107
      %p109 = scmp.eq.s32.totalorder %s46, 0
      %p110 = por %p108, %p109
      %s112 = sadd.s32 %s111, 1
      %p115 = scmp.eq.s32.totalorder %s40, 2
      %p116 = scmp.ne.s32.totalorder %s111, %s113
      %p117 = scmp.eq.s32.totalorder %s40, 0
      %p118 = por %p116, %p117
      %p119 = scmp.ne.s32.totalorder %s111, %s113
      %p120 = scmp.eq.s32.totalorder %s45, 2
      %p121 = por %p119, %p120
      %p122 = scmp.ne.s32.totalorder %s113, %s114
      %p123 = scmp.eq.s32.totalorder %s45, 0
      %p124 = por %p122, %p123
      %p125 = scmp.ne.s32.totalorder %s113, %s114
      %p126 = scmp.eq.s32.totalorder %s46, 2
      %p127 = por %p125, %p126
      %p129 = scmp.ne.s32.totalorder %s114, %s128
      %p130 = scmp.eq.s32.totalorder %s46, 0
      %p131 = por %p129, %p130
      %s133 = sadd.s32 %s132, 1
      %p136 = scmp.eq.s32.totalorder %s40, 2
      %p137 = scmp.ne.s32.totalorder %s132, %s134
      %p138 = scmp.eq.s32.totalorder %s40, 0
      %p139 = por %p137, %p138
      %p140 = scmp.ne.s32.totalorder %s132, %s134
      %p141 = scmp.eq.s32.totalorder %s45, 2
      %p142 = por %p140, %p141
      %p143 = scmp.ne.s32.totalorder %s134, %s135
      %p144 = scmp.eq.s32.totalorder %s45, 0
      %p145 = por %p143, %p144
      %p146 = scmp.ne.s32.totalorder %s134, %s135
      %p147 = scmp.eq.s32.totalorder %s46, 2
      %p148 = por %p146, %p147
      %p150 = scmp.ne.s32.totalorder %s135, %s149
      %p151 = scmp.eq.s32.totalorder %s46, 0
      %p152 = por %p150, %p151
      %s154 = sadd.s32 %s153, 1
      %p157 = scmp.eq.s32.totalorder %s40, 2
      %p158 = scmp.ne.s32.totalorder %s153, %s155
      %p159 = scmp.eq.s32.totalorder %s40, 0
      %p160 = por %p158, %p159
      %p161 = scmp.ne.s32.totalorder %s153, %s155
      %p162 = scmp.eq.s32.totalorder %s45, 2
      %p163 = por %p161, %p162
      %p164 = scmp.ne.s32.totalorder %s155, %s156
      %p165 = scmp.eq.s32.totalorder %s45, 0
      %p166 = por %p164, %p165
      %p167 = scmp.ne.s32.totalorder %s155, %s156
      %p168 = scmp.eq.s32.totalorder %s46, 2
      %p169 = por %p167, %p168
      %p171 = scmp.ne.s32.totalorder %s156, %s170
      %p172 = scmp.eq.s32.totalorder %s46, 0
      %p173 = por %p171, %p172
      %s175 = sadd.s32 %s174, 1
      %p178 = scmp.eq.s32.totalorder %s40, 2
      %p179 = scmp.ne.s32.totalorder %s174, %s176
      %p180 = scmp.eq.s32.totalorder %s40, 0
      %p181 = por %p179, %p180
      %p182 = scmp.ne.s32.totalorder %s174, %s176
      %p183 = scmp.eq.s32.totalorder %s45, 2
      %p184 = por %p182, %p183
      %p185 = scmp.ne.s32.totalorder %s176, %s177
      %p186 = scmp.eq.s32.totalorder %s45, 0
      %p187 = por %p185, %p186
      %p188 = scmp.ne.s32.totalorder %s176, %s177
      %p189 = scmp.eq.s32.totalorder %s46, 2
      %p190 = por %p188, %p189
      %p192 = scmp.ne.s32.totalorder %s177, %s191
      %p193 = scmp.eq.s32.totalorder %s46, 0
      %p194 = por %p192, %p193
      %s196 = sadd.s32 %s195, 1
      %p199 = scmp.eq.s32.totalorder %s40, 2
      %p200 = scmp.ne.s32.totalorder %s195, %s197
      %p201 = scmp.eq.s32.totalorder %s40, 0
      %p202 = por %p200, %p201
      %p203 = scmp.ne.s32.totalorder %s195, %s197
      %p204 = scmp.eq.s32.totalorder %s45, 2
      %p205 = por %p203, %p204
      %p206 = scmp.ne.s32.totalorder %s197, %s198
      %p207 = scmp.eq.s32.totalorder %s45, 0
      %p208 = por %p206, %p207
      %p209 = scmp.ne.s32.totalorder %s197, %s198
      %p210 = scmp.eq.s32.totalorder %s46, 2
      %p211 = por %p209, %p210
      %p213 = scmp.ne.s32.totalorder %s198, %s212
      %p214 = scmp.eq.s32.totalorder %s46, 0
      %p215 = por %p213, %p214
      %s217 = sadd.s32 %s216, 1
      %p220 = scmp.eq.s32.totalorder %s40, 2
      %p221 = scmp.ne.s32.totalorder %s216, %s218
      %p222 = scmp.eq.s32.totalorder %s40, 0
      %p223 = por %p221, %p222
      %p224 = scmp.ne.s32.totalorder %s216, %s218
      %p225 = scmp.eq.s32.totalorder %s45, 2
      %p226 = por %p224, %p225
      %p227 = scmp.ne.s32.totalorder %s218, %s219
      %p228 = scmp.eq.s32.totalorder %s45, 0
      %p229 = por %p227, %p228
      %p230 = scmp.ne.s32.totalorder %s218, %s219
      %p231 = scmp.eq.s32.totalorder %s46, 2
      %p232 = por %p230, %p231
      %p234 = scmp.ne.s32.totalorder %s219, %s233
      %p235 = scmp.eq.s32.totalorder %s46, 0
      %p236 = por %p234, %p235
      %s238 = sadd.s32 %s237, 1
      %p241 = scmp.eq.s32.totalorder %s40, 2
      %p242 = scmp.ne.s32.totalorder %s237, %s239
      %p243 = scmp.eq.s32.totalorder %s40, 0
      %p244 = por %p242, %p243
      %p245 = scmp.ne.s32.totalorder %s237, %s239
      %p246 = scmp.eq.s32.totalorder %s45, 2
      %p247 = por %p245, %p246
      %p248 = scmp.ne.s32.totalorder %s239, %s240
      %p249 = scmp.eq.s32.totalorder %s45, 0
      %p250 = por %p248, %p249
      %p251 = scmp.ne.s32.totalorder %s239, %s240
      %p252 = scmp.eq.s32.totalorder %s46, 2
      %p253 = por %p251, %p252
      %p255 = scmp.ne.s32.totalorder %s240, %s254
      %p256 = scmp.eq.s32.totalorder %s46, 0
      %p257 = por %p255, %p256
      %s259 = sadd.s32 %s258, 1
      %p262 = scmp.eq.s32.totalorder %s40, 2
      %p263 = scmp.ne.s32.totalorder %s258, %s260
      %p264 = scmp.eq.s32.totalorder %s40, 0
      %p265 = por %p263, %p264
      %p266 = scmp.ne.s32.totalorder %s258, %s260
      %p267 = scmp.eq.s32.totalorder %s45, 2
      %p268 = por %p266, %p267
      %p269 = scmp.ne.s32.totalorder %s260, %s261
      %p270 = scmp.eq.s32.totalorder %s45, 0
      %p271 = por %p269, %p270
      %p272 = scmp.ne.s32.totalorder %s260, %s261
      %p273 = scmp.eq.s32.totalorder %s46, 2
      %p274 = por %p272, %p273
      %p276 = scmp.ne.s32.totalorder %s261, %s275
      %p277 = scmp.eq.s32.totalorder %s46, 0
      %p278 = por %p276, %p277
      %s280 = sadd.s32 %s279, 1
      %p283 = scmp.eq.s32.totalorder %s40, 2
      %p284 = scmp.ne.s32.totalorder %s279, %s281
      %p285 = scmp.eq.s32.totalorder %s40, 0
      %p286 = por %p284, %p285
      %p287 = scmp.ne.s32.totalorder %s279, %s281
      %p288 = scmp.eq.s32.totalorder %s45, 2
      %p289 = por %p287, %p288
      %p290 = scmp.ne.s32.totalorder %s281, %s282
      %p291 = scmp.eq.s32.totalorder %s45, 0
      %p292 = por %p290, %p291
      %p293 = scmp.ne.s32.totalorder %s281, %s282
      %p294 = scmp.eq.s32.totalorder %s46, 2
      %p295 = por %p293, %p294
      %p297 = scmp.ne.s32.totalorder %s282, %s296
      %p298 = scmp.eq.s32.totalorder %s46, 0
      %p299 = por %p297, %p298
      %s301 = sadd.s32 %s300, 1
      %p304 = scmp.eq.s32.totalorder %s40, 2
      %p305 = scmp.ne.s32.totalorder %s300, %s302
      %p306 = scmp.eq.s32.totalorder %s40, 0
      %p307 = por %p305, %p306
      %p308 = scmp.ne.s32.totalorder %s300, %s302
      %p309 = scmp.eq.s32.totalorder %s45, 2
      %p310 = por %p308, %p309
      %p311 = scmp.ne.s32.totalorder %s302, %s303
      %p312 = scmp.eq.s32.totalorder %s45, 0
      %p313 = por %p311, %p312
      %p314 = scmp.ne.s32.totalorder %s302, %s303
      %p315 = scmp.eq.s32.totalorder %s46, 2
      %p316 = por %p314, %p315
      %p318 = scmp.ne.s32.totalorder %s303, %s317
      %p319 = scmp.eq.s32.totalorder %s46, 0
      %p320 = por %p318, %p319
      %s322 = sadd.s32 %s321, 1
      %p325 = scmp.eq.s32.totalorder %s40, 2
      %p326 = scmp.ne.s32.totalorder %s321, %s323
      %p327 = scmp.eq.s32.totalorder %s40, 0
      %p328 = por %p326, %p327
      %p329 = scmp.ne.s32.totalorder %s321, %s323
      %p330 = scmp.eq.s32.totalorder %s45, 2
      %p331 = por %p329, %p330
      %p332 = scmp.ne.s32.totalorder %s323, %s324
      %p333 = scmp.eq.s32.totalorder %s45, 0
      %p334 = por %p332, %p333
      %p335 = scmp.ne.s32.totalorder %s323, %s324
      %p336 = scmp.eq.s32.totalorder %s46, 2
      %p337 = por %p335, %p336
      %p339 = scmp.ne.s32.totalorder %s324, %s338
      %p340 = scmp.eq.s32.totalorder %s46, 0
      %p341 = por %p339, %p340
      %s343 = sadd.s32 %s342, 1
      %p346 = scmp.eq.s32.totalorder %s40, 2
      %p347 = scmp.ne.s32.totalorder %s342, %s344
      %p348 = scmp.eq.s32.totalorder %s40, 0
      %p349 = por %p347, %p348
      %p350 = scmp.ne.s32.totalorder %s342, %s344
      %p351 = scmp.eq.s32.totalorder %s45, 2
      %p352 = por %p350, %p351
      %p353 = scmp.ne.s32.totalorder %s344, %s345
      %p354 = scmp.eq.s32.totalorder %s45, 0
      %p355 = por %p353, %p354
      %p356 = scmp.ne.s32.totalorder %s344, %s345
      %p357 = scmp.eq.s32.totalorder %s46, 2
      %p358 = por %p356, %p357
      %p360 = scmp.ne.s32.totalorder %s345, %s359
      %p361 = scmp.eq.s32.totalorder %s46, 0
      %p362 = por %p360, %p361
      %s364 = sadd.s32 %s363, 1
      %p367 = scmp.eq.s32.totalorder %s40, 2
      %p368 = scmp.ne.s32.totalorder %s363, %s365
      %p369 = scmp.eq.s32.totalorder %s40, 0
      %p370 = por %p368, %p369
      %p371 = scmp.ne.s32.totalorder %s363, %s365
      %p372 = scmp.eq.s32.totalorder %s45, 2
      %p373 = por %p371, %p372
      %p374 = scmp.ne.s32.totalorder %s365, %s366
      %p375 = scmp.eq.s32.totalorder %s45, 0
      %p376 = por %p374, %p375
      %p377 = scmp.ne.s32.totalorder %s365, %s366
      %p378 = scmp.eq.s32.totalorder %s46, 2
      %p379 = por %p377, %p378
      %p381 = scmp.ne.s32.totalorder %s366, %s380
      %p382 = scmp.eq.s32.totalorder %s46, 0
      %p383 = por %p381, %p382
      %s385 = sadd.s32 %s384, 1
      %p388 = scmp.eq.s32.totalorder %s40, 2
      %p389 = scmp.ne.s32.totalorder %s384, %s386
      %p390 = scmp.eq.s32.totalorder %s40, 0
      %p391 = por %p389, %p390
      %p392 = scmp.ne.s32.totalorder %s384, %s386
      %p393 = scmp.eq.s32.totalorder %s45, 2
      %p394 = por %p392, %p393
      %p395 = scmp.ne.s32.totalorder %s386, %s387
      %p396 = scmp.eq.s32.totalorder %s45, 0
      %p397 = por %p395, %p396
      %p398 = scmp.ne.s32.totalorder %s386, %s387
      %p399 = scmp.eq.s32.totalorder %s46, 2
      %p400 = por %p398, %p399
      %p402 = scmp.ne.s32.totalorder %s387, %s401
      %p403 = scmp.eq.s32.totalorder %s46, 0
      %p404 = por %p402, %p403
      %s406 = sadd.s32 %s405, 1
      %p409 = scmp.eq.s32.totalorder %s40, 2
      %p410 = scmp.ne.s32.totalorder %s405, %s407
      %p411 = scmp.eq.s32.totalorder %s40, 0
      %p412 = por %p410, %p411
      %p413 = scmp.ne.s32.totalorder %s405, %s407
      %p414 = scmp.eq.s32.totalorder %s45, 2
      %p415 = por %p413, %p414
      %p416 = scmp.ne.s32.totalorder %s407, %s408
      %p417 = scmp.eq.s32.totalorder %s45, 0
      %p418 = por %p416, %p417
      %p419 = scmp.ne.s32.totalorder %s407, %s408
      %p420 = scmp.eq.s32.totalorder %s46, 2
      %p421 = por %p419, %p420
      %p423 = scmp.ne.s32.totalorder %s408, %s422
      %p424 = scmp.eq.s32.totalorder %s46, 0
      %p425 = por %p423, %p424
      %s427 = sadd.s32 %s426, 1
      %p430 = scmp.eq.s32.totalorder %s40, 2
      %p431 = scmp.ne.s32.totalorder %s426, %s428
      %p432 = scmp.eq.s32.totalorder %s40, 0
      %p433 = por %p431, %p432
      %p434 = scmp.ne.s32.totalorder %s426, %s428
      %p435 = scmp.eq.s32.totalorder %s45, 2
      %p436 = por %p434, %p435
      %p437 = scmp.ne.s32.totalorder %s428, %s429
      %p438 = scmp.eq.s32.totalorder %s45, 0
      %p439 = por %p437, %p438
      %p440 = scmp.ne.s32.totalorder %s428, %s429
      %p441 = scmp.eq.s32.totalorder %s46, 2
      %p442 = por %p440, %p441
      %p444 = scmp.ne.s32.totalorder %s429, %s443
      %p445 = scmp.eq.s32.totalorder %s46, 0
      %p446 = por %p444, %p445
      %s448 = sadd.s32 %s447, 1
      %p451 = scmp.eq.s32.totalorder %s40, 2
      %p452 = scmp.ne.s32.totalorder %s447, %s449
      %p453 = scmp.eq.s32.totalorder %s40, 0
      %p454 = por %p452, %p453
      %p455 = scmp.ne.s32.totalorder %s447, %s449
      %p456 = scmp.eq.s32.totalorder %s45, 2
      %p457 = por %p455, %p456
      %p458 = scmp.ne.s32.totalorder %s449, %s450
      %p459 = scmp.eq.s32.totalorder %s45, 0
      %p460 = por %p458, %p459
      %p461 = scmp.ne.s32.totalorder %s449, %s450
      %p462 = scmp.eq.s32.totalorder %s46, 2
      %p463 = por %p461, %p462
      %p465 = scmp.ne.s32.totalorder %s450, %s464
      %p466 = scmp.eq.s32.totalorder %s46, 0
      %p467 = por %p465, %p466
      %s469 = sadd.s32 %s468, 1
      %p472 = scmp.eq.s32.totalorder %s40, 2
      %p473 = scmp.ne.s32.totalorder %s468, %s470
      %p474 = scmp.eq.s32.totalorder %s40, 0
      %p475 = por %p473, %p474
      %p476 = scmp.ne.s32.totalorder %s468, %s470
      %p477 = scmp.eq.s32.totalorder %s45, 2
      %p478 = por %p476, %p477
      %p479 = scmp.ne.s32.totalorder %s470, %s471
      %p480 = scmp.eq.s32.totalorder %s45, 0
      %p481 = por %p479, %p480
      %p482 = scmp.ne.s32.totalorder %s470, %s471
      %p483 = scmp.eq.s32.totalorder %s46, 2
      %p484 = por %p482, %p483
      %p486 = scmp.ne.s32.totalorder %s471, %s485
      %p487 = scmp.eq.s32.totalorder %s46, 0
      %p488 = por %p486, %p487
      %s490 = sadd.s32 %s489, 1
      %p493 = scmp.eq.s32.totalorder %s40, 2
      %p494 = scmp.ne.s32.totalorder %s489, %s491
      %p495 = scmp.eq.s32.totalorder %s40, 0
      %p496 = por %p494, %p495
      %p497 = scmp.ne.s32.totalorder %s489, %s491
      %p498 = scmp.eq.s32.totalorder %s45, 2
      %p499 = por %p497, %p498
      %p500 = scmp.ne.s32.totalorder %s491, %s492
      %p501 = scmp.eq.s32.totalorder %s45, 0
      %p502 = por %p500, %p501
      %p503 = scmp.ne.s32.totalorder %s491, %s492
      %p504 = scmp.eq.s32.totalorder %s46, 2
      %p505 = por %p503, %p504
      %p507 = scmp.ne.s32.totalorder %s492, %s506
      %p508 = scmp.eq.s32.totalorder %s46, 0
      %p509 = por %p507, %p508
      %s511 = sadd.s32 %s510, 1
      %p514 = scmp.eq.s32.totalorder %s40, 2
      %p515 = scmp.ne.s32.totalorder %s510, %s512
      %p516 = scmp.eq.s32.totalorder %s40, 0
      %p517 = por %p515, %p516
      %p518 = scmp.ne.s32.totalorder %s510, %s512
      %p519 = scmp.eq.s32.totalorder %s45, 2
      %p520 = por %p518, %p519
      %p521 = scmp.ne.s32.totalorder %s512, %s513
      %p522 = scmp.eq.s32.totalorder %s45, 0
      %p523 = por %p521, %p522
      %p524 = scmp.ne.s32.totalorder %s512, %s513
      %p525 = scmp.eq.s32.totalorder %s46, 2
      %p526 = por %p524, %p525
      %p528 = scmp.ne.s32.totalorder %s513, %s527
      %p529 = scmp.eq.s32.totalorder %s46, 0
      %p530 = por %p528, %p529
      %s532 = sadd.s32 %s531, 1
      %p535 = scmp.eq.s32.totalorder %s40, 2
      %p536 = scmp.ne.s32.totalorder %s531, %s533
      %p537 = scmp.eq.s32.totalorder %s40, 0
      %p538 = por %p536, %p537
      %p539 = scmp.ne.s32.totalorder %s531, %s533
      %p540 = scmp.eq.s32.totalorder %s45, 2
      %p541 = por %p539, %p540
      %p542 = scmp.ne.s32.totalorder %s533, %s534
      %p543 = scmp.eq.s32.totalorder %s45, 0
      %p544 = por %p542, %p543
      %p545 = scmp.ne.s32.totalorder %s533, %s534
      %p546 = scmp.eq.s32.totalorder %s46, 2
      %p547 = por %p545, %p546
      %p549 = scmp.ne.s32.totalorder %s534, %s548
      %p550 = scmp.eq.s32.totalorder %s46, 0
      %p551 = por %p549, %p550
      %s553 = sadd.s32 %s552, 1
      %p556 = scmp.eq.s32.totalorder %s40, 2
      %p557 = scmp.ne.s32.totalorder %s552, %s554
      %p558 = scmp.eq.s32.totalorder %s40, 0
      %p559 = por %p557, %p558
      %p560 = scmp.ne.s32.totalorder %s552, %s554
      %p561 = scmp.eq.s32.totalorder %s45, 2
      %p562 = por %p560, %p561
      %p563 = scmp.ne.s32.totalorder %s554, %s555
      %p564 = scmp.eq.s32.totalorder %s45, 0
      %p565 = por %p563, %p564
      %p566 = scmp.ne.s32.totalorder %s554, %s555
      %p567 = scmp.eq.s32.totalorder %s46, 2
      %p568 = por %p566, %p567
      %p570 = scmp.ne.s32.totalorder %s555, %s569
      %p571 = scmp.eq.s32.totalorder %s46, 0
      %p572 = por %p570, %p571
      %s574 = sadd.s32 %s573, 1
      %p577 = scmp.eq.s32.totalorder %s40, 2
      %p578 = scmp.ne.s32.totalorder %s573, %s575
      %p579 = scmp.eq.s32.totalorder %s40, 0
      %p580 = por %p578, %p579
      %p581 = scmp.ne.s32.totalorder %s573, %s575
      %p582 = scmp.eq.s32.totalorder %s45, 2
      %p583 = por %p581, %p582
      %p584 = scmp.ne.s32.totalorder %s575, %s576
      %p585 = scmp.eq.s32.totalorder %s45, 0
      %p586 = por %p584, %p585
      %p587 = scmp.ne.s32.totalorder %s575, %s576
      %p588 = scmp.eq.s32.totalorder %s46, 2
      %p589 = por %p587, %p588
      %p591 = scmp.ne.s32.totalorder %s576, %s590
      %p592 = scmp.eq.s32.totalorder %s46, 0
      %p593 = por %p591, %p592
      %s595 = sadd.s32 %s594, 1
      %p598 = scmp.eq.s32.totalorder %s40, 2
      %p599 = scmp.ne.s32.totalorder %s594, %s596
      %p600 = scmp.eq.s32.totalorder %s40, 0
      %p601 = por %p599, %p600
      %p602 = scmp.ne.s32.totalorder %s594, %s596
      %p603 = scmp.eq.s32.totalorder %s45, 2
      %p604 = por %p602, %p603
      %p605 = scmp.ne.s32.totalorder %s596, %s597
      %p606 = scmp.eq.s32.totalorder %s45, 0
      %p607 = por %p605, %p606
      %p608 = scmp.ne.s32.totalorder %s596, %s597
      %p609 = scmp.eq.s32.totalorder %s46, 2
      %p610 = por %p608, %p609
      %p612 = scmp.ne.s32.totalorder %s597, %s611
      %p613 = scmp.eq.s32.totalorder %s46, 0
      %p614 = por %p612, %p613
      %s615 = ssub.s32 %s40, %s47
      %p616 = scmp.eq.s32.totalorder %s615, 0
      %s618 = sadd.s32 %s617, 1
      %s619 = scalar_select %p616, %s617, %s618
      %p622 = pneg %p616
      %p623 = scmp.eq.s32.totalorder %s40, 2
      %p624 = por %p622, %p623
      %p625 = scmp.ne.s32.totalorder %s617, %s620
      %p626 = scmp.eq.s32.totalorder %s40, 0
      %p627 = por %p625, %p626
      %p628 = scmp.ne.s32.totalorder %s617, %s620
      %p629 = scmp.eq.s32.totalorder %s45, 2
      %p630 = por %p628, %p629
      %p631 = scmp.ne.s32.totalorder %s620, %s621
      %p632 = scmp.eq.s32.totalorder %s45, 0
      %p633 = por %p631, %p632
      %p634 = scmp.ne.s32.totalorder %s620, %s621
      %p635 = scmp.eq.s32.totalorder %s46, 2
      %p636 = por %p634, %p635
      %p638 = scmp.ne.s32.totalorder %s621, %s637
      %p639 = scmp.eq.s32.totalorder %s46, 0
      %p640 = por %p638, %p639
      %s641 = ssub.s32 %s40, %s47
      %p642 = scmp.eq.s32.totalorder %s641, 0
      %s644 = sadd.s32 %s643, 1
      %s645 = scalar_select %p642, %s643, %s644
      %p648 = pneg %p642
      %p649 = scmp.eq.s32.totalorder %s40, 2
      %p650 = por %p648, %p649
      %p651 = scmp.ne.s32.totalorder %s643, %s646
      %p652 = scmp.eq.s32.totalorder %s40, 0
      %p653 = por %p651, %p652
      %p654 = scmp.ne.s32.totalorder %s643, %s646
      %p655 = scmp.eq.s32.totalorder %s45, 2
      %p656 = por %p654, %p655
      %p657 = scmp.ne.s32.totalorder %s646, %s647
      %p658 = scmp.eq.s32.totalorder %s45, 0
      %p659 = por %p657, %p658
      %p660 = scmp.ne.s32.totalorder %s646, %s647
      %p661 = scmp.eq.s32.totalorder %s46, 2
      %p662 = por %p660, %p661
      %p664 = scmp.ne.s32.totalorder %s647, %s663
      %p665 = scmp.eq.s32.totalorder %s46, 0
      %p666 = por %p664, %p665
      %p667 = scmp.le.s32.totalorder 1, %s40
      %p668 = scmp.lt.s32.totalorder %s40, 4
      %p669 = pnand %p667, %p668
      %p670 = pneg %p669
      // Predicated region
      $region9: #{network_forward.1} parent=5 // pred_check
        _
      $region10: #{network_forward.1} parent=5 // pred_check_branch
        %672 = sbr.rel (%p669) target = $region12
      $region11: #{network_forward.1} parent=5 // pred_region
        %s673 = ssub.s32 %s40, 1
        // Predicated region
        $region13: #{network_forward.1} parent=11 // pred_check
          %p674 = pneg %p61
        $region14: #{network_forward.1} parent=11 // pred_check_branch
          %676 = sbr.rel (%p674) target = $region16
        $region15: #{network_forward.1} parent=11 // pred_region
          _
        $region16: #{network_forward.1} parent=11 // pred_fallthru
          _
        // Predicated region
        $region17: #{network_forward.1} parent=11 // pred_check
          %p677 = pneg %p82
        $region18: #{network_forward.1} parent=11 // pred_check_branch
          %679 = sbr.rel (%p677) target = $region20
        $region19: #{network_forward.1} parent=11 // pred_region
          _
        $region20: #{network_forward.1} parent=11 // pred_fallthru
          _
        // Predicated region
        $region21: #{network_forward.1} parent=11 // pred_check
          %p680 = pneg %p103
        $region22: #{network_forward.1} parent=11 // pred_check_branch
          %682 = sbr.rel (%p680) target = $region24
        $region23: #{network_forward.1} parent=11 // pred_region
          %s684 = ssub.s32 16, 16
          %685 = vsyncadd [#allocation4], %s684
          %s687 = sshll.u32 [#allocation3], 4
          %s688 = int_to_ptr.vmem [resolvable:$true] %s687
          %690 = dma.hbm_to_vmem [thread:$0]  %s2, 16, %s688, [#allocation4]
        $region24: #{network_forward.1} parent=11 // pred_fallthru
          _
        // Predicated region
        $region25: #{network_forward.1} parent=11 // pred_check
          %p691 = pneg %p124
        $region26: #{network_forward.1} parent=11 // pred_check_branch
          %693 = sbr.rel (%p691) target = $region28
        $region27: #{network_forward.1} parent=11 // pred_region
          _
        $region28: #{network_forward.1} parent=11 // pred_fallthru
          _
        // Predicated region
        $region29: #{network_forward.1} parent=11 // pred_check
          %p694 = pneg %p145
        $region30: #{network_forward.1} parent=11 // pred_check_branch
          %696 = sbr.rel (%p694) target = $region32
        $region31: #{network_forward.1} parent=11 // pred_region
          %s698 = ssub.s32 16, 16
          %699 = vsyncadd [#allocation6], %s698
          %s701 = sshll.u32 [#allocation5], 4
          %s702 = int_to_ptr.vmem [resolvable:$true] %s701
          %704 = dma.hbm_to_vmem [thread:$0]  %s4, 16, %s702, [#allocation6]
        $region32: #{network_forward.1} parent=11 // pred_fallthru
          _
        // Predicated region
        $region33: #{network_forward.1} parent=11 // pred_check
          %p705 = pneg %p166
        $region34: #{network_forward.1} parent=11 // pred_check_branch
          %707 = sbr.rel (%p705) target = $region36
        $region35: #{network_forward.1} parent=11 // pred_region
          %s709 = ssub.s32 16, 16
          %710 = vsyncadd [#allocation6], %s709
          %s712 = sshll.u32 [#allocation7], 4
          %s713 = int_to_ptr.vmem [resolvable:$true] %s712
          %715 = dma.hbm_to_vmem [thread:$0]  %s5, 16, %s713, [#allocation6]
        $region36: #{network_forward.1} parent=11 // pred_fallthru
          _
        // Predicated region
        $region37: #{network_forward.1} parent=11 // pred_check
          %p716 = pneg %p187
        $region38: #{network_forward.1} parent=11 // pred_check_branch
          %718 = sbr.rel (%p716) target = $region40
        $region39: #{network_forward.1} parent=11 // pred_region
          %s720 = ssub.s32 16, 16
          %721 = vsyncadd [#allocation9], %s720
          %s723 = sshll.u32 [#allocation8], 4
          %s724 = int_to_ptr.vmem [resolvable:$true] %s723
          %726 = dma.hbm_to_vmem [thread:$0]  %s6, 16, %s724, [#allocation9]
        $region40: #{network_forward.1} parent=11 // pred_fallthru
          _
        // Predicated region
        $region41: #{network_forward.1} parent=11 // pred_check
          %p727 = pneg %p208
        $region42: #{network_forward.1} parent=11 // pred_check_branch
          %729 = sbr.rel (%p727) target = $region44
        $region43: #{network_forward.1} parent=11 // pred_region
          %s731 = ssub.s32 1152, 1152
          %732 = vsyncadd [#allocation9], %s731
          %s733 = sshll.u32 [#allocation10], 4
          %s734 = int_to_ptr.vmem [resolvable:$true] %s733
          %739 = dma.hbm_to_vmem [thread:$0]  %s7, 1152, %s734, [#allocation9], 64, 64, 4
        $region44: #{network_forward.1} parent=11 // pred_fallthru
          _
        // Predicated region
        $region45: #{network_forward.1} parent=11 // pred_check
          %p740 = pneg %p229
        $region46: #{network_forward.1} parent=11 // pred_check_branch
          %742 = sbr.rel (%p740) target = $region48
        $region47: #{network_forward.1} parent=11 // pred_region
          %s744 = ssub.s32 16, 16
          %745 = vsyncadd [#allocation12], %s744
          %s747 = sshll.u32 [#allocation11], 4
          %s748 = int_to_ptr.vmem [resolvable:$true] %s747
          %750 = dma.hbm_to_vmem [thread:$0]  %s8, 16, %s748, [#allocation12]
        $region48: #{network_forward.1} parent=11 // pred_fallthru
          _
        // Predicated region
        $region49: #{network_forward.1} parent=11 // pred_check
          %p751 = pneg %p250
        $region50: #{network_forward.1} parent=11 // pred_check_branch
          %753 = sbr.rel (%p751) target = $region52
        $region51: #{network_forward.1} parent=11 // pred_region
          _
        $region52: #{network_forward.1} parent=11 // pred_fallthru
          _
        // Predicated region
        $region53: #{network_forward.1} parent=11 // pred_check
          %p754 = pneg %p271
        $region54: #{network_forward.1} parent=11 // pred_check_branch
          %756 = sbr.rel (%p754) target = $region56
        $region55: #{network_forward.1} parent=11 // pred_region
          _
        $region56: #{network_forward.1} parent=11 // pred_fallthru
          _
        // Predicated region
        $region57: #{network_forward.1} parent=11 // pred_check
          %p757 = pneg %p292
        $region58: #{network_forward.1} parent=11 // pred_check_branch
          %759 = sbr.rel (%p757) target = $region60
        $region59: #{network_forward.1} parent=11 // pred_region
          _
        $region60: #{network_forward.1} parent=11 // pred_fallthru
          _
        // Predicated region
        $region61: #{network_forward.1} parent=11 // pred_check
          %p760 = pneg %p313
        $region62: #{network_forward.1} parent=11 // pred_check_branch
          %762 = sbr.rel (%p760) target = $region64
        $region63: #{network_forward.1} parent=11 // pred_region
          _
        $region64: #{network_forward.1} parent=11 // pred_fallthru
          _
        // Predicated region
        $region65: #{network_forward.1} parent=11 // pred_check
          %p763 = pneg %p334
        $region66: #{network_forward.1} parent=11 // pred_check_branch
          %765 = sbr.rel (%p763) target = $region68
        $region67: #{network_forward.1} parent=11 // pred_region
          _
        $region68: #{network_forward.1} parent=11 // pred_fallthru
          _
        // Predicated region
        $region69: #{network_forward.1} parent=11 // pred_check
          %p766 = pneg %p355
        $region70: #{network_forward.1} parent=11 // pred_check_branch
          %768 = sbr.rel (%p766) target = $region72
        $region71: #{network_forward.1} parent=11 // pred_region
          _
        $region72: #{network_forward.1} parent=11 // pred_fallthru
          _
        // Predicated region
        $region73: #{network_forward.1} parent=11 // pred_check
          %p769 = pneg %p376
        $region74: #{network_forward.1} parent=11 // pred_check_branch
          %771 = sbr.rel (%p769) target = $region76
        $region75: #{network_forward.1} parent=11 // pred_region
          _
        $region76: #{network_forward.1} parent=11 // pred_fallthru
          _
        // Predicated region
        $region77: #{network_forward.1} parent=11 // pred_check
          %p772 = pneg %p397
        $region78: #{network_forward.1} parent=11 // pred_check_branch
          %774 = sbr.rel (%p772) target = $region80
        $region79: #{network_forward.1} parent=11 // pred_region
          _
        $region80: #{network_forward.1} parent=11 // pred_fallthru
          _
        // Predicated region
        $region81: #{network_forward.1} parent=11 // pred_check
          %p775 = pneg %p418
        $region82: #{network_forward.1} parent=11 // pred_check_branch
          %777 = sbr.rel (%p775) target = $region84
        $region83: #{network_forward.1} parent=11 // pred_region
          %s779 = ssub.s32 12288, 12288
          %780 = vsyncadd [#allocation12], %s779
          %s781 = sshll.u32 [#allocation13], 4
          %s782 = int_to_ptr.vmem [resolvable:$true] %s781
          %787 = dma.hbm_to_vmem [thread:$0]  %s17, 12288, %s782, [#allocation12], 128, 128, 8
        $region84: #{network_forward.1} parent=11 // pred_fallthru
          _
        // Predicated region
        $region85: #{network_forward.1} parent=11 // pred_check
          %p788 = pneg %p439
        $region86: #{network_forward.1} parent=11 // pred_check_branch
          %790 = sbr.rel (%p788) target = $region88
        $region87: #{network_forward.1} parent=11 // pred_region
          _
        $region88: #{network_forward.1} parent=11 // pred_fallthru
          _
        // Predicated region
        $region89: #{network_forward.1} parent=11 // pred_check
          %p791 = pneg %p460
        $region90: #{network_forward.1} parent=11 // pred_check_branch
          %793 = sbr.rel (%p791) target = $region92
        $region91: #{network_forward.1} parent=11 // pred_region
          _
        $region92: #{network_forward.1} parent=11 // pred_fallthru
          _
        // Predicated region
        $region93: #{network_forward.1} parent=11 // pred_check
          %p794 = pneg %p481
        $region94: #{network_forward.1} parent=11 // pred_check_branch
          %796 = sbr.rel (%p794) target = $region96
        $region95: #{network_forward.1} parent=11 // pred_region
          _
        $region96: #{network_forward.1} parent=11 // pred_fallthru
          _
        // Predicated region
        $region97: #{network_forward.1} parent=11 // pred_check
          %p797 = pneg %p502
        $region98: #{network_forward.1} parent=11 // pred_check_branch
          %799 = sbr.rel (%p797) target = $region100
        $region99: #{network_forward.1} parent=11 // pred_region
          _
        $region100: #{network_forward.1} parent=11 // pred_fallthru
          _
        // Predicated region
        $region101: #{network_forward.1} parent=11 // pred_check
          %p800 = pneg %p523
        $region102: #{network_forward.1} parent=11 // pred_check_branch
          %802 = sbr.rel (%p800) target = $region104
        $region103: #{network_forward.1} parent=11 // pred_region
          %s804 = ssub.s32 16, 16
          %805 = vsyncadd [#allocation15], %s804
          %s807 = sshll.u32 [#allocation14], 4
          %s808 = int_to_ptr.vmem [resolvable:$true] %s807
          %810 = dma.hbm_to_vmem [thread:$0]  %s22, 16, %s808, [#allocation15]
        $region104: #{network_forward.1} parent=11 // pred_fallthru
          _
        // Predicated region
        $region105: #{network_forward.1} parent=11 // pred_check
          %p811 = pneg %p544
        $region106: #{network_forward.1} parent=11 // pred_check_branch
          %813 = sbr.rel (%p811) target = $region108
        $region107: #{network_forward.1} parent=11 // pred_region
          _
        $region108: #{network_forward.1} parent=11 // pred_fallthru
          _
        // Predicated region
        $region109: #{network_forward.1} parent=11 // pred_check
          %p814 = pneg %p565
        $region110: #{network_forward.1} parent=11 // pred_check_branch
          %816 = sbr.rel (%p814) target = $region112
        $region111: #{network_forward.1} parent=11 // pred_region
          _
        $region112: #{network_forward.1} parent=11 // pred_fallthru
          _
        // Predicated region
        $region113: #{network_forward.1} parent=11 // pred_check
          %p817 = pneg %p586
        $region114: #{network_forward.1} parent=11 // pred_check_branch
          %819 = sbr.rel (%p817) target = $region116
        $region115: #{network_forward.1} parent=11 // pred_region
          _
        $region116: #{network_forward.1} parent=11 // pred_fallthru
          _
        // Predicated region
        $region117: #{network_forward.1} parent=11 // pred_check
          %p820 = pneg %p607
        $region118: #{network_forward.1} parent=11 // pred_check_branch
          %822 = sbr.rel (%p820) target = $region120
        $region119: #{network_forward.1} parent=11 // pred_region
          %s824 = ssub.s32 512, 512
          %825 = vsyncadd [#allocation15], %s824
          %s826 = sshll.u32 [#allocation16], 4
          %s827 = int_to_ptr.vmem [resolvable:$true] %s826
          %832 = dma.hbm_to_vmem [thread:$0]  %s26, 512, %s827, [#allocation15], 256, 256, 16
        $region120: #{network_forward.1} parent=11 // pred_fallthru
          _
      $region12: #{network_forward.1} parent=5 // pred_fallthru
        _
      %p833 = scmp.lt.s32.totalorder %s40, 3
      // Predicated region
      $region121: #{network_forward.1} parent=5 // pred_check
        %p834 = pneg %p833
      $region122: #{network_forward.1} parent=5 // pred_check_branch
        %836 = sbr.rel (%p834) target = $region124
      $region123: #{network_forward.1} parent=5 // pred_region
        _
      $region124: #{network_forward.1} parent=5 // pred_fallthru
        _
      %p837 = scmp.le.s32.totalorder 1, %s40
      %p838 = scmp.lt.s32.totalorder %s40, 4
      %p839 = pnand %p837, %p838
      %p840 = pneg %p839
      // Predicated region
      $region125: #{network_forward.1} parent=5 // pred_check
        _
      $region126: #{network_forward.1} parent=5 // pred_check_branch
        %842 = sbr.rel (%p839) target = $region128
      $region127: #{network_forward.1} parent=5 // pred_region
        %s843 = ssub.s32 %s40, 1
        // Predicated region
        $region129: #{network_forward.1} parent=127 // pred_check
          %p844 = pneg %p103
        $region130: #{network_forward.1} parent=127 // pred_check_branch
          %846 = sbr.rel (%p844) target = $region132
        $region131: #{network_forward.1} parent=127 // pred_region
          %847 = dma.done [#allocation4], 16
        $region132: #{network_forward.1} parent=127 // pred_fallthru
          _
        // Predicated region
        $region133: #{network_forward.1} parent=127 // pred_check
          %p848 = pneg %p145
        $region134: #{network_forward.1} parent=127 // pred_check_branch
          %850 = sbr.rel (%p848) target = $region136
        $region135: #{network_forward.1} parent=127 // pred_region
          %851 = dma.done [#allocation6], 16
        $region136: #{network_forward.1} parent=127 // pred_fallthru
          _
        // Predicated region
        $region137: #{network_forward.1} parent=127 // pred_check
          %p852 = pneg %p166
        $region138: #{network_forward.1} parent=127 // pred_check_branch
          %854 = sbr.rel (%p852) target = $region140
        $region139: #{network_forward.1} parent=127 // pred_region
          %855 = dma.done [#allocation6], 16
        $region140: #{network_forward.1} parent=127 // pred_fallthru
          _
        // Predicated region
        $region141: #{network_forward.1} parent=127 // pred_check
          %p856 = pneg %p187
        $region142: #{network_forward.1} parent=127 // pred_check_branch
          %858 = sbr.rel (%p856) target = $region144
        $region143: #{network_forward.1} parent=127 // pred_region
          %859 = dma.done [#allocation9], 16
        $region144: #{network_forward.1} parent=127 // pred_fallthru
          _
        // Predicated region
        $region145: #{network_forward.1} parent=127 // pred_check
          %p860 = pneg %p208
        $region146: #{network_forward.1} parent=127 // pred_check_branch
          %862 = sbr.rel (%p860) target = $region148
        $region147: #{network_forward.1} parent=127 // pred_region
          %863 = dma.done [#allocation9], 1152
        $region148: #{network_forward.1} parent=127 // pred_fallthru
          _
        // Predicated region
        $region149: #{network_forward.1} parent=127 // pred_check
          %p864 = pneg %p229
        $region150: #{network_forward.1} parent=127 // pred_check_branch
          %866 = sbr.rel (%p864) target = $region152
        $region151: #{network_forward.1} parent=127 // pred_region
          %867 = dma.done [#allocation12], 16
        $region152: #{network_forward.1} parent=127 // pred_fallthru
          _
        // Predicated region
        $region153: #{network_forward.1} parent=127 // pred_check
          %p868 = pneg %p418
        $region154: #{network_forward.1} parent=127 // pred_check_branch
          %870 = sbr.rel (%p868) target = $region156
        $region155: #{network_forward.1} parent=127 // pred_region
          %871 = dma.done [#allocation12], 12288
        $region156: #{network_forward.1} parent=127 // pred_fallthru
          _
        // Predicated region
        $region157: #{network_forward.1} parent=127 // pred_check
          %p872 = pneg %p523
        $region158: #{network_forward.1} parent=127 // pred_check_branch
          %874 = sbr.rel (%p872) target = $region160
        $region159: #{network_forward.1} parent=127 // pred_region
          %875 = dma.done [#allocation15], 16
        $region160: #{network_forward.1} parent=127 // pred_fallthru
          _
        // Predicated region
        $region161: #{network_forward.1} parent=127 // pred_check
          %p876 = pneg %p607
        $region162: #{network_forward.1} parent=127 // pred_check_branch
          %878 = sbr.rel (%p876) target = $region164
        $region163: #{network_forward.1} parent=127 // pred_region
          %879 = dma.done [#allocation15], 512
        $region164: #{network_forward.1} parent=127 // pred_fallthru
          _
        %p880 = pneg %p61
        %p881 = pneg %p58
        %p882 = pneg %p82
        %p883 = pneg %p79
        %p884 = pneg %p103
        %p885 = pneg %p100
        %p886 = pneg %p124
        %p887 = pneg %p121
        %p888 = pneg %p145
        %p889 = pneg %p142
        %p890 = pneg %p166
        %p891 = pneg %p163
        %p892 = pneg %p187
        %p893 = pneg %p184
        %p894 = pneg %p208
        %p895 = pneg %p205
        %p896 = pneg %p229
        %p897 = pneg %p226
        %p898 = pneg %p250
        %p899 = pneg %p247
        %p900 = pneg %p271
        %p901 = pneg %p268
        %p902 = pneg %p292
        %p903 = pneg %p289
        %p904 = pneg %p313
        %p905 = pneg %p310
        %p906 = pneg %p334
        %p907 = pneg %p331
        %p908 = pneg %p355
        %p909 = pneg %p352
        %p910 = pneg %p376
        %p911 = pneg %p373
        %p912 = pneg %p397
        %p913 = pneg %p394
        %p914 = pneg %p418
        %p915 = pneg %p415
        %p916 = pneg %p439
        %p917 = pneg %p436
        %p918 = pneg %p460
        %p919 = pneg %p457
        %p920 = pneg %p481
        %p921 = pneg %p478
        %p922 = pneg %p502
        %p923 = pneg %p499
        %p924 = pneg %p523
        %p925 = pneg %p520
        %p926 = pneg %p544
        %p927 = pneg %p541
        %p928 = pneg %p565
        %p929 = pneg %p562
        %p930 = pneg %p586
        %p931 = pneg %p583
        %p932 = pneg %p607
        %p933 = pneg %p604
        %p934 = pneg %p633
        %p935 = pneg %p630
        %p936 = scmp.lt.s32.totalorder %s45, 2
        %s937 = scalar_select %p936, %s45, 2
        %s938 = smul.addr %s937, 4
        %s939 = smul.addr %s938, 8
        %s940 = scalar_lea.vmem %s27, %s939
        %p941 = pneg %p659
        %p942 = pneg %p656
        %p943 = scmp.lt.s32.totalorder %s45, 2
        %s944 = scalar_select %p943, %s45, 2
        %s945 = smul.addr %s944, 4
        %s946 = smul.addr %s945, 8
        %s947 = scalar_lea.vmem %s28, %s946
        %p948 = scmp.lt.s32.totalorder %s45, 2
        %s949 = scalar_select %p948, %s45, 2
        %s950 = smul.addr %s949, 4
        %s951 = smul.addr %s950, 8
        %s952 = scalar_lea.vmem %s27, %s951
        %p953 = scmp.lt.s32.totalorder %s45, 2
        %s954 = scalar_select %p953, %s45, 2
        %s955 = smul.addr %s954, 4
        %s956 = smul.addr %s955, 8
        %s957 = scalar_lea.vmem %s28, %s956
        %p959 = scmp.eq.s32.totalorder %s45, 0
        // Predicated region
        $region165: #{network_forward.1} parent=127 // pred_check
          %p960 = pneg %p959
        $region166: #{network_forward.1} parent=127 // pred_check_branch
          %962 = sbr.rel (%p960) target = $region168
        $region167: #{network_forward.1} parent=127 // pred_region
          %v963 = vld [vmem:[%s0] sm:$0xff]
          %v964 = vld [vmem:[%s0 + $0x8] sm:$0xff]
          %v965 = vld [vmem:[%s0 + $0x10] sm:$0xff]
          %v966 = vld [vmem:[%s0 + $0x18] sm:$0xff]
          %vm967 = vcmask 392192
          %968 = vst.msk [vmem:[#allocation2] sm:$0xff] %vm967, %v963
          %969 = vst.msk [vmem:[#allocation2 + $0x8] sm:$0xff] %vm967, %v964
          %970 = vst.msk [vmem:[#allocation2 + $0x10] sm:$0xff] %vm967, %v965
          %971 = vst.msk [vmem:[#allocation2 + $0x18] sm:$0xff] %vm967, %v966
        $region168: #{network_forward.1} parent=127 // pred_fallthru
          _
        %v972 = vld [vmem:[%s0] sm:$0xff]
        %v973 = vld [vmem:[%s0 + $0x8] sm:$0xff]
        %v974 = vld [vmem:[%s0 + $0x10] sm:$0xff]
        %v975 = vld [vmem:[%s0 + $0x18] sm:$0xff]
        %v976 = vld [vmem:[#allocation2] sm:$0xff]
        %v977 = vld [vmem:[#allocation2 + $0x8] sm:$0xff]
        %v978 = vld [vmem:[#allocation2 + $0x10] sm:$0xff]
        %v979 = vld [vmem:[#allocation2 + $0x18] sm:$0xff]
        %v980 = vlaneseq
        %v981 = vshrl.u32 %v980, 7
        %v982 = vadd.s32 %v981, 8
        %v983 = vadd.s32 %v981, 16
        %v984 = vadd.s32 %v981, 24
        %vm985 = vcmp.lt.s32.totalorder %v981, 0
        %v986 = vsub.s32 0, %v981
        %v987 = vsel %vm985, %v986, %v981
        %v988 = vshrl.u32 %v987, 4
        %v989 = vand.u32 %v987, 15
        %v990 = vsub.s32 0, %v989
        %v991 = vsel %vm985, %v990, %v989
        %vm992 = vcmp.lt.s32.totalorder %v982, 0
        %v993 = vsub.s32 0, %v982
        %v994 = vsel %vm992, %v993, %v982
        %v995 = vshrl.u32 %v994, 4
        %v996 = vand.u32 %v994, 15
        %v997 = vsub.s32 0, %v996
        %v998 = vsel %vm992, %v997, %v996
        %vm999 = vcmp.lt.s32.totalorder %v983, 0
        %v1000 = vsub.s32 0, %v983
        %v1001 = vsel %vm999, %v1000, %v983
        %v1002 = vshrl.u32 %v1001, 4
        %v1003 = vand.u32 %v1001, 15
        %v1004 = vsub.s32 0, %v1003
        %v1005 = vsel %vm999, %v1004, %v1003
        %vm1006 = vcmp.lt.s32.totalorder %v984, 0
        %v1007 = vsub.s32 0, %v984
        %v1008 = vsel %vm1006, %v1007, %v984
        %v1009 = vshrl.u32 %v1008, 4
        %v1010 = vand.u32 %v1008, 15
        %v1011 = vsub.s32 0, %v1010
        %v1012 = vsel %vm1006, %v1011, %v1010
        %vm1013 = vcmp.ne.s32.totalorder %v991, 0
        %vm1014 = vcmp.ne.s32.totalorder %v998, 0
        %vm1015 = vcmp.ne.s32.totalorder %v1005, 0
        %vm1016 = vcmp.ne.s32.totalorder %v1012, 0
        %vm1017 = vcmp.lt.s32.totalorder %v991, 0
        %vm1018 = vcmp.lt.s32.totalorder %v998, 0
        %vm1019 = vcmp.lt.s32.totalorder %v1005, 0
        %vm1020 = vcmp.lt.s32.totalorder %v1012, 0
        %vm1021 = vmand %vm1017, %vm1013
        %vm1022 = vmand %vm1018, %vm1014
        %vm1023 = vmand %vm1019, %vm1015
        %vm1024 = vmand %vm1020, %vm1016
        %v1025 = vadd.s32 %v991, 16
        %v1026 = vadd.s32 %v998, 16
        %v1027 = vadd.s32 %v1005, 16
        %v1028 = vadd.s32 %v1012, 16
        %v1029 = vsel %vm1021, %v1025, %v991
        %v1030 = vsel %vm1022, %v1026, %v998
        %v1031 = vsel %vm1023, %v1027, %v1005
        %v1032 = vsel %vm1024, %v1028, %v1012
        %vm1033 = vcmp.eq.s32.totalorder %v1029, 0
        %vm1034 = vcmp.eq.s32.totalorder %v1030, 0
        %vm1035 = vcmp.eq.s32.totalorder %v1031, 0
        %vm1036 = vcmp.eq.s32.totalorder %v1032, 0
        %vm1037 = vcmp.eq.s32.totalorder %v1029, 15
        %vm1038 = vcmp.eq.s32.totalorder %v1030, 15
        %vm1039 = vcmp.eq.s32.totalorder %v1031, 15
        %vm1040 = vcmp.eq.s32.totalorder %v1032, 15
        %v1041 = vrot.slane %v976, 7
        %v1042 = vrot.slane %v977, 7
        %v1043 = vrot.slane %v978, 7
        %v1044 = vrot.slane %v979, 7
        %vm1045 = vcmp.lt.s32.totalorder %v981, 1
        %v1046 = vsel %vm1045, %v1043, %v1044
        %v1047 = vsel %vm1045, %v1042, %v1043
        %v1048 = vsel %vm1045, %v1041, %v1042
        %v1049 = vsel %vm1045, %v1044, %v1041
        %v1050 = vsel %vm1033, 1, 0
        %v1051 = vsel %vm1034, 1, 0
        %v1052 = vsel %vm1035, 1, 0
        %v1053 = vsel %vm1036, 1, 0
        %vm1054 = vcmp.eq.s32.totalorder %v1050, 1
        %vm1055 = vcmp.eq.s32.totalorder %v1051, 1
        %vm1056 = vcmp.eq.s32.totalorder %v1052, 1
        %vm1057 = vcmp.eq.s32.totalorder %v1053, 1
        %v1058 = vsel %vm1054, 0.0, %v1049
        %v1059 = vsel %vm1055, 0.0, %v1048
        %v1060 = vsel %vm1056, 0.0, %v1047
        %v1061 = vsel %vm1057, 0.0, %v1046
        %v1062 = vpack.c.bf16 %v1059, %v1058
        %v1063 = vpack.c.bf16 %v1061, %v1060
        %v1064 = vpack.c.bf16 %v977, %v976
        %v1065 = vpack.c.bf16 %v979, %v978
        %v1066 = vrot.slane %v976, 1
        %v1067 = vrot.slane %v977, 1
        %v1068 = vrot.slane %v978, 1
        %v1069 = vrot.slane %v979, 1
        %vm1070 = vcmp.lt.s32.totalorder %v981, 7
        %v1071 = vsel %vm1070, %v1068, %v1069
        %v1072 = vsel %vm1070, %v1067, %v1068
        %v1073 = vsel %vm1070, %v1066, %v1067
        %v1074 = vsel %vm1070, %v1069, %v1066
        %v1075 = vsel %vm1037, 1, 0
        %v1076 = vsel %vm1038, 1, 0
        %v1077 = vsel %vm1039, 1, 0
        %v1078 = vsel %vm1040, 1, 0
        %vm1079 = vcmp.eq.s32.totalorder %v1075, 1
        %vm1080 = vcmp.eq.s32.totalorder %v1076, 1
        %vm1081 = vcmp.eq.s32.totalorder %v1077, 1
        %vm1082 = vcmp.eq.s32.totalorder %v1078, 1
        %v1083 = vsel %vm1079, 0.0, %v1073
        %v1084 = vsel %vm1080, 0.0, %v1072
        %v1085 = vsel %vm1081, 0.0, %v1071
        %v1086 = vsel %vm1082, 0.0, %v1074
        %v1087 = vpack.c.bf16 %v1084, %v1083
        %v1088 = vpack.c.bf16 %v1086, %v1085
        %v1089 = vld [vmem:[%s1] sm:$0xf]
        %v1090 = vld [vmem:[%s1 + $0x4] sm:$0xf]
        %v1091 = vld [vmem:[%s1 + $0x8] sm:$0xf]
        %v1092 = vld [vmem:[%s1 + $0xc] sm:$0xf]
        %v1093 = vld [vmem:[%s1 + $0x10] sm:$0xf]
        %v1094 = vld [vmem:[%s1 + $0x14] sm:$0xf]
        %s1095 = scalar_lea.vmem %s1, 24
        %v1096 = vld [vmem:[%s1095] sm:$0xf]
        %v1097 = vld [vmem:[%s1095 + $0x4] sm:$0xf]
        %v1098 = vld [vmem:[%s1095 + $0x8] sm:$0xf]
        %v1099 = vld [vmem:[%s1095 + $0xc] sm:$0xf]
        %v1100 = vld [vmem:[%s1095 + $0x10] sm:$0xf]
        %v1101 = vld [vmem:[%s1095 + $0x14] sm:$0xf]
        %v1108 = vunpack.c.l.b16 %v1096
        %v1109 = vunpack.c.l.b16 %v1097
        %v1110 = vunpack.c.l.b16 %v1098
        %v1111 = vunpack.c.l.b16 %v1099
        %v1112 = vunpack.c.l.b16 %v1100
        %v1113 = vunpack.c.l.b16 %v1101
        %v1114 = vpack.c.b16 %v1109, %v1108
        %v1115 = vpack.c.b16 %v1111, %v1110
        %v1116 = vpack.c.b16 %v1113, %v1112
        %vm1120 = vcmask 392192
        %v1122 = vsel %vm1120, %v1064, 0
        %v1125 = vsel %vm1120, %v1065, 0
        %1127 = vmatprep.subr.bf16.mxu0 0
        %1128 = vmatpush1.bf16.msra.mxu0 0
        %1129 = vmatprep.subr.bf16.mxu0 0
        %1130 = vmatpush1.bf16.msra.mxu0 0
        %1131 = vmatprep.subr.bf16.mxu0 0
        %1132 = vmatpush1.bf16.msra.mxu0 0
        %1133 = vmatprep.subr.bf16.mxu0 0
        %1134 = vmatpush1.bf16.msra.mxu0 0
        %1135 = vmatprep.subr.bf16.mxu0 0
        %1136 = vmatpush1.bf16.msra.mxu0 0
        %1137 = vmatprep.subr.bf16.mxu0 0
        %1138 = vmatpush1.bf16.msra.mxu0 %v1116
        %1139 = vmatprep.subr.bf16.mxu0 0
        %1140 = vmatpush1.bf16.msra.mxu0 %v1115
        %1141 = vmatprep.subr.bf16.mxu0 0
        %1142 = vmatpush1.bf16.msra.mxu0 %v1114
        %1143 = vmatprep.subr.bf16.mxu0 0
        %1144 = vmatpush2.bf16.msra.mxu0 0
        %1145 = vmatprep.subr.bf16.mxu0 0
        %1146 = vmatpush2.bf16.msra.mxu0 0
        %1147 = vmatprep.subr.bf16.mxu0 0
        %1148 = vmatpush2.bf16.msra.mxu0 0
        %1149 = vmatprep.subr.bf16.mxu0 0
        %1150 = vmatpush2.bf16.msra.mxu0 0
        %1151 = vmatprep.subr.bf16.mxu0 0
        %1152 = vmatpush2.bf16.msra.mxu0 0
        %1153 = vmatprep.subr.bf16.mxu0 0
        %1154 = vmatpush2.bf16.msra.mxu0 0
        %1155 = vmatprep.subr.bf16.mxu0 0
        %1156 = vmatpush2.bf16.msra.mxu0 0
        %1157 = vmatprep.subr.bf16.mxu0 0
        %1158 = vmatpush2.bf16.msra.mxu0 0
        %1159 = vmatprep.mubr.bf16.mxu0 0
        %1160 = vmatmul.mubr.bf16.gmra.mxu0 %v1122
        %v1161 = vpop.f32.mrf.mxu0
        %v1162 = vadd.f32 0.0, %v1161
        %v1163 = vpop.f32.mrf.mxu0
        %v1164 = vpop.f32.mrf.mxu0
        %v1165 = vadd.f32 0.0, %v1164
        %v1166 = vpop.f32.mrf.mxu0
        %1167 = vmatprep.mubr.bf16.mxu0 0
        %1168 = vmatmul.mubr.bf16.gmra.mxu0 %v1125
        %v1169 = vpop.f32.mrf.mxu0
        %v1170 = vadd.f32 0.0, %v1169
        %v1171 = vpop.f32.mrf.mxu0
        %v1172 = vpop.f32.mrf.mxu0
        %v1173 = vadd.f32 0.0, %v1172
        %v1174 = vpop.f32.mrf.mxu0
        %1175 = vdwg.mxu0
        %v1182 = vunpack.c.l.b16 %v1089
        %v1183 = vunpack.c.l.b16 %v1090
        %v1184 = vunpack.c.l.b16 %v1091
        %v1185 = vunpack.c.l.b16 %v1092
        %v1186 = vunpack.c.l.b16 %v1093
        %v1187 = vunpack.c.l.b16 %v1094
        %v1188 = vpack.c.b16 %v1183, %v1182
        %v1189 = vpack.c.b16 %v1185, %v1184
        %v1190 = vpack.c.b16 %v1187, %v1186
        %v1195 = vsel %vm1120, %v1062, 0
        %v1198 = vsel %vm1120, %v1063, 0
        %1200 = vmatprep.subr.bf16.mxu0 0
        %1201 = vmatpush1.bf16.msra.mxu0 0
        %1202 = vmatprep.subr.bf16.mxu0 0
        %1203 = vmatpush1.bf16.msra.mxu0 0
        %1204 = vmatprep.subr.bf16.mxu0 0
        %1205 = vmatpush1.bf16.msra.mxu0 0
        %1206 = vmatprep.subr.bf16.mxu0 0
        %1207 = vmatpush1.bf16.msra.mxu0 0
        %1208 = vmatprep.subr.bf16.mxu0 0
        %1209 = vmatpush1.bf16.msra.mxu0 0
        %1210 = vmatprep.subr.bf16.mxu0 0
        %1211 = vmatpush1.bf16.msra.mxu0 %v1190
        %1212 = vmatprep.subr.bf16.mxu0 0
        %1213 = vmatpush1.bf16.msra.mxu0 %v1189
        %1214 = vmatprep.subr.bf16.mxu0 0
        %1215 = vmatpush1.bf16.msra.mxu0 %v1188
        %1216 = vmatprep.subr.bf16.mxu0 0
        %1217 = vmatpush2.bf16.msra.mxu0 0
        %1218 = vmatprep.subr.bf16.mxu0 0
        %1219 = vmatpush2.bf16.msra.mxu0 0
        %1220 = vmatprep.subr.bf16.mxu0 0
        %1221 = vmatpush2.bf16.msra.mxu0 0
        %1222 = vmatprep.subr.bf16.mxu0 0
        %1223 = vmatpush2.bf16.msra.mxu0 0
        %1224 = vmatprep.subr.bf16.mxu0 0
        %1225 = vmatpush2.bf16.msra.mxu0 0
        %1226 = vmatprep.subr.bf16.mxu0 0
        %1227 = vmatpush2.bf16.msra.mxu0 0
        %1228 = vmatprep.subr.bf16.mxu0 0
        %1229 = vmatpush2.bf16.msra.mxu0 0
        %1230 = vmatprep.subr.bf16.mxu0 0
        %1231 = vmatpush2.bf16.msra.mxu0 0
        %1232 = vmatprep.mubr.bf16.mxu0 0
        %1233 = vmatmul.mubr.bf16.gmra.mxu0 %v1195
        %v1234 = vpop.f32.mrf.mxu0
        %v1235 = vadd.f32 %v1162, %v1234
        %v1236 = vpop.f32.mrf.mxu0
        %v1237 = vpop.f32.mrf.mxu0
        %v1238 = vadd.f32 %v1165, %v1237
        %v1239 = vpop.f32.mrf.mxu0
        %1240 = vmatprep.mubr.bf16.mxu0 0
        %1241 = vmatmul.mubr.bf16.gmra.mxu0 %v1198
        %v1242 = vpop.f32.mrf.mxu0
        %v1243 = vadd.f32 %v1170, %v1242
        %v1244 = vpop.f32.mrf.mxu0
        %v1245 = vpop.f32.mrf.mxu0
        %v1246 = vadd.f32 %v1173, %v1245
        %v1247 = vpop.f32.mrf.mxu0
        %1248 = vdwg.mxu0
        %s1249 = scalar_lea.vmem %s1, 48
        %v1250 = vld [vmem:[%s1249] sm:$0xf]
        %v1251 = vld [vmem:[%s1249 + $0x4] sm:$0xf]
        %v1252 = vld [vmem:[%s1249 + $0x8] sm:$0xf]
        %v1253 = vld [vmem:[%s1249 + $0xc] sm:$0xf]
        %v1254 = vld [vmem:[%s1249 + $0x10] sm:$0xf]
        %v1255 = vld [vmem:[%s1249 + $0x14] sm:$0xf]
        %v1262 = vunpack.c.l.b16 %v1250
        %v1263 = vunpack.c.l.b16 %v1251
        %v1264 = vunpack.c.l.b16 %v1252
        %v1265 = vunpack.c.l.b16 %v1253
        %v1266 = vunpack.c.l.b16 %v1254
        %v1267 = vunpack.c.l.b16 %v1255
        %v1268 = vpack.c.b16 %v1263, %v1262
        %v1269 = vpack.c.b16 %v1265, %v1264
        %v1270 = vpack.c.b16 %v1267, %v1266
        %v1275 = vsel %vm1120, %v1087, 0
        %v1278 = vsel %vm1120, %v1088, 0
        %1280 = vmatprep.subr.bf16.mxu0 0
        %1281 = vmatpush1.bf16.msra.mxu0 0
        %1282 = vmatprep.subr.bf16.mxu0 0
        %1283 = vmatpush1.bf16.msra.mxu0 0
        %1284 = vmatprep.subr.bf16.mxu0 0
        %1285 = vmatpush1.bf16.msra.mxu0 0
        %1286 = vmatprep.subr.bf16.mxu0 0
        %1287 = vmatpush1.bf16.msra.mxu0 0
        %1288 = vmatprep.subr.bf16.mxu0 0
        %1289 = vmatpush1.bf16.msra.mxu0 0
        %1290 = vmatprep.subr.bf16.mxu0 0
        %1291 = vmatpush1.bf16.msra.mxu0 %v1270
        %1292 = vmatprep.subr.bf16.mxu0 0
        %1293 = vmatpush1.bf16.msra.mxu0 %v1269
        %1294 = vmatprep.subr.bf16.mxu0 0
        %1295 = vmatpush1.bf16.msra.mxu0 %v1268
        %1296 = vmatprep.subr.bf16.mxu0 0
        %1297 = vmatpush2.bf16.msra.mxu0 0
        %1298 = vmatprep.subr.bf16.mxu0 0
        %1299 = vmatpush2.bf16.msra.mxu0 0
        %1300 = vmatprep.subr.bf16.mxu0 0
        %1301 = vmatpush2.bf16.msra.mxu0 0
        %1302 = vmatprep.subr.bf16.mxu0 0
        %1303 = vmatpush2.bf16.msra.mxu0 0
        %1304 = vmatprep.subr.bf16.mxu0 0
        %1305 = vmatpush2.bf16.msra.mxu0 0
        %1306 = vmatprep.subr.bf16.mxu0 0
        %1307 = vmatpush2.bf16.msra.mxu0 0
        %1308 = vmatprep.subr.bf16.mxu0 0
        %1309 = vmatpush2.bf16.msra.mxu0 0
        %1310 = vmatprep.subr.bf16.mxu0 0
        %1311 = vmatpush2.bf16.msra.mxu0 0
        %1312 = vmatprep.mubr.bf16.mxu0 0
        %1313 = vmatmul.mubr.bf16.gmra.mxu0 %v1275
        %v1314 = vpop.f32.mrf.mxu0
        %v1315 = vadd.f32 0.0, %v1314
        %v1316 = vpop.f32.mrf.mxu0
        %v1317 = vpop.f32.mrf.mxu0
        %v1318 = vadd.f32 0.0, %v1317
        %v1319 = vpop.f32.mrf.mxu0
        %1320 = vmatprep.mubr.bf16.mxu0 0
        %1321 = vmatmul.mubr.bf16.gmra.mxu0 %v1278
        %v1322 = vpop.f32.mrf.mxu0
        %v1323 = vadd.f32 0.0, %v1322
        %v1324 = vpop.f32.mrf.mxu0
        %v1325 = vpop.f32.mrf.mxu0
        %v1326 = vadd.f32 0.0, %v1325
        %v1327 = vpop.f32.mrf.mxu0
        %1328 = vdwg.mxu0
        %v1329 = vadd.f32 %v1235, %v1315
        %v1330 = vadd.f32 %v1238, %v1318
        %v1331 = vadd.f32 %v1243, %v1323
        %v1332 = vadd.f32 %v1246, %v1326
        %v1333 = vld [vmem:[#allocation3] sm:$0x1]
        %v1335 = vlaneseq
        %v1336 = vshrl.u32 %v1335, 7
        %v1337 = vsub.s32 0, %v1336
        %v1338 = vrot.slane %v1333, %v1337
        %v1340 = vadd.f32 %v1329, %v1338
        %v1341 = vadd.f32 %v1330, %v1338
        %v1342 = vadd.f32 %v1331, %v1338
        %v1343 = vadd.f32 %v1332, %v1338
        %v1344 = vmax.f32 %v1340, 0.0
        %v1345 = vmax.f32 %v1341, 0.0
        %v1346 = vmax.f32 %v1342, 0.0
        %v1347 = vmax.f32 %v1343, 0.0
        %v1348 = vrot.slane %v1344, 7
        %v1349 = vrot.slane %v1345, 7
        %v1350 = vrot.slane %v1346, 7
        %v1351 = vrot.slane %v1347, 7
        %v1352 = vsel %vm1045, %v1350, %v1351
        %v1353 = vsel %vm1045, %v1349, %v1350
        %v1354 = vsel %vm1045, %v1348, %v1349
        %v1355 = vsel %vm1045, %v1351, %v1348
        %v1356 = vsel %vm1054, 0.0, %v1355
        %v1357 = vsel %vm1055, 0.0, %v1354
        %v1358 = vsel %vm1056, 0.0, %v1353
        %v1359 = vsel %vm1057, 0.0, %v1352
        %v1360 = vpack.c.bf16 %v1357, %v1356
        %v1361 = vpack.c.bf16 %v1359, %v1358
        %v1362 = vpack.c.bf16 %v1345, %v1344
        %v1363 = vpack.c.bf16 %v1347, %v1346
        %v1364 = vrot.slane %v1344, 1
        %v1365 = vrot.slane %v1345, 1
        %v1366 = vrot.slane %v1346, 1
        %v1367 = vrot.slane %v1347, 1
        %v1368 = vsel %vm1070, %v1366, %v1367
        %v1369 = vsel %vm1070, %v1365, %v1366
        %v1370 = vsel %vm1070, %v1364, %v1365
        %v1371 = vsel %vm1070, %v1367, %v1364
        %v1372 = vsel %vm1079, 0.0, %v1370
        %v1373 = vsel %vm1080, 0.0, %v1369
        %v1374 = vsel %vm1081, 0.0, %v1368
        %v1375 = vsel %vm1082, 0.0, %v1371
        %v1376 = vpack.c.bf16 %v1373, %v1372
        %v1377 = vpack.c.bf16 %v1375, %v1374
        %v1378 = vld [vmem:[%s3] sm:$0xf]
        %v1379 = vld [vmem:[%s3 + $0x4] sm:$0xf]
        %v1380 = vld [vmem:[%s3 + $0x8] sm:$0xf]
        %v1381 = vld [vmem:[%s3 + $0xc] sm:$0xf]
        %v1382 = vld [vmem:[%s3 + $0x10] sm:$0xf]
        %v1383 = vld [vmem:[%s3 + $0x14] sm:$0xf]
        %s1384 = scalar_lea.vmem %s3, 24
        %v1385 = vld [vmem:[%s1384] sm:$0xf]
        %v1386 = vld [vmem:[%s1384 + $0x4] sm:$0xf]
        %v1387 = vld [vmem:[%s1384 + $0x8] sm:$0xf]
        %v1388 = vld [vmem:[%s1384 + $0xc] sm:$0xf]
        %v1389 = vld [vmem:[%s1384 + $0x10] sm:$0xf]
        %v1390 = vld [vmem:[%s1384 + $0x14] sm:$0xf]
        %v1397 = vunpack.c.l.b16 %v1385
        %v1398 = vunpack.c.l.b16 %v1386
        %v1399 = vunpack.c.l.b16 %v1387
        %v1400 = vunpack.c.l.b16 %v1388
        %v1401 = vunpack.c.l.b16 %v1389
        %v1402 = vunpack.c.l.b16 %v1390
        %v1403 = vpack.c.b16 %v1398, %v1397
        %v1404 = vpack.c.b16 %v1400, %v1399
        %v1405 = vpack.c.b16 %v1402, %v1401
        %v1410 = vsel %vm1120, %v1362, 0
        %v1413 = vsel %vm1120, %v1363, 0
        %1415 = vmatprep.subr.bf16.mxu0 0
        %1416 = vmatpush1.bf16.msra.mxu0 0
        %1417 = vmatprep.subr.bf16.mxu0 0
        %1418 = vmatpush1.bf16.msra.mxu0 0
        %1419 = vmatprep.subr.bf16.mxu0 0
        %1420 = vmatpush1.bf16.msra.mxu0 0
        %1421 = vmatprep.subr.bf16.mxu0 0
        %1422 = vmatpush1.bf16.msra.mxu0 0
        %1423 = vmatprep.subr.bf16.mxu0 0
        %1424 = vmatpush1.bf16.msra.mxu0 0
        %1425 = vmatprep.subr.bf16.mxu0 0
        %1426 = vmatpush1.bf16.msra.mxu0 %v1405
        %1427 = vmatprep.subr.bf16.mxu0 0
        %1428 = vmatpush1.bf16.msra.mxu0 %v1404
        %1429 = vmatprep.subr.bf16.mxu0 0
        %1430 = vmatpush1.bf16.msra.mxu0 %v1403
        %1431 = vmatprep.subr.bf16.mxu0 0
        %1432 = vmatpush2.bf16.msra.mxu0 0
        %1433 = vmatprep.subr.bf16.mxu0 0
        %1434 = vmatpush2.bf16.msra.mxu0 0
        %1435 = vmatprep.subr.bf16.mxu0 0
        %1436 = vmatpush2.bf16.msra.mxu0 0
        %1437 = vmatprep.subr.bf16.mxu0 0
        %1438 = vmatpush2.bf16.msra.mxu0 0
        %1439 = vmatprep.subr.bf16.mxu0 0
        %1440 = vmatpush2.bf16.msra.mxu0 0
        %1441 = vmatprep.subr.bf16.mxu0 0
        %1442 = vmatpush2.bf16.msra.mxu0 0
        %1443 = vmatprep.subr.bf16.mxu0 0
        %1444 = vmatpush2.bf16.msra.mxu0 0
        %1445 = vmatprep.subr.bf16.mxu0 0
        %1446 = vmatpush2.bf16.msra.mxu0 0
        %1447 = vmatprep.mubr.bf16.mxu0 0
        %1448 = vmatmul.mubr.bf16.gmra.mxu0 %v1410
        %v1449 = vpop.f32.mrf.mxu0
        %v1450 = vadd.f32 0.0, %v1449
        %v1451 = vpop.f32.mrf.mxu0
        %v1452 = vpop.f32.mrf.mxu0
        %v1453 = vadd.f32 0.0, %v1452
        %v1454 = vpop.f32.mrf.mxu0
        %1455 = vmatprep.mubr.bf16.mxu0 0
        %1456 = vmatmul.mubr.bf16.gmra.mxu0 %v1413
        %v1457 = vpop.f32.mrf.mxu0
        %v1458 = vadd.f32 0.0, %v1457
        %v1459 = vpop.f32.mrf.mxu0
        %v1460 = vpop.f32.mrf.mxu0
        %v1461 = vadd.f32 0.0, %v1460
        %v1462 = vpop.f32.mrf.mxu0
        %1463 = vdwg.mxu0
        %v1470 = vunpack.c.l.b16 %v1378
        %v1471 = vunpack.c.l.b16 %v1379
        %v1472 = vunpack.c.l.b16 %v1380
        %v1473 = vunpack.c.l.b16 %v1381
        %v1474 = vunpack.c.l.b16 %v1382
        %v1475 = vunpack.c.l.b16 %v1383
        %v1476 = vpack.c.b16 %v1471, %v1470
        %v1477 = vpack.c.b16 %v1473, %v1472
        %v1478 = vpack.c.b16 %v1475, %v1474
        %v1483 = vsel %vm1120, %v1360, 0
        %v1486 = vsel %vm1120, %v1361, 0
        %1488 = vmatprep.subr.bf16.mxu0 0
        %1489 = vmatpush1.bf16.msra.mxu0 0
        %1490 = vmatprep.subr.bf16.mxu0 0
        %1491 = vmatpush1.bf16.msra.mxu0 0
        %1492 = vmatprep.subr.bf16.mxu0 0
        %1493 = vmatpush1.bf16.msra.mxu0 0
        %1494 = vmatprep.subr.bf16.mxu0 0
        %1495 = vmatpush1.bf16.msra.mxu0 0
        %1496 = vmatprep.subr.bf16.mxu0 0
        %1497 = vmatpush1.bf16.msra.mxu0 0
        %1498 = vmatprep.subr.bf16.mxu0 0
        %1499 = vmatpush1.bf16.msra.mxu0 %v1478
        %1500 = vmatprep.subr.bf16.mxu0 0
        %1501 = vmatpush1.bf16.msra.mxu0 %v1477
        %1502 = vmatprep.subr.bf16.mxu0 0
        %1503 = vmatpush1.bf16.msra.mxu0 %v1476
        %1504 = vmatprep.subr.bf16.mxu0 0
        %1505 = vmatpush2.bf16.msra.mxu0 0
        %1506 = vmatprep.subr.bf16.mxu0 0
        %1507 = vmatpush2.bf16.msra.mxu0 0
        %1508 = vmatprep.subr.bf16.mxu0 0
        %1509 = vmatpush2.bf16.msra.mxu0 0
        %1510 = vmatprep.subr.bf16.mxu0 0
        %1511 = vmatpush2.bf16.msra.mxu0 0
        %1512 = vmatprep.subr.bf16.mxu0 0
        %1513 = vmatpush2.bf16.msra.mxu0 0
        %1514 = vmatprep.subr.bf16.mxu0 0
        %1515 = vmatpush2.bf16.msra.mxu0 0
        %1516 = vmatprep.subr.bf16.mxu0 0
        %1517 = vmatpush2.bf16.msra.mxu0 0
        %1518 = vmatprep.subr.bf16.mxu0 0
        %1519 = vmatpush2.bf16.msra.mxu0 0
        %1520 = vmatprep.mubr.bf16.mxu0 0
        %1521 = vmatmul.mubr.bf16.gmra.mxu0 %v1483
        %v1522 = vpop.f32.mrf.mxu0
        %v1523 = vadd.f32 %v1450, %v1522
        %v1524 = vpop.f32.mrf.mxu0
        %v1525 = vpop.f32.mrf.mxu0
        %v1526 = vadd.f32 %v1453, %v1525
        %v1527 = vpop.f32.mrf.mxu0
        %1528 = vmatprep.mubr.bf16.mxu0 0
        %1529 = vmatmul.mubr.bf16.gmra.mxu0 %v1486
        %v1530 = vpop.f32.mrf.mxu0
        %v1531 = vadd.f32 %v1458, %v1530
        %v1532 = vpop.f32.mrf.mxu0
        %v1533 = vpop.f32.mrf.mxu0
        %v1534 = vadd.f32 %v1461, %v1533
        %v1535 = vpop.f32.mrf.mxu0
        %1536 = vdwg.mxu0
        %s1537 = scalar_lea.vmem %s3, 48
        %v1538 = vld [vmem:[%s1537] sm:$0xf]
        %v1539 = vld [vmem:[%s1537 + $0x4] sm:$0xf]
        %v1540 = vld [vmem:[%s1537 + $0x8] sm:$0xf]
        %v1541 = vld [vmem:[%s1537 + $0xc] sm:$0xf]
        %v1542 = vld [vmem:[%s1537 + $0x10] sm:$0xf]
        %v1543 = vld [vmem:[%s1537 + $0x14] sm:$0xf]
        %v1550 = vunpack.c.l.b16 %v1538
        %v1551 = vunpack.c.l.b16 %v1539
        %v1552 = vunpack.c.l.b16 %v1540
        %v1553 = vunpack.c.l.b16 %v1541
        %v1554 = vunpack.c.l.b16 %v1542
        %v1555 = vunpack.c.l.b16 %v1543
        %v1556 = vpack.c.b16 %v1551, %v1550
        %v1557 = vpack.c.b16 %v1553, %v1552
        %v1558 = vpack.c.b16 %v1555, %v1554
        %v1563 = vsel %vm1120, %v1376, 0
        %v1566 = vsel %vm1120, %v1377, 0
        %1568 = vmatprep.subr.bf16.mxu0 0
        %1569 = vmatpush1.bf16.msra.mxu0 0
        %1570 = vmatprep.subr.bf16.mxu0 0
        %1571 = vmatpush1.bf16.msra.mxu0 0
        %1572 = vmatprep.subr.bf16.mxu0 0
        %1573 = vmatpush1.bf16.msra.mxu0 0
        %1574 = vmatprep.subr.bf16.mxu0 0
        %1575 = vmatpush1.bf16.msra.mxu0 0
        %1576 = vmatprep.subr.bf16.mxu0 0
        %1577 = vmatpush1.bf16.msra.mxu0 0
        %1578 = vmatprep.subr.bf16.mxu0 0
        %1579 = vmatpush1.bf16.msra.mxu0 %v1558
        %1580 = vmatprep.subr.bf16.mxu0 0
        %1581 = vmatpush1.bf16.msra.mxu0 %v1557
        %1582 = vmatprep.subr.bf16.mxu0 0
        %1583 = vmatpush1.bf16.msra.mxu0 %v1556
        %1584 = vmatprep.subr.bf16.mxu0 0
        %1585 = vmatpush2.bf16.msra.mxu0 0
        %1586 = vmatprep.subr.bf16.mxu0 0
        %1587 = vmatpush2.bf16.msra.mxu0 0
        %1588 = vmatprep.subr.bf16.mxu0 0
        %1589 = vmatpush2.bf16.msra.mxu0 0
        %1590 = vmatprep.subr.bf16.mxu0 0
        %1591 = vmatpush2.bf16.msra.mxu0 0
        %1592 = vmatprep.subr.bf16.mxu0 0
        %1593 = vmatpush2.bf16.msra.mxu0 0
        %1594 = vmatprep.subr.bf16.mxu0 0
        %1595 = vmatpush2.bf16.msra.mxu0 0
        %1596 = vmatprep.subr.bf16.mxu0 0
        %1597 = vmatpush2.bf16.msra.mxu0 0
        %1598 = vmatprep.subr.bf16.mxu0 0
        %1599 = vmatpush2.bf16.msra.mxu0 0
        %1600 = vmatprep.mubr.bf16.mxu0 0
        %1601 = vmatmul.mubr.bf16.gmra.mxu0 %v1563
        %v1602 = vpop.f32.mrf.mxu0
        %v1603 = vadd.f32 0.0, %v1602
        %v1604 = vpop.f32.mrf.mxu0
        %v1605 = vpop.f32.mrf.mxu0
        %v1606 = vadd.f32 0.0, %v1605
        %v1607 = vpop.f32.mrf.mxu0
        %1608 = vmatprep.mubr.bf16.mxu0 0
        %1609 = vmatmul.mubr.bf16.gmra.mxu0 %v1566
        %v1610 = vpop.f32.mrf.mxu0
        %v1611 = vadd.f32 0.0, %v1610
        %v1612 = vpop.f32.mrf.mxu0
        %v1613 = vpop.f32.mrf.mxu0
        %v1614 = vadd.f32 0.0, %v1613
        %v1615 = vpop.f32.mrf.mxu0
        %1616 = vdwg.mxu0
        %v1617 = vadd.f32 %v1523, %v1603
        %v1618 = vadd.f32 %v1526, %v1606
        %v1619 = vadd.f32 %v1531, %v1611
        %v1620 = vadd.f32 %v1534, %v1614
        %v1621 = vld [vmem:[#allocation5] sm:$0x1]
        %v1623 = vlaneseq
        %v1624 = vshrl.u32 %v1623, 7
        %v1625 = vsub.s32 0, %v1624
        %v1626 = vrot.slane %v1621, %v1625
        %v1628 = vadd.f32 %v1617, %v1626
        %v1629 = vadd.f32 %v1618, %v1626
        %v1630 = vadd.f32 %v1619, %v1626
        %v1631 = vadd.f32 %v1620, %v1626
        %v1632 = vsel %vm1120, %v1628, 0.0
        %v1633 = vsel %vm1120, %v1629, 0.0
        %v1634 = vadd.f32 %v1632, %v1633
        %v1635 = vsel %vm1120, %v1630, 0.0
        %v1636 = vadd.f32 %v1634, %v1635
        %v1637 = vsel %vm1120, %v1631, 0.0
        %v1638 = vadd.f32 %v1636, %v1637
        %v1639 = vrot.slane %v1638, 4
        %v1640 = vadd.f32 %v1638, %v1639
        %v1641 = vrot.slane %v1640, 2
        %v1642 = vadd.f32 %v1640, %v1641
        %v1643 = vrot.slane %v1642, 1
        %v1644 = vadd.f32 %v1642, %v1643
        %v1645 = vmul.f32 %v1628, %v1628
        %v1646 = vmul.f32 %v1629, %v1629
        %v1647 = vmul.f32 %v1630, %v1630
        %v1648 = vmul.f32 %v1631, %v1631
        %v1649 = vsel %vm1120, %v1645, 0.0
        %v1650 = vsel %vm1120, %v1646, 0.0
        %v1651 = vadd.f32 %v1649, %v1650
        %v1652 = vsel %vm1120, %v1647, 0.0
        %v1653 = vadd.f32 %v1651, %v1652
        %v1654 = vsel %vm1120, %v1648, 0.0
        %v1655 = vadd.f32 %v1653, %v1654
        %v1656 = vrot.slane %v1655, 4
        %v1657 = vadd.f32 %v1655, %v1656
        %v1658 = vrot.slane %v1657, 2
        %v1659 = vadd.f32 %v1657, %v1658
        %v1660 = vrot.slane %v1659, 1
        %v1661 = vadd.f32 %v1659, %v1660
        %vm1662 = vcmask 1040384
        %v1663 = vsel %vm1662, %v1644, %v1661
        %v1664 = vld [vmem:[%s23] sm:$0xff]
        %v1665 = vld [vmem:[%s23 + $0x8] sm:$0xff]
        %v1666 = vld [vmem:[%s23 + $0x10] sm:$0xff]
        %v1667 = vld [vmem:[%s23 + $0x18] sm:$0xff]
        %v1668 = vld [vmem:[%s23 + $0x20] sm:$0xff]
        %v1669 = vld [vmem:[%s23 + $0x28] sm:$0xff]
        %v1671 = vsel %vm1120, %v1663, 0
        %1673 = vmatprep.subr.mxu0 0.0
        %1674 = vmatpush1.msra.mxu0 0.0
        %1675 = vmatprep.subr.mxu0 0.0
        %1676 = vmatpush1.msra.mxu0 0.0
        %1677 = vmatprep.subr.mxu0 0.0
        %1678 = vmatpush1.msra.mxu0 0.0
        %1679 = vmatprep.subr.mxu0 0.0
        %1680 = vmatpush1.msra.mxu0 0.0
        %1681 = vmatprep.subr.mxu0 0.0
        %1682 = vmatpush1.msra.mxu0 0.0
        %1683 = vmatprep.subr.mxu0 0.0
        %1684 = vmatpush1.msra.mxu0 0.0
        %1685 = vmatprep.subr.mxu0 0.0
        %1686 = vmatpush1.msra.mxu0 0.0
        %1687 = vmatprep.subr.mxu0 0.0
        %1688 = vmatpush1.msra.mxu0 0.0
        %1689 = vmatprep.subr.mxu0 0.0
        %1690 = vmatpush1.msra.mxu0 0.0
        %1691 = vmatprep.subr.mxu0 0.0
        %1692 = vmatpush1.msra.mxu0 0.0
        %1693 = vmatprep.subr.mxu0 0.0
        %1694 = vmatpush1.msra.mxu0 %v1669
        %1695 = vmatprep.subr.mxu0 0.0
        %1696 = vmatpush1.msra.mxu0 %v1668
        %1697 = vmatprep.subr.mxu0 0.0
        %1698 = vmatpush1.msra.mxu0 %v1667
        %1699 = vmatprep.subr.mxu0 0.0
        %1700 = vmatpush1.msra.mxu0 %v1666
        %1701 = vmatprep.subr.mxu0 0.0
        %1702 = vmatpush1.msra.mxu0 %v1665
        %1703 = vmatprep.subr.mxu0 0.0
        %1704 = vmatpush1.msra.mxu0 %v1664
        %1705 = vmatprep.subr.mxu0 0.0
        %1706 = vmatpush2.msra.mxu0 0.0
        %1707 = vmatprep.subr.mxu0 0.0
        %1708 = vmatpush2.msra.mxu0 0.0
        %1709 = vmatprep.subr.mxu0 0.0
        %1710 = vmatpush2.msra.mxu0 0.0
        %1711 = vmatprep.subr.mxu0 0.0
        %1712 = vmatpush2.msra.mxu0 0.0
        %1713 = vmatprep.subr.mxu0 0.0
        %1714 = vmatpush2.msra.mxu0 0.0
        %1715 = vmatprep.subr.mxu0 0.0
        %1716 = vmatpush2.msra.mxu0 0.0
        %1717 = vmatprep.subr.mxu0 0.0
        %1718 = vmatpush2.msra.mxu0 0.0
        %1719 = vmatprep.subr.mxu0 0.0
        %1720 = vmatpush2.msra.mxu0 0.0
        %1721 = vmatprep.subr.mxu0 0.0
        %1722 = vmatpush2.msra.mxu0 0.0
        %1723 = vmatprep.subr.mxu0 0.0
        %1724 = vmatpush2.msra.mxu0 0.0
        %1725 = vmatprep.subr.mxu0 0.0
        %1726 = vmatpush2.msra.mxu0 0.0
        %1727 = vmatprep.subr.mxu0 0.0
        %1728 = vmatpush2.msra.mxu0 0.0
        %1729 = vmatprep.subr.mxu0 0.0
        %1730 = vmatpush2.msra.mxu0 0.0
        %1731 = vmatprep.subr.mxu0 0.0
        %1732 = vmatpush2.msra.mxu0 0.0
        %1733 = vmatprep.subr.mxu0 0.0
        %1734 = vmatpush2.msra.mxu0 0.0
        %1735 = vmatprep.subr.mxu0 0.0
        %1736 = vmatpush2.msra.mxu0 0.0
        %1737 = vmatprep.mubr.f32.mxu0 0.0
        %1738 = vmatmul.mubr.f32.gmra.mxu0 %v1671
        %v1739 = vpop.f32.mrf.mxu0
        %v1740 = vadd.f32 0.0, %v1739
        %v1741 = vpop.f32.mrf.mxu0
        %1742 = vdwg.mxu0
        %v1743 = vmul.f32 %v1740, 0.001953125
        %v1744 = vmul.f32 %v1743, %v1743
        %v1746 = vrot.slane %v1744, 7
        %v1748 = vsub.f32 %v1743, %v1746
        %v1749 = vmax.f32 %v1748, 0.0
        %v1750 = vadd.f32 %v1749, 1e-05
        %v1751 = vrsqrt.pop %v1750
        %v1752 = vsel %vm1662, %v1743, %v1751
        %v1753 = vld [vmem:[%s24] sm:$0x7]
        %vm1754 = vcmask 23552
        %v1756 = vsel %vm1754, %v1752, 0
        %vm1758 = vcmask 1042432
        %v1760 = vsel %vm1758, %v1753, 0
        %1762 = vmatprep.subr.mxu0 0.0
        %1763 = vmatpush1.msra.mxu0 0.0
        %1764 = vmatprep.subr.mxu0 0.0
        %1765 = vmatpush1.msra.mxu0 0.0
        %1766 = vmatprep.subr.mxu0 0.0
        %1767 = vmatpush1.msra.mxu0 0.0
        %1768 = vmatprep.subr.mxu0 0.0
        %1769 = vmatpush1.msra.mxu0 0.0
        %1770 = vmatprep.subr.mxu0 0.0
        %1771 = vmatpush1.msra.mxu0 0.0
        %1772 = vmatprep.subr.mxu0 0.0
        %1773 = vmatpush1.msra.mxu0 0.0
        %1774 = vmatprep.subr.mxu0 0.0
        %1775 = vmatpush1.msra.mxu0 0.0
        %1776 = vmatprep.subr.mxu0 0.0
        %1777 = vmatpush1.msra.mxu0 0.0
        %1778 = vmatprep.subr.mxu0 0.0
        %1779 = vmatpush1.msra.mxu0 0.0
        %1780 = vmatprep.subr.mxu0 0.0
        %1781 = vmatpush1.msra.mxu0 0.0
        %1782 = vmatprep.subr.mxu0 0.0
        %1783 = vmatpush1.msra.mxu0 0.0
        %1784 = vmatprep.subr.mxu0 0.0
        %1785 = vmatpush1.msra.mxu0 0.0
        %1786 = vmatprep.subr.mxu0 0.0
        %1787 = vmatpush1.msra.mxu0 0.0
        %1788 = vmatprep.subr.mxu0 0.0
        %1789 = vmatpush1.msra.mxu0 0.0
        %1790 = vmatprep.subr.mxu0 0.0
        %1791 = vmatpush1.msra.mxu0 0.0
        %1792 = vmatprep.subr.mxu0 0.0
        %1793 = vmatpush1.msra.mxu0 %v1760
        %1794 = vmatprep.subr.mxu0 0.0
        %1795 = vmatpush2.msra.mxu0 0.0
        %1796 = vmatprep.subr.mxu0 0.0
        %1797 = vmatpush2.msra.mxu0 0.0
        %1798 = vmatprep.subr.mxu0 0.0
        %1799 = vmatpush2.msra.mxu0 0.0
        %1800 = vmatprep.subr.mxu0 0.0
        %1801 = vmatpush2.msra.mxu0 0.0
        %1802 = vmatprep.subr.mxu0 0.0
        %1803 = vmatpush2.msra.mxu0 0.0
        %1804 = vmatprep.subr.mxu0 0.0
        %1805 = vmatpush2.msra.mxu0 0.0
        %1806 = vmatprep.subr.mxu0 0.0
        %1807 = vmatpush2.msra.mxu0 0.0
        %1808 = vmatprep.subr.mxu0 0.0
        %1809 = vmatpush2.msra.mxu0 0.0
        %1810 = vmatprep.subr.mxu0 0.0
        %1811 = vmatpush2.msra.mxu0 0.0
        %1812 = vmatprep.subr.mxu0 0.0
        %1813 = vmatpush2.msra.mxu0 0.0
        %1814 = vmatprep.subr.mxu0 0.0
        %1815 = vmatpush2.msra.mxu0 0.0
        %1816 = vmatprep.subr.mxu0 0.0
        %1817 = vmatpush2.msra.mxu0 0.0
        %1818 = vmatprep.subr.mxu0 0.0
        %1819 = vmatpush2.msra.mxu0 0.0
        %1820 = vmatprep.subr.mxu0 0.0
        %1821 = vmatpush2.msra.mxu0 0.0
        %1822 = vmatprep.subr.mxu0 0.0
        %1823 = vmatpush2.msra.mxu0 0.0
        %1824 = vmatprep.subr.mxu0 0.0
        %1825 = vmatpush2.msra.mxu0 0.0
        %1826 = vmatprep.mubr.f32.mxu0 0.0
        %1827 = vmatmul.mubr.f32.gmra.mxu0 %v1756
        %v1828 = vpop.f32.mrf.mxu0
        %v1829 = vadd.f32 0.0, %v1828
        %v1830 = vpop.f32.mrf.mxu0
        %1831 = vdwg.mxu0
        %v1832 = vlaneseq
        %v1833 = vshrl.u32 %v1832, 7
        %v1834 = vsub.s32 0, %v1833
        %v1835 = vrot.slane %v1829, %v1834
        %v1836 = vsub.f32 %v1628, %v1835
        %v1837 = vsub.f32 %v1629, %v1835
        %v1838 = vsub.f32 %v1630, %v1835
        %v1839 = vsub.f32 %v1631, %v1835
        %v1840 = vld [vmem:[#allocation7] sm:$0x1]
        %v1842 = vlaneseq
        %v1843 = vshrl.u32 %v1842, 7
        %v1844 = vsub.s32 0, %v1843
        %v1845 = vrot.slane %v1840, %v1844
        %v1847 = vmul.f32 %v1829, %v1845
        %v1848 = vlaneseq
        %v1849 = vshrl.u32 %v1848, 7
        %v1850 = vsub.s32 1, %v1849
        %v1851 = vrot.slane %v1847, %v1850
        %v1852 = vmul.f32 %v1836, %v1851
        %v1853 = vmul.f32 %v1837, %v1851
        %v1854 = vmul.f32 %v1838, %v1851
        %v1855 = vmul.f32 %v1839, %v1851
        %v1856 = vld [vmem:[#allocation8] sm:$0x1]
        %v1858 = vlaneseq
        %v1859 = vshrl.u32 %v1858, 7
        %v1860 = vsub.s32 0, %v1859
        %v1861 = vrot.slane %v1856, %v1860
        %v1863 = vadd.f32 %v1852, %v1861
        %v1864 = vadd.f32 %v1853, %v1861
        %v1865 = vadd.f32 %v1854, %v1861
        %v1866 = vadd.f32 %v1855, %v1861
        %v1867 = vmax.f32 %v1863, 0.0
        %v1868 = vmax.f32 %v1864, 0.0
        %v1869 = vmax.f32 %v1865, 0.0
        %v1870 = vmax.f32 %v1866, 0.0
        %v1871 = vadd.f32 %v1344, %v1867
        %v1872 = vadd.f32 %v1345, %v1868
        %v1873 = vadd.f32 %v1346, %v1869
        %v1874 = vadd.f32 %v1347, %v1870
        %v1875 = vrot.slane %v1871, 7
        %v1876 = vrot.slane %v1872, 7
        %v1877 = vrot.slane %v1873, 7
        %v1878 = vrot.slane %v1874, 7
        %v1879 = vsel %vm1045, %v1877, %v1878
        %v1880 = vsel %vm1045, %v1876, %v1877
        %v1881 = vsel %vm1045, %v1875, %v1876
        %v1882 = vsel %vm1045, %v1878, %v1875
        %v1883 = vsel %vm1054, 0.0, %v1882
        %v1884 = vsel %vm1055, 0.0, %v1881
        %v1885 = vsel %vm1056, 0.0, %v1880
        %v1886 = vsel %vm1057, 0.0, %v1879
        %v1887 = vpack.c.bf16 %v1884, %v1883
        %v1888 = vpack.c.bf16 %v1886, %v1885
        %v1889 = vpack.c.bf16 %v1872, %v1871
        %v1890 = vpack.c.bf16 %v1874, %v1873
        %v1891 = vrot.slane %v1871, 1
        %v1892 = vrot.slane %v1872, 1
        %v1893 = vrot.slane %v1873, 1
        %v1894 = vrot.slane %v1874, 1
        %v1895 = vsel %vm1070, %v1893, %v1894
        %v1896 = vsel %vm1070, %v1892, %v1893
        %v1897 = vsel %vm1070, %v1891, %v1892
        %v1898 = vsel %vm1070, %v1894, %v1891
        %v1899 = vsel %vm1079, 0.0, %v1897
        %v1900 = vsel %vm1080, 0.0, %v1896
        %v1901 = vsel %vm1081, 0.0, %v1895
        %v1902 = vsel %vm1082, 0.0, %v1898
        %v1903 = vpack.c.bf16 %v1900, %v1899
        %v1904 = vpack.c.bf16 %v1902, %v1901
        %v1905 = vld [vmem:[#allocation10] sm:$0xf]
        %v1906 = vld [vmem:[#allocation10 + $0x4] sm:$0xf]
        %v1907 = vld [vmem:[#allocation10 + $0x8] sm:$0xf]
        %v1908 = vld [vmem:[#allocation10 + $0xc] sm:$0xf]
        %v1909 = vld [vmem:[#allocation10 + $0x10] sm:$0xf]
        %v1910 = vld [vmem:[#allocation10 + $0x14] sm:$0xf]
        %s1911 = scalar_lea.vmem [#allocation10], 24
        %v1912 = vld [vmem:[%s1911] sm:$0xf]
        %v1913 = vld [vmem:[%s1911 + $0x4] sm:$0xf]
        %v1914 = vld [vmem:[%s1911 + $0x8] sm:$0xf]
        %v1915 = vld [vmem:[%s1911 + $0xc] sm:$0xf]
        %v1916 = vld [vmem:[%s1911 + $0x10] sm:$0xf]
        %v1917 = vld [vmem:[%s1911 + $0x14] sm:$0xf]
        %v1924 = vunpack.c.l.b16 %v1912
        %v1925 = vunpack.c.l.b16 %v1913
        %v1926 = vunpack.c.l.b16 %v1914
        %v1927 = vunpack.c.l.b16 %v1915
        %v1928 = vunpack.c.l.b16 %v1916
        %v1929 = vunpack.c.l.b16 %v1917
        %v1930 = vpack.c.b16 %v1925, %v1924
        %v1931 = vpack.c.b16 %v1927, %v1926
        %v1932 = vpack.c.b16 %v1929, %v1928
        %v1937 = vsel %vm1120, %v1889, 0
        %v1940 = vsel %vm1120, %v1890, 0
        %1942 = vmatprep.subr.bf16.mxu0 0
        %1943 = vmatpush1.bf16.msra.mxu0 0
        %1944 = vmatprep.subr.bf16.mxu0 0
        %1945 = vmatpush1.bf16.msra.mxu0 0
        %1946 = vmatprep.subr.bf16.mxu0 0
        %1947 = vmatpush1.bf16.msra.mxu0 0
        %1948 = vmatprep.subr.bf16.mxu0 0
        %1949 = vmatpush1.bf16.msra.mxu0 0
        %1950 = vmatprep.subr.bf16.mxu0 0
        %1951 = vmatpush1.bf16.msra.mxu0 0
        %1952 = vmatprep.subr.bf16.mxu0 0
        %1953 = vmatpush1.bf16.msra.mxu0 %v1932
        %1954 = vmatprep.subr.bf16.mxu0 0
        %1955 = vmatpush1.bf16.msra.mxu0 %v1931
        %1956 = vmatprep.subr.bf16.mxu0 0
        %1957 = vmatpush1.bf16.msra.mxu0 %v1930
        %1958 = vmatprep.subr.bf16.mxu0 0
        %1959 = vmatpush2.bf16.msra.mxu0 0
        %1960 = vmatprep.subr.bf16.mxu0 0
        %1961 = vmatpush2.bf16.msra.mxu0 0
        %1962 = vmatprep.subr.bf16.mxu0 0
        %1963 = vmatpush2.bf16.msra.mxu0 0
        %1964 = vmatprep.subr.bf16.mxu0 0
        %1965 = vmatpush2.bf16.msra.mxu0 0
        %1966 = vmatprep.subr.bf16.mxu0 0
        %1967 = vmatpush2.bf16.msra.mxu0 0
        %1968 = vmatprep.subr.bf16.mxu0 0
        %1969 = vmatpush2.bf16.msra.mxu0 0
        %1970 = vmatprep.subr.bf16.mxu0 0
        %1971 = vmatpush2.bf16.msra.mxu0 0
        %1972 = vmatprep.subr.bf16.mxu0 0
        %1973 = vmatpush2.bf16.msra.mxu0 0
        %1974 = vmatprep.mubr.bf16.mxu0 0
        %1975 = vmatmul.mubr.bf16.gmra.mxu0 %v1937
        %v1976 = vpop.f32.mrf.mxu0
        %v1977 = vadd.f32 0.0, %v1976
        %v1978 = vpop.f32.mrf.mxu0
        %v1979 = vpop.f32.mrf.mxu0
        %v1980 = vadd.f32 0.0, %v1979
        %v1981 = vpop.f32.mrf.mxu0
        %1982 = vmatprep.mubr.bf16.mxu0 0
        %1983 = vmatmul.mubr.bf16.gmra.mxu0 %v1940
        %v1984 = vpop.f32.mrf.mxu0
        %v1985 = vadd.f32 0.0, %v1984
        %v1986 = vpop.f32.mrf.mxu0
        %v1987 = vpop.f32.mrf.mxu0
        %v1988 = vadd.f32 0.0, %v1987
        %v1989 = vpop.f32.mrf.mxu0
        %1990 = vdwg.mxu0
        %v1997 = vunpack.c.l.b16 %v1905
        %v1998 = vunpack.c.l.b16 %v1906
        %v1999 = vunpack.c.l.b16 %v1907
        %v2000 = vunpack.c.l.b16 %v1908
        %v2001 = vunpack.c.l.b16 %v1909
        %v2002 = vunpack.c.l.b16 %v1910
        %v2003 = vpack.c.b16 %v1998, %v1997
        %v2004 = vpack.c.b16 %v2000, %v1999
        %v2005 = vpack.c.b16 %v2002, %v2001
        %v2010 = vsel %vm1120, %v1887, 0
        %v2013 = vsel %vm1120, %v1888, 0
        %2015 = vmatprep.subr.bf16.mxu0 0
        %2016 = vmatpush1.bf16.msra.mxu0 0
        %2017 = vmatprep.subr.bf16.mxu0 0
        %2018 = vmatpush1.bf16.msra.mxu0 0
        %2019 = vmatprep.subr.bf16.mxu0 0
        %2020 = vmatpush1.bf16.msra.mxu0 0
        %2021 = vmatprep.subr.bf16.mxu0 0
        %2022 = vmatpush1.bf16.msra.mxu0 0
        %2023 = vmatprep.subr.bf16.mxu0 0
        %2024 = vmatpush1.bf16.msra.mxu0 0
        %2025 = vmatprep.subr.bf16.mxu0 0
        %2026 = vmatpush1.bf16.msra.mxu0 %v2005
        %2027 = vmatprep.subr.bf16.mxu0 0
        %2028 = vmatpush1.bf16.msra.mxu0 %v2004
        %2029 = vmatprep.subr.bf16.mxu0 0
        %2030 = vmatpush1.bf16.msra.mxu0 %v2003
        %2031 = vmatprep.subr.bf16.mxu0 0
        %2032 = vmatpush2.bf16.msra.mxu0 0
        %2033 = vmatprep.subr.bf16.mxu0 0
        %2034 = vmatpush2.bf16.msra.mxu0 0
        %2035 = vmatprep.subr.bf16.mxu0 0
        %2036 = vmatpush2.bf16.msra.mxu0 0
        %2037 = vmatprep.subr.bf16.mxu0 0
        %2038 = vmatpush2.bf16.msra.mxu0 0
        %2039 = vmatprep.subr.bf16.mxu0 0
        %2040 = vmatpush2.bf16.msra.mxu0 0
        %2041 = vmatprep.subr.bf16.mxu0 0
        %2042 = vmatpush2.bf16.msra.mxu0 0
        %2043 = vmatprep.subr.bf16.mxu0 0
        %2044 = vmatpush2.bf16.msra.mxu0 0
        %2045 = vmatprep.subr.bf16.mxu0 0
        %2046 = vmatpush2.bf16.msra.mxu0 0
        %2047 = vmatprep.mubr.bf16.mxu0 0
        %2048 = vmatmul.mubr.bf16.gmra.mxu0 %v2010
        %v2049 = vpop.f32.mrf.mxu0
        %v2050 = vadd.f32 %v1977, %v2049
        %v2051 = vpop.f32.mrf.mxu0
        %v2052 = vpop.f32.mrf.mxu0
        %v2053 = vadd.f32 %v1980, %v2052
        %v2054 = vpop.f32.mrf.mxu0
        %2055 = vmatprep.mubr.bf16.mxu0 0
        %2056 = vmatmul.mubr.bf16.gmra.mxu0 %v2013
        %v2057 = vpop.f32.mrf.mxu0
        %v2058 = vadd.f32 %v1985, %v2057
        %v2059 = vpop.f32.mrf.mxu0
        %v2060 = vpop.f32.mrf.mxu0
        %v2061 = vadd.f32 %v1988, %v2060
        %v2062 = vpop.f32.mrf.mxu0
        %2063 = vdwg.mxu0
        %s2064 = scalar_lea.vmem [#allocation10], 48
        %v2065 = vld [vmem:[%s2064] sm:$0xf]
        %v2066 = vld [vmem:[%s2064 + $0x4] sm:$0xf]
        %v2067 = vld [vmem:[%s2064 + $0x8] sm:$0xf]
        %v2068 = vld [vmem:[%s2064 + $0xc] sm:$0xf]
        %v2069 = vld [vmem:[%s2064 + $0x10] sm:$0xf]
        %v2070 = vld [vmem:[%s2064 + $0x14] sm:$0xf]
        %v2077 = vunpack.c.l.b16 %v2065
        %v2078 = vunpack.c.l.b16 %v2066
        %v2079 = vunpack.c.l.b16 %v2067
        %v2080 = vunpack.c.l.b16 %v2068
        %v2081 = vunpack.c.l.b16 %v2069
        %v2082 = vunpack.c.l.b16 %v2070
        %v2083 = vpack.c.b16 %v2078, %v2077
        %v2084 = vpack.c.b16 %v2080, %v2079
        %v2085 = vpack.c.b16 %v2082, %v2081
        %v2090 = vsel %vm1120, %v1903, 0
        %v2093 = vsel %vm1120, %v1904, 0
        %2095 = vmatprep.subr.bf16.mxu0 0
        %2096 = vmatpush1.bf16.msra.mxu0 0
        %2097 = vmatprep.subr.bf16.mxu0 0
        %2098 = vmatpush1.bf16.msra.mxu0 0
        %2099 = vmatprep.subr.bf16.mxu0 0
        %2100 = vmatpush1.bf16.msra.mxu0 0
        %2101 = vmatprep.subr.bf16.mxu0 0
        %2102 = vmatpush1.bf16.msra.mxu0 0
        %2103 = vmatprep.subr.bf16.mxu0 0
        %2104 = vmatpush1.bf16.msra.mxu0 0
        %2105 = vmatprep.subr.bf16.mxu0 0
        %2106 = vmatpush1.bf16.msra.mxu0 %v2085
        %2107 = vmatprep.subr.bf16.mxu0 0
        %2108 = vmatpush1.bf16.msra.mxu0 %v2084
        %2109 = vmatprep.subr.bf16.mxu0 0
        %2110 = vmatpush1.bf16.msra.mxu0 %v2083
        %2111 = vmatprep.subr.bf16.mxu0 0
        %2112 = vmatpush2.bf16.msra.mxu0 0
        %2113 = vmatprep.subr.bf16.mxu0 0
        %2114 = vmatpush2.bf16.msra.mxu0 0
        %2115 = vmatprep.subr.bf16.mxu0 0
        %2116 = vmatpush2.bf16.msra.mxu0 0
        %2117 = vmatprep.subr.bf16.mxu0 0
        %2118 = vmatpush2.bf16.msra.mxu0 0
        %2119 = vmatprep.subr.bf16.mxu0 0
        %2120 = vmatpush2.bf16.msra.mxu0 0
        %2121 = vmatprep.subr.bf16.mxu0 0
        %2122 = vmatpush2.bf16.msra.mxu0 0
        %2123 = vmatprep.subr.bf16.mxu0 0
        %2124 = vmatpush2.bf16.msra.mxu0 0
        %2125 = vmatprep.subr.bf16.mxu0 0
        %2126 = vmatpush2.bf16.msra.mxu0 0
        %2127 = vmatprep.mubr.bf16.mxu0 0
        %2128 = vmatmul.mubr.bf16.gmra.mxu0 %v2090
        %v2129 = vpop.f32.mrf.mxu0
        %v2130 = vadd.f32 0.0, %v2129
        %v2131 = vpop.f32.mrf.mxu0
        %v2132 = vpop.f32.mrf.mxu0
        %v2133 = vadd.f32 0.0, %v2132
        %v2134 = vpop.f32.mrf.mxu0
        %2135 = vmatprep.mubr.bf16.mxu0 0
        %2136 = vmatmul.mubr.bf16.gmra.mxu0 %v2093
        %v2137 = vpop.f32.mrf.mxu0
        %v2138 = vadd.f32 0.0, %v2137
        %v2139 = vpop.f32.mrf.mxu0
        %v2140 = vpop.f32.mrf.mxu0
        %v2141 = vadd.f32 0.0, %v2140
        %v2142 = vpop.f32.mrf.mxu0
        %2143 = vdwg.mxu0
        %v2144 = vadd.f32 %v2050, %v2130
        %v2145 = vadd.f32 %v2053, %v2133
        %v2146 = vadd.f32 %v2058, %v2138
        %v2147 = vadd.f32 %v2061, %v2141
        %v2148 = vld [vmem:[#allocation11] sm:$0x1]
        %v2150 = vlaneseq
        %v2151 = vshrl.u32 %v2150, 7
        %v2152 = vsub.s32 0, %v2151
        %v2153 = vrot.slane %v2148, %v2152
        %v2155 = vadd.f32 %v2144, %v2153
        %v2156 = vadd.f32 %v2145, %v2153
        %v2157 = vadd.f32 %v2146, %v2153
        %v2158 = vadd.f32 %v2147, %v2153
        %v2159 = vxor.u32 %v2155, 2147483648
        %v2160 = vxor.u32 %v2156, 2147483648
        %v2161 = vxor.u32 %v2157, 2147483648
        %v2162 = vxor.u32 %v2158, 2147483648
        %v2163 = vmul.f32 %v2159, 1.442695
        %v2164 = vpow.pop %v2163
        %v2165 = vmul.f32 %v2160, 1.442695
        %v2166 = vpow.pop %v2165
        %v2167 = vmul.f32 %v2161, 1.442695
        %v2168 = vpow.pop %v2167
        %v2169 = vmul.f32 %v2162, 1.442695
        %v2170 = vpow.pop %v2169
        %v2171 = vadd.f32 %v2164, 1.0
        %v2172 = vadd.f32 %v2166, 1.0
        %v2173 = vadd.f32 %v2168, 1.0
        %v2174 = vadd.f32 %v2170, 1.0
        %v2175 = vrcp.pop %v2171
        %v2176 = vmul.f32 1.0, %v2175
        %v2177 = vrcp.pop %v2172
        %v2178 = vmul.f32 1.0, %v2177
        %v2179 = vrcp.pop %v2173
        %v2180 = vmul.f32 1.0, %v2179
        %v2181 = vrcp.pop %v2174
        %v2182 = vmul.f32 1.0, %v2181
        %v2183 = vadd.f32 %v2176, %v976
        %v2184 = vadd.f32 %v2178, %v977
        %v2185 = vadd.f32 %v2180, %v978
        %v2186 = vadd.f32 %v2182, %v979
        %v2187 = vmax.f32 %v2183, 0.0001
        %v2188 = vmax.f32 %v2184, 0.0001
        %v2189 = vmax.f32 %v2185, 0.0001
        %v2190 = vmax.f32 %v2186, 0.0001
        %v2191 = vmin.f32 %v2187, 1.0
        %v2192 = vmin.f32 %v2188, 1.0
        %v2193 = vmin.f32 %v2189, 1.0
        %v2194 = vmin.f32 %v2190, 1.0
        %v2195 = vrcp.pop %v2191
        %v2196 = vmul.f32 %v972, %v2195
        %v2197 = vrcp.pop %v2192
        %v2198 = vmul.f32 %v973, %v2197
        %v2199 = vrcp.pop %v2193
        %v2200 = vmul.f32 %v974, %v2199
        %v2201 = vrcp.pop %v2194
        %v2202 = vmul.f32 %v975, %v2201
        %v2203 = vmax.f32 %v2196, 0.0
        %v2204 = vmax.f32 %v2198, 0.0
        %v2205 = vmax.f32 %v2200, 0.0
        %v2206 = vmax.f32 %v2202, 0.0
        %v2207 = vmin.f32 %v2203, 1.0
        %v2208 = vmin.f32 %v2204, 1.0
        %v2209 = vmin.f32 %v2205, 1.0
        %v2210 = vmin.f32 %v2206, 1.0
        %v2211 = vrot.slane %v2207, 7
        %v2212 = vrot.slane %v2208, 7
        %v2213 = vrot.slane %v2209, 7
        %v2214 = vrot.slane %v2210, 7
        %v2215 = vsel %vm1045, %v2213, %v2214
        %v2216 = vsel %vm1045, %v2212, %v2213
        %v2217 = vsel %vm1045, %v2211, %v2212
        %v2218 = vsel %vm1045, %v2214, %v2211
        %v2219 = vsel %vm1054, 0.0, %v2218
        %v2220 = vsel %vm1055, 0.0, %v2217
        %v2221 = vsel %vm1056, 0.0, %v2216
        %v2222 = vsel %vm1057, 0.0, %v2215
        %v2223 = vpack.c.bf16 %v2220, %v2219
        %v2224 = vpack.c.bf16 %v2222, %v2221
        %v2225 = vpack.c.bf16 %v2208, %v2207
        %v2226 = vpack.c.bf16 %v2210, %v2209
        %v2227 = vrot.slane %v2207, 1
        %v2228 = vrot.slane %v2208, 1
        %v2229 = vrot.slane %v2209, 1
        %v2230 = vrot.slane %v2210, 1
        %v2231 = vsel %vm1070, %v2229, %v2230
        %v2232 = vsel %vm1070, %v2228, %v2229
        %v2233 = vsel %vm1070, %v2227, %v2228
        %v2234 = vsel %vm1070, %v2230, %v2227
        %v2235 = vsel %vm1079, 0.0, %v2233
        %v2236 = vsel %vm1080, 0.0, %v2232
        %v2237 = vsel %vm1081, 0.0, %v2231
        %v2238 = vsel %vm1082, 0.0, %v2234
        %v2239 = vpack.c.bf16 %v2236, %v2235
        %v2240 = vpack.c.bf16 %v2238, %v2237
        %v2241 = vld [vmem:[%s9] sm:$0xff]
        %v2242 = vld [vmem:[%s9 + $0x8] sm:$0xff]
        %v2243 = vld [vmem:[%s9 + $0x10] sm:$0xff]
        %v2244 = vld [vmem:[%s9 + $0x18] sm:$0xff]
        %v2245 = vld [vmem:[%s9 + $0x20] sm:$0xff]
        %v2246 = vld [vmem:[%s9 + $0x28] sm:$0xff]
        %s2247 = scalar_lea.vmem %s9, 48
        %v2248 = vld [vmem:[%s2247] sm:$0xff]
        %v2249 = vld [vmem:[%s2247 + $0x8] sm:$0xff]
        %v2250 = vld [vmem:[%s2247 + $0x10] sm:$0xff]
        %v2251 = vld [vmem:[%s2247 + $0x18] sm:$0xff]
        %v2252 = vld [vmem:[%s2247 + $0x20] sm:$0xff]
        %v2253 = vld [vmem:[%s2247 + $0x28] sm:$0xff]
        %v2260 = vunpack.c.l.b16 %v2248
        %v2261 = vunpack.c.h.b16 %v2248
        %v2262 = vunpack.c.l.b16 %v2249
        %v2263 = vunpack.c.h.b16 %v2249
        %v2264 = vunpack.c.l.b16 %v2250
        %v2265 = vunpack.c.h.b16 %v2250
        %v2266 = vunpack.c.l.b16 %v2251
        %v2267 = vunpack.c.h.b16 %v2251
        %v2268 = vunpack.c.l.b16 %v2252
        %v2269 = vunpack.c.h.b16 %v2252
        %v2270 = vunpack.c.l.b16 %v2253
        %v2271 = vunpack.c.h.b16 %v2253
        %v2272 = vpack.c.b16 %v2262, %v2260
        %v2273 = vpack.c.b16 %v2263, %v2261
        %v2274 = vpack.c.b16 %v2266, %v2264
        %v2275 = vpack.c.b16 %v2267, %v2265
        %v2276 = vpack.c.b16 %v2270, %v2268
        %v2277 = vpack.c.b16 %v2271, %v2269
        %v2285 = vsel %vm1120, %v2225, 0
        %v2288 = vsel %vm1120, %v2226, 0
        %2290 = vmatprep.subr.bf16.mxu0 0
        %2291 = vmatpush1.bf16.msra.mxu0 0
        %2292 = vmatprep.subr.bf16.mxu0 0
        %2293 = vmatpush1.bf16.msra.mxu0 0
        %2294 = vmatprep.subr.bf16.mxu0 0
        %2295 = vmatpush1.bf16.msra.mxu0 0
        %2296 = vmatprep.subr.bf16.mxu0 0
        %2297 = vmatpush1.bf16.msra.mxu0 0
        %2298 = vmatprep.subr.bf16.mxu0 0
        %2299 = vmatpush1.bf16.msra.mxu0 0
        %2300 = vmatprep.subr.bf16.mxu0 %v2277
        %2301 = vmatpush1.bf16.msra.mxu0 %v2276
        %2302 = vmatprep.subr.bf16.mxu0 %v2275
        %2303 = vmatpush1.bf16.msra.mxu0 %v2274
        %2304 = vmatprep.subr.bf16.mxu0 %v2273
        %2305 = vmatpush1.bf16.msra.mxu0 %v2272
        %2306 = vmatprep.subr.bf16.mxu0 0
        %2307 = vmatpush2.bf16.msra.mxu0 0
        %2308 = vmatprep.subr.bf16.mxu0 0
        %2309 = vmatpush2.bf16.msra.mxu0 0
        %2310 = vmatprep.subr.bf16.mxu0 0
        %2311 = vmatpush2.bf16.msra.mxu0 0
        %2312 = vmatprep.subr.bf16.mxu0 0
        %2313 = vmatpush2.bf16.msra.mxu0 0
        %2314 = vmatprep.subr.bf16.mxu0 0
        %2315 = vmatpush2.bf16.msra.mxu0 0
        %2316 = vmatprep.subr.bf16.mxu0 0
        %2317 = vmatpush2.bf16.msra.mxu0 0
        %2318 = vmatprep.subr.bf16.mxu0 0
        %2319 = vmatpush2.bf16.msra.mxu0 0
        %2320 = vmatprep.subr.bf16.mxu0 0
        %2321 = vmatpush2.bf16.msra.mxu0 0
        %2322 = vmatprep.mubr.bf16.mxu0 0
        %2323 = vmatmul.mubr.bf16.gmra.mxu0 %v2285
        %v2324 = vpop.f32.mrf.mxu0
        %v2325 = vadd.f32 0.0, %v2324
        %v2326 = vpop.f32.mrf.mxu0
        %v2327 = vadd.f32 0.0, %v2326
        %v2328 = vpop.f32.mrf.mxu0
        %v2329 = vadd.f32 0.0, %v2328
        %v2330 = vpop.f32.mrf.mxu0
        %v2331 = vadd.f32 0.0, %v2330
        %2332 = vmatprep.mubr.bf16.mxu0 0
        %2333 = vmatmul.mubr.bf16.gmra.mxu0 %v2288
        %v2334 = vpop.f32.mrf.mxu0
        %v2335 = vadd.f32 0.0, %v2334
        %v2336 = vpop.f32.mrf.mxu0
        %v2337 = vadd.f32 0.0, %v2336
        %v2338 = vpop.f32.mrf.mxu0
        %v2339 = vadd.f32 0.0, %v2338
        %v2340 = vpop.f32.mrf.mxu0
        %v2341 = vadd.f32 0.0, %v2340
        %2342 = vdwg.mxu0
        %v2349 = vunpack.c.l.b16 %v2241
        %v2350 = vunpack.c.h.b16 %v2241
        %v2351 = vunpack.c.l.b16 %v2242
        %v2352 = vunpack.c.h.b16 %v2242
        %v2353 = vunpack.c.l.b16 %v2243
        %v2354 = vunpack.c.h.b16 %v2243
        %v2355 = vunpack.c.l.b16 %v2244
        %v2356 = vunpack.c.h.b16 %v2244
        %v2357 = vunpack.c.l.b16 %v2245
        %v2358 = vunpack.c.h.b16 %v2245
        %v2359 = vunpack.c.l.b16 %v2246
        %v2360 = vunpack.c.h.b16 %v2246
        %v2361 = vpack.c.b16 %v2351, %v2349
        %v2362 = vpack.c.b16 %v2352, %v2350
        %v2363 = vpack.c.b16 %v2355, %v2353
        %v2364 = vpack.c.b16 %v2356, %v2354
        %v2365 = vpack.c.b16 %v2359, %v2357
        %v2366 = vpack.c.b16 %v2360, %v2358
        %v2374 = vsel %vm1120, %v2223, 0
        %v2377 = vsel %vm1120, %v2224, 0
        %2379 = vmatprep.subr.bf16.mxu0 0
        %2380 = vmatpush1.bf16.msra.mxu0 0
        %2381 = vmatprep.subr.bf16.mxu0 0
        %2382 = vmatpush1.bf16.msra.mxu0 0
        %2383 = vmatprep.subr.bf16.mxu0 0
        %2384 = vmatpush1.bf16.msra.mxu0 0
        %2385 = vmatprep.subr.bf16.mxu0 0
        %2386 = vmatpush1.bf16.msra.mxu0 0
        %2387 = vmatprep.subr.bf16.mxu0 0
        %2388 = vmatpush1.bf16.msra.mxu0 0
        %2389 = vmatprep.subr.bf16.mxu0 %v2366
        %2390 = vmatpush1.bf16.msra.mxu0 %v2365
        %2391 = vmatprep.subr.bf16.mxu0 %v2364
        %2392 = vmatpush1.bf16.msra.mxu0 %v2363
        %2393 = vmatprep.subr.bf16.mxu0 %v2362
        %2394 = vmatpush1.bf16.msra.mxu0 %v2361
        %2395 = vmatprep.subr.bf16.mxu0 0
        %2396 = vmatpush2.bf16.msra.mxu0 0
        %2397 = vmatprep.subr.bf16.mxu0 0
        %2398 = vmatpush2.bf16.msra.mxu0 0
        %2399 = vmatprep.subr.bf16.mxu0 0
        %2400 = vmatpush2.bf16.msra.mxu0 0
        %2401 = vmatprep.subr.bf16.mxu0 0
        %2402 = vmatpush2.bf16.msra.mxu0 0
        %2403 = vmatprep.subr.bf16.mxu0 0
        %2404 = vmatpush2.bf16.msra.mxu0 0
        %2405 = vmatprep.subr.bf16.mxu0 0
        %2406 = vmatpush2.bf16.msra.mxu0 0
        %2407 = vmatprep.subr.bf16.mxu0 0
        %2408 = vmatpush2.bf16.msra.mxu0 0
        %2409 = vmatprep.subr.bf16.mxu0 0
        %2410 = vmatpush2.bf16.msra.mxu0 0
        %2411 = vmatprep.mubr.bf16.mxu0 0
        %2412 = vmatmul.mubr.bf16.gmra.mxu0 %v2374
        %v2413 = vpop.f32.mrf.mxu0
        %v2414 = vadd.f32 %v2325, %v2413
        %v2415 = vpop.f32.mrf.mxu0
        %v2416 = vadd.f32 %v2327, %v2415
        %v2417 = vpop.f32.mrf.mxu0
        %v2418 = vadd.f32 %v2329, %v2417
        %v2419 = vpop.f32.mrf.mxu0
        %v2420 = vadd.f32 %v2331, %v2419
        %2421 = vmatprep.mubr.bf16.mxu0 0
        %2422 = vmatmul.mubr.bf16.gmra.mxu0 %v2377
        %v2423 = vpop.f32.mrf.mxu0
        %v2424 = vadd.f32 %v2335, %v2423
        %v2425 = vpop.f32.mrf.mxu0
        %v2426 = vadd.f32 %v2337, %v2425
        %v2427 = vpop.f32.mrf.mxu0
        %v2428 = vadd.f32 %v2339, %v2427
        %v2429 = vpop.f32.mrf.mxu0
        %v2430 = vadd.f32 %v2341, %v2429
        %2431 = vdwg.mxu0
        %s2432 = scalar_lea.vmem %s9, 96
        %v2433 = vld [vmem:[%s2432] sm:$0xff]
        %v2434 = vld [vmem:[%s2432 + $0x8] sm:$0xff]
        %v2435 = vld [vmem:[%s2432 + $0x10] sm:$0xff]
        %v2436 = vld [vmem:[%s2432 + $0x18] sm:$0xff]
        %v2437 = vld [vmem:[%s2432 + $0x20] sm:$0xff]
        %v2438 = vld [vmem:[%s2432 + $0x28] sm:$0xff]
        %v2445 = vunpack.c.l.b16 %v2433
        %v2446 = vunpack.c.h.b16 %v2433
        %v2447 = vunpack.c.l.b16 %v2434
        %v2448 = vunpack.c.h.b16 %v2434
        %v2449 = vunpack.c.l.b16 %v2435
        %v2450 = vunpack.c.h.b16 %v2435
        %v2451 = vunpack.c.l.b16 %v2436
        %v2452 = vunpack.c.h.b16 %v2436
        %v2453 = vunpack.c.l.b16 %v2437
        %v2454 = vunpack.c.h.b16 %v2437
        %v2455 = vunpack.c.l.b16 %v2438
        %v2456 = vunpack.c.h.b16 %v2438
        %v2457 = vpack.c.b16 %v2447, %v2445
        %v2458 = vpack.c.b16 %v2448, %v2446
        %v2459 = vpack.c.b16 %v2451, %v2449
        %v2460 = vpack.c.b16 %v2452, %v2450
        %v2461 = vpack.c.b16 %v2455, %v2453
        %v2462 = vpack.c.b16 %v2456, %v2454
        %v2470 = vsel %vm1120, %v2239, 0
        %v2473 = vsel %vm1120, %v2240, 0
        %2475 = vmatprep.subr.bf16.mxu0 0
        %2476 = vmatpush1.bf16.msra.mxu0 0
        %2477 = vmatprep.subr.bf16.mxu0 0
        %2478 = vmatpush1.bf16.msra.mxu0 0
        %2479 = vmatprep.subr.bf16.mxu0 0
        %2480 = vmatpush1.bf16.msra.mxu0 0
        %2481 = vmatprep.subr.bf16.mxu0 0
        %2482 = vmatpush1.bf16.msra.mxu0 0
        %2483 = vmatprep.subr.bf16.mxu0 0
        %2484 = vmatpush1.bf16.msra.mxu0 0
        %2485 = vmatprep.subr.bf16.mxu0 %v2462
        %2486 = vmatpush1.bf16.msra.mxu0 %v2461
        %2487 = vmatprep.subr.bf16.mxu0 %v2460
        %2488 = vmatpush1.bf16.msra.mxu0 %v2459
        %2489 = vmatprep.subr.bf16.mxu0 %v2458
        %2490 = vmatpush1.bf16.msra.mxu0 %v2457
        %2491 = vmatprep.subr.bf16.mxu0 0
        %2492 = vmatpush2.bf16.msra.mxu0 0
        %2493 = vmatprep.subr.bf16.mxu0 0
        %2494 = vmatpush2.bf16.msra.mxu0 0
        %2495 = vmatprep.subr.bf16.mxu0 0
        %2496 = vmatpush2.bf16.msra.mxu0 0
        %2497 = vmatprep.subr.bf16.mxu0 0
        %2498 = vmatpush2.bf16.msra.mxu0 0
        %2499 = vmatprep.subr.bf16.mxu0 0
        %2500 = vmatpush2.bf16.msra.mxu0 0
        %2501 = vmatprep.subr.bf16.mxu0 0
        %2502 = vmatpush2.bf16.msra.mxu0 0
        %2503 = vmatprep.subr.bf16.mxu0 0
        %2504 = vmatpush2.bf16.msra.mxu0 0
        %2505 = vmatprep.subr.bf16.mxu0 0
        %2506 = vmatpush2.bf16.msra.mxu0 0
        %2507 = vmatprep.mubr.bf16.mxu0 0
        %2508 = vmatmul.mubr.bf16.gmra.mxu0 %v2470
        %v2509 = vpop.f32.mrf.mxu0
        %v2510 = vadd.f32 0.0, %v2509
        %v2511 = vpop.f32.mrf.mxu0
        %v2512 = vadd.f32 0.0, %v2511
        %v2513 = vpop.f32.mrf.mxu0
        %v2514 = vadd.f32 0.0, %v2513
        %v2515 = vpop.f32.mrf.mxu0
        %v2516 = vadd.f32 0.0, %v2515
        %2517 = vmatprep.mubr.bf16.mxu0 0
        %2518 = vmatmul.mubr.bf16.gmra.mxu0 %v2473
        %v2519 = vpop.f32.mrf.mxu0
        %v2520 = vadd.f32 0.0, %v2519
        %v2521 = vpop.f32.mrf.mxu0
        %v2522 = vadd.f32 0.0, %v2521
        %v2523 = vpop.f32.mrf.mxu0
        %v2524 = vadd.f32 0.0, %v2523
        %v2525 = vpop.f32.mrf.mxu0
        %v2526 = vadd.f32 0.0, %v2525
        %2527 = vdwg.mxu0
        %v2528 = vadd.f32 %v2414, %v2510
        %v2529 = vadd.f32 %v2416, %v2512
        %v2530 = vadd.f32 %v2418, %v2514
        %v2531 = vadd.f32 %v2420, %v2516
        %v2532 = vadd.f32 %v2424, %v2520
        %v2533 = vadd.f32 %v2426, %v2522
        %v2534 = vadd.f32 %v2428, %v2524
        %v2535 = vadd.f32 %v2430, %v2526
        %v2536 = vld [vmem:[%s10] sm:$0x3]
        %v2538 = vlaneseq
        %v2539 = vshrl.u32 %v2538, 7
        %v2540 = vsub.s32 0, %v2539
        %v2541 = vrot.slane %v2536, %v2540
        %v2542 = vlaneseq
        %v2543 = vshrl.u32 %v2542, 7
        %v2544 = vsub.s32 1, %v2543
        %v2545 = vrot.slane %v2536, %v2544
        %v2548 = vadd.f32 %v2528, %v2541
        %v2549 = vadd.f32 %v2529, %v2545
        %v2550 = vadd.f32 %v2530, %v2541
        %v2551 = vadd.f32 %v2531, %v2545
        %v2552 = vadd.f32 %v2532, %v2541
        %v2553 = vadd.f32 %v2533, %v2545
        %v2554 = vadd.f32 %v2534, %v2541
        %v2555 = vadd.f32 %v2535, %v2545
        %v2556 = vadd.f32 %v2548, %v2550
        %v2557 = vadd.f32 %v2556, %v2552
        %v2558 = vadd.f32 %v2557, %v2554
        %v2559 = vrot.slane %v2558, 4
        %v2560 = vadd.f32 %v2558, %v2559
        %v2561 = vrot.slane %v2560, 2
        %v2562 = vadd.f32 %v2560, %v2561
        %v2563 = vrot.slane %v2562, 1
        %v2564 = vadd.f32 %v2562, %v2563
        %v2565 = vadd.f32 %v2549, %v2551
        %v2566 = vadd.f32 %v2565, %v2553
        %v2567 = vadd.f32 %v2566, %v2555
        %v2568 = vrot.slane %v2567, 4
        %v2569 = vadd.f32 %v2567, %v2568
        %v2570 = vrot.slane %v2569, 2
        %v2571 = vadd.f32 %v2569, %v2570
        %v2572 = vrot.slane %v2571, 1
        %v2573 = vadd.f32 %v2571, %v2572
        %v2574 = vmul.f32 %v2548, %v2548
        %v2575 = vmul.f32 %v2549, %v2549
        %v2576 = vmul.f32 %v2550, %v2550
        %v2577 = vmul.f32 %v2551, %v2551
        %v2578 = vmul.f32 %v2552, %v2552
        %v2579 = vmul.f32 %v2553, %v2553
        %v2580 = vmul.f32 %v2554, %v2554
        %v2581 = vmul.f32 %v2555, %v2555
        %v2582 = vadd.f32 %v2574, %v2576
        %v2583 = vadd.f32 %v2582, %v2578
        %v2584 = vadd.f32 %v2583, %v2580
        %v2585 = vrot.slane %v2584, 4
        %v2586 = vadd.f32 %v2584, %v2585
        %v2587 = vrot.slane %v2586, 2
        %v2588 = vadd.f32 %v2586, %v2587
        %v2589 = vrot.slane %v2588, 1
        %v2590 = vadd.f32 %v2588, %v2589
        %v2591 = vadd.f32 %v2575, %v2577
        %v2592 = vadd.f32 %v2591, %v2579
        %v2593 = vadd.f32 %v2592, %v2581
        %v2594 = vrot.slane %v2593, 4
        %v2595 = vadd.f32 %v2593, %v2594
        %v2596 = vrot.slane %v2595, 2
        %v2597 = vadd.f32 %v2595, %v2596
        %v2598 = vrot.slane %v2597, 1
        %v2599 = vadd.f32 %v2597, %v2598
        %v2600 = vsel %vm1662, %v2564, %v2590
        %v2601 = vsel %vm1662, %v2573, %v2599
        %v2602 = vld [vmem:[%s25] sm:$0xff]
        %v2603 = vld [vmem:[%s25 + $0x8] sm:$0xff]
        %v2604 = vld [vmem:[%s25 + $0x10] sm:$0xff]
        %v2605 = vld [vmem:[%s25 + $0x18] sm:$0xff]
        %v2606 = vld [vmem:[%s25 + $0x20] sm:$0xff]
        %v2607 = vld [vmem:[%s25 + $0x28] sm:$0xff]
        %v2608 = vld [vmem:[%s25 + $0x30] sm:$0xff]
        %v2609 = vld [vmem:[%s25 + $0x38] sm:$0xff]
        %v2610 = vld [vmem:[%s25 + $0x40] sm:$0xff]
        %v2611 = vld [vmem:[%s25 + $0x48] sm:$0xff]
        %v2612 = vld [vmem:[%s25 + $0x50] sm:$0xff]
        %v2613 = vld [vmem:[%s25 + $0x58] sm:$0xff]
        %v2614 = vld [vmem:[%s25 + $0x60] sm:$0xff]
        %v2615 = vld [vmem:[%s25 + $0x68] sm:$0xff]
        %v2616 = vld [vmem:[%s25 + $0x70] sm:$0xff]
        %v2617 = vld [vmem:[%s25 + $0x78] sm:$0xff]
        %v2618 = vld [vmem:[%s25 + $0x80] sm:$0xff]
        %v2619 = vld [vmem:[%s25 + $0x88] sm:$0xff]
        %v2620 = vld [vmem:[%s25 + $0x90] sm:$0xff]
        %v2621 = vld [vmem:[%s25 + $0x98] sm:$0xff]
        %v2622 = vld [vmem:[%s25 + $0xa0] sm:$0xff]
        %v2623 = vld [vmem:[%s25 + $0xa8] sm:$0xff]
        %v2624 = vld [vmem:[%s25 + $0xb0] sm:$0xff]
        %v2625 = vld [vmem:[%s25 + $0xb8] sm:$0xff]
        %v2626 = vld [vmem:[%s25 + $0xc0] sm:$0xff]
        %v2627 = vld [vmem:[%s25 + $0xc8] sm:$0xff]
        %v2628 = vld [vmem:[%s25 + $0xd0] sm:$0xff]
        %v2629 = vld [vmem:[%s25 + $0xd8] sm:$0xff]
        %v2630 = vld [vmem:[%s25 + $0xe0] sm:$0xff]
        %v2631 = vld [vmem:[%s25 + $0xe8] sm:$0xff]
        %v2632 = vld [vmem:[%s25 + $0xf0] sm:$0xff]
        %v2633 = vld [vmem:[%s25 + $0xf8] sm:$0xff]
        %2634 = vmatprep.subr.mxu0 0.0
        %2635 = vmatpush1.msra.mxu0 %v2617
        %2636 = vmatprep.subr.mxu0 0.0
        %2637 = vmatpush1.msra.mxu0 %v2616
        %2638 = vmatprep.subr.mxu0 0.0
        %2639 = vmatpush1.msra.mxu0 %v2615
        %2640 = vmatprep.subr.mxu0 0.0
        %2641 = vmatpush1.msra.mxu0 %v2614
        %2642 = vmatprep.subr.mxu0 0.0
        %2643 = vmatpush1.msra.mxu0 %v2613
        %2644 = vmatprep.subr.mxu0 0.0
        %2645 = vmatpush1.msra.mxu0 %v2612
        %2646 = vmatprep.subr.mxu0 0.0
        %2647 = vmatpush1.msra.mxu0 %v2611
        %2648 = vmatprep.subr.mxu0 0.0
        %2649 = vmatpush1.msra.mxu0 %v2610
        %2650 = vmatprep.subr.mxu0 0.0
        %2651 = vmatpush1.msra.mxu0 %v2609
        %2652 = vmatprep.subr.mxu0 0.0
        %2653 = vmatpush1.msra.mxu0 %v2608
        %2654 = vmatprep.subr.mxu0 0.0
        %2655 = vmatpush1.msra.mxu0 %v2607
        %2656 = vmatprep.subr.mxu0 0.0
        %2657 = vmatpush1.msra.mxu0 %v2606
        %2658 = vmatprep.subr.mxu0 0.0
        %2659 = vmatpush1.msra.mxu0 %v2605
        %2660 = vmatprep.subr.mxu0 0.0
        %2661 = vmatpush1.msra.mxu0 %v2604
        %2662 = vmatprep.subr.mxu0 0.0
        %2663 = vmatpush1.msra.mxu0 %v2603
        %2664 = vmatprep.subr.mxu0 0.0
        %2665 = vmatpush1.msra.mxu0 %v2602
        %2666 = vmatprep.subr.mxu0 0.0
        %2667 = vmatpush2.msra.mxu0 %v2633
        %2668 = vmatprep.subr.mxu0 0.0
        %2669 = vmatpush2.msra.mxu0 %v2632
        %2670 = vmatprep.subr.mxu0 0.0
        %2671 = vmatpush2.msra.mxu0 %v2631
        %2672 = vmatprep.subr.mxu0 0.0
        %2673 = vmatpush2.msra.mxu0 %v2630
        %2674 = vmatprep.subr.mxu0 0.0
        %2675 = vmatpush2.msra.mxu0 %v2629
        %2676 = vmatprep.subr.mxu0 0.0
        %2677 = vmatpush2.msra.mxu0 %v2628
        %2678 = vmatprep.subr.mxu0 0.0
        %2679 = vmatpush2.msra.mxu0 %v2627
        %2680 = vmatprep.subr.mxu0 0.0
        %2681 = vmatpush2.msra.mxu0 %v2626
        %2682 = vmatprep.subr.mxu0 0.0
        %2683 = vmatpush2.msra.mxu0 %v2625
        %2684 = vmatprep.subr.mxu0 0.0
        %2685 = vmatpush2.msra.mxu0 %v2624
        %2686 = vmatprep.subr.mxu0 0.0
        %2687 = vmatpush2.msra.mxu0 %v2623
        %2688 = vmatprep.subr.mxu0 0.0
        %2689 = vmatpush2.msra.mxu0 %v2622
        %2690 = vmatprep.subr.mxu0 0.0
        %2691 = vmatpush2.msra.mxu0 %v2621
        %2692 = vmatprep.subr.mxu0 0.0
        %2693 = vmatpush2.msra.mxu0 %v2620
        %2694 = vmatprep.subr.mxu0 0.0
        %2695 = vmatpush2.msra.mxu0 %v2619
        %2696 = vmatprep.subr.mxu0 0.0
        %2697 = vmatpush2.msra.mxu0 %v2618
        %2698 = vmatprep.mubr.f32.mxu0 %v2601
        %2699 = vmatmul.mubr.f32.gmra.mxu0 %v2600
        %v2700 = vpop.f32.mrf.mxu0
        %v2701 = vadd.f32 0.0, %v2700
        %v2702 = vpop.f32.mrf.mxu0
        %2703 = vdwg.mxu0
        %v2704 = vmul.f32 %v2701, 0.001953125
        %v2705 = vmul.f32 %v2704, %v2704
        %v2707 = vrot.slane %v2705, 7
        %v2709 = vsub.f32 %v2704, %v2707
        %v2710 = vmax.f32 %v2709, 0.0
        %v2711 = vadd.f32 %v2710, 1e-05
        %v2712 = vrsqrt.pop %v2711
        %v2713 = vsel %vm1662, %v2704, %v2712
        %v2714 = vld [vmem:[#allocation16] sm:$0xff]
        %v2715 = vld [vmem:[#allocation16 + $0x8] sm:$0xff]
        %v2716 = vld [vmem:[#allocation16 + $0x10] sm:$0xff]
        %v2717 = vld [vmem:[#allocation16 + $0x18] sm:$0xff]
        %vm2718 = vcmask 130048
        %v2720 = vsel %vm2718, %v2713, 0
        %2722 = vmatprep.subr.mxu0 0.0
        %2723 = vmatpush1.msra.mxu0 0.0
        %2724 = vmatprep.subr.mxu0 0.0
        %2725 = vmatpush1.msra.mxu0 0.0
        %2726 = vmatprep.subr.mxu0 0.0
        %2727 = vmatpush1.msra.mxu0 0.0
        %2728 = vmatprep.subr.mxu0 0.0
        %2729 = vmatpush1.msra.mxu0 0.0
        %2730 = vmatprep.subr.mxu0 0.0
        %2731 = vmatpush1.msra.mxu0 0.0
        %2732 = vmatprep.subr.mxu0 0.0
        %2733 = vmatpush1.msra.mxu0 0.0
        %2734 = vmatprep.subr.mxu0 0.0
        %2735 = vmatpush1.msra.mxu0 0.0
        %2736 = vmatprep.subr.mxu0 0.0
        %2737 = vmatpush1.msra.mxu0 0.0
        %2738 = vmatprep.subr.mxu0 0.0
        %2739 = vmatpush1.msra.mxu0 0.0
        %2740 = vmatprep.subr.mxu0 0.0
        %2741 = vmatpush1.msra.mxu0 0.0
        %2742 = vmatprep.subr.mxu0 0.0
        %2743 = vmatpush1.msra.mxu0 0.0
        %2744 = vmatprep.subr.mxu0 0.0
        %2745 = vmatpush1.msra.mxu0 0.0
        %2746 = vmatprep.subr.mxu0 0.0
        %2747 = vmatpush1.msra.mxu0 0.0
        %2748 = vmatprep.subr.mxu0 0.0
        %2749 = vmatpush1.msra.mxu0 0.0
        %2750 = vmatprep.subr.mxu0 %v2717
        %2751 = vmatpush1.msra.mxu0 %v2716
        %2752 = vmatprep.subr.mxu0 %v2715
        %2753 = vmatpush1.msra.mxu0 %v2714
        %2754 = vmatprep.subr.mxu0 0.0
        %2755 = vmatpush2.msra.mxu0 0.0
        %2756 = vmatprep.subr.mxu0 0.0
        %2757 = vmatpush2.msra.mxu0 0.0
        %2758 = vmatprep.subr.mxu0 0.0
        %2759 = vmatpush2.msra.mxu0 0.0
        %2760 = vmatprep.subr.mxu0 0.0
        %2761 = vmatpush2.msra.mxu0 0.0
        %2762 = vmatprep.subr.mxu0 0.0
        %2763 = vmatpush2.msra.mxu0 0.0
        %2764 = vmatprep.subr.mxu0 0.0
        %2765 = vmatpush2.msra.mxu0 0.0
        %2766 = vmatprep.subr.mxu0 0.0
        %2767 = vmatpush2.msra.mxu0 0.0
        %2768 = vmatprep.subr.mxu0 0.0
        %2769 = vmatpush2.msra.mxu0 0.0
        %2770 = vmatprep.subr.mxu0 0.0
        %2771 = vmatpush2.msra.mxu0 0.0
        %2772 = vmatprep.subr.mxu0 0.0
        %2773 = vmatpush2.msra.mxu0 0.0
        %2774 = vmatprep.subr.mxu0 0.0
        %2775 = vmatpush2.msra.mxu0 0.0
        %2776 = vmatprep.subr.mxu0 0.0
        %2777 = vmatpush2.msra.mxu0 0.0
        %2778 = vmatprep.subr.mxu0 0.0
        %2779 = vmatpush2.msra.mxu0 0.0
        %2780 = vmatprep.subr.mxu0 0.0
        %2781 = vmatpush2.msra.mxu0 0.0
        %2782 = vmatprep.subr.mxu0 0.0
        %2783 = vmatpush2.msra.mxu0 0.0
        %2784 = vmatprep.subr.mxu0 0.0
        %2785 = vmatpush2.msra.mxu0 0.0
        %2786 = vmatprep.mubr.f32.mxu0 0.0
        %2787 = vmatmul.mubr.f32.gmra.mxu0 %v2720
        %v2788 = vpop.f32.mrf.mxu0
        %v2789 = vadd.f32 0.0, %v2788
        %v2790 = vpop.f32.mrf.mxu0
        %v2791 = vadd.f32 0.0, %v2790
        %2792 = vdwg.mxu0
        %v2793 = vlaneseq
        %v2794 = vshrl.u32 %v2793, 7
        %v2795 = vsub.s32 0, %v2794
        %v2796 = vrot.slane %v2789, %v2795
        %v2797 = vlaneseq
        %v2798 = vshrl.u32 %v2797, 7
        %v2799 = vsub.s32 0, %v2798
        %v2800 = vrot.slane %v2791, %v2799
        %v2801 = vsub.f32 %v2548, %v2796
        %v2802 = vsub.f32 %v2549, %v2800
        %v2803 = vsub.f32 %v2550, %v2796
        %v2804 = vsub.f32 %v2551, %v2800
        %v2805 = vsub.f32 %v2552, %v2796
        %v2806 = vsub.f32 %v2553, %v2800
        %v2807 = vsub.f32 %v2554, %v2796
        %v2808 = vsub.f32 %v2555, %v2800
        %v2809 = vld [vmem:[%s11] sm:$0x3]
        %v2811 = vlaneseq
        %v2812 = vshrl.u32 %v2811, 7
        %v2813 = vsub.s32 0, %v2812
        %v2814 = vrot.slane %v2809, %v2813
        %v2815 = vlaneseq
        %v2816 = vshrl.u32 %v2815, 7
        %v2817 = vsub.s32 1, %v2816
        %v2818 = vrot.slane %v2809, %v2817
        %v2821 = vmul.f32 %v2789, %v2814
        %v2822 = vmul.f32 %v2791, %v2818
        %v2823 = vlaneseq
        %v2824 = vshrl.u32 %v2823, 7
        %v2825 = vsub.s32 1, %v2824
        %v2826 = vrot.slane %v2821, %v2825
        %v2827 = vlaneseq
        %v2828 = vshrl.u32 %v2827, 7
        %v2829 = vsub.s32 1, %v2828
        %v2830 = vrot.slane %v2822, %v2829
        %v2831 = vmul.f32 %v2801, %v2826
        %v2832 = vmul.f32 %v2802, %v2830
        %v2833 = vmul.f32 %v2803, %v2826
        %v2834 = vmul.f32 %v2804, %v2830
        %v2835 = vmul.f32 %v2805, %v2826
        %v2836 = vmul.f32 %v2806, %v2830
        %v2837 = vmul.f32 %v2807, %v2826
        %v2838 = vmul.f32 %v2808, %v2830
        %v2839 = vld [vmem:[%s12] sm:$0x3]
        %v2841 = vlaneseq
        %v2842 = vshrl.u32 %v2841, 7
        %v2843 = vsub.s32 0, %v2842
        %v2844 = vrot.slane %v2839, %v2843
        %v2845 = vlaneseq
        %v2846 = vshrl.u32 %v2845, 7
        %v2847 = vsub.s32 1, %v2846
        %v2848 = vrot.slane %v2839, %v2847
        %v2851 = vadd.f32 %v2831, %v2844
        %v2852 = vadd.f32 %v2832, %v2848
        %v2853 = vadd.f32 %v2833, %v2844
        %v2854 = vadd.f32 %v2834, %v2848
        %v2855 = vadd.f32 %v2835, %v2844
        %v2856 = vadd.f32 %v2836, %v2848
        %v2857 = vadd.f32 %v2837, %v2844
        %v2858 = vadd.f32 %v2838, %v2848
        %v2859 = vmax.f32 %v2851, 0.0
        %v2860 = vmax.f32 %v2852, 0.0
        %v2861 = vmax.f32 %v2853, 0.0
        %v2862 = vmax.f32 %v2854, 0.0
        %v2863 = vmax.f32 %v2855, 0.0
        %v2864 = vmax.f32 %v2856, 0.0
        %v2865 = vmax.f32 %v2857, 0.0
        %v2866 = vmax.f32 %v2858, 0.0
        %v2867 = vrot.slane %v2859, 7
        %v2868 = vrot.slane %v2860, 7
        %v2869 = vrot.slane %v2861, 7
        %v2870 = vrot.slane %v2862, 7
        %v2871 = vrot.slane %v2863, 7
        %v2872 = vrot.slane %v2864, 7
        %v2873 = vrot.slane %v2865, 7
        %v2874 = vrot.slane %v2866, 7
        %v2875 = vsel %vm1045, %v2871, %v2873
        %v2876 = vsel %vm1045, %v2872, %v2874
        %v2877 = vsel %vm1045, %v2869, %v2871
        %v2878 = vsel %vm1045, %v2870, %v2872
        %v2879 = vsel %vm1045, %v2867, %v2869
        %v2880 = vsel %vm1045, %v2868, %v2870
        %v2881 = vsel %vm1045, %v2873, %v2867
        %v2882 = vsel %vm1045, %v2874, %v2868
        %v2883 = vsel %vm1054, 0.0, %v2881
        %v2884 = vsel %vm1054, 0.0, %v2882
        %v2885 = vsel %vm1055, 0.0, %v2879
        %v2886 = vsel %vm1055, 0.0, %v2880
        %v2887 = vsel %vm1056, 0.0, %v2877
        %v2888 = vsel %vm1056, 0.0, %v2878
        %v2889 = vsel %vm1057, 0.0, %v2875
        %v2890 = vsel %vm1057, 0.0, %v2876
        %v2891 = vpack.c.bf16 %v2885, %v2883
        %v2892 = vpack.c.bf16 %v2886, %v2884
        %v2893 = vpack.c.bf16 %v2889, %v2887
        %v2894 = vpack.c.bf16 %v2890, %v2888
        %v2895 = vpack.c.bf16 %v2861, %v2859
        %v2896 = vpack.c.bf16 %v2862, %v2860
        %v2897 = vpack.c.bf16 %v2865, %v2863
        %v2898 = vpack.c.bf16 %v2866, %v2864
        %v2899 = vrot.slane %v2859, 1
        %v2900 = vrot.slane %v2860, 1
        %v2901 = vrot.slane %v2861, 1
        %v2902 = vrot.slane %v2862, 1
        %v2903 = vrot.slane %v2863, 1
        %v2904 = vrot.slane %v2864, 1
        %v2905 = vrot.slane %v2865, 1
        %v2906 = vrot.slane %v2866, 1
        %v2907 = vsel %vm1070, %v2903, %v2905
        %v2908 = vsel %vm1070, %v2904, %v2906
        %v2909 = vsel %vm1070, %v2901, %v2903
        %v2910 = vsel %vm1070, %v2902, %v2904
        %v2911 = vsel %vm1070, %v2899, %v2901
        %v2912 = vsel %vm1070, %v2900, %v2902
        %v2913 = vsel %vm1070, %v2905, %v2899
        %v2914 = vsel %vm1070, %v2906, %v2900
        %v2915 = vsel %vm1079, 0.0, %v2911
        %v2916 = vsel %vm1079, 0.0, %v2912
        %v2917 = vsel %vm1080, 0.0, %v2909
        %v2918 = vsel %vm1080, 0.0, %v2910
        %v2919 = vsel %vm1081, 0.0, %v2907
        %v2920 = vsel %vm1081, 0.0, %v2908
        %v2921 = vsel %vm1082, 0.0, %v2913
        %v2922 = vsel %vm1082, 0.0, %v2914
        %v2923 = vpack.c.bf16 %v2917, %v2915
        %v2924 = vpack.c.bf16 %v2918, %v2916
        %v2925 = vpack.c.bf16 %v2921, %v2919
        %v2926 = vpack.c.bf16 %v2922, %v2920
        %v2927 = vld [vmem:[%s13] sm:$0xff]
        %v2928 = vld [vmem:[%s13 + $0x8] sm:$0xff]
        %v2929 = vld [vmem:[%s13 + $0x10] sm:$0xff]
        %v2930 = vld [vmem:[%s13 + $0x18] sm:$0xff]
        %v2931 = vld [vmem:[%s13 + $0x20] sm:$0xff]
        %v2932 = vld [vmem:[%s13 + $0x28] sm:$0xff]
        %v2933 = vld [vmem:[%s13 + $0x30] sm:$0xff]
        %v2934 = vld [vmem:[%s13 + $0x38] sm:$0xff]
        %v2935 = vld [vmem:[%s13 + $0x40] sm:$0xff]
        %v2936 = vld [vmem:[%s13 + $0x48] sm:$0xff]
        %v2937 = vld [vmem:[%s13 + $0x50] sm:$0xff]
        %v2938 = vld [vmem:[%s13 + $0x58] sm:$0xff]
        %v2939 = vld [vmem:[%s13 + $0x60] sm:$0xff]
        %v2940 = vld [vmem:[%s13 + $0x68] sm:$0xff]
        %v2941 = vld [vmem:[%s13 + $0x70] sm:$0xff]
        %v2942 = vld [vmem:[%s13 + $0x78] sm:$0xff]
        %v2943 = vld [vmem:[%s13 + $0x80] sm:$0xff]
        %v2944 = vld [vmem:[%s13 + $0x88] sm:$0xff]
        %v2945 = vld [vmem:[%s13 + $0x90] sm:$0xff]
        %v2946 = vld [vmem:[%s13 + $0x98] sm:$0xff]
        %v2947 = vld [vmem:[%s13 + $0xa0] sm:$0xff]
        %v2948 = vld [vmem:[%s13 + $0xa8] sm:$0xff]
        %v2949 = vld [vmem:[%s13 + $0xb0] sm:$0xff]
        %v2950 = vld [vmem:[%s13 + $0xb8] sm:$0xff]
        %v2951 = vld [vmem:[%s13 + $0xc0] sm:$0xff]
        %v2952 = vld [vmem:[%s13 + $0xc8] sm:$0xff]
        %v2953 = vld [vmem:[%s13 + $0xd0] sm:$0xff]
        %v2954 = vld [vmem:[%s13 + $0xd8] sm:$0xff]
        %v2955 = vld [vmem:[%s13 + $0xe0] sm:$0xff]
        %v2956 = vld [vmem:[%s13 + $0xe8] sm:$0xff]
        %v2957 = vld [vmem:[%s13 + $0xf0] sm:$0xff]
        %v2958 = vld [vmem:[%s13 + $0xf8] sm:$0xff]
        %s2959 = scalar_lea.vmem %s13, 256
        %v2960 = vld [vmem:[%s2959] sm:$0xff]
        %v2961 = vld [vmem:[%s2959 + $0x8] sm:$0xff]
        %v2962 = vld [vmem:[%s2959 + $0x10] sm:$0xff]
        %v2963 = vld [vmem:[%s2959 + $0x18] sm:$0xff]
        %v2964 = vld [vmem:[%s2959 + $0x20] sm:$0xff]
        %v2965 = vld [vmem:[%s2959 + $0x28] sm:$0xff]
        %v2966 = vld [vmem:[%s2959 + $0x30] sm:$0xff]
        %v2967 = vld [vmem:[%s2959 + $0x38] sm:$0xff]
        %v2968 = vld [vmem:[%s2959 + $0x40] sm:$0xff]
        %v2969 = vld [vmem:[%s2959 + $0x48] sm:$0xff]
        %v2970 = vld [vmem:[%s2959 + $0x50] sm:$0xff]
        %v2971 = vld [vmem:[%s2959 + $0x58] sm:$0xff]
        %v2972 = vld [vmem:[%s2959 + $0x60] sm:$0xff]
        %v2973 = vld [vmem:[%s2959 + $0x68] sm:$0xff]
        %v2974 = vld [vmem:[%s2959 + $0x70] sm:$0xff]
        %v2975 = vld [vmem:[%s2959 + $0x78] sm:$0xff]
        %v2976 = vld [vmem:[%s2959 + $0x80] sm:$0xff]
        %v2977 = vld [vmem:[%s2959 + $0x88] sm:$0xff]
        %v2978 = vld [vmem:[%s2959 + $0x90] sm:$0xff]
        %v2979 = vld [vmem:[%s2959 + $0x98] sm:$0xff]
        %v2980 = vld [vmem:[%s2959 + $0xa0] sm:$0xff]
        %v2981 = vld [vmem:[%s2959 + $0xa8] sm:$0xff]
        %v2982 = vld [vmem:[%s2959 + $0xb0] sm:$0xff]
        %v2983 = vld [vmem:[%s2959 + $0xb8] sm:$0xff]
        %v2984 = vld [vmem:[%s2959 + $0xc0] sm:$0xff]
        %v2985 = vld [vmem:[%s2959 + $0xc8] sm:$0xff]
        %v2986 = vld [vmem:[%s2959 + $0xd0] sm:$0xff]
        %v2987 = vld [vmem:[%s2959 + $0xd8] sm:$0xff]
        %v2988 = vld [vmem:[%s2959 + $0xe0] sm:$0xff]
        %v2989 = vld [vmem:[%s2959 + $0xe8] sm:$0xff]
        %v2990 = vld [vmem:[%s2959 + $0xf0] sm:$0xff]
        %v2991 = vld [vmem:[%s2959 + $0xf8] sm:$0xff]
        %v3024 = vunpack.c.l.b16 %v2960
        %v3025 = vunpack.c.h.b16 %v2960
        %v3026 = vunpack.c.l.b16 %v2961
        %v3027 = vunpack.c.h.b16 %v2961
        %v3028 = vunpack.c.l.b16 %v2962
        %v3029 = vunpack.c.h.b16 %v2962
        %v3030 = vunpack.c.l.b16 %v2963
        %v3031 = vunpack.c.h.b16 %v2963
        %v3032 = vunpack.c.l.b16 %v2964
        %v3033 = vunpack.c.h.b16 %v2964
        %v3034 = vunpack.c.l.b16 %v2965
        %v3035 = vunpack.c.h.b16 %v2965
        %v3036 = vunpack.c.l.b16 %v2966
        %v3037 = vunpack.c.h.b16 %v2966
        %v3038 = vunpack.c.l.b16 %v2967
        %v3039 = vunpack.c.h.b16 %v2967
        %v3040 = vunpack.c.l.b16 %v2968
        %v3041 = vunpack.c.h.b16 %v2968
        %v3042 = vunpack.c.l.b16 %v2969
        %v3043 = vunpack.c.h.b16 %v2969
        %v3044 = vunpack.c.l.b16 %v2970
        %v3045 = vunpack.c.h.b16 %v2970
        %v3046 = vunpack.c.l.b16 %v2971
        %v3047 = vunpack.c.h.b16 %v2971
        %v3048 = vunpack.c.l.b16 %v2972
        %v3049 = vunpack.c.h.b16 %v2972
        %v3050 = vunpack.c.l.b16 %v2973
        %v3051 = vunpack.c.h.b16 %v2973
        %v3052 = vunpack.c.l.b16 %v2974
        %v3053 = vunpack.c.h.b16 %v2974
        %v3054 = vunpack.c.l.b16 %v2975
        %v3055 = vunpack.c.h.b16 %v2975
        %v3056 = vunpack.c.l.b16 %v2976
        %v3057 = vunpack.c.h.b16 %v2976
        %v3058 = vunpack.c.l.b16 %v2977
        %v3059 = vunpack.c.h.b16 %v2977
        %v3060 = vunpack.c.l.b16 %v2978
        %v3061 = vunpack.c.h.b16 %v2978
        %v3062 = vunpack.c.l.b16 %v2979
        %v3063 = vunpack.c.h.b16 %v2979
        %v3064 = vunpack.c.l.b16 %v2980
        %v3065 = vunpack.c.h.b16 %v2980
        %v3066 = vunpack.c.l.b16 %v2981
        %v3067 = vunpack.c.h.b16 %v2981
        %v3068 = vunpack.c.l.b16 %v2982
        %v3069 = vunpack.c.h.b16 %v2982
        %v3070 = vunpack.c.l.b16 %v2983
        %v3071 = vunpack.c.h.b16 %v2983
        %v3072 = vunpack.c.l.b16 %v2984
        %v3073 = vunpack.c.h.b16 %v2984
        %v3074 = vunpack.c.l.b16 %v2985
        %v3075 = vunpack.c.h.b16 %v2985
        %v3076 = vunpack.c.l.b16 %v2986
        %v3077 = vunpack.c.h.b16 %v2986
        %v3078 = vunpack.c.l.b16 %v2987
        %v3079 = vunpack.c.h.b16 %v2987
        %v3080 = vunpack.c.l.b16 %v2988
        %v3081 = vunpack.c.h.b16 %v2988
        %v3082 = vunpack.c.l.b16 %v2989
        %v3083 = vunpack.c.h.b16 %v2989
        %v3084 = vunpack.c.l.b16 %v2990
        %v3085 = vunpack.c.h.b16 %v2990
        %v3086 = vunpack.c.l.b16 %v2991
        %v3087 = vunpack.c.h.b16 %v2991
        %v3088 = vpack.c.b16 %v3026, %v3024
        %v3089 = vpack.c.b16 %v3027, %v3025
        %v3090 = vpack.c.b16 %v3030, %v3028
        %v3091 = vpack.c.b16 %v3031, %v3029
        %v3092 = vpack.c.b16 %v3034, %v3032
        %v3093 = vpack.c.b16 %v3035, %v3033
        %v3094 = vpack.c.b16 %v3038, %v3036
        %v3095 = vpack.c.b16 %v3039, %v3037
        %v3096 = vpack.c.b16 %v3042, %v3040
        %v3097 = vpack.c.b16 %v3043, %v3041
        %v3098 = vpack.c.b16 %v3046, %v3044
        %v3099 = vpack.c.b16 %v3047, %v3045
        %v3100 = vpack.c.b16 %v3050, %v3048
        %v3101 = vpack.c.b16 %v3051, %v3049
        %v3102 = vpack.c.b16 %v3054, %v3052
        %v3103 = vpack.c.b16 %v3055, %v3053
        %v3104 = vpack.c.b16 %v3058, %v3056
        %v3105 = vpack.c.b16 %v3059, %v3057
        %v3106 = vpack.c.b16 %v3062, %v3060
        %v3107 = vpack.c.b16 %v3063, %v3061
        %v3108 = vpack.c.b16 %v3066, %v3064
        %v3109 = vpack.c.b16 %v3067, %v3065
        %v3110 = vpack.c.b16 %v3070, %v3068
        %v3111 = vpack.c.b16 %v3071, %v3069
        %v3112 = vpack.c.b16 %v3074, %v3072
        %v3113 = vpack.c.b16 %v3075, %v3073
        %v3114 = vpack.c.b16 %v3078, %v3076
        %v3115 = vpack.c.b16 %v3079, %v3077
        %v3116 = vpack.c.b16 %v3082, %v3080
        %v3117 = vpack.c.b16 %v3083, %v3081
        %v3118 = vpack.c.b16 %v3086, %v3084
        %v3119 = vpack.c.b16 %v3087, %v3085
        %3152 = vmatprep.subr.bf16.mxu0 %v3103
        %3153 = vmatpush1.bf16.msra.mxu0 %v3102
        %3154 = vmatprep.subr.bf16.mxu0 %v3101
        %3155 = vmatpush1.bf16.msra.mxu0 %v3100
        %3156 = vmatprep.subr.bf16.mxu0 %v3099
        %3157 = vmatpush1.bf16.msra.mxu0 %v3098
        %3158 = vmatprep.subr.bf16.mxu0 %v3097
        %3159 = vmatpush1.bf16.msra.mxu0 %v3096
        %3160 = vmatprep.subr.bf16.mxu0 %v3095
        %3161 = vmatpush1.bf16.msra.mxu0 %v3094
        %3162 = vmatprep.subr.bf16.mxu0 %v3093
        %3163 = vmatpush1.bf16.msra.mxu0 %v3092
        %3164 = vmatprep.subr.bf16.mxu0 %v3091
        %3165 = vmatpush1.bf16.msra.mxu0 %v3090
        %3166 = vmatprep.subr.bf16.mxu0 %v3089
        %3167 = vmatpush1.bf16.msra.mxu0 %v3088
        %3168 = vmatprep.subr.bf16.mxu0 %v3119
        %3169 = vmatpush2.bf16.msra.mxu0 %v3118
        %3170 = vmatprep.subr.bf16.mxu0 %v3117
        %3171 = vmatpush2.bf16.msra.mxu0 %v3116
        %3172 = vmatprep.subr.bf16.mxu0 %v3115
        %3173 = vmatpush2.bf16.msra.mxu0 %v3114
        %3174 = vmatprep.subr.bf16.mxu0 %v3113
        %3175 = vmatpush2.bf16.msra.mxu0 %v3112
        %3176 = vmatprep.subr.bf16.mxu0 %v3111
        %3177 = vmatpush2.bf16.msra.mxu0 %v3110
        %3178 = vmatprep.subr.bf16.mxu0 %v3109
        %3179 = vmatpush2.bf16.msra.mxu0 %v3108
        %3180 = vmatprep.subr.bf16.mxu0 %v3107
        %3181 = vmatpush2.bf16.msra.mxu0 %v3106
        %3182 = vmatprep.subr.bf16.mxu0 %v3105
        %3183 = vmatpush2.bf16.msra.mxu0 %v3104
        %3184 = vmatprep.mubr.bf16.mxu0 %v2896
        %3185 = vmatmul.mubr.bf16.gmra.mxu0 %v2895
        %v3186 = vpop.f32.mrf.mxu0
        %v3187 = vadd.f32 0.0, %v3186
        %v3188 = vpop.f32.mrf.mxu0
        %v3189 = vadd.f32 0.0, %v3188
        %v3190 = vpop.f32.mrf.mxu0
        %v3191 = vadd.f32 0.0, %v3190
        %v3192 = vpop.f32.mrf.mxu0
        %v3193 = vadd.f32 0.0, %v3192
        %3194 = vmatprep.mubr.bf16.mxu0 %v2898
        %3195 = vmatmul.mubr.bf16.gmra.mxu0 %v2897
        %v3196 = vpop.f32.mrf.mxu0
        %v3197 = vadd.f32 0.0, %v3196
        %v3198 = vpop.f32.mrf.mxu0
        %v3199 = vadd.f32 0.0, %v3198
        %v3200 = vpop.f32.mrf.mxu0
        %v3201 = vadd.f32 0.0, %v3200
        %v3202 = vpop.f32.mrf.mxu0
        %v3203 = vadd.f32 0.0, %v3202
        %3204 = vdwg.mxu0
        %v3237 = vunpack.c.l.b16 %v2927
        %v3238 = vunpack.c.h.b16 %v2927
        %v3239 = vunpack.c.l.b16 %v2928
        %v3240 = vunpack.c.h.b16 %v2928
        %v3241 = vunpack.c.l.b16 %v2929
        %v3242 = vunpack.c.h.b16 %v2929
        %v3243 = vunpack.c.l.b16 %v2930
        %v3244 = vunpack.c.h.b16 %v2930
        %v3245 = vunpack.c.l.b16 %v2931
        %v3246 = vunpack.c.h.b16 %v2931
        %v3247 = vunpack.c.l.b16 %v2932
        %v3248 = vunpack.c.h.b16 %v2932
        %v3249 = vunpack.c.l.b16 %v2933
        %v3250 = vunpack.c.h.b16 %v2933
        %v3251 = vunpack.c.l.b16 %v2934
        %v3252 = vunpack.c.h.b16 %v2934
        %v3253 = vunpack.c.l.b16 %v2935
        %v3254 = vunpack.c.h.b16 %v2935
        %v3255 = vunpack.c.l.b16 %v2936
        %v3256 = vunpack.c.h.b16 %v2936
        %v3257 = vunpack.c.l.b16 %v2937
        %v3258 = vunpack.c.h.b16 %v2937
        %v3259 = vunpack.c.l.b16 %v2938
        %v3260 = vunpack.c.h.b16 %v2938
        %v3261 = vunpack.c.l.b16 %v2939
        %v3262 = vunpack.c.h.b16 %v2939
        %v3263 = vunpack.c.l.b16 %v2940
        %v3264 = vunpack.c.h.b16 %v2940
        %v3265 = vunpack.c.l.b16 %v2941
        %v3266 = vunpack.c.h.b16 %v2941
        %v3267 = vunpack.c.l.b16 %v2942
        %v3268 = vunpack.c.h.b16 %v2942
        %v3269 = vunpack.c.l.b16 %v2943
        %v3270 = vunpack.c.h.b16 %v2943
        %v3271 = vunpack.c.l.b16 %v2944
        %v3272 = vunpack.c.h.b16 %v2944
        %v3273 = vunpack.c.l.b16 %v2945
        %v3274 = vunpack.c.h.b16 %v2945
        %v3275 = vunpack.c.l.b16 %v2946
        %v3276 = vunpack.c.h.b16 %v2946
        %v3277 = vunpack.c.l.b16 %v2947
        %v3278 = vunpack.c.h.b16 %v2947
        %v3279 = vunpack.c.l.b16 %v2948
        %v3280 = vunpack.c.h.b16 %v2948
        %v3281 = vunpack.c.l.b16 %v2949
        %v3282 = vunpack.c.h.b16 %v2949
        %v3283 = vunpack.c.l.b16 %v2950
        %v3284 = vunpack.c.h.b16 %v2950
        %v3285 = vunpack.c.l.b16 %v2951
        %v3286 = vunpack.c.h.b16 %v2951
        %v3287 = vunpack.c.l.b16 %v2952
        %v3288 = vunpack.c.h.b16 %v2952
        %v3289 = vunpack.c.l.b16 %v2953
        %v3290 = vunpack.c.h.b16 %v2953
        %v3291 = vunpack.c.l.b16 %v2954
        %v3292 = vunpack.c.h.b16 %v2954
        %v3293 = vunpack.c.l.b16 %v2955
        %v3294 = vunpack.c.h.b16 %v2955
        %v3295 = vunpack.c.l.b16 %v2956
        %v3296 = vunpack.c.h.b16 %v2956
        %v3297 = vunpack.c.l.b16 %v2957
        %v3298 = vunpack.c.h.b16 %v2957
        %v3299 = vunpack.c.l.b16 %v2958
        %v3300 = vunpack.c.h.b16 %v2958
        %v3301 = vpack.c.b16 %v3239, %v3237
        %v3302 = vpack.c.b16 %v3240, %v3238
        %v3303 = vpack.c.b16 %v3243, %v3241
        %v3304 = vpack.c.b16 %v3244, %v3242
        %v3305 = vpack.c.b16 %v3247, %v3245
        %v3306 = vpack.c.b16 %v3248, %v3246
        %v3307 = vpack.c.b16 %v3251, %v3249
        %v3308 = vpack.c.b16 %v3252, %v3250
        %v3309 = vpack.c.b16 %v3255, %v3253
        %v3310 = vpack.c.b16 %v3256, %v3254
        %v3311 = vpack.c.b16 %v3259, %v3257
        %v3312 = vpack.c.b16 %v3260, %v3258
        %v3313 = vpack.c.b16 %v3263, %v3261
        %v3314 = vpack.c.b16 %v3264, %v3262
        %v3315 = vpack.c.b16 %v3267, %v3265
        %v3316 = vpack.c.b16 %v3268, %v3266
        %v3317 = vpack.c.b16 %v3271, %v3269
        %v3318 = vpack.c.b16 %v3272, %v3270
        %v3319 = vpack.c.b16 %v3275, %v3273
        %v3320 = vpack.c.b16 %v3276, %v3274
        %v3321 = vpack.c.b16 %v3279, %v3277
        %v3322 = vpack.c.b16 %v3280, %v3278
        %v3323 = vpack.c.b16 %v3283, %v3281
        %v3324 = vpack.c.b16 %v3284, %v3282
        %v3325 = vpack.c.b16 %v3287, %v3285
        %v3326 = vpack.c.b16 %v3288, %v3286
        %v3327 = vpack.c.b16 %v3291, %v3289
        %v3328 = vpack.c.b16 %v3292, %v3290
        %v3329 = vpack.c.b16 %v3295, %v3293
        %v3330 = vpack.c.b16 %v3296, %v3294
        %v3331 = vpack.c.b16 %v3299, %v3297
        %v3332 = vpack.c.b16 %v3300, %v3298
        %3365 = vmatprep.subr.bf16.mxu0 %v3316
        %3366 = vmatpush1.bf16.msra.mxu0 %v3315
        %3367 = vmatprep.subr.bf16.mxu0 %v3314
        %3368 = vmatpush1.bf16.msra.mxu0 %v3313
        %3369 = vmatprep.subr.bf16.mxu0 %v3312
        %3370 = vmatpush1.bf16.msra.mxu0 %v3311
        %3371 = vmatprep.subr.bf16.mxu0 %v3310
        %3372 = vmatpush1.bf16.msra.mxu0 %v3309
        %3373 = vmatprep.subr.bf16.mxu0 %v3308
        %3374 = vmatpush1.bf16.msra.mxu0 %v3307
        %3375 = vmatprep.subr.bf16.mxu0 %v3306
        %3376 = vmatpush1.bf16.msra.mxu0 %v3305
        %3377 = vmatprep.subr.bf16.mxu0 %v3304
        %3378 = vmatpush1.bf16.msra.mxu0 %v3303
        %3379 = vmatprep.subr.bf16.mxu0 %v3302
        %3380 = vmatpush1.bf16.msra.mxu0 %v3301
        %3381 = vmatprep.subr.bf16.mxu0 %v3332
        %3382 = vmatpush2.bf16.msra.mxu0 %v3331
        %3383 = vmatprep.subr.bf16.mxu0 %v3330
        %3384 = vmatpush2.bf16.msra.mxu0 %v3329
        %3385 = vmatprep.subr.bf16.mxu0 %v3328
        %3386 = vmatpush2.bf16.msra.mxu0 %v3327
        %3387 = vmatprep.subr.bf16.mxu0 %v3326
        %3388 = vmatpush2.bf16.msra.mxu0 %v3325
        %3389 = vmatprep.subr.bf16.mxu0 %v3324
        %3390 = vmatpush2.bf16.msra.mxu0 %v3323
        %3391 = vmatprep.subr.bf16.mxu0 %v3322
        %3392 = vmatpush2.bf16.msra.mxu0 %v3321
        %3393 = vmatprep.subr.bf16.mxu0 %v3320
        %3394 = vmatpush2.bf16.msra.mxu0 %v3319
        %3395 = vmatprep.subr.bf16.mxu0 %v3318
        %3396 = vmatpush2.bf16.msra.mxu0 %v3317
        %3397 = vmatprep.mubr.bf16.mxu0 %v2892
        %3398 = vmatmul.mubr.bf16.gmra.mxu0 %v2891
        %v3399 = vpop.f32.mrf.mxu0
        %v3400 = vadd.f32 %v3187, %v3399
        %v3401 = vpop.f32.mrf.mxu0
        %v3402 = vadd.f32 %v3189, %v3401
        %v3403 = vpop.f32.mrf.mxu0
        %v3404 = vadd.f32 %v3191, %v3403
        %v3405 = vpop.f32.mrf.mxu0
        %v3406 = vadd.f32 %v3193, %v3405
        %3407 = vmatprep.mubr.bf16.mxu0 %v2894
        %3408 = vmatmul.mubr.bf16.gmra.mxu0 %v2893
        %v3409 = vpop.f32.mrf.mxu0
        %v3410 = vadd.f32 %v3197, %v3409
        %v3411 = vpop.f32.mrf.mxu0
        %v3412 = vadd.f32 %v3199, %v3411
        %v3413 = vpop.f32.mrf.mxu0
        %v3414 = vadd.f32 %v3201, %v3413
        %v3415 = vpop.f32.mrf.mxu0
        %v3416 = vadd.f32 %v3203, %v3415
        %3417 = vdwg.mxu0
        %s3418 = scalar_lea.vmem %s13, 512
        %v3419 = vld [vmem:[%s3418] sm:$0xff]
        %v3420 = vld [vmem:[%s3418 + $0x8] sm:$0xff]
        %v3421 = vld [vmem:[%s3418 + $0x10] sm:$0xff]
        %v3422 = vld [vmem:[%s3418 + $0x18] sm:$0xff]
        %v3423 = vld [vmem:[%s3418 + $0x20] sm:$0xff]
        %v3424 = vld [vmem:[%s3418 + $0x28] sm:$0xff]
        %v3425 = vld [vmem:[%s3418 + $0x30] sm:$0xff]
        %v3426 = vld [vmem:[%s3418 + $0x38] sm:$0xff]
        %v3427 = vld [vmem:[%s3418 + $0x40] sm:$0xff]
        %v3428 = vld [vmem:[%s3418 + $0x48] sm:$0xff]
        %v3429 = vld [vmem:[%s3418 + $0x50] sm:$0xff]
        %v3430 = vld [vmem:[%s3418 + $0x58] sm:$0xff]
        %v3431 = vld [vmem:[%s3418 + $0x60] sm:$0xff]
        %v3432 = vld [vmem:[%s3418 + $0x68] sm:$0xff]
        %v3433 = vld [vmem:[%s3418 + $0x70] sm:$0xff]
        %v3434 = vld [vmem:[%s3418 + $0x78] sm:$0xff]
        %v3435 = vld [vmem:[%s3418 + $0x80] sm:$0xff]
        %v3436 = vld [vmem:[%s3418 + $0x88] sm:$0xff]
        %v3437 = vld [vmem:[%s3418 + $0x90] sm:$0xff]
        %v3438 = vld [vmem:[%s3418 + $0x98] sm:$0xff]
        %v3439 = vld [vmem:[%s3418 + $0xa0] sm:$0xff]
        %v3440 = vld [vmem:[%s3418 + $0xa8] sm:$0xff]
        %v3441 = vld [vmem:[%s3418 + $0xb0] sm:$0xff]
        %v3442 = vld [vmem:[%s3418 + $0xb8] sm:$0xff]
        %v3443 = vld [vmem:[%s3418 + $0xc0] sm:$0xff]
        %v3444 = vld [vmem:[%s3418 + $0xc8] sm:$0xff]
        %v3445 = vld [vmem:[%s3418 + $0xd0] sm:$0xff]
        %v3446 = vld [vmem:[%s3418 + $0xd8] sm:$0xff]
        %v3447 = vld [vmem:[%s3418 + $0xe0] sm:$0xff]
        %v3448 = vld [vmem:[%s3418 + $0xe8] sm:$0xff]
        %v3449 = vld [vmem:[%s3418 + $0xf0] sm:$0xff]
        %v3450 = vld [vmem:[%s3418 + $0xf8] sm:$0xff]
        %v3483 = vunpack.c.l.b16 %v3419
        %v3484 = vunpack.c.h.b16 %v3419
        %v3485 = vunpack.c.l.b16 %v3420
        %v3486 = vunpack.c.h.b16 %v3420
        %v3487 = vunpack.c.l.b16 %v3421
        %v3488 = vunpack.c.h.b16 %v3421
        %v3489 = vunpack.c.l.b16 %v3422
        %v3490 = vunpack.c.h.b16 %v3422
        %v3491 = vunpack.c.l.b16 %v3423
        %v3492 = vunpack.c.h.b16 %v3423
        %v3493 = vunpack.c.l.b16 %v3424
        %v3494 = vunpack.c.h.b16 %v3424
        %v3495 = vunpack.c.l.b16 %v3425
        %v3496 = vunpack.c.h.b16 %v3425
        %v3497 = vunpack.c.l.b16 %v3426
        %v3498 = vunpack.c.h.b16 %v3426
        %v3499 = vunpack.c.l.b16 %v3427
        %v3500 = vunpack.c.h.b16 %v3427
        %v3501 = vunpack.c.l.b16 %v3428
        %v3502 = vunpack.c.h.b16 %v3428
        %v3503 = vunpack.c.l.b16 %v3429
        %v3504 = vunpack.c.h.b16 %v3429
        %v3505 = vunpack.c.l.b16 %v3430
        %v3506 = vunpack.c.h.b16 %v3430
        %v3507 = vunpack.c.l.b16 %v3431
        %v3508 = vunpack.c.h.b16 %v3431
        %v3509 = vunpack.c.l.b16 %v3432
        %v3510 = vunpack.c.h.b16 %v3432
        %v3511 = vunpack.c.l.b16 %v3433
        %v3512 = vunpack.c.h.b16 %v3433
        %v3513 = vunpack.c.l.b16 %v3434
        %v3514 = vunpack.c.h.b16 %v3434
        %v3515 = vunpack.c.l.b16 %v3435
        %v3516 = vunpack.c.h.b16 %v3435
        %v3517 = vunpack.c.l.b16 %v3436
        %v3518 = vunpack.c.h.b16 %v3436
        %v3519 = vunpack.c.l.b16 %v3437
        %v3520 = vunpack.c.h.b16 %v3437
        %v3521 = vunpack.c.l.b16 %v3438
        %v3522 = vunpack.c.h.b16 %v3438
        %v3523 = vunpack.c.l.b16 %v3439
        %v3524 = vunpack.c.h.b16 %v3439
        %v3525 = vunpack.c.l.b16 %v3440
        %v3526 = vunpack.c.h.b16 %v3440
        %v3527 = vunpack.c.l.b16 %v3441
        %v3528 = vunpack.c.h.b16 %v3441
        %v3529 = vunpack.c.l.b16 %v3442
        %v3530 = vunpack.c.h.b16 %v3442
        %v3531 = vunpack.c.l.b16 %v3443
        %v3532 = vunpack.c.h.b16 %v3443
        %v3533 = vunpack.c.l.b16 %v3444
        %v3534 = vunpack.c.h.b16 %v3444
        %v3535 = vunpack.c.l.b16 %v3445
        %v3536 = vunpack.c.h.b16 %v3445
        %v3537 = vunpack.c.l.b16 %v3446
        %v3538 = vunpack.c.h.b16 %v3446
        %v3539 = vunpack.c.l.b16 %v3447
        %v3540 = vunpack.c.h.b16 %v3447
        %v3541 = vunpack.c.l.b16 %v3448
        %v3542 = vunpack.c.h.b16 %v3448
        %v3543 = vunpack.c.l.b16 %v3449
        %v3544 = vunpack.c.h.b16 %v3449
        %v3545 = vunpack.c.l.b16 %v3450
        %v3546 = vunpack.c.h.b16 %v3450
        %v3547 = vpack.c.b16 %v3485, %v3483
        %v3548 = vpack.c.b16 %v3486, %v3484
        %v3549 = vpack.c.b16 %v3489, %v3487
        %v3550 = vpack.c.b16 %v3490, %v3488
        %v3551 = vpack.c.b16 %v3493, %v3491
        %v3552 = vpack.c.b16 %v3494, %v3492
        %v3553 = vpack.c.b16 %v3497, %v3495
        %v3554 = vpack.c.b16 %v3498, %v3496
        %v3555 = vpack.c.b16 %v3501, %v3499
        %v3556 = vpack.c.b16 %v3502, %v3500
        %v3557 = vpack.c.b16 %v3505, %v3503
        %v3558 = vpack.c.b16 %v3506, %v3504
        %v3559 = vpack.c.b16 %v3509, %v3507
        %v3560 = vpack.c.b16 %v3510, %v3508
        %v3561 = vpack.c.b16 %v3513, %v3511
        %v3562 = vpack.c.b16 %v3514, %v3512
        %v3563 = vpack.c.b16 %v3517, %v3515
        %v3564 = vpack.c.b16 %v3518, %v3516
        %v3565 = vpack.c.b16 %v3521, %v3519
        %v3566 = vpack.c.b16 %v3522, %v3520
        %v3567 = vpack.c.b16 %v3525, %v3523
        %v3568 = vpack.c.b16 %v3526, %v3524
        %v3569 = vpack.c.b16 %v3529, %v3527
        %v3570 = vpack.c.b16 %v3530, %v3528
        %v3571 = vpack.c.b16 %v3533, %v3531
        %v3572 = vpack.c.b16 %v3534, %v3532
        %v3573 = vpack.c.b16 %v3537, %v3535
        %v3574 = vpack.c.b16 %v3538, %v3536
        %v3575 = vpack.c.b16 %v3541, %v3539
        %v3576 = vpack.c.b16 %v3542, %v3540
        %v3577 = vpack.c.b16 %v3545, %v3543
        %v3578 = vpack.c.b16 %v3546, %v3544
        %3611 = vmatprep.subr.bf16.mxu0 %v3562
        %3612 = vmatpush1.bf16.msra.mxu0 %v3561
        %3613 = vmatprep.subr.bf16.mxu0 %v3560
        %3614 = vmatpush1.bf16.msra.mxu0 %v3559
        %3615 = vmatprep.subr.bf16.mxu0 %v3558
        %3616 = vmatpush1.bf16.msra.mxu0 %v3557
        %3617 = vmatprep.subr.bf16.mxu0 %v3556
        %3618 = vmatpush1.bf16.msra.mxu0 %v3555
        %3619 = vmatprep.subr.bf16.mxu0 %v3554
        %3620 = vmatpush1.bf16.msra.mxu0 %v3553
        %3621 = vmatprep.subr.bf16.mxu0 %v3552
        %3622 = vmatpush1.bf16.msra.mxu0 %v3551
        %3623 = vmatprep.subr.bf16.mxu0 %v3550
        %3624 = vmatpush1.bf16.msra.mxu0 %v3549
        %3625 = vmatprep.subr.bf16.mxu0 %v3548
        %3626 = vmatpush1.bf16.msra.mxu0 %v3547
        %3627 = vmatprep.subr.bf16.mxu0 %v3578
        %3628 = vmatpush2.bf16.msra.mxu0 %v3577
        %3629 = vmatprep.subr.bf16.mxu0 %v3576
        %3630 = vmatpush2.bf16.msra.mxu0 %v3575
        %3631 = vmatprep.subr.bf16.mxu0 %v3574
        %3632 = vmatpush2.bf16.msra.mxu0 %v3573
        %3633 = vmatprep.subr.bf16.mxu0 %v3572
        %3634 = vmatpush2.bf16.msra.mxu0 %v3571
        %3635 = vmatprep.subr.bf16.mxu0 %v3570
        %3636 = vmatpush2.bf16.msra.mxu0 %v3569
        %3637 = vmatprep.subr.bf16.mxu0 %v3568
        %3638 = vmatpush2.bf16.msra.mxu0 %v3567
        %3639 = vmatprep.subr.bf16.mxu0 %v3566
        %3640 = vmatpush2.bf16.msra.mxu0 %v3565
        %3641 = vmatprep.subr.bf16.mxu0 %v3564
        %3642 = vmatpush2.bf16.msra.mxu0 %v3563
        %3643 = vmatprep.mubr.bf16.mxu0 %v2924
        %3644 = vmatmul.mubr.bf16.gmra.mxu0 %v2923
        %v3645 = vpop.f32.mrf.mxu0
        %v3646 = vadd.f32 0.0, %v3645
        %v3647 = vpop.f32.mrf.mxu0
        %v3648 = vadd.f32 0.0, %v3647
        %v3649 = vpop.f32.mrf.mxu0
        %v3650 = vadd.f32 0.0, %v3649
        %v3651 = vpop.f32.mrf.mxu0
        %v3652 = vadd.f32 0.0, %v3651
        %3653 = vmatprep.mubr.bf16.mxu0 %v2926
        %3654 = vmatmul.mubr.bf16.gmra.mxu0 %v2925
        %v3655 = vpop.f32.mrf.mxu0
        %v3656 = vadd.f32 0.0, %v3655
        %v3657 = vpop.f32.mrf.mxu0
        %v3658 = vadd.f32 0.0, %v3657
        %v3659 = vpop.f32.mrf.mxu0
        %v3660 = vadd.f32 0.0, %v3659
        %v3661 = vpop.f32.mrf.mxu0
        %v3662 = vadd.f32 0.0, %v3661
        %3663 = vdwg.mxu0
        %v3664 = vadd.f32 %v3400, %v3646
        %v3665 = vadd.f32 %v3402, %v3648
        %v3666 = vadd.f32 %v3404, %v3650
        %v3667 = vadd.f32 %v3406, %v3652
        %v3668 = vadd.f32 %v3410, %v3656
        %v3669 = vadd.f32 %v3412, %v3658
        %v3670 = vadd.f32 %v3414, %v3660
        %v3671 = vadd.f32 %v3416, %v3662
        %v3672 = vld [vmem:[%s14] sm:$0x3]
        %v3674 = vlaneseq
        %v3675 = vshrl.u32 %v3674, 7
        %v3676 = vsub.s32 0, %v3675
        %v3677 = vrot.slane %v3672, %v3676
        %v3678 = vlaneseq
        %v3679 = vshrl.u32 %v3678, 7
        %v3680 = vsub.s32 1, %v3679
        %v3681 = vrot.slane %v3672, %v3680
        %v3684 = vadd.f32 %v3664, %v3677
        %v3685 = vadd.f32 %v3665, %v3681
        %v3686 = vadd.f32 %v3666, %v3677
        %v3687 = vadd.f32 %v3667, %v3681
        %v3688 = vadd.f32 %v3668, %v3677
        %v3689 = vadd.f32 %v3669, %v3681
        %v3690 = vadd.f32 %v3670, %v3677
        %v3691 = vadd.f32 %v3671, %v3681
        %v3692 = vadd.f32 %v3684, %v3686
        %v3693 = vadd.f32 %v3692, %v3688
        %v3694 = vadd.f32 %v3693, %v3690
        %v3695 = vrot.slane %v3694, 4
        %v3696 = vadd.f32 %v3694, %v3695
        %v3697 = vrot.slane %v3696, 2
        %v3698 = vadd.f32 %v3696, %v3697
        %v3699 = vrot.slane %v3698, 1
        %v3700 = vadd.f32 %v3698, %v3699
        %v3701 = vadd.f32 %v3685, %v3687
        %v3702 = vadd.f32 %v3701, %v3689
        %v3703 = vadd.f32 %v3702, %v3691
        %v3704 = vrot.slane %v3703, 4
        %v3705 = vadd.f32 %v3703, %v3704
        %v3706 = vrot.slane %v3705, 2
        %v3707 = vadd.f32 %v3705, %v3706
        %v3708 = vrot.slane %v3707, 1
        %v3709 = vadd.f32 %v3707, %v3708
        %v3710 = vmul.f32 %v3684, %v3684
        %v3711 = vmul.f32 %v3685, %v3685
        %v3712 = vmul.f32 %v3686, %v3686
        %v3713 = vmul.f32 %v3687, %v3687
        %v3714 = vmul.f32 %v3688, %v3688
        %v3715 = vmul.f32 %v3689, %v3689
        %v3716 = vmul.f32 %v3690, %v3690
        %v3717 = vmul.f32 %v3691, %v3691
        %v3718 = vadd.f32 %v3710, %v3712
        %v3719 = vadd.f32 %v3718, %v3714
        %v3720 = vadd.f32 %v3719, %v3716
        %v3721 = vrot.slane %v3720, 4
        %v3722 = vadd.f32 %v3720, %v3721
        %v3723 = vrot.slane %v3722, 2
        %v3724 = vadd.f32 %v3722, %v3723
        %v3725 = vrot.slane %v3724, 1
        %v3726 = vadd.f32 %v3724, %v3725
        %v3727 = vadd.f32 %v3711, %v3713
        %v3728 = vadd.f32 %v3727, %v3715
        %v3729 = vadd.f32 %v3728, %v3717
        %v3730 = vrot.slane %v3729, 4
        %v3731 = vadd.f32 %v3729, %v3730
        %v3732 = vrot.slane %v3731, 2
        %v3733 = vadd.f32 %v3731, %v3732
        %v3734 = vrot.slane %v3733, 1
        %v3735 = vadd.f32 %v3733, %v3734
        %v3736 = vsel %vm1662, %v3700, %v3726
        %v3737 = vsel %vm1662, %v3709, %v3735
        %3738 = vmatprep.subr.mxu0 0.0
        %3739 = vmatpush1.msra.mxu0 %v2617
        %3740 = vmatprep.subr.mxu0 0.0
        %3741 = vmatpush1.msra.mxu0 %v2616
        %3742 = vmatprep.subr.mxu0 0.0
        %3743 = vmatpush1.msra.mxu0 %v2615
        %3744 = vmatprep.subr.mxu0 0.0
        %3745 = vmatpush1.msra.mxu0 %v2614
        %3746 = vmatprep.subr.mxu0 0.0
        %3747 = vmatpush1.msra.mxu0 %v2613
        %3748 = vmatprep.subr.mxu0 0.0
        %3749 = vmatpush1.msra.mxu0 %v2612
        %3750 = vmatprep.subr.mxu0 0.0
        %3751 = vmatpush1.msra.mxu0 %v2611
        %3752 = vmatprep.subr.mxu0 0.0
        %3753 = vmatpush1.msra.mxu0 %v2610
        %3754 = vmatprep.subr.mxu0 0.0
        %3755 = vmatpush1.msra.mxu0 %v2609
        %3756 = vmatprep.subr.mxu0 0.0
        %3757 = vmatpush1.msra.mxu0 %v2608
        %3758 = vmatprep.subr.mxu0 0.0
        %3759 = vmatpush1.msra.mxu0 %v2607
        %3760 = vmatprep.subr.mxu0 0.0
        %3761 = vmatpush1.msra.mxu0 %v2606
        %3762 = vmatprep.subr.mxu0 0.0
        %3763 = vmatpush1.msra.mxu0 %v2605
        %3764 = vmatprep.subr.mxu0 0.0
        %3765 = vmatpush1.msra.mxu0 %v2604
        %3766 = vmatprep.subr.mxu0 0.0
        %3767 = vmatpush1.msra.mxu0 %v2603
        %3768 = vmatprep.subr.mxu0 0.0
        %3769 = vmatpush1.msra.mxu0 %v2602
        %3770 = vmatprep.subr.mxu0 0.0
        %3771 = vmatpush2.msra.mxu0 %v2633
        %3772 = vmatprep.subr.mxu0 0.0
        %3773 = vmatpush2.msra.mxu0 %v2632
        %3774 = vmatprep.subr.mxu0 0.0
        %3775 = vmatpush2.msra.mxu0 %v2631
        %3776 = vmatprep.subr.mxu0 0.0
        %3777 = vmatpush2.msra.mxu0 %v2630
        %3778 = vmatprep.subr.mxu0 0.0
        %3779 = vmatpush2.msra.mxu0 %v2629
        %3780 = vmatprep.subr.mxu0 0.0
        %3781 = vmatpush2.msra.mxu0 %v2628
        %3782 = vmatprep.subr.mxu0 0.0
        %3783 = vmatpush2.msra.mxu0 %v2627
        %3784 = vmatprep.subr.mxu0 0.0
        %3785 = vmatpush2.msra.mxu0 %v2626
        %3786 = vmatprep.subr.mxu0 0.0
        %3787 = vmatpush2.msra.mxu0 %v2625
        %3788 = vmatprep.subr.mxu0 0.0
        %3789 = vmatpush2.msra.mxu0 %v2624
        %3790 = vmatprep.subr.mxu0 0.0
        %3791 = vmatpush2.msra.mxu0 %v2623
        %3792 = vmatprep.subr.mxu0 0.0
        %3793 = vmatpush2.msra.mxu0 %v2622
        %3794 = vmatprep.subr.mxu0 0.0
        %3795 = vmatpush2.msra.mxu0 %v2621
        %3796 = vmatprep.subr.mxu0 0.0
        %3797 = vmatpush2.msra.mxu0 %v2620
        %3798 = vmatprep.subr.mxu0 0.0
        %3799 = vmatpush2.msra.mxu0 %v2619
        %3800 = vmatprep.subr.mxu0 0.0
        %3801 = vmatpush2.msra.mxu0 %v2618
        %3802 = vmatprep.mubr.f32.mxu0 %v3737
        %3803 = vmatmul.mubr.f32.gmra.mxu0 %v3736
        %v3804 = vpop.f32.mrf.mxu0
        %v3805 = vadd.f32 0.0, %v3804
        %v3806 = vpop.f32.mrf.mxu0
        %3807 = vdwg.mxu0
        %v3808 = vmul.f32 %v3805, 0.001953125
        %v3809 = vmul.f32 %v3808, %v3808
        %v3811 = vrot.slane %v3809, 7
        %v3813 = vsub.f32 %v3808, %v3811
        %v3814 = vmax.f32 %v3813, 0.0
        %v3815 = vadd.f32 %v3814, 1e-05
        %v3816 = vrsqrt.pop %v3815
        %v3817 = vsel %vm1662, %v3808, %v3816
        %v3819 = vsel %vm2718, %v3817, 0
        %3821 = vmatprep.subr.mxu0 0.0
        %3822 = vmatpush1.msra.mxu0 0.0
        %3823 = vmatprep.subr.mxu0 0.0
        %3824 = vmatpush1.msra.mxu0 0.0
        %3825 = vmatprep.subr.mxu0 0.0
        %3826 = vmatpush1.msra.mxu0 0.0
        %3827 = vmatprep.subr.mxu0 0.0
        %3828 = vmatpush1.msra.mxu0 0.0
        %3829 = vmatprep.subr.mxu0 0.0
        %3830 = vmatpush1.msra.mxu0 0.0
        %3831 = vmatprep.subr.mxu0 0.0
        %3832 = vmatpush1.msra.mxu0 0.0
        %3833 = vmatprep.subr.mxu0 0.0
        %3834 = vmatpush1.msra.mxu0 0.0
        %3835 = vmatprep.subr.mxu0 0.0
        %3836 = vmatpush1.msra.mxu0 0.0
        %3837 = vmatprep.subr.mxu0 0.0
        %3838 = vmatpush1.msra.mxu0 0.0
        %3839 = vmatprep.subr.mxu0 0.0
        %3840 = vmatpush1.msra.mxu0 0.0
        %3841 = vmatprep.subr.mxu0 0.0
        %3842 = vmatpush1.msra.mxu0 0.0
        %3843 = vmatprep.subr.mxu0 0.0
        %3844 = vmatpush1.msra.mxu0 0.0
        %3845 = vmatprep.subr.mxu0 0.0
        %3846 = vmatpush1.msra.mxu0 0.0
        %3847 = vmatprep.subr.mxu0 0.0
        %3848 = vmatpush1.msra.mxu0 0.0
        %3849 = vmatprep.subr.mxu0 %v2717
        %3850 = vmatpush1.msra.mxu0 %v2716
        %3851 = vmatprep.subr.mxu0 %v2715
        %3852 = vmatpush1.msra.mxu0 %v2714
        %3853 = vmatprep.subr.mxu0 0.0
        %3854 = vmatpush2.msra.mxu0 0.0
        %3855 = vmatprep.subr.mxu0 0.0
        %3856 = vmatpush2.msra.mxu0 0.0
        %3857 = vmatprep.subr.mxu0 0.0
        %3858 = vmatpush2.msra.mxu0 0.0
        %3859 = vmatprep.subr.mxu0 0.0
        %3860 = vmatpush2.msra.mxu0 0.0
        %3861 = vmatprep.subr.mxu0 0.0
        %3862 = vmatpush2.msra.mxu0 0.0
        %3863 = vmatprep.subr.mxu0 0.0
        %3864 = vmatpush2.msra.mxu0 0.0
        %3865 = vmatprep.subr.mxu0 0.0
        %3866 = vmatpush2.msra.mxu0 0.0
        %3867 = vmatprep.subr.mxu0 0.0
        %3868 = vmatpush2.msra.mxu0 0.0
        %3869 = vmatprep.subr.mxu0 0.0
        %3870 = vmatpush2.msra.mxu0 0.0
        %3871 = vmatprep.subr.mxu0 0.0
        %3872 = vmatpush2.msra.mxu0 0.0
        %3873 = vmatprep.subr.mxu0 0.0
        %3874 = vmatpush2.msra.mxu0 0.0
        %3875 = vmatprep.subr.mxu0 0.0
        %3876 = vmatpush2.msra.mxu0 0.0
        %3877 = vmatprep.subr.mxu0 0.0
        %3878 = vmatpush2.msra.mxu0 0.0
        %3879 = vmatprep.subr.mxu0 0.0
        %3880 = vmatpush2.msra.mxu0 0.0
        %3881 = vmatprep.subr.mxu0 0.0
        %3882 = vmatpush2.msra.mxu0 0.0
        %3883 = vmatprep.subr.mxu0 0.0
        %3884 = vmatpush2.msra.mxu0 0.0
        %3885 = vmatprep.mubr.f32.mxu0 0.0
        %3886 = vmatmul.mubr.f32.gmra.mxu0 %v3819
        %v3887 = vpop.f32.mrf.mxu0
        %v3888 = vadd.f32 0.0, %v3887
        %v3889 = vpop.f32.mrf.mxu0
        %v3890 = vadd.f32 0.0, %v3889
        %3891 = vdwg.mxu0
        %v3892 = vlaneseq
        %v3893 = vshrl.u32 %v3892, 7
        %v3894 = vsub.s32 0, %v3893
        %v3895 = vrot.slane %v3888, %v3894
        %v3896 = vlaneseq
        %v3897 = vshrl.u32 %v3896, 7
        %v3898 = vsub.s32 0, %v3897
        %v3899 = vrot.slane %v3890, %v3898
        %v3900 = vsub.f32 %v3684, %v3895
        %v3901 = vsub.f32 %v3685, %v3899
        %v3902 = vsub.f32 %v3686, %v3895
        %v3903 = vsub.f32 %v3687, %v3899
        %v3904 = vsub.f32 %v3688, %v3895
        %v3905 = vsub.f32 %v3689, %v3899
        %v3906 = vsub.f32 %v3690, %v3895
        %v3907 = vsub.f32 %v3691, %v3899
        %v3908 = vld [vmem:[%s15] sm:$0x3]
        %v3910 = vlaneseq
        %v3911 = vshrl.u32 %v3910, 7
        %v3912 = vsub.s32 0, %v3911
        %v3913 = vrot.slane %v3908, %v3912
        %v3914 = vlaneseq
        %v3915 = vshrl.u32 %v3914, 7
        %v3916 = vsub.s32 1, %v3915
        %v3917 = vrot.slane %v3908, %v3916
        %v3920 = vmul.f32 %v3888, %v3913
        %v3921 = vmul.f32 %v3890, %v3917
        %v3922 = vlaneseq
        %v3923 = vshrl.u32 %v3922, 7
        %v3924 = vsub.s32 1, %v3923
        %v3925 = vrot.slane %v3920, %v3924
        %v3926 = vlaneseq
        %v3927 = vshrl.u32 %v3926, 7
        %v3928 = vsub.s32 1, %v3927
        %v3929 = vrot.slane %v3921, %v3928
        %v3930 = vmul.f32 %v3900, %v3925
        %v3931 = vmul.f32 %v3901, %v3929
        %v3932 = vmul.f32 %v3902, %v3925
        %v3933 = vmul.f32 %v3903, %v3929
        %v3934 = vmul.f32 %v3904, %v3925
        %v3935 = vmul.f32 %v3905, %v3929
        %v3936 = vmul.f32 %v3906, %v3925
        %v3937 = vmul.f32 %v3907, %v3929
        %v3938 = vld [vmem:[%s16] sm:$0x3]
        %v3940 = vlaneseq
        %v3941 = vshrl.u32 %v3940, 7
        %v3942 = vsub.s32 0, %v3941
        %v3943 = vrot.slane %v3938, %v3942
        %v3944 = vlaneseq
        %v3945 = vshrl.u32 %v3944, 7
        %v3946 = vsub.s32 1, %v3945
        %v3947 = vrot.slane %v3938, %v3946
        %v3950 = vadd.f32 %v3930, %v3943
        %v3951 = vadd.f32 %v3931, %v3947
        %v3952 = vadd.f32 %v3932, %v3943
        %v3953 = vadd.f32 %v3933, %v3947
        %v3954 = vadd.f32 %v3934, %v3943
        %v3955 = vadd.f32 %v3935, %v3947
        %v3956 = vadd.f32 %v3936, %v3943
        %v3957 = vadd.f32 %v3937, %v3947
        %v3958 = vmax.f32 %v3950, 0.0
        %v3959 = vmax.f32 %v3951, 0.0
        %v3960 = vmax.f32 %v3952, 0.0
        %v3961 = vmax.f32 %v3953, 0.0
        %v3962 = vmax.f32 %v3954, 0.0
        %v3963 = vmax.f32 %v3955, 0.0
        %v3964 = vmax.f32 %v3956, 0.0
        %v3965 = vmax.f32 %v3957, 0.0
        %v3966 = vrot.slane %v3958, 7
        %v3967 = vrot.slane %v3959, 7
        %v3968 = vrot.slane %v3960, 7
        %v3969 = vrot.slane %v3961, 7
        %v3970 = vrot.slane %v3962, 7
        %v3971 = vrot.slane %v3963, 7
        %v3972 = vrot.slane %v3964, 7
        %v3973 = vrot.slane %v3965, 7
        %v3974 = vsel %vm1045, %v3970, %v3972
        %v3975 = vsel %vm1045, %v3971, %v3973
        %v3976 = vsel %vm1045, %v3968, %v3970
        %v3977 = vsel %vm1045, %v3969, %v3971
        %v3978 = vsel %vm1045, %v3966, %v3968
        %v3979 = vsel %vm1045, %v3967, %v3969
        %v3980 = vsel %vm1045, %v3972, %v3966
        %v3981 = vsel %vm1045, %v3973, %v3967
        %v3982 = vsel %vm1054, 0.0, %v3980
        %v3983 = vsel %vm1054, 0.0, %v3981
        %v3984 = vsel %vm1055, 0.0, %v3978
        %v3985 = vsel %vm1055, 0.0, %v3979
        %v3986 = vsel %vm1056, 0.0, %v3976
        %v3987 = vsel %vm1056, 0.0, %v3977
        %v3988 = vsel %vm1057, 0.0, %v3974
        %v3989 = vsel %vm1057, 0.0, %v3975
        %v3990 = vpack.c.bf16 %v3984, %v3982
        %v3991 = vpack.c.bf16 %v3985, %v3983
        %v3992 = vpack.c.bf16 %v3988, %v3986
        %v3993 = vpack.c.bf16 %v3989, %v3987
        %v3994 = vpack.c.bf16 %v3960, %v3958
        %v3995 = vpack.c.bf16 %v3961, %v3959
        %v3996 = vpack.c.bf16 %v3964, %v3962
        %v3997 = vpack.c.bf16 %v3965, %v3963
        %v3998 = vrot.slane %v3958, 1
        %v3999 = vrot.slane %v3959, 1
        %v4000 = vrot.slane %v3960, 1
        %v4001 = vrot.slane %v3961, 1
        %v4002 = vrot.slane %v3962, 1
        %v4003 = vrot.slane %v3963, 1
        %v4004 = vrot.slane %v3964, 1
        %v4005 = vrot.slane %v3965, 1
        %v4006 = vsel %vm1070, %v4002, %v4004
        %v4007 = vsel %vm1070, %v4003, %v4005
        %v4008 = vsel %vm1070, %v4000, %v4002
        %v4009 = vsel %vm1070, %v4001, %v4003
        %v4010 = vsel %vm1070, %v3998, %v4000
        %v4011 = vsel %vm1070, %v3999, %v4001
        %v4012 = vsel %vm1070, %v4004, %v3998
        %v4013 = vsel %vm1070, %v4005, %v3999
        %v4014 = vsel %vm1079, 0.0, %v4010
        %v4015 = vsel %vm1079, 0.0, %v4011
        %v4016 = vsel %vm1080, 0.0, %v4008
        %v4017 = vsel %vm1080, 0.0, %v4009
        %v4018 = vsel %vm1081, 0.0, %v4006
        %v4019 = vsel %vm1081, 0.0, %v4007
        %v4020 = vsel %vm1082, 0.0, %v4012
        %v4021 = vsel %vm1082, 0.0, %v4013
        %v4022 = vpack.c.bf16 %v4016, %v4014
        %v4023 = vpack.c.bf16 %v4017, %v4015
        %v4024 = vpack.c.bf16 %v4020, %v4018
        %v4025 = vpack.c.bf16 %v4021, %v4019
        %v4026 = vld [vmem:[#allocation13] sm:$0xff]
        %v4027 = vld [vmem:[#allocation13 + $0x8] sm:$0xff]
        %v4028 = vld [vmem:[#allocation13 + $0x10] sm:$0xff]
        %v4029 = vld [vmem:[#allocation13 + $0x18] sm:$0xff]
        %v4030 = vld [vmem:[#allocation13 + $0x20] sm:$0xff]
        %v4031 = vld [vmem:[#allocation13 + $0x28] sm:$0xff]
        %v4032 = vld [vmem:[#allocation13 + $0x30] sm:$0xff]
        %v4033 = vld [vmem:[#allocation13 + $0x38] sm:$0xff]
        %v4034 = vld [vmem:[#allocation13 + $0x40] sm:$0xff]
        %v4035 = vld [vmem:[#allocation13 + $0x48] sm:$0xff]
        %v4036 = vld [vmem:[#allocation13 + $0x50] sm:$0xff]
        %v4037 = vld [vmem:[#allocation13 + $0x58] sm:$0xff]
        %v4038 = vld [vmem:[#allocation13 + $0x60] sm:$0xff]
        %v4039 = vld [vmem:[#allocation13 + $0x68] sm:$0xff]
        %v4040 = vld [vmem:[#allocation13 + $0x70] sm:$0xff]
        %v4041 = vld [vmem:[#allocation13 + $0x78] sm:$0xff]
        %v4042 = vld [vmem:[#allocation13 + $0x80] sm:$0xff]
        %v4043 = vld [vmem:[#allocation13 + $0x88] sm:$0xff]
        %v4044 = vld [vmem:[#allocation13 + $0x90] sm:$0xff]
        %v4045 = vld [vmem:[#allocation13 + $0x98] sm:$0xff]
        %v4046 = vld [vmem:[#allocation13 + $0xa0] sm:$0xff]
        %v4047 = vld [vmem:[#allocation13 + $0xa8] sm:$0xff]
        %v4048 = vld [vmem:[#allocation13 + $0xb0] sm:$0xff]
        %v4049 = vld [vmem:[#allocation13 + $0xb8] sm:$0xff]
        %v4050 = vld [vmem:[#allocation13 + $0xc0] sm:$0xff]
        %v4051 = vld [vmem:[#allocation13 + $0xc8] sm:$0xff]
        %v4052 = vld [vmem:[#allocation13 + $0xd0] sm:$0xff]
        %v4053 = vld [vmem:[#allocation13 + $0xd8] sm:$0xff]
        %v4054 = vld [vmem:[#allocation13 + $0xe0] sm:$0xff]
        %v4055 = vld [vmem:[#allocation13 + $0xe8] sm:$0xff]
        %v4056 = vld [vmem:[#allocation13 + $0xf0] sm:$0xff]
        %v4057 = vld [vmem:[#allocation13 + $0xf8] sm:$0xff]
        %s4058 = scalar_lea.vmem [#allocation13], 256
        %v4059 = vld [vmem:[%s4058] sm:$0xff]
        %v4060 = vld [vmem:[%s4058 + $0x8] sm:$0xff]
        %v4061 = vld [vmem:[%s4058 + $0x10] sm:$0xff]
        %v4062 = vld [vmem:[%s4058 + $0x18] sm:$0xff]
        %v4063 = vld [vmem:[%s4058 + $0x20] sm:$0xff]
        %v4064 = vld [vmem:[%s4058 + $0x28] sm:$0xff]
        %v4065 = vld [vmem:[%s4058 + $0x30] sm:$0xff]
        %v4066 = vld [vmem:[%s4058 + $0x38] sm:$0xff]
        %v4067 = vld [vmem:[%s4058 + $0x40] sm:$0xff]
        %v4068 = vld [vmem:[%s4058 + $0x48] sm:$0xff]
        %v4069 = vld [vmem:[%s4058 + $0x50] sm:$0xff]
        %v4070 = vld [vmem:[%s4058 + $0x58] sm:$0xff]
        %v4071 = vld [vmem:[%s4058 + $0x60] sm:$0xff]
        %v4072 = vld [vmem:[%s4058 + $0x68] sm:$0xff]
        %v4073 = vld [vmem:[%s4058 + $0x70] sm:$0xff]
        %v4074 = vld [vmem:[%s4058 + $0x78] sm:$0xff]
        %v4075 = vld [vmem:[%s4058 + $0x80] sm:$0xff]
        %v4076 = vld [vmem:[%s4058 + $0x88] sm:$0xff]
        %v4077 = vld [vmem:[%s4058 + $0x90] sm:$0xff]
        %v4078 = vld [vmem:[%s4058 + $0x98] sm:$0xff]
        %v4079 = vld [vmem:[%s4058 + $0xa0] sm:$0xff]
        %v4080 = vld [vmem:[%s4058 + $0xa8] sm:$0xff]
        %v4081 = vld [vmem:[%s4058 + $0xb0] sm:$0xff]
        %v4082 = vld [vmem:[%s4058 + $0xb8] sm:$0xff]
        %v4083 = vld [vmem:[%s4058 + $0xc0] sm:$0xff]
        %v4084 = vld [vmem:[%s4058 + $0xc8] sm:$0xff]
        %v4085 = vld [vmem:[%s4058 + $0xd0] sm:$0xff]
        %v4086 = vld [vmem:[%s4058 + $0xd8] sm:$0xff]
        %v4087 = vld [vmem:[%s4058 + $0xe0] sm:$0xff]
        %v4088 = vld [vmem:[%s4058 + $0xe8] sm:$0xff]
        %v4089 = vld [vmem:[%s4058 + $0xf0] sm:$0xff]
        %v4090 = vld [vmem:[%s4058 + $0xf8] sm:$0xff]
        %v4123 = vunpack.c.l.b16 %v4059
        %v4124 = vunpack.c.h.b16 %v4059
        %v4125 = vunpack.c.l.b16 %v4060
        %v4126 = vunpack.c.h.b16 %v4060
        %v4127 = vunpack.c.l.b16 %v4061
        %v4128 = vunpack.c.h.b16 %v4061
        %v4129 = vunpack.c.l.b16 %v4062
        %v4130 = vunpack.c.h.b16 %v4062
        %v4131 = vunpack.c.l.b16 %v4063
        %v4132 = vunpack.c.h.b16 %v4063
        %v4133 = vunpack.c.l.b16 %v4064
        %v4134 = vunpack.c.h.b16 %v4064
        %v4135 = vunpack.c.l.b16 %v4065
        %v4136 = vunpack.c.h.b16 %v4065
        %v4137 = vunpack.c.l.b16 %v4066
        %v4138 = vunpack.c.h.b16 %v4066
        %v4139 = vunpack.c.l.b16 %v4067
        %v4140 = vunpack.c.h.b16 %v4067
        %v4141 = vunpack.c.l.b16 %v4068
        %v4142 = vunpack.c.h.b16 %v4068
        %v4143 = vunpack.c.l.b16 %v4069
        %v4144 = vunpack.c.h.b16 %v4069
        %v4145 = vunpack.c.l.b16 %v4070
        %v4146 = vunpack.c.h.b16 %v4070
        %v4147 = vunpack.c.l.b16 %v4071
        %v4148 = vunpack.c.h.b16 %v4071
        %v4149 = vunpack.c.l.b16 %v4072
        %v4150 = vunpack.c.h.b16 %v4072
        %v4151 = vunpack.c.l.b16 %v4073
        %v4152 = vunpack.c.h.b16 %v4073
        %v4153 = vunpack.c.l.b16 %v4074
        %v4154 = vunpack.c.h.b16 %v4074
        %v4155 = vunpack.c.l.b16 %v4075
        %v4156 = vunpack.c.h.b16 %v4075
        %v4157 = vunpack.c.l.b16 %v4076
        %v4158 = vunpack.c.h.b16 %v4076
        %v4159 = vunpack.c.l.b16 %v4077
        %v4160 = vunpack.c.h.b16 %v4077
        %v4161 = vunpack.c.l.b16 %v4078
        %v4162 = vunpack.c.h.b16 %v4078
        %v4163 = vunpack.c.l.b16 %v4079
        %v4164 = vunpack.c.h.b16 %v4079
        %v4165 = vunpack.c.l.b16 %v4080
        %v4166 = vunpack.c.h.b16 %v4080
        %v4167 = vunpack.c.l.b16 %v4081
        %v4168 = vunpack.c.h.b16 %v4081
        %v4169 = vunpack.c.l.b16 %v4082
        %v4170 = vunpack.c.h.b16 %v4082
        %v4171 = vunpack.c.l.b16 %v4083
        %v4172 = vunpack.c.h.b16 %v4083
        %v4173 = vunpack.c.l.b16 %v4084
        %v4174 = vunpack.c.h.b16 %v4084
        %v4175 = vunpack.c.l.b16 %v4085
        %v4176 = vunpack.c.h.b16 %v4085
        %v4177 = vunpack.c.l.b16 %v4086
        %v4178 = vunpack.c.h.b16 %v4086
        %v4179 = vunpack.c.l.b16 %v4087
        %v4180 = vunpack.c.h.b16 %v4087
        %v4181 = vunpack.c.l.b16 %v4088
        %v4182 = vunpack.c.h.b16 %v4088
        %v4183 = vunpack.c.l.b16 %v4089
        %v4184 = vunpack.c.h.b16 %v4089
        %v4185 = vunpack.c.l.b16 %v4090
        %v4186 = vunpack.c.h.b16 %v4090
        %v4187 = vpack.c.b16 %v4125, %v4123
        %v4188 = vpack.c.b16 %v4126, %v4124
        %v4189 = vpack.c.b16 %v4129, %v4127
        %v4190 = vpack.c.b16 %v4130, %v4128
        %v4191 = vpack.c.b16 %v4133, %v4131
        %v4192 = vpack.c.b16 %v4134, %v4132
        %v4193 = vpack.c.b16 %v4137, %v4135
        %v4194 = vpack.c.b16 %v4138, %v4136
        %v4195 = vpack.c.b16 %v4141, %v4139
        %v4196 = vpack.c.b16 %v4142, %v4140
        %v4197 = vpack.c.b16 %v4145, %v4143
        %v4198 = vpack.c.b16 %v4146, %v4144
        %v4199 = vpack.c.b16 %v4149, %v4147
        %v4200 = vpack.c.b16 %v4150, %v4148
        %v4201 = vpack.c.b16 %v4153, %v4151
        %v4202 = vpack.c.b16 %v4154, %v4152
        %v4203 = vpack.c.b16 %v4157, %v4155
        %v4204 = vpack.c.b16 %v4158, %v4156
        %v4205 = vpack.c.b16 %v4161, %v4159
        %v4206 = vpack.c.b16 %v4162, %v4160
        %v4207 = vpack.c.b16 %v4165, %v4163
        %v4208 = vpack.c.b16 %v4166, %v4164
        %v4209 = vpack.c.b16 %v4169, %v4167
        %v4210 = vpack.c.b16 %v4170, %v4168
        %v4211 = vpack.c.b16 %v4173, %v4171
        %v4212 = vpack.c.b16 %v4174, %v4172
        %v4213 = vpack.c.b16 %v4177, %v4175
        %v4214 = vpack.c.b16 %v4178, %v4176
        %v4215 = vpack.c.b16 %v4181, %v4179
        %v4216 = vpack.c.b16 %v4182, %v4180
        %v4217 = vpack.c.b16 %v4185, %v4183
        %v4218 = vpack.c.b16 %v4186, %v4184
        %4251 = vmatprep.subr.bf16.mxu0 %v4202
        %4252 = vmatpush1.bf16.msra.mxu0 %v4201
        %4253 = vmatprep.subr.bf16.mxu0 %v4200
        %4254 = vmatpush1.bf16.msra.mxu0 %v4199
        %4255 = vmatprep.subr.bf16.mxu0 %v4198
        %4256 = vmatpush1.bf16.msra.mxu0 %v4197
        %4257 = vmatprep.subr.bf16.mxu0 %v4196
        %4258 = vmatpush1.bf16.msra.mxu0 %v4195
        %4259 = vmatprep.subr.bf16.mxu0 %v4194
        %4260 = vmatpush1.bf16.msra.mxu0 %v4193
        %4261 = vmatprep.subr.bf16.mxu0 %v4192
        %4262 = vmatpush1.bf16.msra.mxu0 %v4191
        %4263 = vmatprep.subr.bf16.mxu0 %v4190
        %4264 = vmatpush1.bf16.msra.mxu0 %v4189
        %4265 = vmatprep.subr.bf16.mxu0 %v4188
        %4266 = vmatpush1.bf16.msra.mxu0 %v4187
        %4267 = vmatprep.subr.bf16.mxu0 %v4218
        %4268 = vmatpush2.bf16.msra.mxu0 %v4217
        %4269 = vmatprep.subr.bf16.mxu0 %v4216
        %4270 = vmatpush2.bf16.msra.mxu0 %v4215
        %4271 = vmatprep.subr.bf16.mxu0 %v4214
        %4272 = vmatpush2.bf16.msra.mxu0 %v4213
        %4273 = vmatprep.subr.bf16.mxu0 %v4212
        %4274 = vmatpush2.bf16.msra.mxu0 %v4211
        %4275 = vmatprep.subr.bf16.mxu0 %v4210
        %4276 = vmatpush2.bf16.msra.mxu0 %v4209
        %4277 = vmatprep.subr.bf16.mxu0 %v4208
        %4278 = vmatpush2.bf16.msra.mxu0 %v4207
        %4279 = vmatprep.subr.bf16.mxu0 %v4206
        %4280 = vmatpush2.bf16.msra.mxu0 %v4205
        %4281 = vmatprep.subr.bf16.mxu0 %v4204
        %4282 = vmatpush2.bf16.msra.mxu0 %v4203
        %4283 = vmatprep.mubr.bf16.mxu0 %v3995
        %4284 = vmatmul.mubr.bf16.gmra.mxu0 %v3994
        %v4285 = vpop.f32.mrf.mxu0
        %v4286 = vadd.f32 0.0, %v4285
        %v4287 = vpop.f32.mrf.mxu0
        %v4288 = vadd.f32 0.0, %v4287
        %v4289 = vpop.f32.mrf.mxu0
        %v4290 = vadd.f32 0.0, %v4289
        %v4291 = vpop.f32.mrf.mxu0
        %v4292 = vadd.f32 0.0, %v4291
        %4293 = vmatprep.mubr.bf16.mxu0 %v3997
        %4294 = vmatmul.mubr.bf16.gmra.mxu0 %v3996
        %v4295 = vpop.f32.mrf.mxu0
        %v4296 = vadd.f32 0.0, %v4295
        %v4297 = vpop.f32.mrf.mxu0
        %v4298 = vadd.f32 0.0, %v4297
        %v4299 = vpop.f32.mrf.mxu0
        %v4300 = vadd.f32 0.0, %v4299
        %v4301 = vpop.f32.mrf.mxu0
        %v4302 = vadd.f32 0.0, %v4301
        %4303 = vdwg.mxu0
        %v4336 = vunpack.c.l.b16 %v4026
        %v4337 = vunpack.c.h.b16 %v4026
        %v4338 = vunpack.c.l.b16 %v4027
        %v4339 = vunpack.c.h.b16 %v4027
        %v4340 = vunpack.c.l.b16 %v4028
        %v4341 = vunpack.c.h.b16 %v4028
        %v4342 = vunpack.c.l.b16 %v4029
        %v4343 = vunpack.c.h.b16 %v4029
        %v4344 = vunpack.c.l.b16 %v4030
        %v4345 = vunpack.c.h.b16 %v4030
        %v4346 = vunpack.c.l.b16 %v4031
        %v4347 = vunpack.c.h.b16 %v4031
        %v4348 = vunpack.c.l.b16 %v4032
        %v4349 = vunpack.c.h.b16 %v4032
        %v4350 = vunpack.c.l.b16 %v4033
        %v4351 = vunpack.c.h.b16 %v4033
        %v4352 = vunpack.c.l.b16 %v4034
        %v4353 = vunpack.c.h.b16 %v4034
        %v4354 = vunpack.c.l.b16 %v4035
        %v4355 = vunpack.c.h.b16 %v4035
        %v4356 = vunpack.c.l.b16 %v4036
        %v4357 = vunpack.c.h.b16 %v4036
        %v4358 = vunpack.c.l.b16 %v4037
        %v4359 = vunpack.c.h.b16 %v4037
        %v4360 = vunpack.c.l.b16 %v4038
        %v4361 = vunpack.c.h.b16 %v4038
        %v4362 = vunpack.c.l.b16 %v4039
        %v4363 = vunpack.c.h.b16 %v4039
        %v4364 = vunpack.c.l.b16 %v4040
        %v4365 = vunpack.c.h.b16 %v4040
        %v4366 = vunpack.c.l.b16 %v4041
        %v4367 = vunpack.c.h.b16 %v4041
        %v4368 = vunpack.c.l.b16 %v4042
        %v4369 = vunpack.c.h.b16 %v4042
        %v4370 = vunpack.c.l.b16 %v4043
        %v4371 = vunpack.c.h.b16 %v4043
        %v4372 = vunpack.c.l.b16 %v4044
        %v4373 = vunpack.c.h.b16 %v4044
        %v4374 = vunpack.c.l.b16 %v4045
        %v4375 = vunpack.c.h.b16 %v4045
        %v4376 = vunpack.c.l.b16 %v4046
        %v4377 = vunpack.c.h.b16 %v4046
        %v4378 = vunpack.c.l.b16 %v4047
        %v4379 = vunpack.c.h.b16 %v4047
        %v4380 = vunpack.c.l.b16 %v4048
        %v4381 = vunpack.c.h.b16 %v4048
        %v4382 = vunpack.c.l.b16 %v4049
        %v4383 = vunpack.c.h.b16 %v4049
        %v4384 = vunpack.c.l.b16 %v4050
        %v4385 = vunpack.c.h.b16 %v4050
        %v4386 = vunpack.c.l.b16 %v4051
        %v4387 = vunpack.c.h.b16 %v4051
        %v4388 = vunpack.c.l.b16 %v4052
        %v4389 = vunpack.c.h.b16 %v4052
        %v4390 = vunpack.c.l.b16 %v4053
        %v4391 = vunpack.c.h.b16 %v4053
        %v4392 = vunpack.c.l.b16 %v4054
        %v4393 = vunpack.c.h.b16 %v4054
        %v4394 = vunpack.c.l.b16 %v4055
        %v4395 = vunpack.c.h.b16 %v4055
        %v4396 = vunpack.c.l.b16 %v4056
        %v4397 = vunpack.c.h.b16 %v4056
        %v4398 = vunpack.c.l.b16 %v4057
        %v4399 = vunpack.c.h.b16 %v4057
        %v4400 = vpack.c.b16 %v4338, %v4336
        %v4401 = vpack.c.b16 %v4339, %v4337
        %v4402 = vpack.c.b16 %v4342, %v4340
        %v4403 = vpack.c.b16 %v4343, %v4341
        %v4404 = vpack.c.b16 %v4346, %v4344
        %v4405 = vpack.c.b16 %v4347, %v4345
        %v4406 = vpack.c.b16 %v4350, %v4348
        %v4407 = vpack.c.b16 %v4351, %v4349
        %v4408 = vpack.c.b16 %v4354, %v4352
        %v4409 = vpack.c.b16 %v4355, %v4353
        %v4410 = vpack.c.b16 %v4358, %v4356
        %v4411 = vpack.c.b16 %v4359, %v4357
        %v4412 = vpack.c.b16 %v4362, %v4360
        %v4413 = vpack.c.b16 %v4363, %v4361
        %v4414 = vpack.c.b16 %v4366, %v4364
        %v4415 = vpack.c.b16 %v4367, %v4365
        %v4416 = vpack.c.b16 %v4370, %v4368
        %v4417 = vpack.c.b16 %v4371, %v4369
        %v4418 = vpack.c.b16 %v4374, %v4372
        %v4419 = vpack.c.b16 %v4375, %v4373
        %v4420 = vpack.c.b16 %v4378, %v4376
        %v4421 = vpack.c.b16 %v4379, %v4377
        %v4422 = vpack.c.b16 %v4382, %v4380
        %v4423 = vpack.c.b16 %v4383, %v4381
        %v4424 = vpack.c.b16 %v4386, %v4384
        %v4425 = vpack.c.b16 %v4387, %v4385
        %v4426 = vpack.c.b16 %v4390, %v4388
        %v4427 = vpack.c.b16 %v4391, %v4389
        %v4428 = vpack.c.b16 %v4394, %v4392
        %v4429 = vpack.c.b16 %v4395, %v4393
        %v4430 = vpack.c.b16 %v4398, %v4396
        %v4431 = vpack.c.b16 %v4399, %v4397
        %4464 = vmatprep.subr.bf16.mxu0 %v4415
        %4465 = vmatpush1.bf16.msra.mxu0 %v4414
        %4466 = vmatprep.subr.bf16.mxu0 %v4413
        %4467 = vmatpush1.bf16.msra.mxu0 %v4412
        %4468 = vmatprep.subr.bf16.mxu0 %v4411
        %4469 = vmatpush1.bf16.msra.mxu0 %v4410
        %4470 = vmatprep.subr.bf16.mxu0 %v4409
        %4471 = vmatpush1.bf16.msra.mxu0 %v4408
        %4472 = vmatprep.subr.bf16.mxu0 %v4407
        %4473 = vmatpush1.bf16.msra.mxu0 %v4406
        %4474 = vmatprep.subr.bf16.mxu0 %v4405
        %4475 = vmatpush1.bf16.msra.mxu0 %v4404
        %4476 = vmatprep.subr.bf16.mxu0 %v4403
        %4477 = vmatpush1.bf16.msra.mxu0 %v4402
        %4478 = vmatprep.subr.bf16.mxu0 %v4401
        %4479 = vmatpush1.bf16.msra.mxu0 %v4400
        %4480 = vmatprep.subr.bf16.mxu0 %v4431
        %4481 = vmatpush2.bf16.msra.mxu0 %v4430
        %4482 = vmatprep.subr.bf16.mxu0 %v4429
        %4483 = vmatpush2.bf16.msra.mxu0 %v4428
        %4484 = vmatprep.subr.bf16.mxu0 %v4427
        %4485 = vmatpush2.bf16.msra.mxu0 %v4426
        %4486 = vmatprep.subr.bf16.mxu0 %v4425
        %4487 = vmatpush2.bf16.msra.mxu0 %v4424
        %4488 = vmatprep.subr.bf16.mxu0 %v4423
        %4489 = vmatpush2.bf16.msra.mxu0 %v4422
        %4490 = vmatprep.subr.bf16.mxu0 %v4421
        %4491 = vmatpush2.bf16.msra.mxu0 %v4420
        %4492 = vmatprep.subr.bf16.mxu0 %v4419
        %4493 = vmatpush2.bf16.msra.mxu0 %v4418
        %4494 = vmatprep.subr.bf16.mxu0 %v4417
        %4495 = vmatpush2.bf16.msra.mxu0 %v4416
        %4496 = vmatprep.mubr.bf16.mxu0 %v3991
        %4497 = vmatmul.mubr.bf16.gmra.mxu0 %v3990
        %v4498 = vpop.f32.mrf.mxu0
        %v4499 = vadd.f32 %v4286, %v4498
        %v4500 = vpop.f32.mrf.mxu0
        %v4501 = vadd.f32 %v4288, %v4500
        %v4502 = vpop.f32.mrf.mxu0
        %v4503 = vadd.f32 %v4290, %v4502
        %v4504 = vpop.f32.mrf.mxu0
        %v4505 = vadd.f32 %v4292, %v4504
        %4506 = vmatprep.mubr.bf16.mxu0 %v3993
        %4507 = vmatmul.mubr.bf16.gmra.mxu0 %v3992
        %v4508 = vpop.f32.mrf.mxu0
        %v4509 = vadd.f32 %v4296, %v4508
        %v4510 = vpop.f32.mrf.mxu0
        %v4511 = vadd.f32 %v4298, %v4510
        %v4512 = vpop.f32.mrf.mxu0
        %v4513 = vadd.f32 %v4300, %v4512
        %v4514 = vpop.f32.mrf.mxu0
        %v4515 = vadd.f32 %v4302, %v4514
        %4516 = vdwg.mxu0
        %s4517 = scalar_lea.vmem [#allocation13], 512
        %v4518 = vld [vmem:[%s4517] sm:$0xff]
        %v4519 = vld [vmem:[%s4517 + $0x8] sm:$0xff]
        %v4520 = vld [vmem:[%s4517 + $0x10] sm:$0xff]
        %v4521 = vld [vmem:[%s4517 + $0x18] sm:$0xff]
        %v4522 = vld [vmem:[%s4517 + $0x20] sm:$0xff]
        %v4523 = vld [vmem:[%s4517 + $0x28] sm:$0xff]
        %v4524 = vld [vmem:[%s4517 + $0x30] sm:$0xff]
        %v4525 = vld [vmem:[%s4517 + $0x38] sm:$0xff]
        %v4526 = vld [vmem:[%s4517 + $0x40] sm:$0xff]
        %v4527 = vld [vmem:[%s4517 + $0x48] sm:$0xff]
        %v4528 = vld [vmem:[%s4517 + $0x50] sm:$0xff]
        %v4529 = vld [vmem:[%s4517 + $0x58] sm:$0xff]
        %v4530 = vld [vmem:[%s4517 + $0x60] sm:$0xff]
        %v4531 = vld [vmem:[%s4517 + $0x68] sm:$0xff]
        %v4532 = vld [vmem:[%s4517 + $0x70] sm:$0xff]
        %v4533 = vld [vmem:[%s4517 + $0x78] sm:$0xff]
        %v4534 = vld [vmem:[%s4517 + $0x80] sm:$0xff]
        %v4535 = vld [vmem:[%s4517 + $0x88] sm:$0xff]
        %v4536 = vld [vmem:[%s4517 + $0x90] sm:$0xff]
        %v4537 = vld [vmem:[%s4517 + $0x98] sm:$0xff]
        %v4538 = vld [vmem:[%s4517 + $0xa0] sm:$0xff]
        %v4539 = vld [vmem:[%s4517 + $0xa8] sm:$0xff]
        %v4540 = vld [vmem:[%s4517 + $0xb0] sm:$0xff]
        %v4541 = vld [vmem:[%s4517 + $0xb8] sm:$0xff]
        %v4542 = vld [vmem:[%s4517 + $0xc0] sm:$0xff]
        %v4543 = vld [vmem:[%s4517 + $0xc8] sm:$0xff]
        %v4544 = vld [vmem:[%s4517 + $0xd0] sm:$0xff]
        %v4545 = vld [vmem:[%s4517 + $0xd8] sm:$0xff]
        %v4546 = vld [vmem:[%s4517 + $0xe0] sm:$0xff]
        %v4547 = vld [vmem:[%s4517 + $0xe8] sm:$0xff]
        %v4548 = vld [vmem:[%s4517 + $0xf0] sm:$0xff]
        %v4549 = vld [vmem:[%s4517 + $0xf8] sm:$0xff]
        %v4582 = vunpack.c.l.b16 %v4518
        %v4583 = vunpack.c.h.b16 %v4518
        %v4584 = vunpack.c.l.b16 %v4519
        %v4585 = vunpack.c.h.b16 %v4519
        %v4586 = vunpack.c.l.b16 %v4520
        %v4587 = vunpack.c.h.b16 %v4520
        %v4588 = vunpack.c.l.b16 %v4521
        %v4589 = vunpack.c.h.b16 %v4521
        %v4590 = vunpack.c.l.b16 %v4522
        %v4591 = vunpack.c.h.b16 %v4522
        %v4592 = vunpack.c.l.b16 %v4523
        %v4593 = vunpack.c.h.b16 %v4523
        %v4594 = vunpack.c.l.b16 %v4524
        %v4595 = vunpack.c.h.b16 %v4524
        %v4596 = vunpack.c.l.b16 %v4525
        %v4597 = vunpack.c.h.b16 %v4525
        %v4598 = vunpack.c.l.b16 %v4526
        %v4599 = vunpack.c.h.b16 %v4526
        %v4600 = vunpack.c.l.b16 %v4527
        %v4601 = vunpack.c.h.b16 %v4527
        %v4602 = vunpack.c.l.b16 %v4528
        %v4603 = vunpack.c.h.b16 %v4528
        %v4604 = vunpack.c.l.b16 %v4529
        %v4605 = vunpack.c.h.b16 %v4529
        %v4606 = vunpack.c.l.b16 %v4530
        %v4607 = vunpack.c.h.b16 %v4530
        %v4608 = vunpack.c.l.b16 %v4531
        %v4609 = vunpack.c.h.b16 %v4531
        %v4610 = vunpack.c.l.b16 %v4532
        %v4611 = vunpack.c.h.b16 %v4532
        %v4612 = vunpack.c.l.b16 %v4533
        %v4613 = vunpack.c.h.b16 %v4533
        %v4614 = vunpack.c.l.b16 %v4534
        %v4615 = vunpack.c.h.b16 %v4534
        %v4616 = vunpack.c.l.b16 %v4535
        %v4617 = vunpack.c.h.b16 %v4535
        %v4618 = vunpack.c.l.b16 %v4536
        %v4619 = vunpack.c.h.b16 %v4536
        %v4620 = vunpack.c.l.b16 %v4537
        %v4621 = vunpack.c.h.b16 %v4537
        %v4622 = vunpack.c.l.b16 %v4538
        %v4623 = vunpack.c.h.b16 %v4538
        %v4624 = vunpack.c.l.b16 %v4539
        %v4625 = vunpack.c.h.b16 %v4539
        %v4626 = vunpack.c.l.b16 %v4540
        %v4627 = vunpack.c.h.b16 %v4540
        %v4628 = vunpack.c.l.b16 %v4541
        %v4629 = vunpack.c.h.b16 %v4541
        %v4630 = vunpack.c.l.b16 %v4542
        %v4631 = vunpack.c.h.b16 %v4542
        %v4632 = vunpack.c.l.b16 %v4543
        %v4633 = vunpack.c.h.b16 %v4543
        %v4634 = vunpack.c.l.b16 %v4544
        %v4635 = vunpack.c.h.b16 %v4544
        %v4636 = vunpack.c.l.b16 %v4545
        %v4637 = vunpack.c.h.b16 %v4545
        %v4638 = vunpack.c.l.b16 %v4546
        %v4639 = vunpack.c.h.b16 %v4546
        %v4640 = vunpack.c.l.b16 %v4547
        %v4641 = vunpack.c.h.b16 %v4547
        %v4642 = vunpack.c.l.b16 %v4548
        %v4643 = vunpack.c.h.b16 %v4548
        %v4644 = vunpack.c.l.b16 %v4549
        %v4645 = vunpack.c.h.b16 %v4549
        %v4646 = vpack.c.b16 %v4584, %v4582
        %v4647 = vpack.c.b16 %v4585, %v4583
        %v4648 = vpack.c.b16 %v4588, %v4586
        %v4649 = vpack.c.b16 %v4589, %v4587
        %v4650 = vpack.c.b16 %v4592, %v4590
        %v4651 = vpack.c.b16 %v4593, %v4591
        %v4652 = vpack.c.b16 %v4596, %v4594
        %v4653 = vpack.c.b16 %v4597, %v4595
        %v4654 = vpack.c.b16 %v4600, %v4598
        %v4655 = vpack.c.b16 %v4601, %v4599
        %v4656 = vpack.c.b16 %v4604, %v4602
        %v4657 = vpack.c.b16 %v4605, %v4603
        %v4658 = vpack.c.b16 %v4608, %v4606
        %v4659 = vpack.c.b16 %v4609, %v4607
        %v4660 = vpack.c.b16 %v4612, %v4610
        %v4661 = vpack.c.b16 %v4613, %v4611
        %v4662 = vpack.c.b16 %v4616, %v4614
        %v4663 = vpack.c.b16 %v4617, %v4615
        %v4664 = vpack.c.b16 %v4620, %v4618
        %v4665 = vpack.c.b16 %v4621, %v4619
        %v4666 = vpack.c.b16 %v4624, %v4622
        %v4667 = vpack.c.b16 %v4625, %v4623
        %v4668 = vpack.c.b16 %v4628, %v4626
        %v4669 = vpack.c.b16 %v4629, %v4627
        %v4670 = vpack.c.b16 %v4632, %v4630
        %v4671 = vpack.c.b16 %v4633, %v4631
        %v4672 = vpack.c.b16 %v4636, %v4634
        %v4673 = vpack.c.b16 %v4637, %v4635
        %v4674 = vpack.c.b16 %v4640, %v4638
        %v4675 = vpack.c.b16 %v4641, %v4639
        %v4676 = vpack.c.b16 %v4644, %v4642
        %v4677 = vpack.c.b16 %v4645, %v4643
        %4710 = vmatprep.subr.bf16.mxu0 %v4661
        %4711 = vmatpush1.bf16.msra.mxu0 %v4660
        %4712 = vmatprep.subr.bf16.mxu0 %v4659
        %4713 = vmatpush1.bf16.msra.mxu0 %v4658
        %4714 = vmatprep.subr.bf16.mxu0 %v4657
        %4715 = vmatpush1.bf16.msra.mxu0 %v4656
        %4716 = vmatprep.subr.bf16.mxu0 %v4655
        %4717 = vmatpush1.bf16.msra.mxu0 %v4654
        %4718 = vmatprep.subr.bf16.mxu0 %v4653
        %4719 = vmatpush1.bf16.msra.mxu0 %v4652
        %4720 = vmatprep.subr.bf16.mxu0 %v4651
        %4721 = vmatpush1.bf16.msra.mxu0 %v4650
        %4722 = vmatprep.subr.bf16.mxu0 %v4649
        %4723 = vmatpush1.bf16.msra.mxu0 %v4648
        %4724 = vmatprep.subr.bf16.mxu0 %v4647
        %4725 = vmatpush1.bf16.msra.mxu0 %v4646
        %4726 = vmatprep.subr.bf16.mxu0 %v4677
        %4727 = vmatpush2.bf16.msra.mxu0 %v4676
        %4728 = vmatprep.subr.bf16.mxu0 %v4675
        %4729 = vmatpush2.bf16.msra.mxu0 %v4674
        %4730 = vmatprep.subr.bf16.mxu0 %v4673
        %4731 = vmatpush2.bf16.msra.mxu0 %v4672
        %4732 = vmatprep.subr.bf16.mxu0 %v4671
        %4733 = vmatpush2.bf16.msra.mxu0 %v4670
        %4734 = vmatprep.subr.bf16.mxu0 %v4669
        %4735 = vmatpush2.bf16.msra.mxu0 %v4668
        %4736 = vmatprep.subr.bf16.mxu0 %v4667
        %4737 = vmatpush2.bf16.msra.mxu0 %v4666
        %4738 = vmatprep.subr.bf16.mxu0 %v4665
        %4739 = vmatpush2.bf16.msra.mxu0 %v4664
        %4740 = vmatprep.subr.bf16.mxu0 %v4663
        %4741 = vmatpush2.bf16.msra.mxu0 %v4662
        %4742 = vmatprep.mubr.bf16.mxu0 %v4023
        %4743 = vmatmul.mubr.bf16.gmra.mxu0 %v4022
        %v4744 = vpop.f32.mrf.mxu0
        %v4745 = vadd.f32 0.0, %v4744
        %v4746 = vpop.f32.mrf.mxu0
        %v4747 = vadd.f32 0.0, %v4746
        %v4748 = vpop.f32.mrf.mxu0
        %v4749 = vadd.f32 0.0, %v4748
        %v4750 = vpop.f32.mrf.mxu0
        %v4751 = vadd.f32 0.0, %v4750
        %4752 = vmatprep.mubr.bf16.mxu0 %v4025
        %4753 = vmatmul.mubr.bf16.gmra.mxu0 %v4024
        %v4754 = vpop.f32.mrf.mxu0
        %v4755 = vadd.f32 0.0, %v4754
        %v4756 = vpop.f32.mrf.mxu0
        %v4757 = vadd.f32 0.0, %v4756
        %v4758 = vpop.f32.mrf.mxu0
        %v4759 = vadd.f32 0.0, %v4758
        %v4760 = vpop.f32.mrf.mxu0
        %v4761 = vadd.f32 0.0, %v4760
        %4762 = vdwg.mxu0
        %v4763 = vadd.f32 %v4499, %v4745
        %v4764 = vadd.f32 %v4501, %v4747
        %v4765 = vadd.f32 %v4503, %v4749
        %v4766 = vadd.f32 %v4505, %v4751
        %v4767 = vadd.f32 %v4509, %v4755
        %v4768 = vadd.f32 %v4511, %v4757
        %v4769 = vadd.f32 %v4513, %v4759
        %v4770 = vadd.f32 %v4515, %v4761
        %v4771 = vld [vmem:[%s18] sm:$0x3]
        %v4773 = vlaneseq
        %v4774 = vshrl.u32 %v4773, 7
        %v4775 = vsub.s32 0, %v4774
        %v4776 = vrot.slane %v4771, %v4775
        %v4777 = vlaneseq
        %v4778 = vshrl.u32 %v4777, 7
        %v4779 = vsub.s32 1, %v4778
        %v4780 = vrot.slane %v4771, %v4779
        %v4783 = vadd.f32 %v4763, %v4776
        %v4784 = vadd.f32 %v4764, %v4780
        %v4785 = vadd.f32 %v4765, %v4776
        %v4786 = vadd.f32 %v4766, %v4780
        %v4787 = vadd.f32 %v4767, %v4776
        %v4788 = vadd.f32 %v4768, %v4780
        %v4789 = vadd.f32 %v4769, %v4776
        %v4790 = vadd.f32 %v4770, %v4780
        %v4791 = vadd.f32 %v4783, %v4785
        %v4792 = vadd.f32 %v4791, %v4787
        %v4793 = vadd.f32 %v4792, %v4789
        %v4794 = vrot.slane %v4793, 4
        %v4795 = vadd.f32 %v4793, %v4794
        %v4796 = vrot.slane %v4795, 2
        %v4797 = vadd.f32 %v4795, %v4796
        %v4798 = vrot.slane %v4797, 1
        %v4799 = vadd.f32 %v4797, %v4798
        %v4800 = vadd.f32 %v4784, %v4786
        %v4801 = vadd.f32 %v4800, %v4788
        %v4802 = vadd.f32 %v4801, %v4790
        %v4803 = vrot.slane %v4802, 4
        %v4804 = vadd.f32 %v4802, %v4803
        %v4805 = vrot.slane %v4804, 2
        %v4806 = vadd.f32 %v4804, %v4805
        %v4807 = vrot.slane %v4806, 1
        %v4808 = vadd.f32 %v4806, %v4807
        %v4809 = vmul.f32 %v4783, %v4783
        %v4810 = vmul.f32 %v4784, %v4784
        %v4811 = vmul.f32 %v4785, %v4785
        %v4812 = vmul.f32 %v4786, %v4786
        %v4813 = vmul.f32 %v4787, %v4787
        %v4814 = vmul.f32 %v4788, %v4788
        %v4815 = vmul.f32 %v4789, %v4789
        %v4816 = vmul.f32 %v4790, %v4790
        %v4817 = vadd.f32 %v4809, %v4811
        %v4818 = vadd.f32 %v4817, %v4813
        %v4819 = vadd.f32 %v4818, %v4815
        %v4820 = vrot.slane %v4819, 4
        %v4821 = vadd.f32 %v4819, %v4820
        %v4822 = vrot.slane %v4821, 2
        %v4823 = vadd.f32 %v4821, %v4822
        %v4824 = vrot.slane %v4823, 1
        %v4825 = vadd.f32 %v4823, %v4824
        %v4826 = vadd.f32 %v4810, %v4812
        %v4827 = vadd.f32 %v4826, %v4814
        %v4828 = vadd.f32 %v4827, %v4816
        %v4829 = vrot.slane %v4828, 4
        %v4830 = vadd.f32 %v4828, %v4829
        %v4831 = vrot.slane %v4830, 2
        %v4832 = vadd.f32 %v4830, %v4831
        %v4833 = vrot.slane %v4832, 1
        %v4834 = vadd.f32 %v4832, %v4833
        %v4835 = vsel %vm1662, %v4799, %v4825
        %v4836 = vsel %vm1662, %v4808, %v4834
        %4837 = vmatprep.subr.mxu0 0.0
        %4838 = vmatpush1.msra.mxu0 %v2617
        %4839 = vmatprep.subr.mxu0 0.0
        %4840 = vmatpush1.msra.mxu0 %v2616
        %4841 = vmatprep.subr.mxu0 0.0
        %4842 = vmatpush1.msra.mxu0 %v2615
        %4843 = vmatprep.subr.mxu0 0.0
        %4844 = vmatpush1.msra.mxu0 %v2614
        %4845 = vmatprep.subr.mxu0 0.0
        %4846 = vmatpush1.msra.mxu0 %v2613
        %4847 = vmatprep.subr.mxu0 0.0
        %4848 = vmatpush1.msra.mxu0 %v2612
        %4849 = vmatprep.subr.mxu0 0.0
        %4850 = vmatpush1.msra.mxu0 %v2611
        %4851 = vmatprep.subr.mxu0 0.0
        %4852 = vmatpush1.msra.mxu0 %v2610
        %4853 = vmatprep.subr.mxu0 0.0
        %4854 = vmatpush1.msra.mxu0 %v2609
        %4855 = vmatprep.subr.mxu0 0.0
        %4856 = vmatpush1.msra.mxu0 %v2608
        %4857 = vmatprep.subr.mxu0 0.0
        %4858 = vmatpush1.msra.mxu0 %v2607
        %4859 = vmatprep.subr.mxu0 0.0
        %4860 = vmatpush1.msra.mxu0 %v2606
        %4861 = vmatprep.subr.mxu0 0.0
        %4862 = vmatpush1.msra.mxu0 %v2605
        %4863 = vmatprep.subr.mxu0 0.0
        %4864 = vmatpush1.msra.mxu0 %v2604
        %4865 = vmatprep.subr.mxu0 0.0
        %4866 = vmatpush1.msra.mxu0 %v2603
        %4867 = vmatprep.subr.mxu0 0.0
        %4868 = vmatpush1.msra.mxu0 %v2602
        %4869 = vmatprep.subr.mxu0 0.0
        %4870 = vmatpush2.msra.mxu0 %v2633
        %4871 = vmatprep.subr.mxu0 0.0
        %4872 = vmatpush2.msra.mxu0 %v2632
        %4873 = vmatprep.subr.mxu0 0.0
        %4874 = vmatpush2.msra.mxu0 %v2631
        %4875 = vmatprep.subr.mxu0 0.0
        %4876 = vmatpush2.msra.mxu0 %v2630
        %4877 = vmatprep.subr.mxu0 0.0
        %4878 = vmatpush2.msra.mxu0 %v2629
        %4879 = vmatprep.subr.mxu0 0.0
        %4880 = vmatpush2.msra.mxu0 %v2628
        %4881 = vmatprep.subr.mxu0 0.0
        %4882 = vmatpush2.msra.mxu0 %v2627
        %4883 = vmatprep.subr.mxu0 0.0
        %4884 = vmatpush2.msra.mxu0 %v2626
        %4885 = vmatprep.subr.mxu0 0.0
        %4886 = vmatpush2.msra.mxu0 %v2625
        %4887 = vmatprep.subr.mxu0 0.0
        %4888 = vmatpush2.msra.mxu0 %v2624
        %4889 = vmatprep.subr.mxu0 0.0
        %4890 = vmatpush2.msra.mxu0 %v2623
        %4891 = vmatprep.subr.mxu0 0.0
        %4892 = vmatpush2.msra.mxu0 %v2622
        %4893 = vmatprep.subr.mxu0 0.0
        %4894 = vmatpush2.msra.mxu0 %v2621
        %4895 = vmatprep.subr.mxu0 0.0
        %4896 = vmatpush2.msra.mxu0 %v2620
        %4897 = vmatprep.subr.mxu0 0.0
        %4898 = vmatpush2.msra.mxu0 %v2619
        %4899 = vmatprep.subr.mxu0 0.0
        %4900 = vmatpush2.msra.mxu0 %v2618
        %4901 = vmatprep.mubr.f32.mxu0 %v4836
        %4902 = vmatmul.mubr.f32.gmra.mxu0 %v4835
        %v4903 = vpop.f32.mrf.mxu0
        %v4904 = vadd.f32 0.0, %v4903
        %v4905 = vpop.f32.mrf.mxu0
        %4906 = vdwg.mxu0
        %v4907 = vmul.f32 %v4904, 0.001953125
        %v4908 = vmul.f32 %v4907, %v4907
        %v4910 = vrot.slane %v4908, 7
        %v4912 = vsub.f32 %v4907, %v4910
        %v4913 = vmax.f32 %v4912, 0.0
        %v4914 = vadd.f32 %v4913, 1e-05
        %v4915 = vrsqrt.pop %v4914
        %v4916 = vsel %vm1662, %v4907, %v4915
        %v4918 = vsel %vm2718, %v4916, 0
        %4920 = vmatprep.subr.mxu0 0.0
        %4921 = vmatpush1.msra.mxu0 0.0
        %4922 = vmatprep.subr.mxu0 0.0
        %4923 = vmatpush1.msra.mxu0 0.0
        %4924 = vmatprep.subr.mxu0 0.0
        %4925 = vmatpush1.msra.mxu0 0.0
        %4926 = vmatprep.subr.mxu0 0.0
        %4927 = vmatpush1.msra.mxu0 0.0
        %4928 = vmatprep.subr.mxu0 0.0
        %4929 = vmatpush1.msra.mxu0 0.0
        %4930 = vmatprep.subr.mxu0 0.0
        %4931 = vmatpush1.msra.mxu0 0.0
        %4932 = vmatprep.subr.mxu0 0.0
        %4933 = vmatpush1.msra.mxu0 0.0
        %4934 = vmatprep.subr.mxu0 0.0
        %4935 = vmatpush1.msra.mxu0 0.0
        %4936 = vmatprep.subr.mxu0 0.0
        %4937 = vmatpush1.msra.mxu0 0.0
        %4938 = vmatprep.subr.mxu0 0.0
        %4939 = vmatpush1.msra.mxu0 0.0
        %4940 = vmatprep.subr.mxu0 0.0
        %4941 = vmatpush1.msra.mxu0 0.0
        %4942 = vmatprep.subr.mxu0 0.0
        %4943 = vmatpush1.msra.mxu0 0.0
        %4944 = vmatprep.subr.mxu0 0.0
        %4945 = vmatpush1.msra.mxu0 0.0
        %4946 = vmatprep.subr.mxu0 0.0
        %4947 = vmatpush1.msra.mxu0 0.0
        %4948 = vmatprep.subr.mxu0 %v2717
        %4949 = vmatpush1.msra.mxu0 %v2716
        %4950 = vmatprep.subr.mxu0 %v2715
        %4951 = vmatpush1.msra.mxu0 %v2714
        %4952 = vmatprep.subr.mxu0 0.0
        %4953 = vmatpush2.msra.mxu0 0.0
        %4954 = vmatprep.subr.mxu0 0.0
        %4955 = vmatpush2.msra.mxu0 0.0
        %4956 = vmatprep.subr.mxu0 0.0
        %4957 = vmatpush2.msra.mxu0 0.0
        %4958 = vmatprep.subr.mxu0 0.0
        %4959 = vmatpush2.msra.mxu0 0.0
        %4960 = vmatprep.subr.mxu0 0.0
        %4961 = vmatpush2.msra.mxu0 0.0
        %4962 = vmatprep.subr.mxu0 0.0
        %4963 = vmatpush2.msra.mxu0 0.0
        %4964 = vmatprep.subr.mxu0 0.0
        %4965 = vmatpush2.msra.mxu0 0.0
        %4966 = vmatprep.subr.mxu0 0.0
        %4967 = vmatpush2.msra.mxu0 0.0
        %4968 = vmatprep.subr.mxu0 0.0
        %4969 = vmatpush2.msra.mxu0 0.0
        %4970 = vmatprep.subr.mxu0 0.0
        %4971 = vmatpush2.msra.mxu0 0.0
        %4972 = vmatprep.subr.mxu0 0.0
        %4973 = vmatpush2.msra.mxu0 0.0
        %4974 = vmatprep.subr.mxu0 0.0
        %4975 = vmatpush2.msra.mxu0 0.0
        %4976 = vmatprep.subr.mxu0 0.0
        %4977 = vmatpush2.msra.mxu0 0.0
        %4978 = vmatprep.subr.mxu0 0.0
        %4979 = vmatpush2.msra.mxu0 0.0
        %4980 = vmatprep.subr.mxu0 0.0
        %4981 = vmatpush2.msra.mxu0 0.0
        %4982 = vmatprep.subr.mxu0 0.0
        %4983 = vmatpush2.msra.mxu0 0.0
        %4984 = vmatprep.mubr.f32.mxu0 0.0
        %4985 = vmatmul.mubr.f32.gmra.mxu0 %v4918
        %v4986 = vpop.f32.mrf.mxu0
        %v4987 = vadd.f32 0.0, %v4986
        %v4988 = vpop.f32.mrf.mxu0
        %v4989 = vadd.f32 0.0, %v4988
        %4990 = vdwg.mxu0
        %v4991 = vlaneseq
        %v4992 = vshrl.u32 %v4991, 7
        %v4993 = vsub.s32 0, %v4992
        %v4994 = vrot.slane %v4987, %v4993
        %v4995 = vlaneseq
        %v4996 = vshrl.u32 %v4995, 7
        %v4997 = vsub.s32 0, %v4996
        %v4998 = vrot.slane %v4989, %v4997
        %v4999 = vsub.f32 %v4783, %v4994
        %v5000 = vsub.f32 %v4784, %v4998
        %v5001 = vsub.f32 %v4785, %v4994
        %v5002 = vsub.f32 %v4786, %v4998
        %v5003 = vsub.f32 %v4787, %v4994
        %v5004 = vsub.f32 %v4788, %v4998
        %v5005 = vsub.f32 %v4789, %v4994
        %v5006 = vsub.f32 %v4790, %v4998
        %v5007 = vld [vmem:[%s19] sm:$0x3]
        %v5009 = vlaneseq
        %v5010 = vshrl.u32 %v5009, 7
        %v5011 = vsub.s32 0, %v5010
        %v5012 = vrot.slane %v5007, %v5011
        %v5013 = vlaneseq
        %v5014 = vshrl.u32 %v5013, 7
        %v5015 = vsub.s32 1, %v5014
        %v5016 = vrot.slane %v5007, %v5015
        %v5019 = vmul.f32 %v4987, %v5012
        %v5020 = vmul.f32 %v4989, %v5016
        %v5021 = vlaneseq
        %v5022 = vshrl.u32 %v5021, 7
        %v5023 = vsub.s32 1, %v5022
        %v5024 = vrot.slane %v5019, %v5023
        %v5025 = vlaneseq
        %v5026 = vshrl.u32 %v5025, 7
        %v5027 = vsub.s32 1, %v5026
        %v5028 = vrot.slane %v5020, %v5027
        %v5029 = vmul.f32 %v4999, %v5024
        %v5030 = vmul.f32 %v5000, %v5028
        %v5031 = vmul.f32 %v5001, %v5024
        %v5032 = vmul.f32 %v5002, %v5028
        %v5033 = vmul.f32 %v5003, %v5024
        %v5034 = vmul.f32 %v5004, %v5028
        %v5035 = vmul.f32 %v5005, %v5024
        %v5036 = vmul.f32 %v5006, %v5028
        %v5037 = vld [vmem:[%s20] sm:$0x3]
        %v5039 = vlaneseq
        %v5040 = vshrl.u32 %v5039, 7
        %v5041 = vsub.s32 0, %v5040
        %v5042 = vrot.slane %v5037, %v5041
        %v5043 = vlaneseq
        %v5044 = vshrl.u32 %v5043, 7
        %v5045 = vsub.s32 1, %v5044
        %v5046 = vrot.slane %v5037, %v5045
        %v5049 = vadd.f32 %v5029, %v5042
        %v5050 = vadd.f32 %v5030, %v5046
        %v5051 = vadd.f32 %v5031, %v5042
        %v5052 = vadd.f32 %v5032, %v5046
        %v5053 = vadd.f32 %v5033, %v5042
        %v5054 = vadd.f32 %v5034, %v5046
        %v5055 = vadd.f32 %v5035, %v5042
        %v5056 = vadd.f32 %v5036, %v5046
        %v5057 = vmax.f32 %v5049, 0.0
        %v5058 = vmax.f32 %v5050, 0.0
        %v5059 = vmax.f32 %v5051, 0.0
        %v5060 = vmax.f32 %v5052, 0.0
        %v5061 = vmax.f32 %v5053, 0.0
        %v5062 = vmax.f32 %v5054, 0.0
        %v5063 = vmax.f32 %v5055, 0.0
        %v5064 = vmax.f32 %v5056, 0.0
        %v5065 = vadd.f32 %v2859, %v5057
        %v5066 = vadd.f32 %v2860, %v5058
        %v5067 = vadd.f32 %v2861, %v5059
        %v5068 = vadd.f32 %v2862, %v5060
        %v5069 = vadd.f32 %v2863, %v5061
        %v5070 = vadd.f32 %v2864, %v5062
        %v5071 = vadd.f32 %v2865, %v5063
        %v5072 = vadd.f32 %v2866, %v5064
        %v5073 = vrot.slane %v5065, 7
        %v5074 = vrot.slane %v5066, 7
        %v5075 = vrot.slane %v5067, 7
        %v5076 = vrot.slane %v5068, 7
        %v5077 = vrot.slane %v5069, 7
        %v5078 = vrot.slane %v5070, 7
        %v5079 = vrot.slane %v5071, 7
        %v5080 = vrot.slane %v5072, 7
        %v5081 = vsel %vm1045, %v5077, %v5079
        %v5082 = vsel %vm1045, %v5078, %v5080
        %v5083 = vsel %vm1045, %v5075, %v5077
        %v5084 = vsel %vm1045, %v5076, %v5078
        %v5085 = vsel %vm1045, %v5073, %v5075
        %v5086 = vsel %vm1045, %v5074, %v5076
        %v5087 = vsel %vm1045, %v5079, %v5073
        %v5088 = vsel %vm1045, %v5080, %v5074
        %v5089 = vsel %vm1054, 0.0, %v5087
        %v5090 = vsel %vm1054, 0.0, %v5088
        %v5091 = vsel %vm1055, 0.0, %v5085
        %v5092 = vsel %vm1055, 0.0, %v5086
        %v5093 = vsel %vm1056, 0.0, %v5083
        %v5094 = vsel %vm1056, 0.0, %v5084
        %v5095 = vsel %vm1057, 0.0, %v5081
        %v5096 = vsel %vm1057, 0.0, %v5082
        %v5097 = vpack.c.bf16 %v5091, %v5089
        %v5098 = vpack.c.bf16 %v5092, %v5090
        %v5099 = vpack.c.bf16 %v5095, %v5093
        %v5100 = vpack.c.bf16 %v5096, %v5094
        %v5101 = vpack.c.bf16 %v5067, %v5065
        %v5102 = vpack.c.bf16 %v5068, %v5066
        %v5103 = vpack.c.bf16 %v5071, %v5069
        %v5104 = vpack.c.bf16 %v5072, %v5070
        %v5105 = vrot.slane %v5065, 1
        %v5106 = vrot.slane %v5066, 1
        %v5107 = vrot.slane %v5067, 1
        %v5108 = vrot.slane %v5068, 1
        %v5109 = vrot.slane %v5069, 1
        %v5110 = vrot.slane %v5070, 1
        %v5111 = vrot.slane %v5071, 1
        %v5112 = vrot.slane %v5072, 1
        %v5113 = vsel %vm1070, %v5109, %v5111
        %v5114 = vsel %vm1070, %v5110, %v5112
        %v5115 = vsel %vm1070, %v5107, %v5109
        %v5116 = vsel %vm1070, %v5108, %v5110
        %v5117 = vsel %vm1070, %v5105, %v5107
        %v5118 = vsel %vm1070, %v5106, %v5108
        %v5119 = vsel %vm1070, %v5111, %v5105
        %v5120 = vsel %vm1070, %v5112, %v5106
        %v5121 = vsel %vm1079, 0.0, %v5117
        %v5122 = vsel %vm1079, 0.0, %v5118
        %v5123 = vsel %vm1080, 0.0, %v5115
        %v5124 = vsel %vm1080, 0.0, %v5116
        %v5125 = vsel %vm1081, 0.0, %v5113
        %v5126 = vsel %vm1081, 0.0, %v5114
        %v5127 = vsel %vm1082, 0.0, %v5119
        %v5128 = vsel %vm1082, 0.0, %v5120
        %v5129 = vpack.c.bf16 %v5123, %v5121
        %v5130 = vpack.c.bf16 %v5124, %v5122
        %v5131 = vpack.c.bf16 %v5127, %v5125
        %v5132 = vpack.c.bf16 %v5128, %v5126
        %5133 = vmatprep.subr.bf16.mxu0 %v3103
        %5134 = vmatpush1.bf16.msra.mxu0 %v3102
        %5135 = vmatprep.subr.bf16.mxu0 %v3101
        %5136 = vmatpush1.bf16.msra.mxu0 %v3100
        %5137 = vmatprep.subr.bf16.mxu0 %v3099
        %5138 = vmatpush1.bf16.msra.mxu0 %v3098
        %5139 = vmatprep.subr.bf16.mxu0 %v3097
        %5140 = vmatpush1.bf16.msra.mxu0 %v3096
        %5141 = vmatprep.subr.bf16.mxu0 %v3095
        %5142 = vmatpush1.bf16.msra.mxu0 %v3094
        %5143 = vmatprep.subr.bf16.mxu0 %v3093
        %5144 = vmatpush1.bf16.msra.mxu0 %v3092
        %5145 = vmatprep.subr.bf16.mxu0 %v3091
        %5146 = vmatpush1.bf16.msra.mxu0 %v3090
        %5147 = vmatprep.subr.bf16.mxu0 %v3089
        %5148 = vmatpush1.bf16.msra.mxu0 %v3088
        %5149 = vmatprep.subr.bf16.mxu0 %v3119
        %5150 = vmatpush2.bf16.msra.mxu0 %v3118
        %5151 = vmatprep.subr.bf16.mxu0 %v3117
        %5152 = vmatpush2.bf16.msra.mxu0 %v3116
        %5153 = vmatprep.subr.bf16.mxu0 %v3115
        %5154 = vmatpush2.bf16.msra.mxu0 %v3114
        %5155 = vmatprep.subr.bf16.mxu0 %v3113
        %5156 = vmatpush2.bf16.msra.mxu0 %v3112
        %5157 = vmatprep.subr.bf16.mxu0 %v3111
        %5158 = vmatpush2.bf16.msra.mxu0 %v3110
        %5159 = vmatprep.subr.bf16.mxu0 %v3109
        %5160 = vmatpush2.bf16.msra.mxu0 %v3108
        %5161 = vmatprep.subr.bf16.mxu0 %v3107
        %5162 = vmatpush2.bf16.msra.mxu0 %v3106
        %5163 = vmatprep.subr.bf16.mxu0 %v3105
        %5164 = vmatpush2.bf16.msra.mxu0 %v3104
        %5165 = vmatprep.mubr.bf16.mxu0 %v5102
        %5166 = vmatmul.mubr.bf16.gmra.mxu0 %v5101
        %v5167 = vpop.f32.mrf.mxu0
        %v5168 = vadd.f32 0.0, %v5167
        %v5169 = vpop.f32.mrf.mxu0
        %v5170 = vadd.f32 0.0, %v5169
        %v5171 = vpop.f32.mrf.mxu0
        %v5172 = vadd.f32 0.0, %v5171
        %v5173 = vpop.f32.mrf.mxu0
        %v5174 = vadd.f32 0.0, %v5173
        %5175 = vmatprep.mubr.bf16.mxu0 %v5104
        %5176 = vmatmul.mubr.bf16.gmra.mxu0 %v5103
        %v5177 = vpop.f32.mrf.mxu0
        %v5178 = vadd.f32 0.0, %v5177
        %v5179 = vpop.f32.mrf.mxu0
        %v5180 = vadd.f32 0.0, %v5179
        %v5181 = vpop.f32.mrf.mxu0
        %v5182 = vadd.f32 0.0, %v5181
        %v5183 = vpop.f32.mrf.mxu0
        %v5184 = vadd.f32 0.0, %v5183
        %5185 = vdwg.mxu0
        %5186 = vmatprep.subr.bf16.mxu0 %v3316
        %5187 = vmatpush1.bf16.msra.mxu0 %v3315
        %5188 = vmatprep.subr.bf16.mxu0 %v3314
        %5189 = vmatpush1.bf16.msra.mxu0 %v3313
        %5190 = vmatprep.subr.bf16.mxu0 %v3312
        %5191 = vmatpush1.bf16.msra.mxu0 %v3311
        %5192 = vmatprep.subr.bf16.mxu0 %v3310
        %5193 = vmatpush1.bf16.msra.mxu0 %v3309
        %5194 = vmatprep.subr.bf16.mxu0 %v3308
        %5195 = vmatpush1.bf16.msra.mxu0 %v3307
        %5196 = vmatprep.subr.bf16.mxu0 %v3306
        %5197 = vmatpush1.bf16.msra.mxu0 %v3305
        %5198 = vmatprep.subr.bf16.mxu0 %v3304
        %5199 = vmatpush1.bf16.msra.mxu0 %v3303
        %5200 = vmatprep.subr.bf16.mxu0 %v3302
        %5201 = vmatpush1.bf16.msra.mxu0 %v3301
        %5202 = vmatprep.subr.bf16.mxu0 %v3332
        %5203 = vmatpush2.bf16.msra.mxu0 %v3331
        %5204 = vmatprep.subr.bf16.mxu0 %v3330
        %5205 = vmatpush2.bf16.msra.mxu0 %v3329
        %5206 = vmatprep.subr.bf16.mxu0 %v3328
        %5207 = vmatpush2.bf16.msra.mxu0 %v3327
        %5208 = vmatprep.subr.bf16.mxu0 %v3326
        %5209 = vmatpush2.bf16.msra.mxu0 %v3325
        %5210 = vmatprep.subr.bf16.mxu0 %v3324
        %5211 = vmatpush2.bf16.msra.mxu0 %v3323
        %5212 = vmatprep.subr.bf16.mxu0 %v3322
        %5213 = vmatpush2.bf16.msra.mxu0 %v3321
        %5214 = vmatprep.subr.bf16.mxu0 %v3320
        %5215 = vmatpush2.bf16.msra.mxu0 %v3319
        %5216 = vmatprep.subr.bf16.mxu0 %v3318
        %5217 = vmatpush2.bf16.msra.mxu0 %v3317
        %5218 = vmatprep.mubr.bf16.mxu0 %v5098
        %5219 = vmatmul.mubr.bf16.gmra.mxu0 %v5097
        %v5220 = vpop.f32.mrf.mxu0
        %v5221 = vadd.f32 %v5168, %v5220
        %v5222 = vpop.f32.mrf.mxu0
        %v5223 = vadd.f32 %v5170, %v5222
        %v5224 = vpop.f32.mrf.mxu0
        %v5225 = vadd.f32 %v5172, %v5224
        %v5226 = vpop.f32.mrf.mxu0
        %v5227 = vadd.f32 %v5174, %v5226
        %5228 = vmatprep.mubr.bf16.mxu0 %v5100
        %5229 = vmatmul.mubr.bf16.gmra.mxu0 %v5099
        %v5230 = vpop.f32.mrf.mxu0
        %v5231 = vadd.f32 %v5178, %v5230
        %v5232 = vpop.f32.mrf.mxu0
        %v5233 = vadd.f32 %v5180, %v5232
        %v5234 = vpop.f32.mrf.mxu0
        %v5235 = vadd.f32 %v5182, %v5234
        %v5236 = vpop.f32.mrf.mxu0
        %v5237 = vadd.f32 %v5184, %v5236
        %5238 = vdwg.mxu0
        %5239 = vmatprep.subr.bf16.mxu0 %v3562
        %5240 = vmatpush1.bf16.msra.mxu0 %v3561
        %5241 = vmatprep.subr.bf16.mxu0 %v3560
        %5242 = vmatpush1.bf16.msra.mxu0 %v3559
        %5243 = vmatprep.subr.bf16.mxu0 %v3558
        %5244 = vmatpush1.bf16.msra.mxu0 %v3557
        %5245 = vmatprep.subr.bf16.mxu0 %v3556
        %5246 = vmatpush1.bf16.msra.mxu0 %v3555
        %5247 = vmatprep.subr.bf16.mxu0 %v3554
        %5248 = vmatpush1.bf16.msra.mxu0 %v3553
        %5249 = vmatprep.subr.bf16.mxu0 %v3552
        %5250 = vmatpush1.bf16.msra.mxu0 %v3551
        %5251 = vmatprep.subr.bf16.mxu0 %v3550
        %5252 = vmatpush1.bf16.msra.mxu0 %v3549
        %5253 = vmatprep.subr.bf16.mxu0 %v3548
        %5254 = vmatpush1.bf16.msra.mxu0 %v3547
        %5255 = vmatprep.subr.bf16.mxu0 %v3578
        %5256 = vmatpush2.bf16.msra.mxu0 %v3577
        %5257 = vmatprep.subr.bf16.mxu0 %v3576
        %5258 = vmatpush2.bf16.msra.mxu0 %v3575
        %5259 = vmatprep.subr.bf16.mxu0 %v3574
        %5260 = vmatpush2.bf16.msra.mxu0 %v3573
        %5261 = vmatprep.subr.bf16.mxu0 %v3572
        %5262 = vmatpush2.bf16.msra.mxu0 %v3571
        %5263 = vmatprep.subr.bf16.mxu0 %v3570
        %5264 = vmatpush2.bf16.msra.mxu0 %v3569
        %5265 = vmatprep.subr.bf16.mxu0 %v3568
        %5266 = vmatpush2.bf16.msra.mxu0 %v3567
        %5267 = vmatprep.subr.bf16.mxu0 %v3566
        %5268 = vmatpush2.bf16.msra.mxu0 %v3565
        %5269 = vmatprep.subr.bf16.mxu0 %v3564
        %5270 = vmatpush2.bf16.msra.mxu0 %v3563
        %5271 = vmatprep.mubr.bf16.mxu0 %v5130
        %5272 = vmatmul.mubr.bf16.gmra.mxu0 %v5129
        %v5273 = vpop.f32.mrf.mxu0
        %v5274 = vadd.f32 0.0, %v5273
        %v5275 = vpop.f32.mrf.mxu0
        %v5276 = vadd.f32 0.0, %v5275
        %v5277 = vpop.f32.mrf.mxu0
        %v5278 = vadd.f32 0.0, %v5277
        %v5279 = vpop.f32.mrf.mxu0
        %v5280 = vadd.f32 0.0, %v5279
        %5281 = vmatprep.mubr.bf16.mxu0 %v5132
        %5282 = vmatmul.mubr.bf16.gmra.mxu0 %v5131
        %v5283 = vpop.f32.mrf.mxu0
        %v5284 = vadd.f32 0.0, %v5283
        %v5285 = vpop.f32.mrf.mxu0
        %v5286 = vadd.f32 0.0, %v5285
        %v5287 = vpop.f32.mrf.mxu0
        %v5288 = vadd.f32 0.0, %v5287
        %v5289 = vpop.f32.mrf.mxu0
        %v5290 = vadd.f32 0.0, %v5289
        %5291 = vdwg.mxu0
        %v5292 = vadd.f32 %v5221, %v5274
        %v5293 = vadd.f32 %v5223, %v5276
        %v5294 = vadd.f32 %v5225, %v5278
        %v5295 = vadd.f32 %v5227, %v5280
        %v5296 = vadd.f32 %v5231, %v5284
        %v5297 = vadd.f32 %v5233, %v5286
        %v5298 = vadd.f32 %v5235, %v5288
        %v5299 = vadd.f32 %v5237, %v5290
        %v5300 = vadd.f32 %v5292, %v3677
        %v5301 = vadd.f32 %v5293, %v3681
        %v5302 = vadd.f32 %v5294, %v3677
        %v5303 = vadd.f32 %v5295, %v3681
        %v5304 = vadd.f32 %v5296, %v3677
        %v5305 = vadd.f32 %v5297, %v3681
        %v5306 = vadd.f32 %v5298, %v3677
        %v5307 = vadd.f32 %v5299, %v3681
        %v5308 = vadd.f32 %v5300, %v5302
        %v5309 = vadd.f32 %v5308, %v5304
        %v5310 = vadd.f32 %v5309, %v5306
        %v5311 = vrot.slane %v5310, 4
        %v5312 = vadd.f32 %v5310, %v5311
        %v5313 = vrot.slane %v5312, 2
        %v5314 = vadd.f32 %v5312, %v5313
        %v5315 = vrot.slane %v5314, 1
        %v5316 = vadd.f32 %v5314, %v5315
        %v5317 = vadd.f32 %v5301, %v5303
        %v5318 = vadd.f32 %v5317, %v5305
        %v5319 = vadd.f32 %v5318, %v5307
        %v5320 = vrot.slane %v5319, 4
        %v5321 = vadd.f32 %v5319, %v5320
        %v5322 = vrot.slane %v5321, 2
        %v5323 = vadd.f32 %v5321, %v5322
        %v5324 = vrot.slane %v5323, 1
        %v5325 = vadd.f32 %v5323, %v5324
        %v5326 = vmul.f32 %v5300, %v5300
        %v5327 = vmul.f32 %v5301, %v5301
        %v5328 = vmul.f32 %v5302, %v5302
        %v5329 = vmul.f32 %v5303, %v5303
        %v5330 = vmul.f32 %v5304, %v5304
        %v5331 = vmul.f32 %v5305, %v5305
        %v5332 = vmul.f32 %v5306, %v5306
        %v5333 = vmul.f32 %v5307, %v5307
        %v5334 = vadd.f32 %v5326, %v5328
        %v5335 = vadd.f32 %v5334, %v5330
        %v5336 = vadd.f32 %v5335, %v5332
        %v5337 = vrot.slane %v5336, 4
        %v5338 = vadd.f32 %v5336, %v5337
        %v5339 = vrot.slane %v5338, 2
        %v5340 = vadd.f32 %v5338, %v5339
        %v5341 = vrot.slane %v5340, 1
        %v5342 = vadd.f32 %v5340, %v5341
        %v5343 = vadd.f32 %v5327, %v5329
        %v5344 = vadd.f32 %v5343, %v5331
        %v5345 = vadd.f32 %v5344, %v5333
        %v5346 = vrot.slane %v5345, 4
        %v5347 = vadd.f32 %v5345, %v5346
        %v5348 = vrot.slane %v5347, 2
        %v5349 = vadd.f32 %v5347, %v5348
        %v5350 = vrot.slane %v5349, 1
        %v5351 = vadd.f32 %v5349, %v5350
        %v5352 = vsel %vm1662, %v5316, %v5342
        %v5353 = vsel %vm1662, %v5325, %v5351
        %5354 = vmatprep.subr.mxu0 0.0
        %5355 = vmatpush1.msra.mxu0 %v2617
        %5356 = vmatprep.subr.mxu0 0.0
        %5357 = vmatpush1.msra.mxu0 %v2616
        %5358 = vmatprep.subr.mxu0 0.0
        %5359 = vmatpush1.msra.mxu0 %v2615
        %5360 = vmatprep.subr.mxu0 0.0
        %5361 = vmatpush1.msra.mxu0 %v2614
        %5362 = vmatprep.subr.mxu0 0.0
        %5363 = vmatpush1.msra.mxu0 %v2613
        %5364 = vmatprep.subr.mxu0 0.0
        %5365 = vmatpush1.msra.mxu0 %v2612
        %5366 = vmatprep.subr.mxu0 0.0
        %5367 = vmatpush1.msra.mxu0 %v2611
        %5368 = vmatprep.subr.mxu0 0.0
        %5369 = vmatpush1.msra.mxu0 %v2610
        %5370 = vmatprep.subr.mxu0 0.0
        %5371 = vmatpush1.msra.mxu0 %v2609
        %5372 = vmatprep.subr.mxu0 0.0
        %5373 = vmatpush1.msra.mxu0 %v2608
        %5374 = vmatprep.subr.mxu0 0.0
        %5375 = vmatpush1.msra.mxu0 %v2607
        %5376 = vmatprep.subr.mxu0 0.0
        %5377 = vmatpush1.msra.mxu0 %v2606
        %5378 = vmatprep.subr.mxu0 0.0
        %5379 = vmatpush1.msra.mxu0 %v2605
        %5380 = vmatprep.subr.mxu0 0.0
        %5381 = vmatpush1.msra.mxu0 %v2604
        %5382 = vmatprep.subr.mxu0 0.0
        %5383 = vmatpush1.msra.mxu0 %v2603
        %5384 = vmatprep.subr.mxu0 0.0
        %5385 = vmatpush1.msra.mxu0 %v2602
        %5386 = vmatprep.subr.mxu0 0.0
        %5387 = vmatpush2.msra.mxu0 %v2633
        %5388 = vmatprep.subr.mxu0 0.0
        %5389 = vmatpush2.msra.mxu0 %v2632
        %5390 = vmatprep.subr.mxu0 0.0
        %5391 = vmatpush2.msra.mxu0 %v2631
        %5392 = vmatprep.subr.mxu0 0.0
        %5393 = vmatpush2.msra.mxu0 %v2630
        %5394 = vmatprep.subr.mxu0 0.0
        %5395 = vmatpush2.msra.mxu0 %v2629
        %5396 = vmatprep.subr.mxu0 0.0
        %5397 = vmatpush2.msra.mxu0 %v2628
        %5398 = vmatprep.subr.mxu0 0.0
        %5399 = vmatpush2.msra.mxu0 %v2627
        %5400 = vmatprep.subr.mxu0 0.0
        %5401 = vmatpush2.msra.mxu0 %v2626
        %5402 = vmatprep.subr.mxu0 0.0
        %5403 = vmatpush2.msra.mxu0 %v2625
        %5404 = vmatprep.subr.mxu0 0.0
        %5405 = vmatpush2.msra.mxu0 %v2624
        %5406 = vmatprep.subr.mxu0 0.0
        %5407 = vmatpush2.msra.mxu0 %v2623
        %5408 = vmatprep.subr.mxu0 0.0
        %5409 = vmatpush2.msra.mxu0 %v2622
        %5410 = vmatprep.subr.mxu0 0.0
        %5411 = vmatpush2.msra.mxu0 %v2621
        %5412 = vmatprep.subr.mxu0 0.0
        %5413 = vmatpush2.msra.mxu0 %v2620
        %5414 = vmatprep.subr.mxu0 0.0
        %5415 = vmatpush2.msra.mxu0 %v2619
        %5416 = vmatprep.subr.mxu0 0.0
        %5417 = vmatpush2.msra.mxu0 %v2618
        %5418 = vmatprep.mubr.f32.mxu0 %v5353
        %5419 = vmatmul.mubr.f32.gmra.mxu0 %v5352
        %v5420 = vpop.f32.mrf.mxu0
        %v5421 = vadd.f32 0.0, %v5420
        %v5422 = vpop.f32.mrf.mxu0
        %5423 = vdwg.mxu0
        %v5424 = vmul.f32 %v5421, 0.001953125
        %v5425 = vmul.f32 %v5424, %v5424
        %v5427 = vrot.slane %v5425, 7
        %v5429 = vsub.f32 %v5424, %v5427
        %v5430 = vmax.f32 %v5429, 0.0
        %v5431 = vadd.f32 %v5430, 1e-05
        %v5432 = vrsqrt.pop %v5431
        %v5433 = vsel %vm1662, %v5424, %v5432
        %v5435 = vsel %vm2718, %v5433, 0
        %5437 = vmatprep.subr.mxu0 0.0
        %5438 = vmatpush1.msra.mxu0 0.0
        %5439 = vmatprep.subr.mxu0 0.0
        %5440 = vmatpush1.msra.mxu0 0.0
        %5441 = vmatprep.subr.mxu0 0.0
        %5442 = vmatpush1.msra.mxu0 0.0
        %5443 = vmatprep.subr.mxu0 0.0
        %5444 = vmatpush1.msra.mxu0 0.0
        %5445 = vmatprep.subr.mxu0 0.0
        %5446 = vmatpush1.msra.mxu0 0.0
        %5447 = vmatprep.subr.mxu0 0.0
        %5448 = vmatpush1.msra.mxu0 0.0
        %5449 = vmatprep.subr.mxu0 0.0
        %5450 = vmatpush1.msra.mxu0 0.0
        %5451 = vmatprep.subr.mxu0 0.0
        %5452 = vmatpush1.msra.mxu0 0.0
        %5453 = vmatprep.subr.mxu0 0.0
        %5454 = vmatpush1.msra.mxu0 0.0
        %5455 = vmatprep.subr.mxu0 0.0
        %5456 = vmatpush1.msra.mxu0 0.0
        %5457 = vmatprep.subr.mxu0 0.0
        %5458 = vmatpush1.msra.mxu0 0.0
        %5459 = vmatprep.subr.mxu0 0.0
        %5460 = vmatpush1.msra.mxu0 0.0
        %5461 = vmatprep.subr.mxu0 0.0
        %5462 = vmatpush1.msra.mxu0 0.0
        %5463 = vmatprep.subr.mxu0 0.0
        %5464 = vmatpush1.msra.mxu0 0.0
        %5465 = vmatprep.subr.mxu0 %v2717
        %5466 = vmatpush1.msra.mxu0 %v2716
        %5467 = vmatprep.subr.mxu0 %v2715
        %5468 = vmatpush1.msra.mxu0 %v2714
        %5469 = vmatprep.subr.mxu0 0.0
        %5470 = vmatpush2.msra.mxu0 0.0
        %5471 = vmatprep.subr.mxu0 0.0
        %5472 = vmatpush2.msra.mxu0 0.0
        %5473 = vmatprep.subr.mxu0 0.0
        %5474 = vmatpush2.msra.mxu0 0.0
        %5475 = vmatprep.subr.mxu0 0.0
        %5476 = vmatpush2.msra.mxu0 0.0
        %5477 = vmatprep.subr.mxu0 0.0
        %5478 = vmatpush2.msra.mxu0 0.0
        %5479 = vmatprep.subr.mxu0 0.0
        %5480 = vmatpush2.msra.mxu0 0.0
        %5481 = vmatprep.subr.mxu0 0.0
        %5482 = vmatpush2.msra.mxu0 0.0
        %5483 = vmatprep.subr.mxu0 0.0
        %5484 = vmatpush2.msra.mxu0 0.0
        %5485 = vmatprep.subr.mxu0 0.0
        %5486 = vmatpush2.msra.mxu0 0.0
        %5487 = vmatprep.subr.mxu0 0.0
        %5488 = vmatpush2.msra.mxu0 0.0
        %5489 = vmatprep.subr.mxu0 0.0
        %5490 = vmatpush2.msra.mxu0 0.0
        %5491 = vmatprep.subr.mxu0 0.0
        %5492 = vmatpush2.msra.mxu0 0.0
        %5493 = vmatprep.subr.mxu0 0.0
        %5494 = vmatpush2.msra.mxu0 0.0
        %5495 = vmatprep.subr.mxu0 0.0
        %5496 = vmatpush2.msra.mxu0 0.0
        %5497 = vmatprep.subr.mxu0 0.0
        %5498 = vmatpush2.msra.mxu0 0.0
        %5499 = vmatprep.subr.mxu0 0.0
        %5500 = vmatpush2.msra.mxu0 0.0
        %5501 = vmatprep.mubr.f32.mxu0 0.0
        %5502 = vmatmul.mubr.f32.gmra.mxu0 %v5435
        %v5503 = vpop.f32.mrf.mxu0
        %v5504 = vadd.f32 0.0, %v5503
        %v5505 = vpop.f32.mrf.mxu0
        %v5506 = vadd.f32 0.0, %v5505
        %5507 = vdwg.mxu0
        %v5508 = vlaneseq
        %v5509 = vshrl.u32 %v5508, 7
        %v5510 = vsub.s32 0, %v5509
        %v5511 = vrot.slane %v5504, %v5510
        %v5512 = vlaneseq
        %v5513 = vshrl.u32 %v5512, 7
        %v5514 = vsub.s32 0, %v5513
        %v5515 = vrot.slane %v5506, %v5514
        %v5516 = vsub.f32 %v5300, %v5511
        %v5517 = vsub.f32 %v5301, %v5515
        %v5518 = vsub.f32 %v5302, %v5511
        %v5519 = vsub.f32 %v5303, %v5515
        %v5520 = vsub.f32 %v5304, %v5511
        %v5521 = vsub.f32 %v5305, %v5515
        %v5522 = vsub.f32 %v5306, %v5511
        %v5523 = vsub.f32 %v5307, %v5515
        %v5524 = vmul.f32 %v5504, %v3913
        %v5525 = vmul.f32 %v5506, %v3917
        %v5526 = vlaneseq
        %v5527 = vshrl.u32 %v5526, 7
        %v5528 = vsub.s32 1, %v5527
        %v5529 = vrot.slane %v5524, %v5528
        %v5530 = vlaneseq
        %v5531 = vshrl.u32 %v5530, 7
        %v5532 = vsub.s32 1, %v5531
        %v5533 = vrot.slane %v5525, %v5532
        %v5534 = vmul.f32 %v5516, %v5529
        %v5535 = vmul.f32 %v5517, %v5533
        %v5536 = vmul.f32 %v5518, %v5529
        %v5537 = vmul.f32 %v5519, %v5533
        %v5538 = vmul.f32 %v5520, %v5529
        %v5539 = vmul.f32 %v5521, %v5533
        %v5540 = vmul.f32 %v5522, %v5529
        %v5541 = vmul.f32 %v5523, %v5533
        %v5542 = vadd.f32 %v5534, %v3943
        %v5543 = vadd.f32 %v5535, %v3947
        %v5544 = vadd.f32 %v5536, %v3943
        %v5545 = vadd.f32 %v5537, %v3947
        %v5546 = vadd.f32 %v5538, %v3943
        %v5547 = vadd.f32 %v5539, %v3947
        %v5548 = vadd.f32 %v5540, %v3943
        %v5549 = vadd.f32 %v5541, %v3947
        %v5550 = vmax.f32 %v5542, 0.0
        %v5551 = vmax.f32 %v5543, 0.0
        %v5552 = vmax.f32 %v5544, 0.0
        %v5553 = vmax.f32 %v5545, 0.0
        %v5554 = vmax.f32 %v5546, 0.0
        %v5555 = vmax.f32 %v5547, 0.0
        %v5556 = vmax.f32 %v5548, 0.0
        %v5557 = vmax.f32 %v5549, 0.0
        %v5558 = vrot.slane %v5550, 7
        %v5559 = vrot.slane %v5551, 7
        %v5560 = vrot.slane %v5552, 7
        %v5561 = vrot.slane %v5553, 7
        %v5562 = vrot.slane %v5554, 7
        %v5563 = vrot.slane %v5555, 7
        %v5564 = vrot.slane %v5556, 7
        %v5565 = vrot.slane %v5557, 7
        %v5566 = vsel %vm1045, %v5562, %v5564
        %v5567 = vsel %vm1045, %v5563, %v5565
        %v5568 = vsel %vm1045, %v5560, %v5562
        %v5569 = vsel %vm1045, %v5561, %v5563
        %v5570 = vsel %vm1045, %v5558, %v5560
        %v5571 = vsel %vm1045, %v5559, %v5561
        %v5572 = vsel %vm1045, %v5564, %v5558
        %v5573 = vsel %vm1045, %v5565, %v5559
        %v5574 = vsel %vm1054, 0.0, %v5572
        %v5575 = vsel %vm1054, 0.0, %v5573
        %v5576 = vsel %vm1055, 0.0, %v5570
        %v5577 = vsel %vm1055, 0.0, %v5571
        %v5578 = vsel %vm1056, 0.0, %v5568
        %v5579 = vsel %vm1056, 0.0, %v5569
        %v5580 = vsel %vm1057, 0.0, %v5566
        %v5581 = vsel %vm1057, 0.0, %v5567
        %v5582 = vpack.c.bf16 %v5576, %v5574
        %v5583 = vpack.c.bf16 %v5577, %v5575
        %v5584 = vpack.c.bf16 %v5580, %v5578
        %v5585 = vpack.c.bf16 %v5581, %v5579
        %v5586 = vpack.c.bf16 %v5552, %v5550
        %v5587 = vpack.c.bf16 %v5553, %v5551
        %v5588 = vpack.c.bf16 %v5556, %v5554
        %v5589 = vpack.c.bf16 %v5557, %v5555
        %v5590 = vrot.slane %v5550, 1
        %v5591 = vrot.slane %v5551, 1
        %v5592 = vrot.slane %v5552, 1
        %v5593 = vrot.slane %v5553, 1
        %v5594 = vrot.slane %v5554, 1
        %v5595 = vrot.slane %v5555, 1
        %v5596 = vrot.slane %v5556, 1
        %v5597 = vrot.slane %v5557, 1
        %v5598 = vsel %vm1070, %v5594, %v5596
        %v5599 = vsel %vm1070, %v5595, %v5597
        %v5600 = vsel %vm1070, %v5592, %v5594
        %v5601 = vsel %vm1070, %v5593, %v5595
        %v5602 = vsel %vm1070, %v5590, %v5592
        %v5603 = vsel %vm1070, %v5591, %v5593
        %v5604 = vsel %vm1070, %v5596, %v5590
        %v5605 = vsel %vm1070, %v5597, %v5591
        %v5606 = vsel %vm1079, 0.0, %v5602
        %v5607 = vsel %vm1079, 0.0, %v5603
        %v5608 = vsel %vm1080, 0.0, %v5600
        %v5609 = vsel %vm1080, 0.0, %v5601
        %v5610 = vsel %vm1081, 0.0, %v5598
        %v5611 = vsel %vm1081, 0.0, %v5599
        %v5612 = vsel %vm1082, 0.0, %v5604
        %v5613 = vsel %vm1082, 0.0, %v5605
        %v5614 = vpack.c.bf16 %v5608, %v5606
        %v5615 = vpack.c.bf16 %v5609, %v5607
        %v5616 = vpack.c.bf16 %v5612, %v5610
        %v5617 = vpack.c.bf16 %v5613, %v5611
        %5618 = vmatprep.subr.bf16.mxu0 %v4202
        %5619 = vmatpush1.bf16.msra.mxu0 %v4201
        %5620 = vmatprep.subr.bf16.mxu0 %v4200
        %5621 = vmatpush1.bf16.msra.mxu0 %v4199
        %5622 = vmatprep.subr.bf16.mxu0 %v4198
        %5623 = vmatpush1.bf16.msra.mxu0 %v4197
        %5624 = vmatprep.subr.bf16.mxu0 %v4196
        %5625 = vmatpush1.bf16.msra.mxu0 %v4195
        %5626 = vmatprep.subr.bf16.mxu0 %v4194
        %5627 = vmatpush1.bf16.msra.mxu0 %v4193
        %5628 = vmatprep.subr.bf16.mxu0 %v4192
        %5629 = vmatpush1.bf16.msra.mxu0 %v4191
        %5630 = vmatprep.subr.bf16.mxu0 %v4190
        %5631 = vmatpush1.bf16.msra.mxu0 %v4189
        %5632 = vmatprep.subr.bf16.mxu0 %v4188
        %5633 = vmatpush1.bf16.msra.mxu0 %v4187
        %5634 = vmatprep.subr.bf16.mxu0 %v4218
        %5635 = vmatpush2.bf16.msra.mxu0 %v4217
        %5636 = vmatprep.subr.bf16.mxu0 %v4216
        %5637 = vmatpush2.bf16.msra.mxu0 %v4215
        %5638 = vmatprep.subr.bf16.mxu0 %v4214
        %5639 = vmatpush2.bf16.msra.mxu0 %v4213
        %5640 = vmatprep.subr.bf16.mxu0 %v4212
        %5641 = vmatpush2.bf16.msra.mxu0 %v4211
        %5642 = vmatprep.subr.bf16.mxu0 %v4210
        %5643 = vmatpush2.bf16.msra.mxu0 %v4209
        %5644 = vmatprep.subr.bf16.mxu0 %v4208
        %5645 = vmatpush2.bf16.msra.mxu0 %v4207
        %5646 = vmatprep.subr.bf16.mxu0 %v4206
        %5647 = vmatpush2.bf16.msra.mxu0 %v4205
        %5648 = vmatprep.subr.bf16.mxu0 %v4204
        %5649 = vmatpush2.bf16.msra.mxu0 %v4203
        %5650 = vmatprep.mubr.bf16.mxu0 %v5587
        %5651 = vmatmul.mubr.bf16.gmra.mxu0 %v5586
        %v5652 = vpop.f32.mrf.mxu0
        %v5653 = vadd.f32 0.0, %v5652
        %v5654 = vpop.f32.mrf.mxu0
        %v5655 = vadd.f32 0.0, %v5654
        %v5656 = vpop.f32.mrf.mxu0
        %v5657 = vadd.f32 0.0, %v5656
        %v5658 = vpop.f32.mrf.mxu0
        %v5659 = vadd.f32 0.0, %v5658
        %5660 = vmatprep.mubr.bf16.mxu0 %v5589
        %5661 = vmatmul.mubr.bf16.gmra.mxu0 %v5588
        %v5662 = vpop.f32.mrf.mxu0
        %v5663 = vadd.f32 0.0, %v5662
        %v5664 = vpop.f32.mrf.mxu0
        %v5665 = vadd.f32 0.0, %v5664
        %v5666 = vpop.f32.mrf.mxu0
        %v5667 = vadd.f32 0.0, %v5666
        %v5668 = vpop.f32.mrf.mxu0
        %v5669 = vadd.f32 0.0, %v5668
        %5670 = vdwg.mxu0
        %5671 = vmatprep.subr.bf16.mxu0 %v4415
        %5672 = vmatpush1.bf16.msra.mxu0 %v4414
        %5673 = vmatprep.subr.bf16.mxu0 %v4413
        %5674 = vmatpush1.bf16.msra.mxu0 %v4412
        %5675 = vmatprep.subr.bf16.mxu0 %v4411
        %5676 = vmatpush1.bf16.msra.mxu0 %v4410
        %5677 = vmatprep.subr.bf16.mxu0 %v4409
        %5678 = vmatpush1.bf16.msra.mxu0 %v4408
        %5679 = vmatprep.subr.bf16.mxu0 %v4407
        %5680 = vmatpush1.bf16.msra.mxu0 %v4406
        %5681 = vmatprep.subr.bf16.mxu0 %v4405
        %5682 = vmatpush1.bf16.msra.mxu0 %v4404
        %5683 = vmatprep.subr.bf16.mxu0 %v4403
        %5684 = vmatpush1.bf16.msra.mxu0 %v4402
        %5685 = vmatprep.subr.bf16.mxu0 %v4401
        %5686 = vmatpush1.bf16.msra.mxu0 %v4400
        %5687 = vmatprep.subr.bf16.mxu0 %v4431
        %5688 = vmatpush2.bf16.msra.mxu0 %v4430
        %5689 = vmatprep.subr.bf16.mxu0 %v4429
        %5690 = vmatpush2.bf16.msra.mxu0 %v4428
        %5691 = vmatprep.subr.bf16.mxu0 %v4427
        %5692 = vmatpush2.bf16.msra.mxu0 %v4426
        %5693 = vmatprep.subr.bf16.mxu0 %v4425
        %5694 = vmatpush2.bf16.msra.mxu0 %v4424
        %5695 = vmatprep.subr.bf16.mxu0 %v4423
        %5696 = vmatpush2.bf16.msra.mxu0 %v4422
        %5697 = vmatprep.subr.bf16.mxu0 %v4421
        %5698 = vmatpush2.bf16.msra.mxu0 %v4420
        %5699 = vmatprep.subr.bf16.mxu0 %v4419
        %5700 = vmatpush2.bf16.msra.mxu0 %v4418
        %5701 = vmatprep.subr.bf16.mxu0 %v4417
        %5702 = vmatpush2.bf16.msra.mxu0 %v4416
        %5703 = vmatprep.mubr.bf16.mxu0 %v5583
        %5704 = vmatmul.mubr.bf16.gmra.mxu0 %v5582
        %v5705 = vpop.f32.mrf.mxu0
        %v5706 = vadd.f32 %v5653, %v5705
        %v5707 = vpop.f32.mrf.mxu0
        %v5708 = vadd.f32 %v5655, %v5707
        %v5709 = vpop.f32.mrf.mxu0
        %v5710 = vadd.f32 %v5657, %v5709
        %v5711 = vpop.f32.mrf.mxu0
        %v5712 = vadd.f32 %v5659, %v5711
        %5713 = vmatprep.mubr.bf16.mxu0 %v5585
        %5714 = vmatmul.mubr.bf16.gmra.mxu0 %v5584
        %v5715 = vpop.f32.mrf.mxu0
        %v5716 = vadd.f32 %v5663, %v5715
        %v5717 = vpop.f32.mrf.mxu0
        %v5718 = vadd.f32 %v5665, %v5717
        %v5719 = vpop.f32.mrf.mxu0
        %v5720 = vadd.f32 %v5667, %v5719
        %v5721 = vpop.f32.mrf.mxu0
        %v5722 = vadd.f32 %v5669, %v5721
        %5723 = vdwg.mxu0
        %5724 = vmatprep.subr.bf16.mxu0 %v4661
        %5725 = vmatpush1.bf16.msra.mxu0 %v4660
        %5726 = vmatprep.subr.bf16.mxu0 %v4659
        %5727 = vmatpush1.bf16.msra.mxu0 %v4658
        %5728 = vmatprep.subr.bf16.mxu0 %v4657
        %5729 = vmatpush1.bf16.msra.mxu0 %v4656
        %5730 = vmatprep.subr.bf16.mxu0 %v4655
        %5731 = vmatpush1.bf16.msra.mxu0 %v4654
        %5732 = vmatprep.subr.bf16.mxu0 %v4653
        %5733 = vmatpush1.bf16.msra.mxu0 %v4652
        %5734 = vmatprep.subr.bf16.mxu0 %v4651
        %5735 = vmatpush1.bf16.msra.mxu0 %v4650
        %5736 = vmatprep.subr.bf16.mxu0 %v4649
        %5737 = vmatpush1.bf16.msra.mxu0 %v4648
        %5738 = vmatprep.subr.bf16.mxu0 %v4647
        %5739 = vmatpush1.bf16.msra.mxu0 %v4646
        %5740 = vmatprep.subr.bf16.mxu0 %v4677
        %5741 = vmatpush2.bf16.msra.mxu0 %v4676
        %5742 = vmatprep.subr.bf16.mxu0 %v4675
        %5743 = vmatpush2.bf16.msra.mxu0 %v4674
        %5744 = vmatprep.subr.bf16.mxu0 %v4673
        %5745 = vmatpush2.bf16.msra.mxu0 %v4672
        %5746 = vmatprep.subr.bf16.mxu0 %v4671
        %5747 = vmatpush2.bf16.msra.mxu0 %v4670
        %5748 = vmatprep.subr.bf16.mxu0 %v4669
        %5749 = vmatpush2.bf16.msra.mxu0 %v4668
        %5750 = vmatprep.subr.bf16.mxu0 %v4667
        %5751 = vmatpush2.bf16.msra.mxu0 %v4666
        %5752 = vmatprep.subr.bf16.mxu0 %v4665
        %5753 = vmatpush2.bf16.msra.mxu0 %v4664
        %5754 = vmatprep.subr.bf16.mxu0 %v4663
        %5755 = vmatpush2.bf16.msra.mxu0 %v4662
        %5756 = vmatprep.mubr.bf16.mxu0 %v5615
        %5757 = vmatmul.mubr.bf16.gmra.mxu0 %v5614
        %v5758 = vpop.f32.mrf.mxu0
        %v5759 = vadd.f32 0.0, %v5758
        %v5760 = vpop.f32.mrf.mxu0
        %v5761 = vadd.f32 0.0, %v5760
        %v5762 = vpop.f32.mrf.mxu0
        %v5763 = vadd.f32 0.0, %v5762
        %v5764 = vpop.f32.mrf.mxu0
        %v5765 = vadd.f32 0.0, %v5764
        %5766 = vmatprep.mubr.bf16.mxu0 %v5617
        %5767 = vmatmul.mubr.bf16.gmra.mxu0 %v5616
        %v5768 = vpop.f32.mrf.mxu0
        %v5769 = vadd.f32 0.0, %v5768
        %v5770 = vpop.f32.mrf.mxu0
        %v5771 = vadd.f32 0.0, %v5770
        %v5772 = vpop.f32.mrf.mxu0
        %v5773 = vadd.f32 0.0, %v5772
        %v5774 = vpop.f32.mrf.mxu0
        %v5775 = vadd.f32 0.0, %v5774
        %5776 = vdwg.mxu0
        %v5777 = vadd.f32 %v5706, %v5759
        %v5778 = vadd.f32 %v5708, %v5761
        %v5779 = vadd.f32 %v5710, %v5763
        %v5780 = vadd.f32 %v5712, %v5765
        %v5781 = vadd.f32 %v5716, %v5769
        %v5782 = vadd.f32 %v5718, %v5771
        %v5783 = vadd.f32 %v5720, %v5773
        %v5784 = vadd.f32 %v5722, %v5775
        %v5785 = vadd.f32 %v5777, %v4776
        %v5786 = vadd.f32 %v5778, %v4780
        %v5787 = vadd.f32 %v5779, %v4776
        %v5788 = vadd.f32 %v5780, %v4780
        %v5789 = vadd.f32 %v5781, %v4776
        %v5790 = vadd.f32 %v5782, %v4780
        %v5791 = vadd.f32 %v5783, %v4776
        %v5792 = vadd.f32 %v5784, %v4780
        %v5793 = vadd.f32 %v5785, %v5787
        %v5794 = vadd.f32 %v5793, %v5789
        %v5795 = vadd.f32 %v5794, %v5791
        %v5796 = vrot.slane %v5795, 4
        %v5797 = vadd.f32 %v5795, %v5796
        %v5798 = vrot.slane %v5797, 2
        %v5799 = vadd.f32 %v5797, %v5798
        %v5800 = vrot.slane %v5799, 1
        %v5801 = vadd.f32 %v5799, %v5800
        %v5802 = vadd.f32 %v5786, %v5788
        %v5803 = vadd.f32 %v5802, %v5790
        %v5804 = vadd.f32 %v5803, %v5792
        %v5805 = vrot.slane %v5804, 4
        %v5806 = vadd.f32 %v5804, %v5805
        %v5807 = vrot.slane %v5806, 2
        %v5808 = vadd.f32 %v5806, %v5807
        %v5809 = vrot.slane %v5808, 1
        %v5810 = vadd.f32 %v5808, %v5809
        %v5811 = vmul.f32 %v5785, %v5785
        %v5812 = vmul.f32 %v5786, %v5786
        %v5813 = vmul.f32 %v5787, %v5787
        %v5814 = vmul.f32 %v5788, %v5788
        %v5815 = vmul.f32 %v5789, %v5789
        %v5816 = vmul.f32 %v5790, %v5790
        %v5817 = vmul.f32 %v5791, %v5791
        %v5818 = vmul.f32 %v5792, %v5792
        %v5819 = vadd.f32 %v5811, %v5813
        %v5820 = vadd.f32 %v5819, %v5815
        %v5821 = vadd.f32 %v5820, %v5817
        %v5822 = vrot.slane %v5821, 4
        %v5823 = vadd.f32 %v5821, %v5822
        %v5824 = vrot.slane %v5823, 2
        %v5825 = vadd.f32 %v5823, %v5824
        %v5826 = vrot.slane %v5825, 1
        %v5827 = vadd.f32 %v5825, %v5826
        %v5828 = vadd.f32 %v5812, %v5814
        %v5829 = vadd.f32 %v5828, %v5816
        %v5830 = vadd.f32 %v5829, %v5818
        %v5831 = vrot.slane %v5830, 4
        %v5832 = vadd.f32 %v5830, %v5831
        %v5833 = vrot.slane %v5832, 2
        %v5834 = vadd.f32 %v5832, %v5833
        %v5835 = vrot.slane %v5834, 1
        %v5836 = vadd.f32 %v5834, %v5835
        %v5837 = vsel %vm1662, %v5801, %v5827
        %v5838 = vsel %vm1662, %v5810, %v5836
        %5839 = vmatprep.subr.mxu0 0.0
        %5840 = vmatpush1.msra.mxu0 %v2617
        %5841 = vmatprep.subr.mxu0 0.0
        %5842 = vmatpush1.msra.mxu0 %v2616
        %5843 = vmatprep.subr.mxu0 0.0
        %5844 = vmatpush1.msra.mxu0 %v2615
        %5845 = vmatprep.subr.mxu0 0.0
        %5846 = vmatpush1.msra.mxu0 %v2614
        %5847 = vmatprep.subr.mxu0 0.0
        %5848 = vmatpush1.msra.mxu0 %v2613
        %5849 = vmatprep.subr.mxu0 0.0
        %5850 = vmatpush1.msra.mxu0 %v2612
        %5851 = vmatprep.subr.mxu0 0.0
        %5852 = vmatpush1.msra.mxu0 %v2611
        %5853 = vmatprep.subr.mxu0 0.0
        %5854 = vmatpush1.msra.mxu0 %v2610
        %5855 = vmatprep.subr.mxu0 0.0
        %5856 = vmatpush1.msra.mxu0 %v2609
        %5857 = vmatprep.subr.mxu0 0.0
        %5858 = vmatpush1.msra.mxu0 %v2608
        %5859 = vmatprep.subr.mxu0 0.0
        %5860 = vmatpush1.msra.mxu0 %v2607
        %5861 = vmatprep.subr.mxu0 0.0
        %5862 = vmatpush1.msra.mxu0 %v2606
        %5863 = vmatprep.subr.mxu0 0.0
        %5864 = vmatpush1.msra.mxu0 %v2605
        %5865 = vmatprep.subr.mxu0 0.0
        %5866 = vmatpush1.msra.mxu0 %v2604
        %5867 = vmatprep.subr.mxu0 0.0
        %5868 = vmatpush1.msra.mxu0 %v2603
        %5869 = vmatprep.subr.mxu0 0.0
        %5870 = vmatpush1.msra.mxu0 %v2602
        %5871 = vmatprep.subr.mxu0 0.0
        %5872 = vmatpush2.msra.mxu0 %v2633
        %5873 = vmatprep.subr.mxu0 0.0
        %5874 = vmatpush2.msra.mxu0 %v2632
        %5875 = vmatprep.subr.mxu0 0.0
        %5876 = vmatpush2.msra.mxu0 %v2631
        %5877 = vmatprep.subr.mxu0 0.0
        %5878 = vmatpush2.msra.mxu0 %v2630
        %5879 = vmatprep.subr.mxu0 0.0
        %5880 = vmatpush2.msra.mxu0 %v2629
        %5881 = vmatprep.subr.mxu0 0.0
        %5882 = vmatpush2.msra.mxu0 %v2628
        %5883 = vmatprep.subr.mxu0 0.0
        %5884 = vmatpush2.msra.mxu0 %v2627
        %5885 = vmatprep.subr.mxu0 0.0
        %5886 = vmatpush2.msra.mxu0 %v2626
        %5887 = vmatprep.subr.mxu0 0.0
        %5888 = vmatpush2.msra.mxu0 %v2625
        %5889 = vmatprep.subr.mxu0 0.0
        %5890 = vmatpush2.msra.mxu0 %v2624
        %5891 = vmatprep.subr.mxu0 0.0
        %5892 = vmatpush2.msra.mxu0 %v2623
        %5893 = vmatprep.subr.mxu0 0.0
        %5894 = vmatpush2.msra.mxu0 %v2622
        %5895 = vmatprep.subr.mxu0 0.0
        %5896 = vmatpush2.msra.mxu0 %v2621
        %5897 = vmatprep.subr.mxu0 0.0
        %5898 = vmatpush2.msra.mxu0 %v2620
        %5899 = vmatprep.subr.mxu0 0.0
        %5900 = vmatpush2.msra.mxu0 %v2619
        %5901 = vmatprep.subr.mxu0 0.0
        %5902 = vmatpush2.msra.mxu0 %v2618
        %5903 = vmatprep.mubr.f32.mxu0 %v5838
        %5904 = vmatmul.mubr.f32.gmra.mxu0 %v5837
        %v5905 = vpop.f32.mrf.mxu0
        %v5906 = vadd.f32 0.0, %v5905
        %v5907 = vpop.f32.mrf.mxu0
        %5908 = vdwg.mxu0
        %v5909 = vmul.f32 %v5906, 0.001953125
        %v5910 = vmul.f32 %v5909, %v5909
        %v5912 = vrot.slane %v5910, 7
        %v5914 = vsub.f32 %v5909, %v5912
        %v5915 = vmax.f32 %v5914, 0.0
        %v5916 = vadd.f32 %v5915, 1e-05
        %v5917 = vrsqrt.pop %v5916
        %v5918 = vsel %vm1662, %v5909, %v5917
        %v5920 = vsel %vm2718, %v5918, 0
        %5922 = vmatprep.subr.mxu0 0.0
        %5923 = vmatpush1.msra.mxu0 0.0
        %5924 = vmatprep.subr.mxu0 0.0
        %5925 = vmatpush1.msra.mxu0 0.0
        %5926 = vmatprep.subr.mxu0 0.0
        %5927 = vmatpush1.msra.mxu0 0.0
        %5928 = vmatprep.subr.mxu0 0.0
        %5929 = vmatpush1.msra.mxu0 0.0
        %5930 = vmatprep.subr.mxu0 0.0
        %5931 = vmatpush1.msra.mxu0 0.0
        %5932 = vmatprep.subr.mxu0 0.0
        %5933 = vmatpush1.msra.mxu0 0.0
        %5934 = vmatprep.subr.mxu0 0.0
        %5935 = vmatpush1.msra.mxu0 0.0
        %5936 = vmatprep.subr.mxu0 0.0
        %5937 = vmatpush1.msra.mxu0 0.0
        %5938 = vmatprep.subr.mxu0 0.0
        %5939 = vmatpush1.msra.mxu0 0.0
        %5940 = vmatprep.subr.mxu0 0.0
        %5941 = vmatpush1.msra.mxu0 0.0
        %5942 = vmatprep.subr.mxu0 0.0
        %5943 = vmatpush1.msra.mxu0 0.0
        %5944 = vmatprep.subr.mxu0 0.0
        %5945 = vmatpush1.msra.mxu0 0.0
        %5946 = vmatprep.subr.mxu0 0.0
        %5947 = vmatpush1.msra.mxu0 0.0
        %5948 = vmatprep.subr.mxu0 0.0
        %5949 = vmatpush1.msra.mxu0 0.0
        %5950 = vmatprep.subr.mxu0 %v2717
        %5951 = vmatpush1.msra.mxu0 %v2716
        %5952 = vmatprep.subr.mxu0 %v2715
        %5953 = vmatpush1.msra.mxu0 %v2714
        %5954 = vmatprep.subr.mxu0 0.0
        %5955 = vmatpush2.msra.mxu0 0.0
        %5956 = vmatprep.subr.mxu0 0.0
        %5957 = vmatpush2.msra.mxu0 0.0
        %5958 = vmatprep.subr.mxu0 0.0
        %5959 = vmatpush2.msra.mxu0 0.0
        %5960 = vmatprep.subr.mxu0 0.0
        %5961 = vmatpush2.msra.mxu0 0.0
        %5962 = vmatprep.subr.mxu0 0.0
        %5963 = vmatpush2.msra.mxu0 0.0
        %5964 = vmatprep.subr.mxu0 0.0
        %5965 = vmatpush2.msra.mxu0 0.0
        %5966 = vmatprep.subr.mxu0 0.0
        %5967 = vmatpush2.msra.mxu0 0.0
        %5968 = vmatprep.subr.mxu0 0.0
        %5969 = vmatpush2.msra.mxu0 0.0
        %5970 = vmatprep.subr.mxu0 0.0
        %5971 = vmatpush2.msra.mxu0 0.0
        %5972 = vmatprep.subr.mxu0 0.0
        %5973 = vmatpush2.msra.mxu0 0.0
        %5974 = vmatprep.subr.mxu0 0.0
        %5975 = vmatpush2.msra.mxu0 0.0
        %5976 = vmatprep.subr.mxu0 0.0
        %5977 = vmatpush2.msra.mxu0 0.0
        %5978 = vmatprep.subr.mxu0 0.0
        %5979 = vmatpush2.msra.mxu0 0.0
        %5980 = vmatprep.subr.mxu0 0.0
        %5981 = vmatpush2.msra.mxu0 0.0
        %5982 = vmatprep.subr.mxu0 0.0
        %5983 = vmatpush2.msra.mxu0 0.0
        %5984 = vmatprep.subr.mxu0 0.0
        %5985 = vmatpush2.msra.mxu0 0.0
        %5986 = vmatprep.mubr.f32.mxu0 0.0
        %5987 = vmatmul.mubr.f32.gmra.mxu0 %v5920
        %v5988 = vpop.f32.mrf.mxu0
        %v5989 = vadd.f32 0.0, %v5988
        %v5990 = vpop.f32.mrf.mxu0
        %v5991 = vadd.f32 0.0, %v5990
        %5992 = vdwg.mxu0
        %v5993 = vlaneseq
        %v5994 = vshrl.u32 %v5993, 7
        %v5995 = vsub.s32 0, %v5994
        %v5996 = vrot.slane %v5989, %v5995
        %v5997 = vlaneseq
        %v5998 = vshrl.u32 %v5997, 7
        %v5999 = vsub.s32 0, %v5998
        %v6000 = vrot.slane %v5991, %v5999
        %v6001 = vsub.f32 %v5785, %v5996
        %v6002 = vsub.f32 %v5786, %v6000
        %v6003 = vsub.f32 %v5787, %v5996
        %v6004 = vsub.f32 %v5788, %v6000
        %v6005 = vsub.f32 %v5789, %v5996
        %v6006 = vsub.f32 %v5790, %v6000
        %v6007 = vsub.f32 %v5791, %v5996
        %v6008 = vsub.f32 %v5792, %v6000
        %v6009 = vmul.f32 %v5989, %v5012
        %v6010 = vmul.f32 %v5991, %v5016
        %v6011 = vlaneseq
        %v6012 = vshrl.u32 %v6011, 7
        %v6013 = vsub.s32 1, %v6012
        %v6014 = vrot.slane %v6009, %v6013
        %v6015 = vlaneseq
        %v6016 = vshrl.u32 %v6015, 7
        %v6017 = vsub.s32 1, %v6016
        %v6018 = vrot.slane %v6010, %v6017
        %v6019 = vmul.f32 %v6001, %v6014
        %v6020 = vmul.f32 %v6002, %v6018
        %v6021 = vmul.f32 %v6003, %v6014
        %v6022 = vmul.f32 %v6004, %v6018
        %v6023 = vmul.f32 %v6005, %v6014
        %v6024 = vmul.f32 %v6006, %v6018
        %v6025 = vmul.f32 %v6007, %v6014
        %v6026 = vmul.f32 %v6008, %v6018
        %v6027 = vadd.f32 %v6019, %v5042
        %v6028 = vadd.f32 %v6020, %v5046
        %v6029 = vadd.f32 %v6021, %v5042
        %v6030 = vadd.f32 %v6022, %v5046
        %v6031 = vadd.f32 %v6023, %v5042
        %v6032 = vadd.f32 %v6024, %v5046
        %v6033 = vadd.f32 %v6025, %v5042
        %v6034 = vadd.f32 %v6026, %v5046
        %v6035 = vmax.f32 %v6027, 0.0
        %v6036 = vmax.f32 %v6028, 0.0
        %v6037 = vmax.f32 %v6029, 0.0
        %v6038 = vmax.f32 %v6030, 0.0
        %v6039 = vmax.f32 %v6031, 0.0
        %v6040 = vmax.f32 %v6032, 0.0
        %v6041 = vmax.f32 %v6033, 0.0
        %v6042 = vmax.f32 %v6034, 0.0
        %v6043 = vadd.f32 %v5065, %v6035
        %v6044 = vadd.f32 %v5066, %v6036
        %v6045 = vadd.f32 %v5067, %v6037
        %v6046 = vadd.f32 %v5068, %v6038
        %v6047 = vadd.f32 %v5069, %v6039
        %v6048 = vadd.f32 %v5070, %v6040
        %v6049 = vadd.f32 %v5071, %v6041
        %v6050 = vadd.f32 %v5072, %v6042
        %v6051 = vrot.slane %v6043, 7
        %v6052 = vrot.slane %v6044, 7
        %v6053 = vrot.slane %v6045, 7
        %v6054 = vrot.slane %v6046, 7
        %v6055 = vrot.slane %v6047, 7
        %v6056 = vrot.slane %v6048, 7
        %v6057 = vrot.slane %v6049, 7
        %v6058 = vrot.slane %v6050, 7
        %v6059 = vsel %vm1045, %v6055, %v6057
        %v6060 = vsel %vm1045, %v6056, %v6058
        %v6061 = vsel %vm1045, %v6053, %v6055
        %v6062 = vsel %vm1045, %v6054, %v6056
        %v6063 = vsel %vm1045, %v6051, %v6053
        %v6064 = vsel %vm1045, %v6052, %v6054
        %v6065 = vsel %vm1045, %v6057, %v6051
        %v6066 = vsel %vm1045, %v6058, %v6052
        %v6067 = vsel %vm1054, 0.0, %v6065
        %v6068 = vsel %vm1054, 0.0, %v6066
        %v6069 = vsel %vm1055, 0.0, %v6063
        %v6070 = vsel %vm1055, 0.0, %v6064
        %v6071 = vsel %vm1056, 0.0, %v6061
        %v6072 = vsel %vm1056, 0.0, %v6062
        %v6073 = vsel %vm1057, 0.0, %v6059
        %v6074 = vsel %vm1057, 0.0, %v6060
        %v6075 = vpack.c.bf16 %v6069, %v6067
        %v6076 = vpack.c.bf16 %v6070, %v6068
        %v6077 = vpack.c.bf16 %v6073, %v6071
        %v6078 = vpack.c.bf16 %v6074, %v6072
        %v6079 = vpack.c.bf16 %v6045, %v6043
        %v6080 = vpack.c.bf16 %v6046, %v6044
        %v6081 = vpack.c.bf16 %v6049, %v6047
        %v6082 = vpack.c.bf16 %v6050, %v6048
        %v6083 = vrot.slane %v6043, 1
        %v6084 = vrot.slane %v6044, 1
        %v6085 = vrot.slane %v6045, 1
        %v6086 = vrot.slane %v6046, 1
        %v6087 = vrot.slane %v6047, 1
        %v6088 = vrot.slane %v6048, 1
        %v6089 = vrot.slane %v6049, 1
        %v6090 = vrot.slane %v6050, 1
        %v6091 = vsel %vm1070, %v6087, %v6089
        %v6092 = vsel %vm1070, %v6088, %v6090
        %v6093 = vsel %vm1070, %v6085, %v6087
        %v6094 = vsel %vm1070, %v6086, %v6088
        %v6095 = vsel %vm1070, %v6083, %v6085
        %v6096 = vsel %vm1070, %v6084, %v6086
        %v6097 = vsel %vm1070, %v6089, %v6083
        %v6098 = vsel %vm1070, %v6090, %v6084
        %v6099 = vsel %vm1079, 0.0, %v6095
        %v6100 = vsel %vm1079, 0.0, %v6096
        %v6101 = vsel %vm1080, 0.0, %v6093
        %v6102 = vsel %vm1080, 0.0, %v6094
        %v6103 = vsel %vm1081, 0.0, %v6091
        %v6104 = vsel %vm1081, 0.0, %v6092
        %v6105 = vsel %vm1082, 0.0, %v6097
        %v6106 = vsel %vm1082, 0.0, %v6098
        %v6107 = vpack.c.bf16 %v6101, %v6099
        %v6108 = vpack.c.bf16 %v6102, %v6100
        %v6109 = vpack.c.bf16 %v6105, %v6103
        %v6110 = vpack.c.bf16 %v6106, %v6104
        %6111 = vmatprep.subr.bf16.mxu0 %v3103
        %6112 = vmatpush1.bf16.msra.mxu0 %v3102
        %6113 = vmatprep.subr.bf16.mxu0 %v3101
        %6114 = vmatpush1.bf16.msra.mxu0 %v3100
        %6115 = vmatprep.subr.bf16.mxu0 %v3099
        %6116 = vmatpush1.bf16.msra.mxu0 %v3098
        %6117 = vmatprep.subr.bf16.mxu0 %v3097
        %6118 = vmatpush1.bf16.msra.mxu0 %v3096
        %6119 = vmatprep.subr.bf16.mxu0 %v3095
        %6120 = vmatpush1.bf16.msra.mxu0 %v3094
        %6121 = vmatprep.subr.bf16.mxu0 %v3093
        %6122 = vmatpush1.bf16.msra.mxu0 %v3092
        %6123 = vmatprep.subr.bf16.mxu0 %v3091
        %6124 = vmatpush1.bf16.msra.mxu0 %v3090
        %6125 = vmatprep.subr.bf16.mxu0 %v3089
        %6126 = vmatpush1.bf16.msra.mxu0 %v3088
        %6127 = vmatprep.subr.bf16.mxu0 %v3119
        %6128 = vmatpush2.bf16.msra.mxu0 %v3118
        %6129 = vmatprep.subr.bf16.mxu0 %v3117
        %6130 = vmatpush2.bf16.msra.mxu0 %v3116
        %6131 = vmatprep.subr.bf16.mxu0 %v3115
        %6132 = vmatpush2.bf16.msra.mxu0 %v3114
        %6133 = vmatprep.subr.bf16.mxu0 %v3113
        %6134 = vmatpush2.bf16.msra.mxu0 %v3112
        %6135 = vmatprep.subr.bf16.mxu0 %v3111
        %6136 = vmatpush2.bf16.msra.mxu0 %v3110
        %6137 = vmatprep.subr.bf16.mxu0 %v3109
        %6138 = vmatpush2.bf16.msra.mxu0 %v3108
        %6139 = vmatprep.subr.bf16.mxu0 %v3107
        %6140 = vmatpush2.bf16.msra.mxu0 %v3106
        %6141 = vmatprep.subr.bf16.mxu0 %v3105
        %6142 = vmatpush2.bf16.msra.mxu0 %v3104
        %6143 = vmatprep.mubr.bf16.mxu0 %v6080
        %6144 = vmatmul.mubr.bf16.gmra.mxu0 %v6079
        %v6145 = vpop.f32.mrf.mxu0
        %v6146 = vadd.f32 0.0, %v6145
        %v6147 = vpop.f32.mrf.mxu0
        %v6148 = vadd.f32 0.0, %v6147
        %v6149 = vpop.f32.mrf.mxu0
        %v6150 = vadd.f32 0.0, %v6149
        %v6151 = vpop.f32.mrf.mxu0
        %v6152 = vadd.f32 0.0, %v6151
        %6153 = vmatprep.mubr.bf16.mxu0 %v6082
        %6154 = vmatmul.mubr.bf16.gmra.mxu0 %v6081
        %v6155 = vpop.f32.mrf.mxu0
        %v6156 = vadd.f32 0.0, %v6155
        %v6157 = vpop.f32.mrf.mxu0
        %v6158 = vadd.f32 0.0, %v6157
        %v6159 = vpop.f32.mrf.mxu0
        %v6160 = vadd.f32 0.0, %v6159
        %v6161 = vpop.f32.mrf.mxu0
        %v6162 = vadd.f32 0.0, %v6161
        %6163 = vdwg.mxu0
        %6164 = vmatprep.subr.bf16.mxu0 %v3316
        %6165 = vmatpush1.bf16.msra.mxu0 %v3315
        %6166 = vmatprep.subr.bf16.mxu0 %v3314
        %6167 = vmatpush1.bf16.msra.mxu0 %v3313
        %6168 = vmatprep.subr.bf16.mxu0 %v3312
        %6169 = vmatpush1.bf16.msra.mxu0 %v3311
        %6170 = vmatprep.subr.bf16.mxu0 %v3310
        %6171 = vmatpush1.bf16.msra.mxu0 %v3309
        %6172 = vmatprep.subr.bf16.mxu0 %v3308
        %6173 = vmatpush1.bf16.msra.mxu0 %v3307
        %6174 = vmatprep.subr.bf16.mxu0 %v3306
        %6175 = vmatpush1.bf16.msra.mxu0 %v3305
        %6176 = vmatprep.subr.bf16.mxu0 %v3304
        %6177 = vmatpush1.bf16.msra.mxu0 %v3303
        %6178 = vmatprep.subr.bf16.mxu0 %v3302
        %6179 = vmatpush1.bf16.msra.mxu0 %v3301
        %6180 = vmatprep.subr.bf16.mxu0 %v3332
        %6181 = vmatpush2.bf16.msra.mxu0 %v3331
        %6182 = vmatprep.subr.bf16.mxu0 %v3330
        %6183 = vmatpush2.bf16.msra.mxu0 %v3329
        %6184 = vmatprep.subr.bf16.mxu0 %v3328
        %6185 = vmatpush2.bf16.msra.mxu0 %v3327
        %6186 = vmatprep.subr.bf16.mxu0 %v3326
        %6187 = vmatpush2.bf16.msra.mxu0 %v3325
        %6188 = vmatprep.subr.bf16.mxu0 %v3324
        %6189 = vmatpush2.bf16.msra.mxu0 %v3323
        %6190 = vmatprep.subr.bf16.mxu0 %v3322
        %6191 = vmatpush2.bf16.msra.mxu0 %v3321
        %6192 = vmatprep.subr.bf16.mxu0 %v3320
        %6193 = vmatpush2.bf16.msra.mxu0 %v3319
        %6194 = vmatprep.subr.bf16.mxu0 %v3318
        %6195 = vmatpush2.bf16.msra.mxu0 %v3317
        %6196 = vmatprep.mubr.bf16.mxu0 %v6076
        %6197 = vmatmul.mubr.bf16.gmra.mxu0 %v6075
        %v6198 = vpop.f32.mrf.mxu0
        %v6199 = vadd.f32 %v6146, %v6198
        %v6200 = vpop.f32.mrf.mxu0
        %v6201 = vadd.f32 %v6148, %v6200
        %v6202 = vpop.f32.mrf.mxu0
        %v6203 = vadd.f32 %v6150, %v6202
        %v6204 = vpop.f32.mrf.mxu0
        %v6205 = vadd.f32 %v6152, %v6204
        %6206 = vmatprep.mubr.bf16.mxu0 %v6078
        %6207 = vmatmul.mubr.bf16.gmra.mxu0 %v6077
        %v6208 = vpop.f32.mrf.mxu0
        %v6209 = vadd.f32 %v6156, %v6208
        %v6210 = vpop.f32.mrf.mxu0
        %v6211 = vadd.f32 %v6158, %v6210
        %v6212 = vpop.f32.mrf.mxu0
        %v6213 = vadd.f32 %v6160, %v6212
        %v6214 = vpop.f32.mrf.mxu0
        %v6215 = vadd.f32 %v6162, %v6214
        %6216 = vdwg.mxu0
        %6217 = vmatprep.subr.bf16.mxu0 %v3562
        %6218 = vmatpush1.bf16.msra.mxu0 %v3561
        %6219 = vmatprep.subr.bf16.mxu0 %v3560
        %6220 = vmatpush1.bf16.msra.mxu0 %v3559
        %6221 = vmatprep.subr.bf16.mxu0 %v3558
        %6222 = vmatpush1.bf16.msra.mxu0 %v3557
        %6223 = vmatprep.subr.bf16.mxu0 %v3556
        %6224 = vmatpush1.bf16.msra.mxu0 %v3555
        %6225 = vmatprep.subr.bf16.mxu0 %v3554
        %6226 = vmatpush1.bf16.msra.mxu0 %v3553
        %6227 = vmatprep.subr.bf16.mxu0 %v3552
        %6228 = vmatpush1.bf16.msra.mxu0 %v3551
        %6229 = vmatprep.subr.bf16.mxu0 %v3550
        %6230 = vmatpush1.bf16.msra.mxu0 %v3549
        %6231 = vmatprep.subr.bf16.mxu0 %v3548
        %6232 = vmatpush1.bf16.msra.mxu0 %v3547
        %6233 = vmatprep.subr.bf16.mxu0 %v3578
        %6234 = vmatpush2.bf16.msra.mxu0 %v3577
        %6235 = vmatprep.subr.bf16.mxu0 %v3576
        %6236 = vmatpush2.bf16.msra.mxu0 %v3575
        %6237 = vmatprep.subr.bf16.mxu0 %v3574
        %6238 = vmatpush2.bf16.msra.mxu0 %v3573
        %6239 = vmatprep.subr.bf16.mxu0 %v3572
        %6240 = vmatpush2.bf16.msra.mxu0 %v3571
        %6241 = vmatprep.subr.bf16.mxu0 %v3570
        %6242 = vmatpush2.bf16.msra.mxu0 %v3569
        %6243 = vmatprep.subr.bf16.mxu0 %v3568
        %6244 = vmatpush2.bf16.msra.mxu0 %v3567
        %6245 = vmatprep.subr.bf16.mxu0 %v3566
        %6246 = vmatpush2.bf16.msra.mxu0 %v3565
        %6247 = vmatprep.subr.bf16.mxu0 %v3564
        %6248 = vmatpush2.bf16.msra.mxu0 %v3563
        %6249 = vmatprep.mubr.bf16.mxu0 %v6108
        %6250 = vmatmul.mubr.bf16.gmra.mxu0 %v6107
        %v6251 = vpop.f32.mrf.mxu0
        %v6252 = vadd.f32 0.0, %v6251
        %v6253 = vpop.f32.mrf.mxu0
        %v6254 = vadd.f32 0.0, %v6253
        %v6255 = vpop.f32.mrf.mxu0
        %v6256 = vadd.f32 0.0, %v6255
        %v6257 = vpop.f32.mrf.mxu0
        %v6258 = vadd.f32 0.0, %v6257
        %6259 = vmatprep.mubr.bf16.mxu0 %v6110
        %6260 = vmatmul.mubr.bf16.gmra.mxu0 %v6109
        %v6261 = vpop.f32.mrf.mxu0
        %v6262 = vadd.f32 0.0, %v6261
        %v6263 = vpop.f32.mrf.mxu0
        %v6264 = vadd.f32 0.0, %v6263
        %v6265 = vpop.f32.mrf.mxu0
        %v6266 = vadd.f32 0.0, %v6265
        %v6267 = vpop.f32.mrf.mxu0
        %v6268 = vadd.f32 0.0, %v6267
        %6269 = vdwg.mxu0
        %v6270 = vadd.f32 %v6199, %v6252
        %v6271 = vadd.f32 %v6201, %v6254
        %v6272 = vadd.f32 %v6203, %v6256
        %v6273 = vadd.f32 %v6205, %v6258
        %v6274 = vadd.f32 %v6209, %v6262
        %v6275 = vadd.f32 %v6211, %v6264
        %v6276 = vadd.f32 %v6213, %v6266
        %v6277 = vadd.f32 %v6215, %v6268
        %v6278 = vadd.f32 %v6270, %v3677
        %v6279 = vadd.f32 %v6271, %v3681
        %v6280 = vadd.f32 %v6272, %v3677
        %v6281 = vadd.f32 %v6273, %v3681
        %v6282 = vadd.f32 %v6274, %v3677
        %v6283 = vadd.f32 %v6275, %v3681
        %v6284 = vadd.f32 %v6276, %v3677
        %v6285 = vadd.f32 %v6277, %v3681
        %v6286 = vadd.f32 %v6278, %v6280
        %v6287 = vadd.f32 %v6286, %v6282
        %v6288 = vadd.f32 %v6287, %v6284
        %v6289 = vrot.slane %v6288, 4
        %v6290 = vadd.f32 %v6288, %v6289
        %v6291 = vrot.slane %v6290, 2
        %v6292 = vadd.f32 %v6290, %v6291
        %v6293 = vrot.slane %v6292, 1
        %v6294 = vadd.f32 %v6292, %v6293
        %v6295 = vadd.f32 %v6279, %v6281
        %v6296 = vadd.f32 %v6295, %v6283
        %v6297 = vadd.f32 %v6296, %v6285
        %v6298 = vrot.slane %v6297, 4
        %v6299 = vadd.f32 %v6297, %v6298
        %v6300 = vrot.slane %v6299, 2
        %v6301 = vadd.f32 %v6299, %v6300
        %v6302 = vrot.slane %v6301, 1
        %v6303 = vadd.f32 %v6301, %v6302
        %v6304 = vmul.f32 %v6278, %v6278
        %v6305 = vmul.f32 %v6279, %v6279
        %v6306 = vmul.f32 %v6280, %v6280
        %v6307 = vmul.f32 %v6281, %v6281
        %v6308 = vmul.f32 %v6282, %v6282
        %v6309 = vmul.f32 %v6283, %v6283
        %v6310 = vmul.f32 %v6284, %v6284
        %v6311 = vmul.f32 %v6285, %v6285
        %v6312 = vadd.f32 %v6304, %v6306
        %v6313 = vadd.f32 %v6312, %v6308
        %v6314 = vadd.f32 %v6313, %v6310
        %v6315 = vrot.slane %v6314, 4
        %v6316 = vadd.f32 %v6314, %v6315
        %v6317 = vrot.slane %v6316, 2
        %v6318 = vadd.f32 %v6316, %v6317
        %v6319 = vrot.slane %v6318, 1
        %v6320 = vadd.f32 %v6318, %v6319
        %v6321 = vadd.f32 %v6305, %v6307
        %v6322 = vadd.f32 %v6321, %v6309
        %v6323 = vadd.f32 %v6322, %v6311
        %v6324 = vrot.slane %v6323, 4
        %v6325 = vadd.f32 %v6323, %v6324
        %v6326 = vrot.slane %v6325, 2
        %v6327 = vadd.f32 %v6325, %v6326
        %v6328 = vrot.slane %v6327, 1
        %v6329 = vadd.f32 %v6327, %v6328
        %v6330 = vsel %vm1662, %v6294, %v6320
        %v6331 = vsel %vm1662, %v6303, %v6329
        %6332 = vmatprep.subr.mxu0 0.0
        %6333 = vmatpush1.msra.mxu0 %v2617
        %6334 = vmatprep.subr.mxu0 0.0
        %6335 = vmatpush1.msra.mxu0 %v2616
        %6336 = vmatprep.subr.mxu0 0.0
        %6337 = vmatpush1.msra.mxu0 %v2615
        %6338 = vmatprep.subr.mxu0 0.0
        %6339 = vmatpush1.msra.mxu0 %v2614
        %6340 = vmatprep.subr.mxu0 0.0
        %6341 = vmatpush1.msra.mxu0 %v2613
        %6342 = vmatprep.subr.mxu0 0.0
        %6343 = vmatpush1.msra.mxu0 %v2612
        %6344 = vmatprep.subr.mxu0 0.0
        %6345 = vmatpush1.msra.mxu0 %v2611
        %6346 = vmatprep.subr.mxu0 0.0
        %6347 = vmatpush1.msra.mxu0 %v2610
        %6348 = vmatprep.subr.mxu0 0.0
        %6349 = vmatpush1.msra.mxu0 %v2609
        %6350 = vmatprep.subr.mxu0 0.0
        %6351 = vmatpush1.msra.mxu0 %v2608
        %6352 = vmatprep.subr.mxu0 0.0
        %6353 = vmatpush1.msra.mxu0 %v2607
        %6354 = vmatprep.subr.mxu0 0.0
        %6355 = vmatpush1.msra.mxu0 %v2606
        %6356 = vmatprep.subr.mxu0 0.0
        %6357 = vmatpush1.msra.mxu0 %v2605
        %6358 = vmatprep.subr.mxu0 0.0
        %6359 = vmatpush1.msra.mxu0 %v2604
        %6360 = vmatprep.subr.mxu0 0.0
        %6361 = vmatpush1.msra.mxu0 %v2603
        %6362 = vmatprep.subr.mxu0 0.0
        %6363 = vmatpush1.msra.mxu0 %v2602
        %6364 = vmatprep.subr.mxu0 0.0
        %6365 = vmatpush2.msra.mxu0 %v2633
        %6366 = vmatprep.subr.mxu0 0.0
        %6367 = vmatpush2.msra.mxu0 %v2632
        %6368 = vmatprep.subr.mxu0 0.0
        %6369 = vmatpush2.msra.mxu0 %v2631
        %6370 = vmatprep.subr.mxu0 0.0
        %6371 = vmatpush2.msra.mxu0 %v2630
        %6372 = vmatprep.subr.mxu0 0.0
        %6373 = vmatpush2.msra.mxu0 %v2629
        %6374 = vmatprep.subr.mxu0 0.0
        %6375 = vmatpush2.msra.mxu0 %v2628
        %6376 = vmatprep.subr.mxu0 0.0
        %6377 = vmatpush2.msra.mxu0 %v2627
        %6378 = vmatprep.subr.mxu0 0.0
        %6379 = vmatpush2.msra.mxu0 %v2626
        %6380 = vmatprep.subr.mxu0 0.0
        %6381 = vmatpush2.msra.mxu0 %v2625
        %6382 = vmatprep.subr.mxu0 0.0
        %6383 = vmatpush2.msra.mxu0 %v2624
        %6384 = vmatprep.subr.mxu0 0.0
        %6385 = vmatpush2.msra.mxu0 %v2623
        %6386 = vmatprep.subr.mxu0 0.0
        %6387 = vmatpush2.msra.mxu0 %v2622
        %6388 = vmatprep.subr.mxu0 0.0
        %6389 = vmatpush2.msra.mxu0 %v2621
        %6390 = vmatprep.subr.mxu0 0.0
        %6391 = vmatpush2.msra.mxu0 %v2620
        %6392 = vmatprep.subr.mxu0 0.0
        %6393 = vmatpush2.msra.mxu0 %v2619
        %6394 = vmatprep.subr.mxu0 0.0
        %6395 = vmatpush2.msra.mxu0 %v2618
        %6396 = vmatprep.mubr.f32.mxu0 %v6331
        %6397 = vmatmul.mubr.f32.gmra.mxu0 %v6330
        %v6398 = vpop.f32.mrf.mxu0
        %v6399 = vadd.f32 0.0, %v6398
        %v6400 = vpop.f32.mrf.mxu0
        %6401 = vdwg.mxu0
        %v6402 = vmul.f32 %v6399, 0.001953125
        %v6403 = vmul.f32 %v6402, %v6402
        %v6405 = vrot.slane %v6403, 7
        %v6407 = vsub.f32 %v6402, %v6405
        %v6408 = vmax.f32 %v6407, 0.0
        %v6409 = vadd.f32 %v6408, 1e-05
        %v6410 = vrsqrt.pop %v6409
        %v6411 = vsel %vm1662, %v6402, %v6410
        %v6413 = vsel %vm2718, %v6411, 0
        %6415 = vmatprep.subr.mxu0 0.0
        %6416 = vmatpush1.msra.mxu0 0.0
        %6417 = vmatprep.subr.mxu0 0.0
        %6418 = vmatpush1.msra.mxu0 0.0
        %6419 = vmatprep.subr.mxu0 0.0
        %6420 = vmatpush1.msra.mxu0 0.0
        %6421 = vmatprep.subr.mxu0 0.0
        %6422 = vmatpush1.msra.mxu0 0.0
        %6423 = vmatprep.subr.mxu0 0.0
        %6424 = vmatpush1.msra.mxu0 0.0
        %6425 = vmatprep.subr.mxu0 0.0
        %6426 = vmatpush1.msra.mxu0 0.0
        %6427 = vmatprep.subr.mxu0 0.0
        %6428 = vmatpush1.msra.mxu0 0.0
        %6429 = vmatprep.subr.mxu0 0.0
        %6430 = vmatpush1.msra.mxu0 0.0
        %6431 = vmatprep.subr.mxu0 0.0
        %6432 = vmatpush1.msra.mxu0 0.0
        %6433 = vmatprep.subr.mxu0 0.0
        %6434 = vmatpush1.msra.mxu0 0.0
        %6435 = vmatprep.subr.mxu0 0.0
        %6436 = vmatpush1.msra.mxu0 0.0
        %6437 = vmatprep.subr.mxu0 0.0
        %6438 = vmatpush1.msra.mxu0 0.0
        %6439 = vmatprep.subr.mxu0 0.0
        %6440 = vmatpush1.msra.mxu0 0.0
        %6441 = vmatprep.subr.mxu0 0.0
        %6442 = vmatpush1.msra.mxu0 0.0
        %6443 = vmatprep.subr.mxu0 %v2717
        %6444 = vmatpush1.msra.mxu0 %v2716
        %6445 = vmatprep.subr.mxu0 %v2715
        %6446 = vmatpush1.msra.mxu0 %v2714
        %6447 = vmatprep.subr.mxu0 0.0
        %6448 = vmatpush2.msra.mxu0 0.0
        %6449 = vmatprep.subr.mxu0 0.0
        %6450 = vmatpush2.msra.mxu0 0.0
        %6451 = vmatprep.subr.mxu0 0.0
        %6452 = vmatpush2.msra.mxu0 0.0
        %6453 = vmatprep.subr.mxu0 0.0
        %6454 = vmatpush2.msra.mxu0 0.0
        %6455 = vmatprep.subr.mxu0 0.0
        %6456 = vmatpush2.msra.mxu0 0.0
        %6457 = vmatprep.subr.mxu0 0.0
        %6458 = vmatpush2.msra.mxu0 0.0
        %6459 = vmatprep.subr.mxu0 0.0
        %6460 = vmatpush2.msra.mxu0 0.0
        %6461 = vmatprep.subr.mxu0 0.0
        %6462 = vmatpush2.msra.mxu0 0.0
        %6463 = vmatprep.subr.mxu0 0.0
        %6464 = vmatpush2.msra.mxu0 0.0
        %6465 = vmatprep.subr.mxu0 0.0
        %6466 = vmatpush2.msra.mxu0 0.0
        %6467 = vmatprep.subr.mxu0 0.0
        %6468 = vmatpush2.msra.mxu0 0.0
        %6469 = vmatprep.subr.mxu0 0.0
        %6470 = vmatpush2.msra.mxu0 0.0
        %6471 = vmatprep.subr.mxu0 0.0
        %6472 = vmatpush2.msra.mxu0 0.0
        %6473 = vmatprep.subr.mxu0 0.0
        %6474 = vmatpush2.msra.mxu0 0.0
        %6475 = vmatprep.subr.mxu0 0.0
        %6476 = vmatpush2.msra.mxu0 0.0
        %6477 = vmatprep.subr.mxu0 0.0
        %6478 = vmatpush2.msra.mxu0 0.0
        %6479 = vmatprep.mubr.f32.mxu0 0.0
        %6480 = vmatmul.mubr.f32.gmra.mxu0 %v6413
        %v6481 = vpop.f32.mrf.mxu0
        %v6482 = vadd.f32 0.0, %v6481
        %v6483 = vpop.f32.mrf.mxu0
        %v6484 = vadd.f32 0.0, %v6483
        %6485 = vdwg.mxu0
        %v6486 = vlaneseq
        %v6487 = vshrl.u32 %v6486, 7
        %v6488 = vsub.s32 0, %v6487
        %v6489 = vrot.slane %v6482, %v6488
        %v6490 = vlaneseq
        %v6491 = vshrl.u32 %v6490, 7
        %v6492 = vsub.s32 0, %v6491
        %v6493 = vrot.slane %v6484, %v6492
        %v6494 = vsub.f32 %v6278, %v6489
        %v6495 = vsub.f32 %v6279, %v6493
        %v6496 = vsub.f32 %v6280, %v6489
        %v6497 = vsub.f32 %v6281, %v6493
        %v6498 = vsub.f32 %v6282, %v6489
        %v6499 = vsub.f32 %v6283, %v6493
        %v6500 = vsub.f32 %v6284, %v6489
        %v6501 = vsub.f32 %v6285, %v6493
        %v6502 = vmul.f32 %v6482, %v3913
        %v6503 = vmul.f32 %v6484, %v3917
        %v6504 = vlaneseq
        %v6505 = vshrl.u32 %v6504, 7
        %v6506 = vsub.s32 1, %v6505
        %v6507 = vrot.slane %v6502, %v6506
        %v6508 = vlaneseq
        %v6509 = vshrl.u32 %v6508, 7
        %v6510 = vsub.s32 1, %v6509
        %v6511 = vrot.slane %v6503, %v6510
        %v6512 = vmul.f32 %v6494, %v6507
        %v6513 = vmul.f32 %v6495, %v6511
        %v6514 = vmul.f32 %v6496, %v6507
        %v6515 = vmul.f32 %v6497, %v6511
        %v6516 = vmul.f32 %v6498, %v6507
        %v6517 = vmul.f32 %v6499, %v6511
        %v6518 = vmul.f32 %v6500, %v6507
        %v6519 = vmul.f32 %v6501, %v6511
        %v6520 = vadd.f32 %v6512, %v3943
        %v6521 = vadd.f32 %v6513, %v3947
        %v6522 = vadd.f32 %v6514, %v3943
        %v6523 = vadd.f32 %v6515, %v3947
        %v6524 = vadd.f32 %v6516, %v3943
        %v6525 = vadd.f32 %v6517, %v3947
        %v6526 = vadd.f32 %v6518, %v3943
        %v6527 = vadd.f32 %v6519, %v3947
        %v6528 = vmax.f32 %v6520, 0.0
        %v6529 = vmax.f32 %v6521, 0.0
        %v6530 = vmax.f32 %v6522, 0.0
        %v6531 = vmax.f32 %v6523, 0.0
        %v6532 = vmax.f32 %v6524, 0.0
        %v6533 = vmax.f32 %v6525, 0.0
        %v6534 = vmax.f32 %v6526, 0.0
        %v6535 = vmax.f32 %v6527, 0.0
        %v6536 = vrot.slane %v6528, 7
        %v6537 = vrot.slane %v6529, 7
        %v6538 = vrot.slane %v6530, 7
        %v6539 = vrot.slane %v6531, 7
        %v6540 = vrot.slane %v6532, 7
        %v6541 = vrot.slane %v6533, 7
        %v6542 = vrot.slane %v6534, 7
        %v6543 = vrot.slane %v6535, 7
        %v6544 = vsel %vm1045, %v6540, %v6542
        %v6545 = vsel %vm1045, %v6541, %v6543
        %v6546 = vsel %vm1045, %v6538, %v6540
        %v6547 = vsel %vm1045, %v6539, %v6541
        %v6548 = vsel %vm1045, %v6536, %v6538
        %v6549 = vsel %vm1045, %v6537, %v6539
        %v6550 = vsel %vm1045, %v6542, %v6536
        %v6551 = vsel %vm1045, %v6543, %v6537
        %v6552 = vsel %vm1054, 0.0, %v6550
        %v6553 = vsel %vm1054, 0.0, %v6551
        %v6554 = vsel %vm1055, 0.0, %v6548
        %v6555 = vsel %vm1055, 0.0, %v6549
        %v6556 = vsel %vm1056, 0.0, %v6546
        %v6557 = vsel %vm1056, 0.0, %v6547
        %v6558 = vsel %vm1057, 0.0, %v6544
        %v6559 = vsel %vm1057, 0.0, %v6545
        %v6560 = vpack.c.bf16 %v6554, %v6552
        %v6561 = vpack.c.bf16 %v6555, %v6553
        %v6562 = vpack.c.bf16 %v6558, %v6556
        %v6563 = vpack.c.bf16 %v6559, %v6557
        %v6564 = vpack.c.bf16 %v6530, %v6528
        %v6565 = vpack.c.bf16 %v6531, %v6529
        %v6566 = vpack.c.bf16 %v6534, %v6532
        %v6567 = vpack.c.bf16 %v6535, %v6533
        %v6568 = vrot.slane %v6528, 1
        %v6569 = vrot.slane %v6529, 1
        %v6570 = vrot.slane %v6530, 1
        %v6571 = vrot.slane %v6531, 1
        %v6572 = vrot.slane %v6532, 1
        %v6573 = vrot.slane %v6533, 1
        %v6574 = vrot.slane %v6534, 1
        %v6575 = vrot.slane %v6535, 1
        %v6576 = vsel %vm1070, %v6572, %v6574
        %v6577 = vsel %vm1070, %v6573, %v6575
        %v6578 = vsel %vm1070, %v6570, %v6572
        %v6579 = vsel %vm1070, %v6571, %v6573
        %v6580 = vsel %vm1070, %v6568, %v6570
        %v6581 = vsel %vm1070, %v6569, %v6571
        %v6582 = vsel %vm1070, %v6574, %v6568
        %v6583 = vsel %vm1070, %v6575, %v6569
        %v6584 = vsel %vm1079, 0.0, %v6580
        %v6585 = vsel %vm1079, 0.0, %v6581
        %v6586 = vsel %vm1080, 0.0, %v6578
        %v6587 = vsel %vm1080, 0.0, %v6579
        %v6588 = vsel %vm1081, 0.0, %v6576
        %v6589 = vsel %vm1081, 0.0, %v6577
        %v6590 = vsel %vm1082, 0.0, %v6582
        %v6591 = vsel %vm1082, 0.0, %v6583
        %v6592 = vpack.c.bf16 %v6586, %v6584
        %v6593 = vpack.c.bf16 %v6587, %v6585
        %v6594 = vpack.c.bf16 %v6590, %v6588
        %v6595 = vpack.c.bf16 %v6591, %v6589
        %6596 = vmatprep.subr.bf16.mxu0 %v4202
        %6597 = vmatpush1.bf16.msra.mxu0 %v4201
        %6598 = vmatprep.subr.bf16.mxu0 %v4200
        %6599 = vmatpush1.bf16.msra.mxu0 %v4199
        %6600 = vmatprep.subr.bf16.mxu0 %v4198
        %6601 = vmatpush1.bf16.msra.mxu0 %v4197
        %6602 = vmatprep.subr.bf16.mxu0 %v4196
        %6603 = vmatpush1.bf16.msra.mxu0 %v4195
        %6604 = vmatprep.subr.bf16.mxu0 %v4194
        %6605 = vmatpush1.bf16.msra.mxu0 %v4193
        %6606 = vmatprep.subr.bf16.mxu0 %v4192
        %6607 = vmatpush1.bf16.msra.mxu0 %v4191
        %6608 = vmatprep.subr.bf16.mxu0 %v4190
        %6609 = vmatpush1.bf16.msra.mxu0 %v4189
        %6610 = vmatprep.subr.bf16.mxu0 %v4188
        %6611 = vmatpush1.bf16.msra.mxu0 %v4187
        %6612 = vmatprep.subr.bf16.mxu0 %v4218
        %6613 = vmatpush2.bf16.msra.mxu0 %v4217
        %6614 = vmatprep.subr.bf16.mxu0 %v4216
        %6615 = vmatpush2.bf16.msra.mxu0 %v4215
        %6616 = vmatprep.subr.bf16.mxu0 %v4214
        %6617 = vmatpush2.bf16.msra.mxu0 %v4213
        %6618 = vmatprep.subr.bf16.mxu0 %v4212
        %6619 = vmatpush2.bf16.msra.mxu0 %v4211
        %6620 = vmatprep.subr.bf16.mxu0 %v4210
        %6621 = vmatpush2.bf16.msra.mxu0 %v4209
        %6622 = vmatprep.subr.bf16.mxu0 %v4208
        %6623 = vmatpush2.bf16.msra.mxu0 %v4207
        %6624 = vmatprep.subr.bf16.mxu0 %v4206
        %6625 = vmatpush2.bf16.msra.mxu0 %v4205
        %6626 = vmatprep.subr.bf16.mxu0 %v4204
        %6627 = vmatpush2.bf16.msra.mxu0 %v4203
        %6628 = vmatprep.mubr.bf16.mxu0 %v6565
        %6629 = vmatmul.mubr.bf16.gmra.mxu0 %v6564
        %v6630 = vpop.f32.mrf.mxu0
        %v6631 = vadd.f32 0.0, %v6630
        %v6632 = vpop.f32.mrf.mxu0
        %v6633 = vadd.f32 0.0, %v6632
        %v6634 = vpop.f32.mrf.mxu0
        %v6635 = vadd.f32 0.0, %v6634
        %v6636 = vpop.f32.mrf.mxu0
        %v6637 = vadd.f32 0.0, %v6636
        %6638 = vmatprep.mubr.bf16.mxu0 %v6567
        %6639 = vmatmul.mubr.bf16.gmra.mxu0 %v6566
        %v6640 = vpop.f32.mrf.mxu0
        %v6641 = vadd.f32 0.0, %v6640
        %v6642 = vpop.f32.mrf.mxu0
        %v6643 = vadd.f32 0.0, %v6642
        %v6644 = vpop.f32.mrf.mxu0
        %v6645 = vadd.f32 0.0, %v6644
        %v6646 = vpop.f32.mrf.mxu0
        %v6647 = vadd.f32 0.0, %v6646
        %6648 = vdwg.mxu0
        %6649 = vmatprep.subr.bf16.mxu0 %v4415
        %6650 = vmatpush1.bf16.msra.mxu0 %v4414
        %6651 = vmatprep.subr.bf16.mxu0 %v4413
        %6652 = vmatpush1.bf16.msra.mxu0 %v4412
        %6653 = vmatprep.subr.bf16.mxu0 %v4411
        %6654 = vmatpush1.bf16.msra.mxu0 %v4410
        %6655 = vmatprep.subr.bf16.mxu0 %v4409
        %6656 = vmatpush1.bf16.msra.mxu0 %v4408
        %6657 = vmatprep.subr.bf16.mxu0 %v4407
        %6658 = vmatpush1.bf16.msra.mxu0 %v4406
        %6659 = vmatprep.subr.bf16.mxu0 %v4405
        %6660 = vmatpush1.bf16.msra.mxu0 %v4404
        %6661 = vmatprep.subr.bf16.mxu0 %v4403
        %6662 = vmatpush1.bf16.msra.mxu0 %v4402
        %6663 = vmatprep.subr.bf16.mxu0 %v4401
        %6664 = vmatpush1.bf16.msra.mxu0 %v4400
        %6665 = vmatprep.subr.bf16.mxu0 %v4431
        %6666 = vmatpush2.bf16.msra.mxu0 %v4430
        %6667 = vmatprep.subr.bf16.mxu0 %v4429
        %6668 = vmatpush2.bf16.msra.mxu0 %v4428
        %6669 = vmatprep.subr.bf16.mxu0 %v4427
        %6670 = vmatpush2.bf16.msra.mxu0 %v4426
        %6671 = vmatprep.subr.bf16.mxu0 %v4425
        %6672 = vmatpush2.bf16.msra.mxu0 %v4424
        %6673 = vmatprep.subr.bf16.mxu0 %v4423
        %6674 = vmatpush2.bf16.msra.mxu0 %v4422
        %6675 = vmatprep.subr.bf16.mxu0 %v4421
        %6676 = vmatpush2.bf16.msra.mxu0 %v4420
        %6677 = vmatprep.subr.bf16.mxu0 %v4419
        %6678 = vmatpush2.bf16.msra.mxu0 %v4418
        %6679 = vmatprep.subr.bf16.mxu0 %v4417
        %6680 = vmatpush2.bf16.msra.mxu0 %v4416
        %6681 = vmatprep.mubr.bf16.mxu0 %v6561
        %6682 = vmatmul.mubr.bf16.gmra.mxu0 %v6560
        %v6683 = vpop.f32.mrf.mxu0
        %v6684 = vadd.f32 %v6631, %v6683
        %v6685 = vpop.f32.mrf.mxu0
        %v6686 = vadd.f32 %v6633, %v6685
        %v6687 = vpop.f32.mrf.mxu0
        %v6688 = vadd.f32 %v6635, %v6687
        %v6689 = vpop.f32.mrf.mxu0
        %v6690 = vadd.f32 %v6637, %v6689
        %6691 = vmatprep.mubr.bf16.mxu0 %v6563
        %6692 = vmatmul.mubr.bf16.gmra.mxu0 %v6562
        %v6693 = vpop.f32.mrf.mxu0
        %v6694 = vadd.f32 %v6641, %v6693
        %v6695 = vpop.f32.mrf.mxu0
        %v6696 = vadd.f32 %v6643, %v6695
        %v6697 = vpop.f32.mrf.mxu0
        %v6698 = vadd.f32 %v6645, %v6697
        %v6699 = vpop.f32.mrf.mxu0
        %v6700 = vadd.f32 %v6647, %v6699
        %6701 = vdwg.mxu0
        %6702 = vmatprep.subr.bf16.mxu0 %v4661
        %6703 = vmatpush1.bf16.msra.mxu0 %v4660
        %6704 = vmatprep.subr.bf16.mxu0 %v4659
        %6705 = vmatpush1.bf16.msra.mxu0 %v4658
        %6706 = vmatprep.subr.bf16.mxu0 %v4657
        %6707 = vmatpush1.bf16.msra.mxu0 %v4656
        %6708 = vmatprep.subr.bf16.mxu0 %v4655
        %6709 = vmatpush1.bf16.msra.mxu0 %v4654
        %6710 = vmatprep.subr.bf16.mxu0 %v4653
        %6711 = vmatpush1.bf16.msra.mxu0 %v4652
        %6712 = vmatprep.subr.bf16.mxu0 %v4651
        %6713 = vmatpush1.bf16.msra.mxu0 %v4650
        %6714 = vmatprep.subr.bf16.mxu0 %v4649
        %6715 = vmatpush1.bf16.msra.mxu0 %v4648
        %6716 = vmatprep.subr.bf16.mxu0 %v4647
        %6717 = vmatpush1.bf16.msra.mxu0 %v4646
        %6718 = vmatprep.subr.bf16.mxu0 %v4677
        %6719 = vmatpush2.bf16.msra.mxu0 %v4676
        %6720 = vmatprep.subr.bf16.mxu0 %v4675
        %6721 = vmatpush2.bf16.msra.mxu0 %v4674
        %6722 = vmatprep.subr.bf16.mxu0 %v4673
        %6723 = vmatpush2.bf16.msra.mxu0 %v4672
        %6724 = vmatprep.subr.bf16.mxu0 %v4671
        %6725 = vmatpush2.bf16.msra.mxu0 %v4670
        %6726 = vmatprep.subr.bf16.mxu0 %v4669
        %6727 = vmatpush2.bf16.msra.mxu0 %v4668
        %6728 = vmatprep.subr.bf16.mxu0 %v4667
        %6729 = vmatpush2.bf16.msra.mxu0 %v4666
        %6730 = vmatprep.subr.bf16.mxu0 %v4665
        %6731 = vmatpush2.bf16.msra.mxu0 %v4664
        %6732 = vmatprep.subr.bf16.mxu0 %v4663
        %6733 = vmatpush2.bf16.msra.mxu0 %v4662
        %6734 = vmatprep.mubr.bf16.mxu0 %v6593
        %6735 = vmatmul.mubr.bf16.gmra.mxu0 %v6592
        %v6736 = vpop.f32.mrf.mxu0
        %v6737 = vadd.f32 0.0, %v6736
        %v6738 = vpop.f32.mrf.mxu0
        %v6739 = vadd.f32 0.0, %v6738
        %v6740 = vpop.f32.mrf.mxu0
        %v6741 = vadd.f32 0.0, %v6740
        %v6742 = vpop.f32.mrf.mxu0
        %v6743 = vadd.f32 0.0, %v6742
        %6744 = vmatprep.mubr.bf16.mxu0 %v6595
        %6745 = vmatmul.mubr.bf16.gmra.mxu0 %v6594
        %v6746 = vpop.f32.mrf.mxu0
        %v6747 = vadd.f32 0.0, %v6746
        %v6748 = vpop.f32.mrf.mxu0
        %v6749 = vadd.f32 0.0, %v6748
        %v6750 = vpop.f32.mrf.mxu0
        %v6751 = vadd.f32 0.0, %v6750
        %v6752 = vpop.f32.mrf.mxu0
        %v6753 = vadd.f32 0.0, %v6752
        %6754 = vdwg.mxu0
        %v6755 = vadd.f32 %v6684, %v6737
        %v6756 = vadd.f32 %v6686, %v6739
        %v6757 = vadd.f32 %v6688, %v6741
        %v6758 = vadd.f32 %v6690, %v6743
        %v6759 = vadd.f32 %v6694, %v6747
        %v6760 = vadd.f32 %v6696, %v6749
        %v6761 = vadd.f32 %v6698, %v6751
        %v6762 = vadd.f32 %v6700, %v6753
        %v6763 = vadd.f32 %v6755, %v4776
        %v6764 = vadd.f32 %v6756, %v4780
        %v6765 = vadd.f32 %v6757, %v4776
        %v6766 = vadd.f32 %v6758, %v4780
        %v6767 = vadd.f32 %v6759, %v4776
        %v6768 = vadd.f32 %v6760, %v4780
        %v6769 = vadd.f32 %v6761, %v4776
        %v6770 = vadd.f32 %v6762, %v4780
        %v6771 = vadd.f32 %v6763, %v6765
        %v6772 = vadd.f32 %v6771, %v6767
        %v6773 = vadd.f32 %v6772, %v6769
        %v6774 = vrot.slane %v6773, 4
        %v6775 = vadd.f32 %v6773, %v6774
        %v6776 = vrot.slane %v6775, 2
        %v6777 = vadd.f32 %v6775, %v6776
        %v6778 = vrot.slane %v6777, 1
        %v6779 = vadd.f32 %v6777, %v6778
        %v6780 = vadd.f32 %v6764, %v6766
        %v6781 = vadd.f32 %v6780, %v6768
        %v6782 = vadd.f32 %v6781, %v6770
        %v6783 = vrot.slane %v6782, 4
        %v6784 = vadd.f32 %v6782, %v6783
        %v6785 = vrot.slane %v6784, 2
        %v6786 = vadd.f32 %v6784, %v6785
        %v6787 = vrot.slane %v6786, 1
        %v6788 = vadd.f32 %v6786, %v6787
        %v6789 = vmul.f32 %v6763, %v6763
        %v6790 = vmul.f32 %v6764, %v6764
        %v6791 = vmul.f32 %v6765, %v6765
        %v6792 = vmul.f32 %v6766, %v6766
        %v6793 = vmul.f32 %v6767, %v6767
        %v6794 = vmul.f32 %v6768, %v6768
        %v6795 = vmul.f32 %v6769, %v6769
        %v6796 = vmul.f32 %v6770, %v6770
        %v6797 = vadd.f32 %v6789, %v6791
        %v6798 = vadd.f32 %v6797, %v6793
        %v6799 = vadd.f32 %v6798, %v6795
        %v6800 = vrot.slane %v6799, 4
        %v6801 = vadd.f32 %v6799, %v6800
        %v6802 = vrot.slane %v6801, 2
        %v6803 = vadd.f32 %v6801, %v6802
        %v6804 = vrot.slane %v6803, 1
        %v6805 = vadd.f32 %v6803, %v6804
        %v6806 = vadd.f32 %v6790, %v6792
        %v6807 = vadd.f32 %v6806, %v6794
        %v6808 = vadd.f32 %v6807, %v6796
        %v6809 = vrot.slane %v6808, 4
        %v6810 = vadd.f32 %v6808, %v6809
        %v6811 = vrot.slane %v6810, 2
        %v6812 = vadd.f32 %v6810, %v6811
        %v6813 = vrot.slane %v6812, 1
        %v6814 = vadd.f32 %v6812, %v6813
        %v6815 = vsel %vm1662, %v6779, %v6805
        %v6816 = vsel %vm1662, %v6788, %v6814
        %6817 = vmatprep.subr.mxu0 0.0
        %6818 = vmatpush1.msra.mxu0 %v2617
        %6819 = vmatprep.subr.mxu0 0.0
        %6820 = vmatpush1.msra.mxu0 %v2616
        %6821 = vmatprep.subr.mxu0 0.0
        %6822 = vmatpush1.msra.mxu0 %v2615
        %6823 = vmatprep.subr.mxu0 0.0
        %6824 = vmatpush1.msra.mxu0 %v2614
        %6825 = vmatprep.subr.mxu0 0.0
        %6826 = vmatpush1.msra.mxu0 %v2613
        %6827 = vmatprep.subr.mxu0 0.0
        %6828 = vmatpush1.msra.mxu0 %v2612
        %6829 = vmatprep.subr.mxu0 0.0
        %6830 = vmatpush1.msra.mxu0 %v2611
        %6831 = vmatprep.subr.mxu0 0.0
        %6832 = vmatpush1.msra.mxu0 %v2610
        %6833 = vmatprep.subr.mxu0 0.0
        %6834 = vmatpush1.msra.mxu0 %v2609
        %6835 = vmatprep.subr.mxu0 0.0
        %6836 = vmatpush1.msra.mxu0 %v2608
        %6837 = vmatprep.subr.mxu0 0.0
        %6838 = vmatpush1.msra.mxu0 %v2607
        %6839 = vmatprep.subr.mxu0 0.0
        %6840 = vmatpush1.msra.mxu0 %v2606
        %6841 = vmatprep.subr.mxu0 0.0
        %6842 = vmatpush1.msra.mxu0 %v2605
        %6843 = vmatprep.subr.mxu0 0.0
        %6844 = vmatpush1.msra.mxu0 %v2604
        %6845 = vmatprep.subr.mxu0 0.0
        %6846 = vmatpush1.msra.mxu0 %v2603
        %6847 = vmatprep.subr.mxu0 0.0
        %6848 = vmatpush1.msra.mxu0 %v2602
        %6849 = vmatprep.subr.mxu0 0.0
        %6850 = vmatpush2.msra.mxu0 %v2633
        %6851 = vmatprep.subr.mxu0 0.0
        %6852 = vmatpush2.msra.mxu0 %v2632
        %6853 = vmatprep.subr.mxu0 0.0
        %6854 = vmatpush2.msra.mxu0 %v2631
        %6855 = vmatprep.subr.mxu0 0.0
        %6856 = vmatpush2.msra.mxu0 %v2630
        %6857 = vmatprep.subr.mxu0 0.0
        %6858 = vmatpush2.msra.mxu0 %v2629
        %6859 = vmatprep.subr.mxu0 0.0
        %6860 = vmatpush2.msra.mxu0 %v2628
        %6861 = vmatprep.subr.mxu0 0.0
        %6862 = vmatpush2.msra.mxu0 %v2627
        %6863 = vmatprep.subr.mxu0 0.0
        %6864 = vmatpush2.msra.mxu0 %v2626
        %6865 = vmatprep.subr.mxu0 0.0
        %6866 = vmatpush2.msra.mxu0 %v2625
        %6867 = vmatprep.subr.mxu0 0.0
        %6868 = vmatpush2.msra.mxu0 %v2624
        %6869 = vmatprep.subr.mxu0 0.0
        %6870 = vmatpush2.msra.mxu0 %v2623
        %6871 = vmatprep.subr.mxu0 0.0
        %6872 = vmatpush2.msra.mxu0 %v2622
        %6873 = vmatprep.subr.mxu0 0.0
        %6874 = vmatpush2.msra.mxu0 %v2621
        %6875 = vmatprep.subr.mxu0 0.0
        %6876 = vmatpush2.msra.mxu0 %v2620
        %6877 = vmatprep.subr.mxu0 0.0
        %6878 = vmatpush2.msra.mxu0 %v2619
        %6879 = vmatprep.subr.mxu0 0.0
        %6880 = vmatpush2.msra.mxu0 %v2618
        %6881 = vmatprep.mubr.f32.mxu0 %v6816
        %6882 = vmatmul.mubr.f32.gmra.mxu0 %v6815
        %v6883 = vpop.f32.mrf.mxu0
        %v6884 = vadd.f32 0.0, %v6883
        %v6885 = vpop.f32.mrf.mxu0
        %6886 = vdwg.mxu0
        %v6887 = vmul.f32 %v6884, 0.001953125
        %v6888 = vmul.f32 %v6887, %v6887
        %v6890 = vrot.slane %v6888, 7
        %v6892 = vsub.f32 %v6887, %v6890
        %v6893 = vmax.f32 %v6892, 0.0
        %v6894 = vadd.f32 %v6893, 1e-05
        %v6895 = vrsqrt.pop %v6894
        %v6896 = vsel %vm1662, %v6887, %v6895
        %v6898 = vsel %vm2718, %v6896, 0
        %6900 = vmatprep.subr.mxu0 0.0
        %6901 = vmatpush1.msra.mxu0 0.0
        %6902 = vmatprep.subr.mxu0 0.0
        %6903 = vmatpush1.msra.mxu0 0.0
        %6904 = vmatprep.subr.mxu0 0.0
        %6905 = vmatpush1.msra.mxu0 0.0
        %6906 = vmatprep.subr.mxu0 0.0
        %6907 = vmatpush1.msra.mxu0 0.0
        %6908 = vmatprep.subr.mxu0 0.0
        %6909 = vmatpush1.msra.mxu0 0.0
        %6910 = vmatprep.subr.mxu0 0.0
        %6911 = vmatpush1.msra.mxu0 0.0
        %6912 = vmatprep.subr.mxu0 0.0
        %6913 = vmatpush1.msra.mxu0 0.0
        %6914 = vmatprep.subr.mxu0 0.0
        %6915 = vmatpush1.msra.mxu0 0.0
        %6916 = vmatprep.subr.mxu0 0.0
        %6917 = vmatpush1.msra.mxu0 0.0
        %6918 = vmatprep.subr.mxu0 0.0
        %6919 = vmatpush1.msra.mxu0 0.0
        %6920 = vmatprep.subr.mxu0 0.0
        %6921 = vmatpush1.msra.mxu0 0.0
        %6922 = vmatprep.subr.mxu0 0.0
        %6923 = vmatpush1.msra.mxu0 0.0
        %6924 = vmatprep.subr.mxu0 0.0
        %6925 = vmatpush1.msra.mxu0 0.0
        %6926 = vmatprep.subr.mxu0 0.0
        %6927 = vmatpush1.msra.mxu0 0.0
        %6928 = vmatprep.subr.mxu0 %v2717
        %6929 = vmatpush1.msra.mxu0 %v2716
        %6930 = vmatprep.subr.mxu0 %v2715
        %6931 = vmatpush1.msra.mxu0 %v2714
        %6932 = vmatprep.subr.mxu0 0.0
        %6933 = vmatpush2.msra.mxu0 0.0
        %6934 = vmatprep.subr.mxu0 0.0
        %6935 = vmatpush2.msra.mxu0 0.0
        %6936 = vmatprep.subr.mxu0 0.0
        %6937 = vmatpush2.msra.mxu0 0.0
        %6938 = vmatprep.subr.mxu0 0.0
        %6939 = vmatpush2.msra.mxu0 0.0
        %6940 = vmatprep.subr.mxu0 0.0
        %6941 = vmatpush2.msra.mxu0 0.0
        %6942 = vmatprep.subr.mxu0 0.0
        %6943 = vmatpush2.msra.mxu0 0.0
        %6944 = vmatprep.subr.mxu0 0.0
        %6945 = vmatpush2.msra.mxu0 0.0
        %6946 = vmatprep.subr.mxu0 0.0
        %6947 = vmatpush2.msra.mxu0 0.0
        %6948 = vmatprep.subr.mxu0 0.0
        %6949 = vmatpush2.msra.mxu0 0.0
        %6950 = vmatprep.subr.mxu0 0.0
        %6951 = vmatpush2.msra.mxu0 0.0
        %6952 = vmatprep.subr.mxu0 0.0
        %6953 = vmatpush2.msra.mxu0 0.0
        %6954 = vmatprep.subr.mxu0 0.0
        %6955 = vmatpush2.msra.mxu0 0.0
        %6956 = vmatprep.subr.mxu0 0.0
        %6957 = vmatpush2.msra.mxu0 0.0
        %6958 = vmatprep.subr.mxu0 0.0
        %6959 = vmatpush2.msra.mxu0 0.0
        %6960 = vmatprep.subr.mxu0 0.0
        %6961 = vmatpush2.msra.mxu0 0.0
        %6962 = vmatprep.subr.mxu0 0.0
        %6963 = vmatpush2.msra.mxu0 0.0
        %6964 = vmatprep.mubr.f32.mxu0 0.0
        %6965 = vmatmul.mubr.f32.gmra.mxu0 %v6898
        %v6966 = vpop.f32.mrf.mxu0
        %v6967 = vadd.f32 0.0, %v6966
        %v6968 = vpop.f32.mrf.mxu0
        %v6969 = vadd.f32 0.0, %v6968
        %6970 = vdwg.mxu0
        %v6971 = vlaneseq
        %v6972 = vshrl.u32 %v6971, 7
        %v6973 = vsub.s32 0, %v6972
        %v6974 = vrot.slane %v6967, %v6973
        %v6975 = vlaneseq
        %v6976 = vshrl.u32 %v6975, 7
        %v6977 = vsub.s32 0, %v6976
        %v6978 = vrot.slane %v6969, %v6977
        %v6979 = vsub.f32 %v6763, %v6974
        %v6980 = vsub.f32 %v6764, %v6978
        %v6981 = vsub.f32 %v6765, %v6974
        %v6982 = vsub.f32 %v6766, %v6978
        %v6983 = vsub.f32 %v6767, %v6974
        %v6984 = vsub.f32 %v6768, %v6978
        %v6985 = vsub.f32 %v6769, %v6974
        %v6986 = vsub.f32 %v6770, %v6978
        %v6987 = vmul.f32 %v6967, %v5012
        %v6988 = vmul.f32 %v6969, %v5016
        %v6989 = vlaneseq
        %v6990 = vshrl.u32 %v6989, 7
        %v6991 = vsub.s32 1, %v6990
        %v6992 = vrot.slane %v6987, %v6991
        %v6993 = vlaneseq
        %v6994 = vshrl.u32 %v6993, 7
        %v6995 = vsub.s32 1, %v6994
        %v6996 = vrot.slane %v6988, %v6995
        %v6997 = vmul.f32 %v6979, %v6992
        %v6998 = vmul.f32 %v6980, %v6996
        %v6999 = vmul.f32 %v6981, %v6992
        %v7000 = vmul.f32 %v6982, %v6996
        %v7001 = vmul.f32 %v6983, %v6992
        %v7002 = vmul.f32 %v6984, %v6996
        %v7003 = vmul.f32 %v6985, %v6992
        %v7004 = vmul.f32 %v6986, %v6996
        %v7005 = vadd.f32 %v6997, %v5042
        %v7006 = vadd.f32 %v6998, %v5046
        %v7007 = vadd.f32 %v6999, %v5042
        %v7008 = vadd.f32 %v7000, %v5046
        %v7009 = vadd.f32 %v7001, %v5042
        %v7010 = vadd.f32 %v7002, %v5046
        %v7011 = vadd.f32 %v7003, %v5042
        %v7012 = vadd.f32 %v7004, %v5046
        %v7013 = vmax.f32 %v7005, 0.0
        %v7014 = vmax.f32 %v7006, 0.0
        %v7015 = vmax.f32 %v7007, 0.0
        %v7016 = vmax.f32 %v7008, 0.0
        %v7017 = vmax.f32 %v7009, 0.0
        %v7018 = vmax.f32 %v7010, 0.0
        %v7019 = vmax.f32 %v7011, 0.0
        %v7020 = vmax.f32 %v7012, 0.0
        %v7021 = vadd.f32 %v6043, %v7013
        %v7022 = vadd.f32 %v6044, %v7014
        %v7023 = vadd.f32 %v6045, %v7015
        %v7024 = vadd.f32 %v6046, %v7016
        %v7025 = vadd.f32 %v6047, %v7017
        %v7026 = vadd.f32 %v6048, %v7018
        %v7027 = vadd.f32 %v6049, %v7019
        %v7028 = vadd.f32 %v6050, %v7020
        %v7029 = vrot.slane %v7021, 7
        %v7030 = vrot.slane %v7022, 7
        %v7031 = vrot.slane %v7023, 7
        %v7032 = vrot.slane %v7024, 7
        %v7033 = vrot.slane %v7025, 7
        %v7034 = vrot.slane %v7026, 7
        %v7035 = vrot.slane %v7027, 7
        %v7036 = vrot.slane %v7028, 7
        %v7037 = vsel %vm1045, %v7033, %v7035
        %v7038 = vsel %vm1045, %v7034, %v7036
        %v7039 = vsel %vm1045, %v7031, %v7033
        %v7040 = vsel %vm1045, %v7032, %v7034
        %v7041 = vsel %vm1045, %v7029, %v7031
        %v7042 = vsel %vm1045, %v7030, %v7032
        %v7043 = vsel %vm1045, %v7035, %v7029
        %v7044 = vsel %vm1045, %v7036, %v7030
        %v7045 = vsel %vm1054, 0.0, %v7043
        %v7046 = vsel %vm1054, 0.0, %v7044
        %v7047 = vsel %vm1055, 0.0, %v7041
        %v7048 = vsel %vm1055, 0.0, %v7042
        %v7049 = vsel %vm1056, 0.0, %v7039
        %v7050 = vsel %vm1056, 0.0, %v7040
        %v7051 = vsel %vm1057, 0.0, %v7037
        %v7052 = vsel %vm1057, 0.0, %v7038
        %v7053 = vpack.c.bf16 %v7047, %v7045
        %v7054 = vpack.c.bf16 %v7048, %v7046
        %v7055 = vpack.c.bf16 %v7051, %v7049
        %v7056 = vpack.c.bf16 %v7052, %v7050
        %v7057 = vpack.c.bf16 %v7023, %v7021
        %v7058 = vpack.c.bf16 %v7024, %v7022
        %v7059 = vpack.c.bf16 %v7027, %v7025
        %v7060 = vpack.c.bf16 %v7028, %v7026
        %v7061 = vrot.slane %v7021, 1
        %v7062 = vrot.slane %v7022, 1
        %v7063 = vrot.slane %v7023, 1
        %v7064 = vrot.slane %v7024, 1
        %v7065 = vrot.slane %v7025, 1
        %v7066 = vrot.slane %v7026, 1
        %v7067 = vrot.slane %v7027, 1
        %v7068 = vrot.slane %v7028, 1
        %v7069 = vsel %vm1070, %v7065, %v7067
        %v7070 = vsel %vm1070, %v7066, %v7068
        %v7071 = vsel %vm1070, %v7063, %v7065
        %v7072 = vsel %vm1070, %v7064, %v7066
        %v7073 = vsel %vm1070, %v7061, %v7063
        %v7074 = vsel %vm1070, %v7062, %v7064
        %v7075 = vsel %vm1070, %v7067, %v7061
        %v7076 = vsel %vm1070, %v7068, %v7062
        %v7077 = vsel %vm1079, 0.0, %v7073
        %v7078 = vsel %vm1079, 0.0, %v7074
        %v7079 = vsel %vm1080, 0.0, %v7071
        %v7080 = vsel %vm1080, 0.0, %v7072
        %v7081 = vsel %vm1081, 0.0, %v7069
        %v7082 = vsel %vm1081, 0.0, %v7070
        %v7083 = vsel %vm1082, 0.0, %v7075
        %v7084 = vsel %vm1082, 0.0, %v7076
        %v7085 = vpack.c.bf16 %v7079, %v7077
        %v7086 = vpack.c.bf16 %v7080, %v7078
        %v7087 = vpack.c.bf16 %v7083, %v7081
        %v7088 = vpack.c.bf16 %v7084, %v7082
        %v7089 = vld [vmem:[%s21] sm:$0xf]
        %v7090 = vld [vmem:[%s21 + $0x4] sm:$0xf]
        %v7091 = vld [vmem:[%s21 + $0x8] sm:$0xf]
        %v7092 = vld [vmem:[%s21 + $0xc] sm:$0xf]
        %v7093 = vld [vmem:[%s21 + $0x10] sm:$0xf]
        %v7094 = vld [vmem:[%s21 + $0x14] sm:$0xf]
        %v7095 = vld [vmem:[%s21 + $0x18] sm:$0xf]
        %v7096 = vld [vmem:[%s21 + $0x1c] sm:$0xf]
        %v7097 = vld [vmem:[%s21 + $0x20] sm:$0xf]
        %v7098 = vld [vmem:[%s21 + $0x24] sm:$0xf]
        %v7099 = vld [vmem:[%s21 + $0x28] sm:$0xf]
        %v7100 = vld [vmem:[%s21 + $0x2c] sm:$0xf]
        %v7101 = vld [vmem:[%s21 + $0x30] sm:$0xf]
        %v7102 = vld [vmem:[%s21 + $0x34] sm:$0xf]
        %v7103 = vld [vmem:[%s21 + $0x38] sm:$0xf]
        %v7104 = vld [vmem:[%s21 + $0x3c] sm:$0xf]
        %v7105 = vld [vmem:[%s21 + $0x40] sm:$0xf]
        %v7106 = vld [vmem:[%s21 + $0x44] sm:$0xf]
        %v7107 = vld [vmem:[%s21 + $0x48] sm:$0xf]
        %v7108 = vld [vmem:[%s21 + $0x4c] sm:$0xf]
        %v7109 = vld [vmem:[%s21 + $0x50] sm:$0xf]
        %v7110 = vld [vmem:[%s21 + $0x54] sm:$0xf]
        %v7111 = vld [vmem:[%s21 + $0x58] sm:$0xf]
        %v7112 = vld [vmem:[%s21 + $0x5c] sm:$0xf]
        %v7113 = vld [vmem:[%s21 + $0x60] sm:$0xf]
        %v7114 = vld [vmem:[%s21 + $0x64] sm:$0xf]
        %v7115 = vld [vmem:[%s21 + $0x68] sm:$0xf]
        %v7116 = vld [vmem:[%s21 + $0x6c] sm:$0xf]
        %v7117 = vld [vmem:[%s21 + $0x70] sm:$0xf]
        %v7118 = vld [vmem:[%s21 + $0x74] sm:$0xf]
        %v7119 = vld [vmem:[%s21 + $0x78] sm:$0xf]
        %v7120 = vld [vmem:[%s21 + $0x7c] sm:$0xf]
        %s7121 = scalar_lea.vmem %s21, 128
        %v7122 = vld [vmem:[%s7121] sm:$0xf]
        %v7123 = vld [vmem:[%s7121 + $0x4] sm:$0xf]
        %v7124 = vld [vmem:[%s7121 + $0x8] sm:$0xf]
        %v7125 = vld [vmem:[%s7121 + $0xc] sm:$0xf]
        %v7126 = vld [vmem:[%s7121 + $0x10] sm:$0xf]
        %v7127 = vld [vmem:[%s7121 + $0x14] sm:$0xf]
        %v7128 = vld [vmem:[%s7121 + $0x18] sm:$0xf]
        %v7129 = vld [vmem:[%s7121 + $0x1c] sm:$0xf]
        %v7130 = vld [vmem:[%s7121 + $0x20] sm:$0xf]
        %v7131 = vld [vmem:[%s7121 + $0x24] sm:$0xf]
        %v7132 = vld [vmem:[%s7121 + $0x28] sm:$0xf]
        %v7133 = vld [vmem:[%s7121 + $0x2c] sm:$0xf]
        %v7134 = vld [vmem:[%s7121 + $0x30] sm:$0xf]
        %v7135 = vld [vmem:[%s7121 + $0x34] sm:$0xf]
        %v7136 = vld [vmem:[%s7121 + $0x38] sm:$0xf]
        %v7137 = vld [vmem:[%s7121 + $0x3c] sm:$0xf]
        %v7138 = vld [vmem:[%s7121 + $0x40] sm:$0xf]
        %v7139 = vld [vmem:[%s7121 + $0x44] sm:$0xf]
        %v7140 = vld [vmem:[%s7121 + $0x48] sm:$0xf]
        %v7141 = vld [vmem:[%s7121 + $0x4c] sm:$0xf]
        %v7142 = vld [vmem:[%s7121 + $0x50] sm:$0xf]
        %v7143 = vld [vmem:[%s7121 + $0x54] sm:$0xf]
        %v7144 = vld [vmem:[%s7121 + $0x58] sm:$0xf]
        %v7145 = vld [vmem:[%s7121 + $0x5c] sm:$0xf]
        %v7146 = vld [vmem:[%s7121 + $0x60] sm:$0xf]
        %v7147 = vld [vmem:[%s7121 + $0x64] sm:$0xf]
        %v7148 = vld [vmem:[%s7121 + $0x68] sm:$0xf]
        %v7149 = vld [vmem:[%s7121 + $0x6c] sm:$0xf]
        %v7150 = vld [vmem:[%s7121 + $0x70] sm:$0xf]
        %v7151 = vld [vmem:[%s7121 + $0x74] sm:$0xf]
        %v7152 = vld [vmem:[%s7121 + $0x78] sm:$0xf]
        %v7153 = vld [vmem:[%s7121 + $0x7c] sm:$0xf]
        %v7186 = vunpack.c.l.b16 %v7122
        %v7187 = vunpack.c.l.b16 %v7123
        %v7188 = vunpack.c.l.b16 %v7124
        %v7189 = vunpack.c.l.b16 %v7125
        %v7190 = vunpack.c.l.b16 %v7126
        %v7191 = vunpack.c.l.b16 %v7127
        %v7192 = vunpack.c.l.b16 %v7128
        %v7193 = vunpack.c.l.b16 %v7129
        %v7194 = vunpack.c.l.b16 %v7130
        %v7195 = vunpack.c.l.b16 %v7131
        %v7196 = vunpack.c.l.b16 %v7132
        %v7197 = vunpack.c.l.b16 %v7133
        %v7198 = vunpack.c.l.b16 %v7134
        %v7199 = vunpack.c.l.b16 %v7135
        %v7200 = vunpack.c.l.b16 %v7136
        %v7201 = vunpack.c.l.b16 %v7137
        %v7202 = vunpack.c.l.b16 %v7138
        %v7203 = vunpack.c.l.b16 %v7139
        %v7204 = vunpack.c.l.b16 %v7140
        %v7205 = vunpack.c.l.b16 %v7141
        %v7206 = vunpack.c.l.b16 %v7142
        %v7207 = vunpack.c.l.b16 %v7143
        %v7208 = vunpack.c.l.b16 %v7144
        %v7209 = vunpack.c.l.b16 %v7145
        %v7210 = vunpack.c.l.b16 %v7146
        %v7211 = vunpack.c.l.b16 %v7147
        %v7212 = vunpack.c.l.b16 %v7148
        %v7213 = vunpack.c.l.b16 %v7149
        %v7214 = vunpack.c.l.b16 %v7150
        %v7215 = vunpack.c.l.b16 %v7151
        %v7216 = vunpack.c.l.b16 %v7152
        %v7217 = vunpack.c.l.b16 %v7153
        %v7218 = vpack.c.b16 %v7187, %v7186
        %v7219 = vpack.c.b16 %v7189, %v7188
        %v7220 = vpack.c.b16 %v7191, %v7190
        %v7221 = vpack.c.b16 %v7193, %v7192
        %v7222 = vpack.c.b16 %v7195, %v7194
        %v7223 = vpack.c.b16 %v7197, %v7196
        %v7224 = vpack.c.b16 %v7199, %v7198
        %v7225 = vpack.c.b16 %v7201, %v7200
        %v7226 = vpack.c.b16 %v7203, %v7202
        %v7227 = vpack.c.b16 %v7205, %v7204
        %v7228 = vpack.c.b16 %v7207, %v7206
        %v7229 = vpack.c.b16 %v7209, %v7208
        %v7230 = vpack.c.b16 %v7211, %v7210
        %v7231 = vpack.c.b16 %v7213, %v7212
        %v7232 = vpack.c.b16 %v7215, %v7214
        %v7233 = vpack.c.b16 %v7217, %v7216
        %7250 = vmatprep.subr.bf16.mxu0 0
        %7251 = vmatpush1.bf16.msra.mxu0 %v7225
        %7252 = vmatprep.subr.bf16.mxu0 0
        %7253 = vmatpush1.bf16.msra.mxu0 %v7224
        %7254 = vmatprep.subr.bf16.mxu0 0
        %7255 = vmatpush1.bf16.msra.mxu0 %v7223
        %7256 = vmatprep.subr.bf16.mxu0 0
        %7257 = vmatpush1.bf16.msra.mxu0 %v7222
        %7258 = vmatprep.subr.bf16.mxu0 0
        %7259 = vmatpush1.bf16.msra.mxu0 %v7221
        %7260 = vmatprep.subr.bf16.mxu0 0
        %7261 = vmatpush1.bf16.msra.mxu0 %v7220
        %7262 = vmatprep.subr.bf16.mxu0 0
        %7263 = vmatpush1.bf16.msra.mxu0 %v7219
        %7264 = vmatprep.subr.bf16.mxu0 0
        %7265 = vmatpush1.bf16.msra.mxu0 %v7218
        %7266 = vmatprep.subr.bf16.mxu0 0
        %7267 = vmatpush2.bf16.msra.mxu0 %v7233
        %7268 = vmatprep.subr.bf16.mxu0 0
        %7269 = vmatpush2.bf16.msra.mxu0 %v7232
        %7270 = vmatprep.subr.bf16.mxu0 0
        %7271 = vmatpush2.bf16.msra.mxu0 %v7231
        %7272 = vmatprep.subr.bf16.mxu0 0
        %7273 = vmatpush2.bf16.msra.mxu0 %v7230
        %7274 = vmatprep.subr.bf16.mxu0 0
        %7275 = vmatpush2.bf16.msra.mxu0 %v7229
        %7276 = vmatprep.subr.bf16.mxu0 0
        %7277 = vmatpush2.bf16.msra.mxu0 %v7228
        %7278 = vmatprep.subr.bf16.mxu0 0
        %7279 = vmatpush2.bf16.msra.mxu0 %v7227
        %7280 = vmatprep.subr.bf16.mxu0 0
        %7281 = vmatpush2.bf16.msra.mxu0 %v7226
        %7282 = vmatprep.mubr.bf16.mxu0 %v7058
        %7283 = vmatmul.mubr.bf16.gmra.mxu0 %v7057
        %v7284 = vpop.f32.mrf.mxu0
        %v7285 = vadd.f32 0.0, %v7284
        %v7286 = vpop.f32.mrf.mxu0
        %v7287 = vpop.f32.mrf.mxu0
        %v7288 = vadd.f32 0.0, %v7287
        %v7289 = vpop.f32.mrf.mxu0
        %7290 = vmatprep.mubr.bf16.mxu0 %v7060
        %7291 = vmatmul.mubr.bf16.gmra.mxu0 %v7059
        %v7292 = vpop.f32.mrf.mxu0
        %v7293 = vadd.f32 0.0, %v7292
        %v7294 = vpop.f32.mrf.mxu0
        %v7295 = vpop.f32.mrf.mxu0
        %v7296 = vadd.f32 0.0, %v7295
        %v7297 = vpop.f32.mrf.mxu0
        %7298 = vdwg.mxu0
        %v7331 = vunpack.c.l.b16 %v7089
        %v7332 = vunpack.c.l.b16 %v7090
        %v7333 = vunpack.c.l.b16 %v7091
        %v7334 = vunpack.c.l.b16 %v7092
        %v7335 = vunpack.c.l.b16 %v7093
        %v7336 = vunpack.c.l.b16 %v7094
        %v7337 = vunpack.c.l.b16 %v7095
        %v7338 = vunpack.c.l.b16 %v7096
        %v7339 = vunpack.c.l.b16 %v7097
        %v7340 = vunpack.c.l.b16 %v7098
        %v7341 = vunpack.c.l.b16 %v7099
        %v7342 = vunpack.c.l.b16 %v7100
        %v7343 = vunpack.c.l.b16 %v7101
        %v7344 = vunpack.c.l.b16 %v7102
        %v7345 = vunpack.c.l.b16 %v7103
        %v7346 = vunpack.c.l.b16 %v7104
        %v7347 = vunpack.c.l.b16 %v7105
        %v7348 = vunpack.c.l.b16 %v7106
        %v7349 = vunpack.c.l.b16 %v7107
        %v7350 = vunpack.c.l.b16 %v7108
        %v7351 = vunpack.c.l.b16 %v7109
        %v7352 = vunpack.c.l.b16 %v7110
        %v7353 = vunpack.c.l.b16 %v7111
        %v7354 = vunpack.c.l.b16 %v7112
        %v7355 = vunpack.c.l.b16 %v7113
        %v7356 = vunpack.c.l.b16 %v7114
        %v7357 = vunpack.c.l.b16 %v7115
        %v7358 = vunpack.c.l.b16 %v7116
        %v7359 = vunpack.c.l.b16 %v7117
        %v7360 = vunpack.c.l.b16 %v7118
        %v7361 = vunpack.c.l.b16 %v7119
        %v7362 = vunpack.c.l.b16 %v7120
        %v7363 = vpack.c.b16 %v7332, %v7331
        %v7364 = vpack.c.b16 %v7334, %v7333
        %v7365 = vpack.c.b16 %v7336, %v7335
        %v7366 = vpack.c.b16 %v7338, %v7337
        %v7367 = vpack.c.b16 %v7340, %v7339
        %v7368 = vpack.c.b16 %v7342, %v7341
        %v7369 = vpack.c.b16 %v7344, %v7343
        %v7370 = vpack.c.b16 %v7346, %v7345
        %v7371 = vpack.c.b16 %v7348, %v7347
        %v7372 = vpack.c.b16 %v7350, %v7349
        %v7373 = vpack.c.b16 %v7352, %v7351
        %v7374 = vpack.c.b16 %v7354, %v7353
        %v7375 = vpack.c.b16 %v7356, %v7355
        %v7376 = vpack.c.b16 %v7358, %v7357
        %v7377 = vpack.c.b16 %v7360, %v7359
        %v7378 = vpack.c.b16 %v7362, %v7361
        %7395 = vmatprep.subr.bf16.mxu0 0
        %7396 = vmatpush1.bf16.msra.mxu0 %v7370
        %7397 = vmatprep.subr.bf16.mxu0 0
        %7398 = vmatpush1.bf16.msra.mxu0 %v7369
        %7399 = vmatprep.subr.bf16.mxu0 0
        %7400 = vmatpush1.bf16.msra.mxu0 %v7368
        %7401 = vmatprep.subr.bf16.mxu0 0
        %7402 = vmatpush1.bf16.msra.mxu0 %v7367
        %7403 = vmatprep.subr.bf16.mxu0 0
        %7404 = vmatpush1.bf16.msra.mxu0 %v7366
        %7405 = vmatprep.subr.bf16.mxu0 0
        %7406 = vmatpush1.bf16.msra.mxu0 %v7365
        %7407 = vmatprep.subr.bf16.mxu0 0
        %7408 = vmatpush1.bf16.msra.mxu0 %v7364
        %7409 = vmatprep.subr.bf16.mxu0 0
        %7410 = vmatpush1.bf16.msra.mxu0 %v7363
        %7411 = vmatprep.subr.bf16.mxu0 0
        %7412 = vmatpush2.bf16.msra.mxu0 %v7378
        %7413 = vmatprep.subr.bf16.mxu0 0
        %7414 = vmatpush2.bf16.msra.mxu0 %v7377
        %7415 = vmatprep.subr.bf16.mxu0 0
        %7416 = vmatpush2.bf16.msra.mxu0 %v7376
        %7417 = vmatprep.subr.bf16.mxu0 0
        %7418 = vmatpush2.bf16.msra.mxu0 %v7375
        %7419 = vmatprep.subr.bf16.mxu0 0
        %7420 = vmatpush2.bf16.msra.mxu0 %v7374
        %7421 = vmatprep.subr.bf16.mxu0 0
        %7422 = vmatpush2.bf16.msra.mxu0 %v7373
        %7423 = vmatprep.subr.bf16.mxu0 0
        %7424 = vmatpush2.bf16.msra.mxu0 %v7372
        %7425 = vmatprep.subr.bf16.mxu0 0
        %7426 = vmatpush2.bf16.msra.mxu0 %v7371
        %7427 = vmatprep.mubr.bf16.mxu0 %v7054
        %7428 = vmatmul.mubr.bf16.gmra.mxu0 %v7053
        %v7429 = vpop.f32.mrf.mxu0
        %v7430 = vadd.f32 %v7285, %v7429
        %v7431 = vpop.f32.mrf.mxu0
        %v7432 = vpop.f32.mrf.mxu0
        %v7433 = vadd.f32 %v7288, %v7432
        %v7434 = vpop.f32.mrf.mxu0
        %7435 = vmatprep.mubr.bf16.mxu0 %v7056
        %7436 = vmatmul.mubr.bf16.gmra.mxu0 %v7055
        %v7437 = vpop.f32.mrf.mxu0
        %v7438 = vadd.f32 %v7293, %v7437
        %v7439 = vpop.f32.mrf.mxu0
        %v7440 = vpop.f32.mrf.mxu0
        %v7441 = vadd.f32 %v7296, %v7440
        %v7442 = vpop.f32.mrf.mxu0
        %7443 = vdwg.mxu0
        %s7444 = scalar_lea.vmem %s21, 256
        %v7445 = vld [vmem:[%s7444] sm:$0xf]
        %v7446 = vld [vmem:[%s7444 + $0x4] sm:$0xf]
        %v7447 = vld [vmem:[%s7444 + $0x8] sm:$0xf]
        %v7448 = vld [vmem:[%s7444 + $0xc] sm:$0xf]
        %v7449 = vld [vmem:[%s7444 + $0x10] sm:$0xf]
        %v7450 = vld [vmem:[%s7444 + $0x14] sm:$0xf]
        %v7451 = vld [vmem:[%s7444 + $0x18] sm:$0xf]
        %v7452 = vld [vmem:[%s7444 + $0x1c] sm:$0xf]
        %v7453 = vld [vmem:[%s7444 + $0x20] sm:$0xf]
        %v7454 = vld [vmem:[%s7444 + $0x24] sm:$0xf]
        %v7455 = vld [vmem:[%s7444 + $0x28] sm:$0xf]
        %v7456 = vld [vmem:[%s7444 + $0x2c] sm:$0xf]
        %v7457 = vld [vmem:[%s7444 + $0x30] sm:$0xf]
        %v7458 = vld [vmem:[%s7444 + $0x34] sm:$0xf]
        %v7459 = vld [vmem:[%s7444 + $0x38] sm:$0xf]
        %v7460 = vld [vmem:[%s7444 + $0x3c] sm:$0xf]
        %v7461 = vld [vmem:[%s7444 + $0x40] sm:$0xf]
        %v7462 = vld [vmem:[%s7444 + $0x44] sm:$0xf]
        %v7463 = vld [vmem:[%s7444 + $0x48] sm:$0xf]
        %v7464 = vld [vmem:[%s7444 + $0x4c] sm:$0xf]
        %v7465 = vld [vmem:[%s7444 + $0x50] sm:$0xf]
        %v7466 = vld [vmem:[%s7444 + $0x54] sm:$0xf]
        %v7467 = vld [vmem:[%s7444 + $0x58] sm:$0xf]
        %v7468 = vld [vmem:[%s7444 + $0x5c] sm:$0xf]
        %v7469 = vld [vmem:[%s7444 + $0x60] sm:$0xf]
        %v7470 = vld [vmem:[%s7444 + $0x64] sm:$0xf]
        %v7471 = vld [vmem:[%s7444 + $0x68] sm:$0xf]
        %v7472 = vld [vmem:[%s7444 + $0x6c] sm:$0xf]
        %v7473 = vld [vmem:[%s7444 + $0x70] sm:$0xf]
        %v7474 = vld [vmem:[%s7444 + $0x74] sm:$0xf]
        %v7475 = vld [vmem:[%s7444 + $0x78] sm:$0xf]
        %v7476 = vld [vmem:[%s7444 + $0x7c] sm:$0xf]
        %v7509 = vunpack.c.l.b16 %v7445
        %v7510 = vunpack.c.l.b16 %v7446
        %v7511 = vunpack.c.l.b16 %v7447
        %v7512 = vunpack.c.l.b16 %v7448
        %v7513 = vunpack.c.l.b16 %v7449
        %v7514 = vunpack.c.l.b16 %v7450
        %v7515 = vunpack.c.l.b16 %v7451
        %v7516 = vunpack.c.l.b16 %v7452
        %v7517 = vunpack.c.l.b16 %v7453
        %v7518 = vunpack.c.l.b16 %v7454
        %v7519 = vunpack.c.l.b16 %v7455
        %v7520 = vunpack.c.l.b16 %v7456
        %v7521 = vunpack.c.l.b16 %v7457
        %v7522 = vunpack.c.l.b16 %v7458
        %v7523 = vunpack.c.l.b16 %v7459
        %v7524 = vunpack.c.l.b16 %v7460
        %v7525 = vunpack.c.l.b16 %v7461
        %v7526 = vunpack.c.l.b16 %v7462
        %v7527 = vunpack.c.l.b16 %v7463
        %v7528 = vunpack.c.l.b16 %v7464
        %v7529 = vunpack.c.l.b16 %v7465
        %v7530 = vunpack.c.l.b16 %v7466
        %v7531 = vunpack.c.l.b16 %v7467
        %v7532 = vunpack.c.l.b16 %v7468
        %v7533 = vunpack.c.l.b16 %v7469
        %v7534 = vunpack.c.l.b16 %v7470
        %v7535 = vunpack.c.l.b16 %v7471
        %v7536 = vunpack.c.l.b16 %v7472
        %v7537 = vunpack.c.l.b16 %v7473
        %v7538 = vunpack.c.l.b16 %v7474
        %v7539 = vunpack.c.l.b16 %v7475
        %v7540 = vunpack.c.l.b16 %v7476
        %v7541 = vpack.c.b16 %v7510, %v7509
        %v7542 = vpack.c.b16 %v7512, %v7511
        %v7543 = vpack.c.b16 %v7514, %v7513
        %v7544 = vpack.c.b16 %v7516, %v7515
        %v7545 = vpack.c.b16 %v7518, %v7517
        %v7546 = vpack.c.b16 %v7520, %v7519
        %v7547 = vpack.c.b16 %v7522, %v7521
        %v7548 = vpack.c.b16 %v7524, %v7523
        %v7549 = vpack.c.b16 %v7526, %v7525
        %v7550 = vpack.c.b16 %v7528, %v7527
        %v7551 = vpack.c.b16 %v7530, %v7529
        %v7552 = vpack.c.b16 %v7532, %v7531
        %v7553 = vpack.c.b16 %v7534, %v7533
        %v7554 = vpack.c.b16 %v7536, %v7535
        %v7555 = vpack.c.b16 %v7538, %v7537
        %v7556 = vpack.c.b16 %v7540, %v7539
        %7573 = vmatprep.subr.bf16.mxu0 0
        %7574 = vmatpush1.bf16.msra.mxu0 %v7548
        %7575 = vmatprep.subr.bf16.mxu0 0
        %7576 = vmatpush1.bf16.msra.mxu0 %v7547
        %7577 = vmatprep.subr.bf16.mxu0 0
        %7578 = vmatpush1.bf16.msra.mxu0 %v7546
        %7579 = vmatprep.subr.bf16.mxu0 0
        %7580 = vmatpush1.bf16.msra.mxu0 %v7545
        %7581 = vmatprep.subr.bf16.mxu0 0
        %7582 = vmatpush1.bf16.msra.mxu0 %v7544
        %7583 = vmatprep.subr.bf16.mxu0 0
        %7584 = vmatpush1.bf16.msra.mxu0 %v7543
        %7585 = vmatprep.subr.bf16.mxu0 0
        %7586 = vmatpush1.bf16.msra.mxu0 %v7542
        %7587 = vmatprep.subr.bf16.mxu0 0
        %7588 = vmatpush1.bf16.msra.mxu0 %v7541
        %7589 = vmatprep.subr.bf16.mxu0 0
        %7590 = vmatpush2.bf16.msra.mxu0 %v7556
        %7591 = vmatprep.subr.bf16.mxu0 0
        %7592 = vmatpush2.bf16.msra.mxu0 %v7555
        %7593 = vmatprep.subr.bf16.mxu0 0
        %7594 = vmatpush2.bf16.msra.mxu0 %v7554
        %7595 = vmatprep.subr.bf16.mxu0 0
        %7596 = vmatpush2.bf16.msra.mxu0 %v7553
        %7597 = vmatprep.subr.bf16.mxu0 0
        %7598 = vmatpush2.bf16.msra.mxu0 %v7552
        %7599 = vmatprep.subr.bf16.mxu0 0
        %7600 = vmatpush2.bf16.msra.mxu0 %v7551
        %7601 = vmatprep.subr.bf16.mxu0 0
        %7602 = vmatpush2.bf16.msra.mxu0 %v7550
        %7603 = vmatprep.subr.bf16.mxu0 0
        %7604 = vmatpush2.bf16.msra.mxu0 %v7549
        %7605 = vmatprep.mubr.bf16.mxu0 %v7086
        %7606 = vmatmul.mubr.bf16.gmra.mxu0 %v7085
        %v7607 = vpop.f32.mrf.mxu0
        %v7608 = vadd.f32 0.0, %v7607
        %v7609 = vpop.f32.mrf.mxu0
        %v7610 = vpop.f32.mrf.mxu0
        %v7611 = vadd.f32 0.0, %v7610
        %v7612 = vpop.f32.mrf.mxu0
        %7613 = vmatprep.mubr.bf16.mxu0 %v7088
        %7614 = vmatmul.mubr.bf16.gmra.mxu0 %v7087
        %v7615 = vpop.f32.mrf.mxu0
        %v7616 = vadd.f32 0.0, %v7615
        %v7617 = vpop.f32.mrf.mxu0
        %v7618 = vpop.f32.mrf.mxu0
        %v7619 = vadd.f32 0.0, %v7618
        %v7620 = vpop.f32.mrf.mxu0
        %7621 = vdwg.mxu0
        %v7622 = vadd.f32 %v7430, %v7608
        %v7623 = vadd.f32 %v7433, %v7611
        %v7624 = vadd.f32 %v7438, %v7616
        %v7625 = vadd.f32 %v7441, %v7619
        %v7626 = vld [vmem:[#allocation14] sm:$0x1]
        %v7628 = vlaneseq
        %v7629 = vshrl.u32 %v7628, 7
        %v7630 = vsub.s32 0, %v7629
        %v7631 = vrot.slane %v7626, %v7630
        %v7633 = vadd.f32 %v7622, %v7631
        %v7634 = vadd.f32 %v7623, %v7631
        %v7635 = vadd.f32 %v7624, %v7631
        %v7636 = vadd.f32 %v7625, %v7631
        %v7637 = vxor.u32 %v7633, 2147483648
        %v7638 = vxor.u32 %v7634, 2147483648
        %v7639 = vxor.u32 %v7635, 2147483648
        %v7640 = vxor.u32 %v7636, 2147483648
        %v7641 = vmul.f32 %v7637, 1.442695
        %v7642 = vpow.pop %v7641
        %v7643 = vmul.f32 %v7638, 1.442695
        %v7644 = vpow.pop %v7643
        %v7645 = vmul.f32 %v7639, 1.442695
        %v7646 = vpow.pop %v7645
        %v7647 = vmul.f32 %v7640, 1.442695
        %v7648 = vpow.pop %v7647
        %v7649 = vadd.f32 %v7642, 1.0
        %v7650 = vadd.f32 %v7644, 1.0
        %v7651 = vadd.f32 %v7646, 1.0
        %v7652 = vadd.f32 %v7648, 1.0
        %v7653 = vrcp.pop %v7649
        %v7654 = vmul.f32 1.0, %v7653
        %v7655 = vrcp.pop %v7650
        %v7656 = vmul.f32 1.0, %v7655
        %v7657 = vrcp.pop %v7651
        %v7658 = vmul.f32 1.0, %v7657
        %v7659 = vrcp.pop %v7652
        %v7660 = vmul.f32 1.0, %v7659
        %v7661 = vsub.f32 %v2207, %v7654
        %v7662 = vsub.f32 %v2208, %v7656
        %v7663 = vsub.f32 %v2209, %v7658
        %v7664 = vsub.f32 %v2210, %v7660
        %7665 = vst.msk [vmem:[%s952] sm:$0xff] %vm1120, %v2191
        %7666 = vst.msk [vmem:[%s952 + $0x8] sm:$0xff] %vm1120, %v2192
        %7667 = vst.msk [vmem:[%s952 + $0x10] sm:$0xff] %vm1120, %v2193
        %7668 = vst.msk [vmem:[%s952 + $0x18] sm:$0xff] %vm1120, %v2194
        %7669 = vst.msk [vmem:[%s957] sm:$0xff] %vm1120, %v7661
        %7670 = vst.msk [vmem:[%s957 + $0x8] sm:$0xff] %vm1120, %v7662
        %7671 = vst.msk [vmem:[%s957 + $0x10] sm:$0xff] %vm1120, %v7663
        %7672 = vst.msk [vmem:[%s957 + $0x18] sm:$0xff] %vm1120, %v7664
        %v7673 = vadd.f32 %v972, %v7661
        %v7674 = vadd.f32 %v973, %v7662
        %v7675 = vadd.f32 %v974, %v7663
        %v7676 = vadd.f32 %v975, %v7664
        %7677 = vst.msk [vmem:[#allocation2] sm:$0xff] %vm1120, %v7673
        %7678 = vst.msk [vmem:[#allocation2 + $0x8] sm:$0xff] %vm1120, %v7674
        %7679 = vst.msk [vmem:[#allocation2 + $0x10] sm:$0xff] %vm1120, %v7675
        %7680 = vst.msk [vmem:[#allocation2 + $0x18] sm:$0xff] %vm1120, %v7676
        %p7681 = scmp.lt.s32.totalorder %s45, 2
        %s7682 = scalar_select %p7681, %s45, 2
        %s7683 = smul.addr %s7682, 4
        %s7684 = smul.addr %s7683, 8
        %s7685 = scalar_lea.vmem %s27, %s7684
        %p7686 = scmp.lt.s32.totalorder %s45, 2
        %s7687 = scalar_select %p7686, %s45, 2
        %s7688 = smul.addr %s7687, 4
        %s7689 = smul.addr %s7688, 8
        %s7690 = scalar_lea.vmem %s28, %s7689
        // Predicated region
        $region169: #{network_forward.1} parent=127 // pred_check
          %p7691 = pneg %p630
        $region170: #{network_forward.1} parent=127 // pred_check_branch
          %7693 = sbr.rel (%p7691) target = $region172
        $region171: #{network_forward.1} parent=127 // pred_region
          _
        $region172: #{network_forward.1} parent=127 // pred_fallthru
          _
        // Predicated region
        $region173: #{network_forward.1} parent=127 // pred_check
          %p7694 = pneg %p656
        $region174: #{network_forward.1} parent=127 // pred_check_branch
          %7696 = sbr.rel (%p7694) target = $region176
        $region175: #{network_forward.1} parent=127 // pred_region
          _
        $region176: #{network_forward.1} parent=127 // pred_fallthru
          _
      $region128: #{network_forward.1} parent=5 // pred_fallthru
        _
      %p7697 = scmp.le.s32.totalorder 2, %s40
      // Predicated region
      $region177: #{network_forward.1} parent=5 // pred_check
        %p7698 = pneg %p7697
      $region178: #{network_forward.1} parent=5 // pred_check_branch
        %7700 = sbr.rel (%p7698) target = $region180
      $region179: #{network_forward.1} parent=5 // pred_region
        %s7701 = ssub.s32 %s40, 2
        // Predicated region
        $region181: #{network_forward.1} parent=179 // pred_check
          %p7702 = pneg %p636
        $region182: #{network_forward.1} parent=179 // pred_check_branch
          %7704 = sbr.rel (%p7702) target = $region184
        $region183: #{network_forward.1} parent=179 // pred_region
          %p7705 = scmp.lt.s32.totalorder %s46, 2
          %s7706 = scalar_select %p7705, %s46, 2
          %s7707 = smul.addr %s7706, 4
          %s7708 = smul.addr %s7707, 8
          %s7709 = scalar_lea.vmem %s27, %s7708
        $region184: #{network_forward.1} parent=179 // pred_fallthru
          _
        // Predicated region
        $region185: #{network_forward.1} parent=179 // pred_check
          %p7710 = pneg %p662
        $region186: #{network_forward.1} parent=179 // pred_check_branch
          %7712 = sbr.rel (%p7710) target = $region188
        $region187: #{network_forward.1} parent=179 // pred_region
          %p7713 = scmp.lt.s32.totalorder %s46, 2
          %s7714 = scalar_select %p7713, %s46, 2
          %s7715 = smul.addr %s7714, 4
          %s7716 = smul.addr %s7715, 8
          %s7717 = scalar_lea.vmem %s28, %s7716
        $region188: #{network_forward.1} parent=179 // pred_fallthru
          _
      $region180: #{network_forward.1} parent=5 // pred_fallthru
        _
    $region6: #{network_forward.1} parent=1 // loop_footer
      %s44 = sadd.s32 1, %s40
    $region7: #{network_forward.1} parent=1 // loop_footer_branch
      %39 = sbr.rel target = $region3
    $region8: #{network_forward.1} parent=1 // loop_exit
      _
    %7718 = vsyncpa [#allocation4], 1
    %s7719 = scalar_lea.sflag [#allocation4], 1
    %7720 = vsyncpa %s7719, 1
    %7721 = vsyncpa [#allocation6], 1
    %7722 = vsyncpa [#allocation9], 1
    %7723 = vsyncpa [#allocation12], 1
    %7724 = vsyncpa [#allocation15], 1

</llo_original>
